<compile_context>
chip_gen: v6e
topology: v6e:2x2x1
jax: 0.10.0
libtpu: 0.0.40
codegen_flags: <defaults>
</compile_context>

<pallas_src>
import functools

import jax
import jax.numpy as jnp
import jax.scipy.linalg
from jax.experimental import pallas as pl
from jax.experimental.pallas import tpu as pltpu

FILTER_SIZE = 512
_VMEM_LIMIT = 32 * 1024 * 1024  # safe on v5e/v6e/v7x


def _round_up(x, m):
    return ((x + m - 1) // m) * m


# --------------------------------------------------------------------------
# Kernel 1: per-channel sum / sum-of-squares reduction (ActNorm statistics).
# Grid over P tiles, accumulator output (P3 pattern), "arbitrary" semantics.
# --------------------------------------------------------------------------
def _stats_kernel(x_ref, sum_ref, sq_ref):
    @pl.when(pl.program_id(0) == 0)
    def _():
        sum_ref[...] = jnp.zeros_like(sum_ref)
        sq_ref[...] = jnp.zeros_like(sq_ref)

    x = x_ref[...]                                    # (TILE_P, C) f32
    sum_ref[...] += jnp.sum(x, axis=0, keepdims=True)
    sq_ref[...] += jnp.sum(x * x, axis=0, keepdims=True)


def channel_stats(x_flat, tile_p):
    p_pad, c = x_flat.shape
    return pl.pallas_call(
        _stats_kernel,
        out_shape=(jax.ShapeDtypeStruct((1, c), jnp.float32),
                   jax.ShapeDtypeStruct((1, c), jnp.float32)),
        grid=(p_pad // tile_p,),
        in_specs=[pl.BlockSpec((tile_p, c), lambda i: (i, 0))],
        out_specs=(pl.BlockSpec((1, c), lambda i: (0, 0)),
                   pl.BlockSpec((1, c), lambda i: (0, 0))),
        compiler_params=pltpu.CompilerParams(
            dimension_semantics=("arbitrary",),
            vmem_limit_bytes=_VMEM_LIMIT),
    )(x_flat)


# --------------------------------------------------------------------------
# Kernel 2: fused ActNorm + InvConv2dLU as a single 1x1 conv:  out = x @ W' + b'
# (ActNorm's per-channel affine folded into W', b' in plain JAX, exactly.)
# --------------------------------------------------------------------------
def _matmul_bias_kernel(x_ref, w_ref, b_ref, o_ref):
    o_ref[...] = (jnp.dot(x_ref[...], w_ref[...],
                          preferred_element_type=jnp.float32)
                  + b_ref[...]).astype(o_ref.dtype)


def actnorm_invconv(x_flat, w_eff, b_eff, tile_p):
    p_pad, c = x_flat.shape
    return pl.pallas_call(
        _matmul_bias_kernel,
        out_shape=jax.ShapeDtypeStruct((p_pad, c), jnp.float32),
        grid=(p_pad // tile_p,),
        in_specs=[pl.BlockSpec((tile_p, c), lambda i: (i, 0)),
                  pl.BlockSpec((c, c), lambda i: (0, 0)),
                  pl.BlockSpec((1, c), lambda i: (0, 0))],
        out_specs=pl.BlockSpec((tile_p, c), lambda i: (i, 0)),
        compiler_params=pltpu.CompilerParams(
            dimension_semantics=("parallel",),
            vmem_limit_bytes=_VMEM_LIMIT),
    )(x_flat, w_eff, b_eff)


# --------------------------------------------------------------------------
# Kernel 3: coupling net[0] (3x3, Cin=C/2 folded to one K=9*Cin contraction) + ReLU
#           fused with net[2] (1x1 fs->fs) + ReLU.  bf16 operands, f32 accumulation.
#           h1 never leaves VMEM; h2 is written lane-dense (width fs) in bf16.
# --------------------------------------------------------------------------
def _coupling_net12_kernel(xs_ref, w1_ref, b1_ref, w2_ref, b2_ref, o_ref):
    h1 = jnp.dot(xs_ref[...], w1_ref[...], preferred_element_type=jnp.float32)
    h1 = jnp.maximum(h1 + b1_ref[...], 0.0)
    h2 = jnp.dot(h1.astype(jnp.bfloat16), w2_ref[...],
                 preferred_element_type=jnp.float32)
    h2 = jnp.maximum(h2 + b2_ref[...], 0.0)
    o_ref[...] = h2.astype(o_ref.dtype)


def coupling_net12(xs, w1f, b1, w2m, b2, tile_p):
    p_pad, k = xs.shape
    fs = w1f.shape[1]
    return pl.pallas_call(
        _coupling_net12_kernel,
        out_shape=jax.ShapeDtypeStruct((p_pad, fs), jnp.bfloat16),
        grid=(p_pad // tile_p,),
        in_specs=[pl.BlockSpec((tile_p, k), lambda i: (i, 0)),
                  pl.BlockSpec((k, fs), lambda i: (0, 0)),
                  pl.BlockSpec((1, fs), lambda i: (0, 0)),
                  pl.BlockSpec((fs, fs), lambda i: (0, 0)),
                  pl.BlockSpec((1, fs), lambda i: (0, 0))],
        out_specs=pl.BlockSpec((tile_p, fs), lambda i: (i, 0)),
        compiler_params=pltpu.CompilerParams(
            dimension_semantics=("parallel",),
            vmem_limit_bytes=_VMEM_LIMIT),
    )(xs, w1f, b1, w2m, b2)


# --------------------------------------------------------------------------
# Kernel 4: ZeroConv2d (3x3 over the value-1-padded h2) fused with the affine
# coupling epilogue.  The padded h2 stays in HBM (memory_space=pl.ANY); a halo
# row tile is manually DMA'd with double buffering, and the 9 shifted windows
# are formed in VMEM (no im2col in HBM).
# --------------------------------------------------------------------------
def _zeroconv_couple_kernel(xab_ref, w3_ref, b3_ref, mult_ref, h2_hbm,
                            o_ref, halo_ref, sem_ref,
                            *, tile_h, width, half, n_h_tiles):
    n = pl.program_id(0)
    ht = pl.program_id(1)
    th = tile_h

    def halo_copy(h_tile, slot):
        return pltpu.make_async_copy(
            h2_hbm.at[n, pl.ds(h_tile * th, th + 2)],
            halo_ref.at[slot],
            sem_ref.at[slot])

    slot = ht % 2

    # Prime the first tile of this image, wait for the current tile, and
    # prefetch the next tile into the other buffer (manual double buffering).
    @pl.when(ht == 0)
    def _():
        halo_copy(0, 0).start()

    halo_copy(ht, slot).wait()

    @pl.when(ht + 1 < n_h_tiles)
    def _():
        halo_copy(ht + 1, 1 - slot).start()

    cout = o_ref.shape[-1]
    rows = th * width

    halo = halo_ref[slot]                               # (th+2, Wp, fs) bf16
    acc = jnp.zeros((rows, cout), jnp.float32)
    for dy in range(3):
        for dx in range(3):
            win = halo[dy:dy + th, dx:dx + width, :].reshape(rows, -1)
            acc = acc + jnp.dot(win, w3_ref[dy * 3 + dx],
                                preferred_element_type=jnp.float32)

    net = (acc + b3_ref[...]) * mult_ref[...]           # (rows, C)
    log_s = net[:, :half]
    t = net[:, half:]
    s = 1.0 / (1.0 + jnp.exp(-(log_s + 2.0)))           # sigmoid(log_s + 2)

    xab = xab_ref[0].reshape(rows, cout)
    in_a = xab[:, :half]
    in_b = xab[:, half:]
    out_b = (in_b + t) * s
    o_ref[0] = jnp.concatenate([in_a, out_b], axis=-1).reshape(th, width, cout)


def zeroconv_couple(xab_nhwc, h2_pad, w3_taps, b3, mult, tile_h):
    n, h, w, c = xab_nhwc.shape
    half = c // 2
    fs = w3_taps.shape[1]
    wp = h2_pad.shape[2]
    n_h_tiles = h // tile_h
    kern = functools.partial(_zeroconv_couple_kernel, tile_h=tile_h,
                             width=w, half=half, n_h_tiles=n_h_tiles)
    return pl.pallas_call(
        kern,
        out_shape=jax.ShapeDtypeStruct((n, h, w, c), jnp.float32),
        grid=(n, n_h_tiles),
        in_specs=[pl.BlockSpec((1, tile_h, w, c), lambda ni, hi: (ni, hi, 0, 0)),
                  pl.BlockSpec((9, fs, c), lambda ni, hi: (0, 0, 0)),
                  pl.BlockSpec((1, c), lambda ni, hi: (0, 0)),
                  pl.BlockSpec((1, c), lambda ni, hi: (0, 0)),
                  pl.BlockSpec(memory_space=pl.ANY)],
        out_specs=pl.BlockSpec((1, tile_h, w, c), lambda ni, hi: (ni, hi, 0, 0)),
        scratch_shapes=[pltpu.VMEM((2, tile_h + 2, wp, fs), jnp.bfloat16),
                        pltpu.SemaphoreType.DMA((2,))],
        compiler_params=pltpu.CompilerParams(
            dimension_semantics=("parallel", "arbitrary"),
            vmem_limit_bytes=_VMEM_LIMIT),
    )(xab_nhwc, w3_taps, b3, mult, h2_pad)


# --------------------------------------------------------------------------
# Plain-JAX glue: parameter init, weight folding, im2col for the tiny-Cin conv.
# --------------------------------------------------------------------------
def _im2col_fold(x_pad, h, w):
    # x_pad: (N, H+2, W+2, Cin) -> (N*H*W, 9*Cin), tap-major / channel-minor.
    n = x_pad.shape[0]
    cin = x_pad.shape[-1]
    cols = []
    for dy in range(3):
        for dx in range(3):
            cols.append(x_pad[:, dy:dy + h, dx:dx + w, :])
    return jnp.stack(cols, axis=3).reshape(n * h * w, 9 * cin)


def init_flow_params(key, in_channel, filter_size=FILTER_SIZE):
    k_inv, k_w1, k_w2 = jax.random.split(key, 3)
    params = {}
    # InvConv2dLU init (QR -> LU decomposition of a random matrix)
    w0 = jax.random.normal(k_inv, (in_channel, in_channel), dtype=jnp.float32)
    q, _ = jnp.linalg.qr(w0)
    p_mat, l_mat, u_mat = jax.scipy.linalg.lu(q)
    w_s = jnp.diag(u_mat)
    params["w_p"] = p_mat
    params["w_l"] = l_mat
    params["w_u"] = jnp.triu(u_mat, 1)
    params["s_sign"] = jnp.sign(w_s)
    params["logabs_w_s"] = jnp.log(jnp.abs(w_s))
    params["u_mask"] = jnp.triu(jnp.ones((in_channel, in_channel), jnp.float32), 1)
    params["l_mask"] = params["u_mask"].T
    params["l_eye"] = jnp.eye(in_channel, dtype=jnp.float32)
    # Coupling net: conv3x3(C/2->fs), conv1x1(fs->fs), ZeroConv2d(fs->C)
    half = in_channel // 2
    params["w1"] = 0.05 * jax.random.normal(k_w1, (filter_size, half, 3, 3), jnp.float32)
    params["b1"] = jnp.zeros((filter_size,), jnp.float32)
    params["w2"] = 0.05 * jax.random.normal(k_w2, (filter_size, filter_size, 1, 1), jnp.float32)
    params["b2"] = jnp.zeros((filter_size,), jnp.float32)
    params["w3"] = jnp.zeros((in_channel, filter_size, 3, 3), jnp.float32)
    params["b3"] = jnp.zeros((in_channel,), jnp.float32)
    params["zc_scale"] = jnp.zeros((in_channel,), jnp.float32)
    return params


def calc_invconv_weight(p):
    return p["w_p"] @ (p["w_l"] * p["l_mask"] + p["l_eye"]) @ (
        p["w_u"] * p["u_mask"]
        + jnp.diag(p["s_sign"] * jnp.exp(p["logabs_w_s"])))


# --------------------------------------------------------------------------
# Flow.forward  (actnorm -> invconv(LU) -> affine coupling with sigmoid)
# --------------------------------------------------------------------------
def flow_forward(x_nchw, params):
    N, C, H, W = x_nchw.shape
    half = C // 2
    fs = params["w1"].shape[0]
    P = N * H * W

    x = jnp.transpose(x_nchw, (0, 2, 3, 1)).astype(jnp.float32)   # NHWC
    x_flat = x.reshape(P, C)

    tile_p = 512 if P >= 4096 else 256
    p_pad = _round_up(P, tile_p)
    x_flat_p = jnp.pad(x_flat, ((0, p_pad - P), (0, 0)))

    # --- ActNorm first-forward statistics (Pallas reduction) ----------------
    ch_sum, ch_sq = channel_stats(x_flat_p, tile_p)
    mean = ch_sum[0] / P
    var = (ch_sq[0] - P * mean * mean) / (P - 1)       # unbiased, matches torch.std
    std = jnp.sqrt(var)
    scale = 1.0 / (std + 1e-6)
    loc = -mean

    # --- Fold ActNorm into the InvConv2dLU weight (exact affine algebra) ----
    w_inv = calc_invconv_weight(params)                # (Cout, Cin)
    w_eff = jnp.transpose(w_inv) * scale[:, None]      # (Cin, Cout) for x @ w_eff
    b_eff = (scale * loc)[None, :] @ jnp.transpose(w_inv)   # (1, Cout)

    xab_flat = actnorm_invconv(x_flat_p, w_eff, b_eff, tile_p)[:P]
    xab = xab_flat.reshape(N, H, W, C)

    # --- Coupling net[0] (3x3, small Cin, taps folded) + net[2] (1x1), bf16 -
    in_a = xab[..., :half]
    a_pad = jnp.pad(in_a, ((0, 0), (1, 1), (1, 1), (0, 0)))
    xs = _im2col_fold(a_pad, H, W)                     # (P, 9*half)  (tiny Cin)
    xs = jnp.pad(xs, ((0, p_pad - P), (0, 0))).astype(jnp.bfloat16)

    w1f = jnp.transpose(params["w1"], (2, 3, 1, 0)).reshape(9 * half, fs)
    w2m = jnp.transpose(params["w2"][:, :, 0, 0])      # (fs_in, fs_out)
    h2 = coupling_net12(xs, w1f.astype(jnp.bfloat16), params["b1"][None],
                        w2m.astype(jnp.bfloat16), params["b2"][None], tile_p)
    h2 = h2[:P].reshape(N, H, W, fs)

    # --- ZeroConv2d (pad value 1) + coupling epilogue, halo-tiled -----------
    wp = _round_up(W + 2, 8)                           # DMA-friendly padded width
    h2_pad = jnp.pad(h2, ((0, 0), (1, 1), (1, wp - W - 1), (0, 0)),
                     constant_values=1.0)
    w3_taps = jnp.transpose(params["w3"], (2, 3, 1, 0)).reshape(9, fs, C)
    b3 = params["b3"][None]
    mult = jnp.exp(params["zc_scale"] * 3.0)[None]

    tile_h = 8
    while H % tile_h != 0:
        tile_h //= 2

    out_nhwc = zeroconv_couple(xab, h2_pad, w3_taps.astype(jnp.bfloat16),
                               b3, mult, tile_h)
    return jnp.transpose(out_nhwc, (0, 3, 1, 2))       # back to NCHW


# --------------------------------------------------------------------------
# Pure-JAX reference (mirrors the PyTorch math) for a numerical self-check.
# --------------------------------------------------------------------------
def flow_forward_ref(x_nchw, params):
    N, C, H, W = x_nchw.shape
    half = C // 2
    x = x_nchw.astype(jnp.float32)
    # ActNorm init
    flat = jnp.transpose(x, (1, 0, 2, 3)).reshape(C, -1)
    mean = jnp.mean(flat, axis=1)
    std = jnp.std(flat, axis=1, ddof=1)
    x = (1.0 / (std + 1e-6)).reshape(1, C, 1, 1) * (x - mean.reshape(1, C, 1, 1))
    # InvConv2dLU
    w_inv = calc_invconv_weight(params)
    x = jnp.einsum("nchw,oc->nohw", x, w_inv,
                   precision=jax.lax.Precision.HIGHEST)
    # Coupling
    in_a, in_b = x[:, :half], x[:, half:]

    def conv3x3(inp, w, b, pad_val):
        inp_p = jnp.pad(inp, ((0, 0), (0, 0), (1, 1), (1, 1)),
                        constant_values=pad_val)
        out = jax.lax.conv_general_dilated(
            inp_p, w, (1, 1), "VALID",
            dimension_numbers=("NCHW", "OIHW", "NCHW"),
            precision=jax.lax.Precision.HIGHEST)
        return out + b.reshape(1, -1, 1, 1)

    h = jax.nn.relu(conv3x3(in_a, params["w1"], params["b1"], 0.0))
    h = jax.nn.relu(jnp.einsum("nchw,oc->nohw", h, params["w2"][:, :, 0, 0],
                               precision=jax.lax.Precision.HIGHEST)
                    + params["b2"].reshape(1, -1, 1, 1))
    net_out = conv3x3(h, params["w3"], params["b3"], 1.0)
    net_out = net_out * jnp.exp(params["zc_scale"].reshape(1, -1, 1, 1) * 3.0)
    log_s, t = net_out[:, :half], net_out[:, half:]
    s = jax.nn.sigmoid(log_s + 2.0)
    out_b = (in_b + t) * s
    return jnp.concatenate([in_a, out_b], axis=1)


if __name__ == "__main__":
    key = jax.random.PRNGKey(0)
    k_x, k_p = jax.random.split(key)
    N, C, H, W = 2, 4, 16, 16
    x = jax.random.normal(k_x, (N, C, H, W), dtype=jnp.float32)
    params = init_flow_params(k_p, C)

    out = jax.jit(flow_forward)(x, params)
    out = jax.block_until_ready(out)

    ref = flow_forward_ref(x, params)
    assert out.shape == (N, C, H, W), out.shape
    max_err = float(jnp.max(jnp.abs(out - ref)))
    if max_err > 1e-3:
        raise AssertionError(f"kernel mismatch vs reference, max abs err={max_err}")
    print("KERNEL_OK")
</pallas_src>

<mosaic_0001>
module attributes {stable_mosaic.version = 11 : i64} {
  func.func @_stats_kernel(%arg0: i32, %arg1: memref<256x4xf32, #tpu.memory_space<vmem>>, %arg2: memref<1x4xf32, #tpu.memory_space<vmem>>, %arg3: memref<1x4xf32, #tpu.memory_space<vmem>>) attributes {dimension_semantics = [#tpu.dimension_semantics<arbitrary>], iteration_bounds = array<i64: 2>, scalar_prefetch = 0 : i64, scratch_operands = 0 : i64, tpu.core_type = #tpu.core_type<tc>, window_params = [{transform_indices = @transform_0, window_bounds = array<i64: 256, 4>}, {pipeline_mode = #tpu.pipeline_mode<synchronous>, transform_indices = @transform_1, window_bounds = array<i64: 1, 4>}, {pipeline_mode = #tpu.pipeline_mode<synchronous>, transform_indices = @transform_2, window_bounds = array<i64: 1, 4>}]} {
    %c0_i32 = arith.constant 0 : i32
    %0 = arith.cmpi eq, %arg0, %c0_i32 : i32
    %1 = arith.extui %0 : i1 to i32
    %c0_i32_0 = arith.constant 0 : i32
    %2 = arith.cmpi ne, %1, %c0_i32_0 : i32
    scf.if %2 {
      %cst_11 = arith.constant 0.000000e+00 : f32
      %15 = vector.broadcast %cst_11 : f32 to vector<1x4xf32>
      %c0_12 = arith.constant 0 : index
      %c0_13 = arith.constant 0 : index
      %16 = vector.load %arg2[%c0_12, %c0_13] : memref<1x4xf32, #tpu.memory_space<vmem>>, vector<1x4xf32>
      tpu.vector_store %arg2[%c0_12, %c0_13], %15 {strides = array<i32>} : memref<1x4xf32, #tpu.memory_space<vmem>>, vector<1x4xf32>,
      %cst_14 = arith.constant 0.000000e+00 : f32
      %17 = vector.broadcast %cst_14 : f32 to vector<1x4xf32>
      %c0_15 = arith.constant 0 : index
      %c0_16 = arith.constant 0 : index
      %18 = vector.load %arg3[%c0_15, %c0_16] : memref<1x4xf32, #tpu.memory_space<vmem>>, vector<1x4xf32>
      tpu.vector_store %arg3[%c0_15, %c0_16], %17 {strides = array<i32>} : memref<1x4xf32, #tpu.memory_space<vmem>>, vector<1x4xf32>,
    } else {
    }
    %c0 = arith.constant 0 : index
    %c0_1 = arith.constant 0 : index
    %3 = vector.load %arg1[%c0, %c0_1] : memref<256x4xf32, #tpu.memory_space<vmem>>, vector<256x4xf32>
    %c0_2 = arith.constant 0 : index
    %c0_3 = arith.constant 0 : index
    %4 = vector.load %arg2[%c0_2, %c0_3] : memref<1x4xf32, #tpu.memory_space<vmem>>, vector<1x4xf32>
    %cst = arith.constant dense<0.000000e+00> : vector<4xf32>
    %5 = vector.multi_reduction <add>, %3, %cst [0] : vector<256x4xf32> to vector<4xf32>
    %6 = vector.shape_cast %5 : vector<4xf32> to vector<1x4xf32>
    %7 = arith.addf %4, %6 : vector<1x4xf32>
    %c0_4 = arith.constant 0 : index
    %c0_5 = arith.constant 0 : index
    %8 = vector.load %arg2[%c0_4, %c0_5] : memref<1x4xf32, #tpu.memory_space<vmem>>, vector<1x4xf32>
    tpu.vector_store %arg2[%c0_4, %c0_5], %7 {strides = array<i32>} : memref<1x4xf32, #tpu.memory_space<vmem>>, vector<1x4xf32>,
    %c0_6 = arith.constant 0 : index
    %c0_7 = arith.constant 0 : index
    %9 = vector.load %arg3[%c0_6, %c0_7] : memref<1x4xf32, #tpu.memory_space<vmem>>, vector<1x4xf32>
    %10 = arith.mulf %3, %3 : vector<256x4xf32>
    %cst_8 = arith.constant dense<0.000000e+00> : vector<4xf32>
    %11 = vector.multi_reduction <add>, %10, %cst_8 [0] : vector<256x4xf32> to vector<4xf32>
    %12 = vector.shape_cast %11 : vector<4xf32> to vector<1x4xf32>
    %13 = arith.addf %9, %12 : vector<1x4xf32>
    %c0_9 = arith.constant 0 : index
    %c0_10 = arith.constant 0 : index
    %14 = vector.load %arg3[%c0_9, %c0_10] : memref<1x4xf32, #tpu.memory_space<vmem>>, vector<1x4xf32>
    tpu.vector_store %arg3[%c0_9, %c0_10], %13 {strides = array<i32>} : memref<1x4xf32, #tpu.memory_space<vmem>>, vector<1x4xf32>,
    return
  }
  func.func @transform_0(%arg0: i32) -> (i32, i32) {
    %c0_i32 = arith.constant 0 : i32
    %c0_i32_0 = arith.constant 0 : i32
    return %arg0, %c0_i32 : i32, i32
  }
  func.func @transform_1(%arg0: i32) -> (i32, i32) {
    %c0_i32 = arith.constant 0 : i32
    %c0_i32_0 = arith.constant 0 : i32
    %c0_i32_1 = arith.constant 0 : i32
    return %c0_i32, %c0_i32_0 : i32, i32
  }
  func.func @transform_2(%arg0: i32) -> (i32, i32) {
    %c0_i32 = arith.constant 0 : i32
    %c0_i32_0 = arith.constant 0 : i32
    %c0_i32_1 = arith.constant 0 : i32
    return %c0_i32, %c0_i32_0 : i32, i32
  }
}

module attributes {stable_mosaic.version = 11 : i64} {
  func.func @_matmul_bias_kernel(%arg0: i32, %arg1: memref<256x4xf32, #tpu.memory_space<vmem>>, %arg2: memref<4x4xf32, #tpu.memory_space<vmem>>, %arg3: memref<1x4xf32, #tpu.memory_space<vmem>>, %arg4: memref<256x4xf32, #tpu.memory_space<vmem>>) attributes {dimension_semantics = [#tpu.dimension_semantics<parallel>], iteration_bounds = array<i64: 2>, scalar_prefetch = 0 : i64, scratch_operands = 0 : i64, tpu.core_type = #tpu.core_type<tc>, window_params = [{transform_indices = @transform_0, window_bounds = array<i64: 256, 4>}, {pipeline_mode = #tpu.pipeline_mode<synchronous>, transform_indices = @transform_1, window_bounds = array<i64: 4, 4>}, {pipeline_mode = #tpu.pipeline_mode<synchronous>, transform_indices = @transform_2, window_bounds = array<i64: 1, 4>}, {transform_indices = @transform_3, window_bounds = array<i64: 256, 4>}]} {
    %c0 = arith.constant 0 : index
    %c0_0 = arith.constant 0 : index
    %0 = vector.load %arg1[%c0, %c0_0] : memref<256x4xf32, #tpu.memory_space<vmem>>, vector<256x4xf32>
    %c0_1 = arith.constant 0 : index
    %c0_2 = arith.constant 0 : index
    %1 = vector.load %arg2[%c0_1, %c0_2] : memref<4x4xf32, #tpu.memory_space<vmem>>, vector<4x4xf32>
    %cst = arith.constant dense<0.000000e+00> : vector<256x4xf32>
    %2 = tpu.matmul %0, %1, %cst {dimension_numbers = #tpu.dot_dimension_numbers<[1], [0], [0], [1], [0, 0, 1, 1], [], []>} : vector<256x4xf32>, vector<4x4xf32>, vector<256x4xf32> -> vector<256x4xf32>
    %c0_3 = arith.constant 0 : index
    %c0_4 = arith.constant 0 : index
    %3 = vector.load %arg3[%c0_3, %c0_4] : memref<1x4xf32, #tpu.memory_space<vmem>>, vector<1x4xf32>
    %4 = vector.broadcast %3 : vector<1x4xf32> to vector<256x4xf32>
    %5 = arith.addf %2, %4 : vector<256x4xf32>
    %c0_5 = arith.constant 0 : index
    %c0_6 = arith.constant 0 : index
    %6 = vector.load %arg4[%c0_5, %c0_6] : memref<256x4xf32, #tpu.memory_space<vmem>>, vector<256x4xf32>
    tpu.vector_store %arg4[%c0_5, %c0_6], %5 {strides = array<i32>} : memref<256x4xf32, #tpu.memory_space<vmem>>, vector<256x4xf32>,
    return
  }
  func.func @transform_0(%arg0: i32) -> (i32, i32) {
    %c0_i32 = arith.constant 0 : i32
    %c0_i32_0 = arith.constant 0 : i32
    return %arg0, %c0_i32 : i32, i32
  }
  func.func @transform_1(%arg0: i32) -> (i32, i32) {
    %c0_i32 = arith.constant 0 : i32
    %c0_i32_0 = arith.constant 0 : i32
    %c0_i32_1 = arith.constant 0 : i32
    return %c0_i32, %c0_i32_0 : i32, i32
  }
  func.func @transform_2(%arg0: i32) -> (i32, i32) {
    %c0_i32 = arith.constant 0 : i32
    %c0_i32_0 = arith.constant 0 : i32
    %c0_i32_1 = arith.constant 0 : i32
    return %c0_i32, %c0_i32_0 : i32, i32
  }
  func.func @transform_3(%arg0: i32) -> (i32, i32) {
    %c0_i32 = arith.constant 0 : i32
    %c0_i32_0 = arith.constant 0 : i32
    return %arg0, %c0_i32 : i32, i32
  }
}

module attributes {stable_mosaic.version = 11 : i64} {
  func.func @_coupling_net12_kernel(%arg0: i32, %arg1: memref<256x18xbf16, #tpu.memory_space<vmem>>, %arg2: memref<18x512xbf16, #tpu.memory_space<vmem>>, %arg3: memref<1x512xf32, #tpu.memory_space<vmem>>, %arg4: memref<512x512xbf16, #tpu.memory_space<vmem>>, %arg5: memref<1x512xf32, #tpu.memory_space<vmem>>, %arg6: memref<256x512xbf16, #tpu.memory_space<vmem>>) attributes {dimension_semantics = [#tpu.dimension_semantics<parallel>], iteration_bounds = array<i64: 2>, scalar_prefetch = 0 : i64, scratch_operands = 0 : i64, tpu.core_type = #tpu.core_type<tc>, window_params = [{transform_indices = @transform_0, window_bounds = array<i64: 256, 18>}, {pipeline_mode = #tpu.pipeline_mode<synchronous>, transform_indices = @transform_1, window_bounds = array<i64: 18, 512>}, {pipeline_mode = #tpu.pipeline_mode<synchronous>, transform_indices = @transform_2, window_bounds = array<i64: 1, 512>}, {pipeline_mode = #tpu.pipeline_mode<synchronous>, transform_indices = @transform_3, window_bounds = array<i64: 512, 512>}, {pipeline_mode = #tpu.pipeline_mode<synchronous>, transform_indices = @transform_4, window_bounds = array<i64: 1, 512>}, {transform_indices = @transform_5, window_bounds = array<i64: 256, 512>}]} {
    %c0 = arith.constant 0 : index
    %c0_0 = arith.constant 0 : index
    %0 = vector.load %arg1[%c0, %c0_0] : memref<256x18xbf16, #tpu.memory_space<vmem>>, vector<256x18xbf16>
    %c0_1 = arith.constant 0 : index
    %c0_2 = arith.constant 0 : index
    %1 = vector.load %arg2[%c0_1, %c0_2] : memref<18x512xbf16, #tpu.memory_space<vmem>>, vector<18x512xbf16>
    %cst = arith.constant dense<0.000000e+00> : vector<256x512xf32>
    %2 = tpu.matmul %0, %1, %cst {dimension_numbers = #tpu.dot_dimension_numbers<[1], [0], [0], [1], [0, 0, 1, 1], [], []>} : vector<256x18xbf16>, vector<18x512xbf16>, vector<256x512xf32> -> vector<256x512xf32>
    %c0_3 = arith.constant 0 : index
    %c0_4 = arith.constant 0 : index
    %3 = vector.load %arg3[%c0_3, %c0_4] : memref<1x512xf32, #tpu.memory_space<vmem>>, vector<1x512xf32>
    %4 = vector.broadcast %3 : vector<1x512xf32> to vector<256x512xf32>
    %5 = arith.addf %2, %4 : vector<256x512xf32>
    %cst_5 = arith.constant 0.000000e+00 : f32
    %6 = vector.broadcast %cst_5 : f32 to vector<256x512xf32>
    %7 = arith.maximumf %5, %6 : vector<256x512xf32>
    %8 = arith.truncf %7 : vector<256x512xf32> to vector<256x512xbf16>
    %c0_6 = arith.constant 0 : index
    %c0_7 = arith.constant 0 : index
    %9 = vector.load %arg4[%c0_6, %c0_7] : memref<512x512xbf16, #tpu.memory_space<vmem>>, vector<512x512xbf16>
    %cst_8 = arith.constant dense<0.000000e+00> : vector<256x512xf32>
    %10 = tpu.matmul %8, %9, %cst_8 {dimension_numbers = #tpu.dot_dimension_numbers<[1], [0], [0], [1], [0, 0, 1, 1], [], []>} : vector<256x512xbf16>, vector<512x512xbf16>, vector<256x512xf32> -> vector<256x512xf32>
    %c0_9 = arith.constant 0 : index
    %c0_10 = arith.constant 0 : index
    %11 = vector.load %arg5[%c0_9, %c0_10] : memref<1x512xf32, #tpu.memory_space<vmem>>, vector<1x512xf32>
    %12 = vector.broadcast %11 : vector<1x512xf32> to vector<256x512xf32>
    %13 = arith.addf %10, %12 : vector<256x512xf32>
    %cst_11 = arith.constant 0.000000e+00 : f32
    %14 = vector.broadcast %cst_11 : f32 to vector<256x512xf32>
    %15 = arith.maximumf %13, %14 : vector<256x512xf32>
    %16 = arith.truncf %15 : vector<256x512xf32> to vector<256x512xbf16>
    %c0_12 = arith.constant 0 : index
    %c0_13 = arith.constant 0 : index
    %17 = vector.load %arg6[%c0_12, %c0_13] : memref<256x512xbf16, #tpu.memory_space<vmem>>, vector<256x512xbf16>
    tpu.vector_store %arg6[%c0_12, %c0_13], %16 {strides = array<i32>} : memref<256x512xbf16, #tpu.memory_space<vmem>>, vector<256x512xbf16>,
    return
  }
  func.func @transform_0(%arg0: i32) -> (i32, i32) {
    %c0_i32 = arith.constant 0 : i32
    %c0_i32_0 = arith.constant 0 : i32
    return %arg0, %c0_i32 : i32, i32
  }
  func.func @transform_1(%arg0: i32) -> (i32, i32) {
    %c0_i32 = arith.constant 0 : i32
    %c0_i32_0 = arith.constant 0 : i32
    %c0_i32_1 = arith.constant 0 : i32
    return %c0_i32, %c0_i32_0 : i32, i32
  }
  func.func @transform_2(%arg0: i32) -> (i32, i32) {
    %c0_i32 = arith.constant 0 : i32
    %c0_i32_0 = arith.constant 0 : i32
    %c0_i32_1 = arith.constant 0 : i32
    return %c0_i32, %c0_i32_0 : i32, i32
  }
  func.func @transform_3(%arg0: i32) -> (i32, i32) {
    %c0_i32 = arith.constant 0 : i32
    %c0_i32_0 = arith.constant 0 : i32
    %c0_i32_1 = arith.constant 0 : i32
    return %c0_i32, %c0_i32_0 : i32, i32
  }
  func.func @transform_4(%arg0: i32) -> (i32, i32) {
    %c0_i32 = arith.constant 0 : i32
    %c0_i32_0 = arith.constant 0 : i32
    %c0_i32_1 = arith.constant 0 : i32
    return %c0_i32, %c0_i32_0 : i32, i32
  }
  func.func @transform_5(%arg0: i32) -> (i32, i32) {
    %c0_i32 = arith.constant 0 : i32
    %c0_i32_0 = arith.constant 0 : i32
    return %arg0, %c0_i32 : i32, i32
  }
}

module attributes {stable_mosaic.version = 11 : i64} {
  func.func @_zeroconv_couple_kernel(%arg0: i32, %arg1: i32, %arg2: memref<1x8x16x4xf32, #tpu.memory_space<vmem>>, %arg3: memref<9x512x4xbf16, #tpu.memory_space<vmem>>, %arg4: memref<1x4xf32, #tpu.memory_space<vmem>>, %arg5: memref<1x4xf32, #tpu.memory_space<vmem>>, %arg6: memref<2x18x24x512xbf16, #tpu.memory_space<any>>, %arg7: memref<1x8x16x4xf32, #tpu.memory_space<vmem>>, %arg8: memref<2x10x24x512xbf16, #tpu.memory_space<vmem>>, %arg9: memref<2x!tpu.dma_semaphore, #tpu.memory_space<semaphore_mem>>) attributes {dimension_semantics = [#tpu.dimension_semantics<parallel>, #tpu.dimension_semantics<arbitrary>], iteration_bounds = array<i64: 2, 2>, scalar_prefetch = 0 : i64, scratch_operands = 2 : i64, tpu.core_type = #tpu.core_type<tc>, window_params = [{transform_indices = @transform_0, window_bounds = array<i64: 1, 8, 16, 4>}, {pipeline_mode = #tpu.pipeline_mode<synchronous>, transform_indices = @transform_1, window_bounds = array<i64: 9, 512, 4>}, {pipeline_mode = #tpu.pipeline_mode<synchronous>, transform_indices = @transform_2, window_bounds = array<i64: 1, 4>}, {pipeline_mode = #tpu.pipeline_mode<synchronous>, transform_indices = @transform_3, window_bounds = array<i64: 1, 4>}, {}, {transform_indices = @transform_5, window_bounds = array<i64: 1, 8, 16, 4>}]} {
    %c2_i32 = arith.constant 2 : i32
    %c0_i32 = arith.constant 0 : i32
    %0 = arith.cmpi eq, %c2_i32, %c0_i32 : i32
    %c1_i32 = arith.constant 1 : i32
    %1 = arith.select %0, %c1_i32, %c2_i32 : i32
    %2 = arith.remsi %arg1, %1 : i32
    %c0_i32_0 = arith.constant 0 : i32
    %3 = arith.cmpi ne, %2, %c0_i32_0 : i32
    %c0_i32_1 = arith.constant 0 : i32
    %4 = arith.cmpi slt, %2, %c0_i32_1 : i32
    %c0_i32_2 = arith.constant 0 : i32
    %5 = arith.cmpi slt, %1, %c0_i32_2 : i32
    %6 = arith.xori %4, %5 : i1
    %7 = arith.andi %6, %3 : i1
    %8 = arith.addi %2, %1 : i32
    %9 = arith.select %7, %8, %2 : i32
    %c0_i32_3 = arith.constant 0 : i32
    %10 = arith.cmpi eq, %arg1, %c0_i32_3 : i32
    %11 = arith.extui %10 : i1 to i32
    %c0_i32_4 = arith.constant 0 : i32
    %12 = arith.cmpi ne, %11, %c0_i32_4 : i32
    scf.if %12 {
      %c0_i32_59 = arith.constant 0 : i32
      %c0_i32_60 = arith.constant 0 : i32
      %c0_i32_61 = arith.constant 0 : i32
      %c0_i32_62 = arith.constant 0 : i32
      %c0_i32_63 = arith.constant 0 : i32
      %111 = tpu.memref_slice %arg6[%arg0, %c0_i32_61, %c0_i32_62, %c0_i32_63] : memref<2x18x24x512xbf16, #tpu.memory_space<any>> -> memref<1x10x24x512xbf16, #tpu.memory_space<any>>
      %112 = tpu.memref_squeeze %111 : memref<1x10x24x512xbf16, #tpu.memory_space<any>> -> memref<10x24x512xbf16, #tpu.memory_space<any>>
      %c0_i32_64 = arith.constant 0 : i32
      %c0_i32_65 = arith.constant 0 : i32
      %c0_i32_66 = arith.constant 0 : i32
      %113 = tpu.memref_slice %arg8[%c0_i32_59, %c0_i32_64, %c0_i32_65, %c0_i32_66] : memref<2x10x24x512xbf16, #tpu.memory_space<vmem>> -> memref<1x10x24x512xbf16, #tpu.memory_space<vmem>>
      %114 = tpu.memref_squeeze %113 : memref<1x10x24x512xbf16, #tpu.memory_space<vmem>> -> memref<10x24x512xbf16, #tpu.memory_space<vmem>>
      %115 = tpu.memref_slice %arg9[%c0_i32_60] : memref<2x!tpu.dma_semaphore, #tpu.memory_space<semaphore_mem>> -> memref<1x!tpu.dma_semaphore, #tpu.memory_space<semaphore_mem>>
      %116 = tpu.memref_squeeze %115 : memref<1x!tpu.dma_semaphore, #tpu.memory_space<semaphore_mem>> -> memref<!tpu.dma_semaphore, #tpu.memory_space<semaphore_mem>>
      tpu.enqueue_dma source(%112 : memref<10x24x512xbf16, #tpu.memory_space<any>>) target(%114 : memref<10x24x512xbf16, #tpu.memory_space<vmem>>) target_semaphore(%116 : memref<!tpu.dma_semaphore, #tpu.memory_space<semaphore_mem>>)
    } else {
    }
    %c8_i32 = arith.constant 8 : i32
    %13 = arith.muli %arg1, %c8_i32 : i32
    %c0_i32_5 = arith.constant 0 : i32
    %c0_i32_6 = arith.constant 0 : i32
    %14 = tpu.memref_slice %arg6[%arg0, %13, %c0_i32_5, %c0_i32_6] : memref<2x18x24x512xbf16, #tpu.memory_space<any>> -> memref<1x10x24x512xbf16, #tpu.memory_space<any>>
    %15 = tpu.memref_squeeze %14 : memref<1x10x24x512xbf16, #tpu.memory_space<any>> -> memref<10x24x512xbf16, #tpu.memory_space<any>>
    %c0_i32_7 = arith.constant 0 : i32
    %c0_i32_8 = arith.constant 0 : i32
    %c0_i32_9 = arith.constant 0 : i32
    %16 = tpu.memref_slice %arg8[%9, %c0_i32_7, %c0_i32_8, %c0_i32_9] : memref<2x10x24x512xbf16, #tpu.memory_space<vmem>> -> memref<1x10x24x512xbf16, #tpu.memory_space<vmem>>
    %17 = tpu.memref_squeeze %16 : memref<1x10x24x512xbf16, #tpu.memory_space<vmem>> -> memref<10x24x512xbf16, #tpu.memory_space<vmem>>
    %18 = tpu.memref_slice %arg9[%9] : memref<2x!tpu.dma_semaphore, #tpu.memory_space<semaphore_mem>> -> memref<1x!tpu.dma_semaphore, #tpu.memory_space<semaphore_mem>>
    %19 = tpu.memref_squeeze %18 : memref<1x!tpu.dma_semaphore, #tpu.memory_space<semaphore_mem>> -> memref<!tpu.dma_semaphore, #tpu.memory_space<semaphore_mem>>
    tpu.wait_dma2 semaphore(%19 : memref<!tpu.dma_semaphore, #tpu.memory_space<semaphore_mem>>) src(%15 : memref<10x24x512xbf16, #tpu.memory_space<any>>) dst(%17 : memref<10x24x512xbf16, #tpu.memory_space<vmem>>)
    %c1_i32_10 = arith.constant 1 : i32
    %20 = arith.addi %arg1, %c1_i32_10 : i32
    %c2_i32_11 = arith.constant 2 : i32
    %21 = arith.cmpi slt, %20, %c2_i32_11 : i32
    %22 = arith.extui %21 : i1 to i32
    %c0_i32_12 = arith.constant 0 : i32
    %23 = arith.cmpi ne, %22, %c0_i32_12 : i32
    scf.if %23 {
      %c1_i32_59 = arith.constant 1 : i32
      %111 = arith.addi %arg1, %c1_i32_59 : i32
      %c1_i32_60 = arith.constant 1 : i32
      %112 = arith.subi %c1_i32_60, %9 : i32
      %c8_i32_61 = arith.constant 8 : i32
      %113 = arith.muli %111, %c8_i32_61 : i32
      %c0_i32_62 = arith.constant 0 : i32
      %c0_i32_63 = arith.constant 0 : i32
      %114 = tpu.memref_slice %arg6[%arg0, %113, %c0_i32_62, %c0_i32_63] : memref<2x18x24x512xbf16, #tpu.memory_space<any>> -> memref<1x10x24x512xbf16, #tpu.memory_space<any>>
      %115 = tpu.memref_squeeze %114 : memref<1x10x24x512xbf16, #tpu.memory_space<any>> -> memref<10x24x512xbf16, #tpu.memory_space<any>>
      %c0_i32_64 = arith.constant 0 : i32
      %c0_i32_65 = arith.constant 0 : i32
      %c0_i32_66 = arith.constant 0 : i32
      %116 = tpu.memref_slice %arg8[%112, %c0_i32_64, %c0_i32_65, %c0_i32_66] : memref<2x10x24x512xbf16, #tpu.memory_space<vmem>> -> memref<1x10x24x512xbf16, #tpu.memory_space<vmem>>
      %117 = tpu.memref_squeeze %116 : memref<1x10x24x512xbf16, #tpu.memory_space<vmem>> -> memref<10x24x512xbf16, #tpu.memory_space<vmem>>
      %118 = tpu.memref_slice %arg9[%112] : memref<2x!tpu.dma_semaphore, #tpu.memory_space<semaphore_mem>> -> memref<1x!tpu.dma_semaphore, #tpu.memory_space<semaphore_mem>>
      %119 = tpu.memref_squeeze %118 : memref<1x!tpu.dma_semaphore, #tpu.memory_space<semaphore_mem>> -> memref<!tpu.dma_semaphore, #tpu.memory_space<semaphore_mem>>
      tpu.enqueue_dma source(%115 : memref<10x24x512xbf16, #tpu.memory_space<any>>) target(%117 : memref<10x24x512xbf16, #tpu.memory_space<vmem>>) target_semaphore(%119 : memref<!tpu.dma_semaphore, #tpu.memory_space<semaphore_mem>>)
    } else {
    }
    %24 = arith.index_cast %9 : i32 to index
    %c0 = arith.constant 0 : index
    %c0_13 = arith.constant 0 : index
    %c0_14 = arith.constant 0 : index
    %25 = vector.load %arg8[%24, %c0, %c0_13, %c0_14] : memref<2x10x24x512xbf16, #tpu.memory_space<vmem>>, vector<1x10x24x512xbf16>
    %26 = vector.shape_cast %25 : vector<1x10x24x512xbf16> to vector<10x24x512xbf16>
    %cst = arith.constant 0.000000e+00 : f32
    %27 = vector.broadcast %cst : f32 to vector<128x4xf32>
    %28 = vector.extract_strided_slice %26 {offsets = [0, 0, 0], sizes = [8, 16, 512], strides = [1, 1, 1]} : vector<10x24x512xbf16> to vector<8x16x512xbf16>
    %29 = vector.shape_cast %28 : vector<8x16x512xbf16> to vector<128x512xbf16>
    %c0_15 = arith.constant 0 : index
    %c0_16 = arith.constant 0 : index
    %c0_17 = arith.constant 0 : index
    %30 = vector.load %arg3[%c0_15, %c0_16, %c0_17] : memref<9x512x4xbf16, #tpu.memory_space<vmem>>, vector<1x512x4xbf16>
    %31 = vector.shape_cast %30 : vector<1x512x4xbf16> to vector<512x4xbf16>
    %cst_18 = arith.constant dense<0.000000e+00> : vector<128x4xf32>
    %32 = tpu.matmul %29, %31, %cst_18 {dimension_numbers = #tpu.dot_dimension_numbers<[1], [0], [0], [1], [0, 0, 1, 1], [], []>} : vector<128x512xbf16>, vector<512x4xbf16>, vector<128x4xf32> -> vector<128x4xf32>
    %33 = arith.addf %27, %32 : vector<128x4xf32>
    %34 = vector.extract_strided_slice %26 {offsets = [0, 1, 0], sizes = [8, 16, 512], strides = [1, 1, 1]} : vector<10x24x512xbf16> to vector<8x16x512xbf16>
    %35 = vector.shape_cast %34 : vector<8x16x512xbf16> to vector<128x512xbf16>
    %c1 = arith.constant 1 : index
    %c0_19 = arith.constant 0 : index
    %c0_20 = arith.constant 0 : index
    %36 = vector.load %arg3[%c1, %c0_19, %c0_20] : memref<9x512x4xbf16, #tpu.memory_space<vmem>>, vector<1x512x4xbf16>
    %37 = vector.shape_cast %36 : vector<1x512x4xbf16> to vector<512x4xbf16>
    %cst_21 = arith.constant dense<0.000000e+00> : vector<128x4xf32>
    %38 = tpu.matmul %35, %37, %cst_21 {dimension_numbers = #tpu.dot_dimension_numbers<[1], [0], [0], [1], [0, 0, 1, 1], [], []>} : vector<128x512xbf16>, vector<512x4xbf16>, vector<128x4xf32> -> vector<128x4xf32>
    %39 = arith.addf %33, %38 : vector<128x4xf32>
    %40 = vector.extract_strided_slice %26 {offsets = [0, 2, 0], sizes = [8, 16, 512], strides = [1, 1, 1]} : vector<10x24x512xbf16> to vector<8x16x512xbf16>
    %41 = vector.shape_cast %40 : vector<8x16x512xbf16> to vector<128x512xbf16>
    %c2 = arith.constant 2 : index
    %c0_22 = arith.constant 0 : index
    %c0_23 = arith.constant 0 : index
    %42 = vector.load %arg3[%c2, %c0_22, %c0_23] : memref<9x512x4xbf16, #tpu.memory_space<vmem>>, vector<1x512x4xbf16>
    %43 = vector.shape_cast %42 : vector<1x512x4xbf16> to vector<512x4xbf16>
    %cst_24 = arith.constant dense<0.000000e+00> : vector<128x4xf32>
    %44 = tpu.matmul %41, %43, %cst_24 {dimension_numbers = #tpu.dot_dimension_numbers<[1], [0], [0], [1], [0, 0, 1, 1], [], []>} : vector<128x512xbf16>, vector<512x4xbf16>, vector<128x4xf32> -> vector<128x4xf32>
    %45 = arith.addf %39, %44 : vector<128x4xf32>
    %46 = vector.extract_strided_slice %26 {offsets = [1, 0, 0], sizes = [8, 16, 512], strides = [1, 1, 1]} : vector<10x24x512xbf16> to vector<8x16x512xbf16>
    %47 = vector.shape_cast %46 : vector<8x16x512xbf16> to vector<128x512xbf16>
    %c3 = arith.constant 3 : index
    %c0_25 = arith.constant 0 : index
    %c0_26 = arith.constant 0 : index
    %48 = vector.load %arg3[%c3, %c0_25, %c0_26] : memref<9x512x4xbf16, #tpu.memory_space<vmem>>, vector<1x512x4xbf16>
    %49 = vector.shape_cast %48 : vector<1x512x4xbf16> to vector<512x4xbf16>
    %cst_27 = arith.constant dense<0.000000e+00> : vector<128x4xf32>
    %50 = tpu.matmul %47, %49, %cst_27 {dimension_numbers = #tpu.dot_dimension_numbers<[1], [0], [0], [1], [0, 0, 1, 1], [], []>} : vector<128x512xbf16>, vector<512x4xbf16>, vector<128x4xf32> -> vector<128x4xf32>
    %51 = arith.addf %45, %50 : vector<128x4xf32>
    %52 = vector.extract_strided_slice %26 {offsets = [1, 1, 0], sizes = [8, 16, 512], strides = [1, 1, 1]} : vector<10x24x512xbf16> to vector<8x16x512xbf16>
    %53 = vector.shape_cast %52 : vector<8x16x512xbf16> to vector<128x512xbf16>
    %c4 = arith.constant 4 : index
    %c0_28 = arith.constant 0 : index
    %c0_29 = arith.constant 0 : index
    %54 = vector.load %arg3[%c4, %c0_28, %c0_29] : memref<9x512x4xbf16, #tpu.memory_space<vmem>>, vector<1x512x4xbf16>
    %55 = vector.shape_cast %54 : vector<1x512x4xbf16> to vector<512x4xbf16>
    %cst_30 = arith.constant dense<0.000000e+00> : vector<128x4xf32>
    %56 = tpu.matmul %53, %55, %cst_30 {dimension_numbers = #tpu.dot_dimension_numbers<[1], [0], [0], [1], [0, 0, 1, 1], [], []>} : vector<128x512xbf16>, vector<512x4xbf16>, vector<128x4xf32> -> vector<128x4xf32>
    %57 = arith.addf %51, %56 : vector<128x4xf32>
    %58 = vector.extract_strided_slice %26 {offsets = [1, 2, 0], sizes = [8, 16, 512], strides = [1, 1, 1]} : vector<10x24x512xbf16> to vector<8x16x512xbf16>
    %59 = vector.shape_cast %58 : vector<8x16x512xbf16> to vector<128x512xbf16>
    %c5 = arith.constant 5 : index
    %c0_31 = arith.constant 0 : index
    %c0_32 = arith.constant 0 : index
    %60 = vector.load %arg3[%c5, %c0_31, %c0_32] : memref<9x512x4xbf16, #tpu.memory_space<vmem>>, vector<1x512x4xbf16>
    %61 = vector.shape_cast %60 : vector<1x512x4xbf16> to vector<512x4xbf16>
    %cst_33 = arith.constant dense<0.000000e+00> : vector<128x4xf32>
    %62 = tpu.matmul %59, %61, %cst_33 {dimension_numbers = #tpu.dot_dimension_numbers<[1], [0], [0], [1], [0, 0, 1, 1], [], []>} : vector<128x512xbf16>, vector<512x4xbf16>, vector<128x4xf32> -> vector<128x4xf32>
    %63 = arith.addf %57, %62 : vector<128x4xf32>
    %64 = vector.extract_strided_slice %26 {offsets = [2, 0, 0], sizes = [8, 16, 512], strides = [1, 1, 1]} : vector<10x24x512xbf16> to vector<8x16x512xbf16>
    %65 = vector.shape_cast %64 : vector<8x16x512xbf16> to vector<128x512xbf16>
    %c6 = arith.constant 6 : index
    %c0_34 = arith.constant 0 : index
    %c0_35 = arith.constant 0 : index
    %66 = vector.load %arg3[%c6, %c0_34, %c0_35] : memref<9x512x4xbf16, #tpu.memory_space<vmem>>, vector<1x512x4xbf16>
    %67 = vector.shape_cast %66 : vector<1x512x4xbf16> to vector<512x4xbf16>
    %cst_36 = arith.constant dense<0.000000e+00> : vector<128x4xf32>
    %68 = tpu.matmul %65, %67, %cst_36 {dimension_numbers = #tpu.dot_dimension_numbers<[1], [0], [0], [1], [0, 0, 1, 1], [], []>} : vector<128x512xbf16>, vector<512x4xbf16>, vector<128x4xf32> -> vector<128x4xf32>
    %69 = arith.addf %63, %68 : vector<128x4xf32>
    %70 = vector.extract_strided_slice %26 {offsets = [2, 1, 0], sizes = [8, 16, 512], strides = [1, 1, 1]} : vector<10x24x512xbf16> to vector<8x16x512xbf16>
    %71 = vector.shape_cast %70 : vector<8x16x512xbf16> to vector<128x512xbf16>
    %c7 = arith.constant 7 : index
    %c0_37 = arith.constant 0 : index
    %c0_38 = arith.constant 0 : index
    %72 = vector.load %arg3[%c7, %c0_37, %c0_38] : memref<9x512x4xbf16, #tpu.memory_space<vmem>>, vector<1x512x4xbf16>
    %73 = vector.shape_cast %72 : vector<1x512x4xbf16> to vector<512x4xbf16>
    %cst_39 = arith.constant dense<0.000000e+00> : vector<128x4xf32>
    %74 = tpu.matmul %71, %73, %cst_39 {dimension_numbers = #tpu.dot_dimension_numbers<[1], [0], [0], [1], [0, 0, 1, 1], [], []>} : vector<128x512xbf16>, vector<512x4xbf16>, vector<128x4xf32> -> vector<128x4xf32>
    %75 = arith.addf %69, %74 : vector<128x4xf32>
    %76 = vector.extract_strided_slice %26 {offsets = [2, 2, 0], sizes = [8, 16, 512], strides = [1, 1, 1]} : vector<10x24x512xbf16> to vector<8x16x512xbf16>
    %77 = vector.shape_cast %76 : vector<8x16x512xbf16> to vector<128x512xbf16>
    %c8 = arith.constant 8 : index
    %c0_40 = arith.constant 0 : index
    %c0_41 = arith.constant 0 : index
    %78 = vector.load %arg3[%c8, %c0_40, %c0_41] : memref<9x512x4xbf16, #tpu.memory_space<vmem>>, vector<1x512x4xbf16>
    %79 = vector.shape_cast %78 : vector<1x512x4xbf16> to vector<512x4xbf16>
    %cst_42 = arith.constant dense<0.000000e+00> : vector<128x4xf32>
    %80 = tpu.matmul %77, %79, %cst_42 {dimension_numbers = #tpu.dot_dimension_numbers<[1], [0], [0], [1], [0, 0, 1, 1], [], []>} : vector<128x512xbf16>, vector<512x4xbf16>, vector<128x4xf32> -> vector<128x4xf32>
    %81 = arith.addf %75, %80 : vector<128x4xf32>
    %c0_43 = arith.constant 0 : index
    %c0_44 = arith.constant 0 : index
    %82 = vector.load %arg4[%c0_43, %c0_44] : memref<1x4xf32, #tpu.memory_space<vmem>>, vector<1x4xf32>
    %83 = vector.broadcast %82 : vector<1x4xf32> to vector<128x4xf32>
    %84 = arith.addf %81, %83 : vector<128x4xf32>
    %c0_45 = arith.constant 0 : index
    %c0_46 = arith.constant 0 : index
    %85 = vector.load %arg5[%c0_45, %c0_46] : memref<1x4xf32, #tpu.memory_space<vmem>>, vector<1x4xf32>
    %86 = vector.broadcast %85 : vector<1x4xf32> to vector<128x4xf32>
    %87 = arith.mulf %84, %86 : vector<128x4xf32>
    %88 = vector.extract_strided_slice %87 {offsets = [0, 0], sizes = [128, 2], strides = [1, 1]} : vector<128x4xf32> to vector<128x2xf32>
    %89 = vector.extract_strided_slice %87 {offsets = [0, 2], sizes = [128, 2], strides = [1, 1]} : vector<128x4xf32> to vector<128x2xf32>
    %cst_47 = arith.constant 2.000000e+00 : f32
    %90 = vector.broadcast %cst_47 : f32 to vector<128x2xf32>
    %91 = arith.addf %88, %90 : vector<128x2xf32>
    %cst_48 = arith.constant 0.000000e+00 : f32
    %92 = vector.broadcast %cst_48 : f32 to vector<128x2xf32>
    %93 = arith.subf %92, %91 : vector<128x2xf32>
    %94 = math.exp %93 : vector<128x2xf32>
    %cst_49 = arith.constant 1.000000e+00 : f32
    %95 = vector.broadcast %cst_49 : f32 to vector<128x2xf32>
    %96 = arith.addf %95, %94 : vector<128x2xf32>
    %cst_50 = arith.constant 1.000000e+00 : f32
    %97 = vector.broadcast %cst_50 : f32 to vector<128x2xf32>
    %98 = arith.divf %97, %96 : vector<128x2xf32>
    %c0_51 = arith.constant 0 : index
    %c0_52 = arith.constant 0 : index
    %c0_53 = arith.constant 0 : index
    %c0_54 = arith.constant 0 : index
    %99 = vector.load %arg2[%c0_51, %c0_52, %c0_53, %c0_54] : memref<1x8x16x4xf32, #tpu.memory_space<vmem>>, vector<1x8x16x4xf32>
    %100 = vector.shape_cast %99 : vector<1x8x16x4xf32> to vector<8x16x4xf32>
    %101 = vector.shape_cast %100 : vector<8x16x4xf32> to vector<128x4xf32>
    %102 = vector.extract_strided_slice %101 {offsets = [0, 0], sizes = [128, 2], strides = [1, 1]} : vector<128x4xf32> to vector<128x2xf32>
    %103 = vector.extract_strided_slice %101 {offsets = [0, 2], sizes = [128, 2], strides = [1, 1]} : vector<128x4xf32> to vector<128x2xf32>
    %104 = arith.addf %103, %89 : vector<128x2xf32>
    %105 = arith.mulf %104, %98 : vector<128x2xf32>
    %106 = tpu.concatenate %102, %105 in 1 : vector<128x2xf32>, vector<128x2xf32> -> vector<128x4xf32>
    %107 = vector.shape_cast %106 : vector<128x4xf32> to vector<8x16x4xf32>
    %c0_55 = arith.constant 0 : index
    %c0_56 = arith.constant 0 : index
    %c0_57 = arith.constant 0 : index
    %c0_58 = arith.constant 0 : index
    %108 = vector.load %arg7[%c0_55, %c0_56, %c0_57, %c0_58] : memref<1x8x16x4xf32, #tpu.memory_space<vmem>>, vector<1x8x16x4xf32>
    %109 = vector.shape_cast %108 : vector<1x8x16x4xf32> to vector<8x16x4xf32>
    %110 = vector.shape_cast %107 : vector<8x16x4xf32> to vector<1x8x16x4xf32>
    tpu.vector_store %arg7[%c0_55, %c0_56, %c0_57, %c0_58], %110 {strides = array<i32>} : memref<1x8x16x4xf32, #tpu.memory_space<vmem>>, vector<1x8x16x4xf32>,
    return
  }
  func.func @transform_0(%arg0: i32, %arg1: i32) -> (i32, i32, i32, i32) {
    %c0_i32 = arith.constant 0 : i32
    %c0_i32_0 = arith.constant 0 : i32
    %c0_i32_1 = arith.constant 0 : i32
    return %arg0, %arg1, %c0_i32, %c0_i32_0 : i32, i32, i32, i32
  }
  func.func @transform_1(%arg0: i32, %arg1: i32) -> (i32, i32, i32) {
    %c0_i32 = arith.constant 0 : i32
    %c0_i32_0 = arith.constant 0 : i32
    %c0_i32_1 = arith.constant 0 : i32
    %c0_i32_2 = arith.constant 0 : i32
    return %c0_i32, %c0_i32_0, %c0_i32_1 : i32, i32, i32
  }
  func.func @transform_2(%arg0: i32, %arg1: i32) -> (i32, i32) {
    %c0_i32 = arith.constant 0 : i32
    %c0_i32_0 = arith.constant 0 : i32
    %c0_i32_1 = arith.constant 0 : i32
    return %c0_i32, %c0_i32_0 : i32, i32
  }
  func.func @transform_3(%arg0: i32, %arg1: i32) -> (i32, i32) {
    %c0_i32 = arith.constant 0 : i32
    %c0_i32_0 = arith.constant 0 : i32
    %c0_i32_1 = arith.constant 0 : i32
    return %c0_i32, %c0_i32_0 : i32, i32
  }
  func.func @transform_5(%arg0: i32, %arg1: i32) -> (i32, i32, i32, i32) {
    %c0_i32 = arith.constant 0 : i32
    %c0_i32_0 = arith.constant 0 : i32
    %c0_i32_1 = arith.constant 0 : i32
    return %arg0, %arg1, %c0_i32, %c0_i32_0 : i32, i32, i32, i32
  }
}

</mosaic_0001>

<llo_original>
// kernel: flow_forward.4
$region0: #{flow_forward.4}
  #allocation0 [shape = 'u32[]', space=smem, size = 0x4, offset = 0x4, fixed_abs, tag = 'smem constant byte address 0x4 - core index']
  #allocation1 [shape = 'u32[144,128]{1,0:T(1,128)}', space=vmem, size = 0x12000, scoped, tag = 'internal scratch']
  %s0 = inlined_call_operand.vmem [shape: f32[512,4], index: 0, kind: input, shape index: {}]
  %s1 = inlined_call_operand.vmem [shape: f32[1,4], index: 1, kind: output, shape index: {0}]
  %s2 = inlined_call_operand.vmem [shape: f32[1,4], index: 2, kind: output, shape index: {1}]
  %3 = xla_tuple %s1, %s2
  %s4 = sld [smem:[#allocation0]]
  $region49: #{flow_forward.4} parent=0
    _
  %s6 = ssub.s32 1, %s4
  %s7 = scalar_select 0, %s6, %s4
  loop: start=0, step=1, limit=4
  $region2: #{flow_forward.4} parent=0 // loop_pre_header
    _
  $region3: #{flow_forward.4} parent=0 // loop_header
    %s9 = sphi 0, %s13
    %p10 = scmp.ge.s32.totalorder %s9, 4
    %s19 = sphi 0, %s21
    %s22 = sphi 0, %s19
    %s23 = sphi 0, %s22
    %s39 = sphi 0, %s23
    %s43 = sphi 0, %s43
    %s45 = sphi 0, %s43
    %s46 = sphi 0, %s45
    %s60 = sphi 0, %s46
    %s64 = sphi 0, %s64
    %s66 = sphi 0, %s64
    %s67 = sphi 0, %s66
    %s81 = sphi 0, %s67
  $region4: #{flow_forward.4} parent=0 // loop_header_branch
    %12 = sbr.rel (%p10) target = $region8
  $region5: #{flow_forward.4} parent=0 // loop_body
    %s14 = ssub.s32 %s9, 1
    %s15 = ssub.s32 %s9, 2
    %s16 = sadd.s32 %s9, 1
    %s17 = ssub.s32 %s9, %s16
    %p18 = scmp.eq.s32.totalorder %s17, 0
    %s20 = sadd.s32 %s19, 1
    %s21 = scalar_select %p18, %s19, %s20
    %p24 = pneg %p18
    %p25 = scmp.eq.s32.totalorder %s9, 1
    %p26 = por %p24, %p25
    %p27 = scmp.ne.s32.totalorder %s19, %s22
    %p28 = scmp.eq.s32.totalorder %s9, 0
    %p29 = por %p27, %p28
    %p30 = scmp.ne.s32.totalorder %s19, %s22
    %p31 = scmp.eq.s32.totalorder %s14, 1
    %p32 = por %p30, %p31
    %p33 = scmp.ne.s32.totalorder %s22, %s23
    %p34 = scmp.eq.s32.totalorder %s14, 0
    %p35 = por %p33, %p34
    %p36 = scmp.ne.s32.totalorder %s22, %s23
    %p37 = scmp.eq.s32.totalorder %s15, 1
    %p38 = por %p36, %p37
    %p40 = scmp.ne.s32.totalorder %s23, %s39
    %p41 = scmp.eq.s32.totalorder %s15, 0
    %p42 = por %p40, %p41
    %s44 = sadd.s32 %s43, 1
    %p47 = scmp.eq.s32.totalorder %s9, 1
    %p48 = scmp.ne.s32.totalorder %s43, %s45
    %p49 = scmp.eq.s32.totalorder %s9, 0
    %p50 = por %p48, %p49
    %p51 = scmp.ne.s32.totalorder %s43, %s45
    %p52 = scmp.eq.s32.totalorder %s14, 1
    %p53 = por %p51, %p52
    %p54 = scmp.ne.s32.totalorder %s45, %s46
    %p55 = scmp.eq.s32.totalorder %s14, 0
    %p56 = por %p54, %p55
    %p57 = scmp.ne.s32.totalorder %s45, %s46
    %p58 = scmp.eq.s32.totalorder %s15, 1
    %p59 = por %p57, %p58
    %p61 = scmp.ne.s32.totalorder %s46, %s60
    %p62 = scmp.eq.s32.totalorder %s15, 0
    %p63 = por %p61, %p62
    %s65 = sadd.s32 %s64, 1
    %p68 = scmp.eq.s32.totalorder %s9, 1
    %p69 = scmp.ne.s32.totalorder %s64, %s66
    %p70 = scmp.eq.s32.totalorder %s9, 0
    %p71 = por %p69, %p70
    %p72 = scmp.ne.s32.totalorder %s64, %s66
    %p73 = scmp.eq.s32.totalorder %s14, 1
    %p74 = por %p72, %p73
    %p75 = scmp.ne.s32.totalorder %s66, %s67
    %p76 = scmp.eq.s32.totalorder %s14, 0
    %p77 = por %p75, %p76
    %p78 = scmp.ne.s32.totalorder %s66, %s67
    %p79 = scmp.eq.s32.totalorder %s15, 1
    %p80 = por %p78, %p79
    %p82 = scmp.ne.s32.totalorder %s67, %s81
    %p83 = scmp.eq.s32.totalorder %s15, 0
    %p84 = por %p82, %p83
    %p85 = scmp.le.s32.totalorder 1, %s9
    %p86 = scmp.lt.s32.totalorder %s9, 3
    %p87 = pnand %p85, %p86
    %p88 = pneg %p87
    // Predicated region
    $region9: #{flow_forward.4} parent=5 // pred_check
      _
    $region10: #{flow_forward.4} parent=5 // pred_check_branch
      %90 = sbr.rel (%p87) target = $region12
    $region11: #{flow_forward.4} parent=5 // pred_region
      %s91 = ssub.s32 %s9, 1
    $region12: #{flow_forward.4} parent=5 // pred_fallthru
      _
    %p92 = scmp.lt.s32.totalorder %s9, 2
    // Predicated region
    $region13: #{flow_forward.4} parent=5 // pred_check
      %p93 = pneg %p92
    $region14: #{flow_forward.4} parent=5 // pred_check_branch
      %95 = sbr.rel (%p93) target = $region16
    $region15: #{flow_forward.4} parent=5 // pred_region
      // Predicated region
      $region17: #{flow_forward.4} parent=15 // pred_check
        %p96 = pneg %p29
      $region18: #{flow_forward.4} parent=15 // pred_check_branch
        %98 = sbr.rel (%p96) target = $region20
      $region19: #{flow_forward.4} parent=15 // pred_region
        %s99 = smul.u32 32, %s9
        %p100 = scmp.lt.s32.totalorder %s99, 63
        %s101 = scalar_select %p100, %s99, 63
        %s102 = smul.addr %s101, 8
        %s103 = scalar_lea.vmem %s0, %s102
        %s104 = smul.u32 32, %s9
      $region20: #{flow_forward.4} parent=15 // pred_fallthru
        _
    $region16: #{flow_forward.4} parent=5 // pred_fallthru
      _
    %p105 = scmp.le.s32.totalorder 1, %s9
    %p106 = scmp.lt.s32.totalorder %s9, 3
    %p107 = pnand %p105, %p106
    %p108 = pneg %p107
    // Predicated region
    $region21: #{flow_forward.4} parent=5 // pred_check
      _
    $region22: #{flow_forward.4} parent=5 // pred_check_branch
      %110 = sbr.rel (%p107) target = $region24
    $region23: #{flow_forward.4} parent=5 // pred_region
      %s111 = ssub.s32 %s9, 1
      %s112 = smul.u32 32, %s14
      %p113 = scmp.lt.s32.totalorder %s112, 63
      %s114 = scalar_select %p113, %s112, 63
      %s115 = smul.addr %s114, 8
      %s116 = scalar_lea.vmem %s0, %s115
      %p117 = pneg %p35
      %p118 = pneg %p32
      %p119 = pneg %p56
      %p120 = pneg %p53
      %p121 = pneg %p77
      %p122 = pneg %p74
      %s123 = smul.u32 32, %s14
      %p124 = scmp.lt.s32.totalorder %s123, 63
      %s125 = scalar_select %p124, %s123, 63
      %s126 = smul.addr %s125, 8
      %s127 = scalar_lea.vmem %s0, %s126
      %s128 = smul.u32 32, %s14
      %p129 = scmp.eq.s32.totalorder %s14, 0
      // Predicated region
      $region25: #{flow_forward.4} parent=23 // pred_check
        %p130 = pneg %p129
      $region26: #{flow_forward.4} parent=23 // pred_check_branch
        %132 = sbr.rel (%p130) target = $region28
      $region27: #{flow_forward.4} parent=23 // pred_region
        %vm133 = vcmask 24576
        %134 = vst.msk [vmem:[%s1] sm:$0x1] %vm133, 0.0
        %135 = vst.msk [vmem:[%s2] sm:$0x1] %vm133, 0.0
      $region28: #{flow_forward.4} parent=23 // pred_fallthru
        _
      %v136 = vld [vmem:[%s127] sm:$0xff]
      %v137 = vld [vmem:[%s127 + $0x8] sm:$0xff]
      %v138 = vld [vmem:[%s127 + $0x10] sm:$0xff]
      %v139 = vld [vmem:[%s127 + $0x18] sm:$0xff]
      %v140 = vld [vmem:[%s127 + $0x20] sm:$0xff]
      %v141 = vld [vmem:[%s127 + $0x28] sm:$0xff]
      %v142 = vld [vmem:[%s127 + $0x30] sm:$0xff]
      %v143 = vld [vmem:[%s127 + $0x38] sm:$0xff]
      %v144 = vld [vmem:[%s127 + $0x40] sm:$0xff]
      %v145 = vld [vmem:[%s127 + $0x48] sm:$0xff]
      %v146 = vld [vmem:[%s127 + $0x50] sm:$0xff]
      %v147 = vld [vmem:[%s127 + $0x58] sm:$0xff]
      %v148 = vld [vmem:[%s127 + $0x60] sm:$0xff]
      %v149 = vld [vmem:[%s127 + $0x68] sm:$0xff]
      %v150 = vld [vmem:[%s127 + $0x70] sm:$0xff]
      %v151 = vld [vmem:[%s127 + $0x78] sm:$0xff]
      %v152 = vld [vmem:[%s127 + $0x80] sm:$0xff]
      %v153 = vld [vmem:[%s127 + $0x88] sm:$0xff]
      %v154 = vld [vmem:[%s127 + $0x90] sm:$0xff]
      %v155 = vld [vmem:[%s127 + $0x98] sm:$0xff]
      %v156 = vld [vmem:[%s127 + $0xa0] sm:$0xff]
      %v157 = vld [vmem:[%s127 + $0xa8] sm:$0xff]
      %v158 = vld [vmem:[%s127 + $0xb0] sm:$0xff]
      %v159 = vld [vmem:[%s127 + $0xb8] sm:$0xff]
      %v160 = vld [vmem:[%s127 + $0xc0] sm:$0xff]
      %v161 = vld [vmem:[%s127 + $0xc8] sm:$0xff]
      %v162 = vld [vmem:[%s127 + $0xd0] sm:$0xff]
      %v163 = vld [vmem:[%s127 + $0xd8] sm:$0xff]
      %v164 = vld [vmem:[%s127 + $0xe0] sm:$0xff]
      %v165 = vld [vmem:[%s127 + $0xe8] sm:$0xff]
      %v166 = vld [vmem:[%s127 + $0xf0] sm:$0xff]
      %v167 = vld [vmem:[%s127 + $0xf8] sm:$0xff]
      %v168 = vld [vmem:[%s1] sm:$0x1]
      %vm169 = vcmask 31744
      %v170 = vsel %vm169, %v136, 0.0
      %v171 = vsel %vm169, %v137, 0.0
      %v172 = vadd.f32 %v170, %v171
      %v173 = vsel %vm169, %v138, 0.0
      %v174 = vadd.f32 %v172, %v173
      %v175 = vsel %vm169, %v139, 0.0
      %v176 = vadd.f32 %v174, %v175
      %v177 = vsel %vm169, %v140, 0.0
      %v178 = vadd.f32 %v176, %v177
      %v179 = vsel %vm169, %v141, 0.0
      %v180 = vadd.f32 %v178, %v179
      %v181 = vsel %vm169, %v142, 0.0
      %v182 = vadd.f32 %v180, %v181
      %v183 = vsel %vm169, %v143, 0.0
      %v184 = vadd.f32 %v182, %v183
      %v185 = vsel %vm169, %v144, 0.0
      %v186 = vadd.f32 %v184, %v185
      %v187 = vsel %vm169, %v145, 0.0
      %v188 = vadd.f32 %v186, %v187
      %v189 = vsel %vm169, %v146, 0.0
      %v190 = vadd.f32 %v188, %v189
      %v191 = vsel %vm169, %v147, 0.0
      %v192 = vadd.f32 %v190, %v191
      %v193 = vsel %vm169, %v148, 0.0
      %v194 = vadd.f32 %v192, %v193
      %v195 = vsel %vm169, %v149, 0.0
      %v196 = vadd.f32 %v194, %v195
      %v197 = vsel %vm169, %v150, 0.0
      %v198 = vadd.f32 %v196, %v197
      %v199 = vsel %vm169, %v151, 0.0
      %v200 = vadd.f32 %v198, %v199
      %v201 = vsel %vm169, %v152, 0.0
      %v202 = vadd.f32 %v200, %v201
      %v203 = vsel %vm169, %v153, 0.0
      %v204 = vadd.f32 %v202, %v203
      %v205 = vsel %vm169, %v154, 0.0
      %v206 = vadd.f32 %v204, %v205
      %v207 = vsel %vm169, %v155, 0.0
      %v208 = vadd.f32 %v206, %v207
      %v209 = vsel %vm169, %v156, 0.0
      %v210 = vadd.f32 %v208, %v209
      %v211 = vsel %vm169, %v157, 0.0
      %v212 = vadd.f32 %v210, %v211
      %v213 = vsel %vm169, %v158, 0.0
      %v214 = vadd.f32 %v212, %v213
      %v215 = vsel %vm169, %v159, 0.0
      %v216 = vadd.f32 %v214, %v215
      %v217 = vsel %vm169, %v160, 0.0
      %v218 = vadd.f32 %v216, %v217
      %v219 = vsel %vm169, %v161, 0.0
      %v220 = vadd.f32 %v218, %v219
      %v221 = vsel %vm169, %v162, 0.0
      %v222 = vadd.f32 %v220, %v221
      %v223 = vsel %vm169, %v163, 0.0
      %v224 = vadd.f32 %v222, %v223
      %v225 = vsel %vm169, %v164, 0.0
      %v226 = vadd.f32 %v224, %v225
      %v227 = vsel %vm169, %v165, 0.0
      %v228 = vadd.f32 %v226, %v227
      %v229 = vsel %vm169, %v166, 0.0
      %v230 = vadd.f32 %v228, %v229
      %v231 = vsel %vm169, %v167, 0.0
      %v232 = vadd.f32 %v230, %v231
      %v233 = vrot.slane %v232, 4
      %v234 = vadd.f32 %v232, %v233
      %v235 = vrot.slane %v234, 2
      %v236 = vadd.f32 %v234, %v235
      %v237 = vrot.slane %v236, 1
      %v238 = vadd.f32 %v236, %v237
      %v239 = vadd.f32 %v168, %v238
      %vm240 = vcmask 24576
      %241 = vst.msk [vmem:[%s1] sm:$0x1] %vm240, %v239
      %v242 = vld [vmem:[%s2] sm:$0x1]
      %v243 = vmul.f32 %v136, %v136
      %v244 = vmul.f32 %v137, %v137
      %v245 = vmul.f32 %v138, %v138
      %v246 = vmul.f32 %v139, %v139
      %v247 = vmul.f32 %v140, %v140
      %v248 = vmul.f32 %v141, %v141
      %v249 = vmul.f32 %v142, %v142
      %v250 = vmul.f32 %v143, %v143
      %v251 = vmul.f32 %v144, %v144
      %v252 = vmul.f32 %v145, %v145
      %v253 = vmul.f32 %v146, %v146
      %v254 = vmul.f32 %v147, %v147
      %v255 = vmul.f32 %v148, %v148
      %v256 = vmul.f32 %v149, %v149
      %v257 = vmul.f32 %v150, %v150
      %v258 = vmul.f32 %v151, %v151
      %v259 = vmul.f32 %v152, %v152
      %v260 = vmul.f32 %v153, %v153
      %v261 = vmul.f32 %v154, %v154
      %v262 = vmul.f32 %v155, %v155
      %v263 = vmul.f32 %v156, %v156
      %v264 = vmul.f32 %v157, %v157
      %v265 = vmul.f32 %v158, %v158
      %v266 = vmul.f32 %v159, %v159
      %v267 = vmul.f32 %v160, %v160
      %v268 = vmul.f32 %v161, %v161
      %v269 = vmul.f32 %v162, %v162
      %v270 = vmul.f32 %v163, %v163
      %v271 = vmul.f32 %v164, %v164
      %v272 = vmul.f32 %v165, %v165
      %v273 = vmul.f32 %v166, %v166
      %v274 = vmul.f32 %v167, %v167
      %v275 = vsel %vm169, %v243, 0.0
      %v276 = vsel %vm169, %v244, 0.0
      %v277 = vadd.f32 %v275, %v276
      %v278 = vsel %vm169, %v245, 0.0
      %v279 = vadd.f32 %v277, %v278
      %v280 = vsel %vm169, %v246, 0.0
      %v281 = vadd.f32 %v279, %v280
      %v282 = vsel %vm169, %v247, 0.0
      %v283 = vadd.f32 %v281, %v282
      %v284 = vsel %vm169, %v248, 0.0
      %v285 = vadd.f32 %v283, %v284
      %v286 = vsel %vm169, %v249, 0.0
      %v287 = vadd.f32 %v285, %v286
      %v288 = vsel %vm169, %v250, 0.0
      %v289 = vadd.f32 %v287, %v288
      %v290 = vsel %vm169, %v251, 0.0
      %v291 = vadd.f32 %v289, %v290
      %v292 = vsel %vm169, %v252, 0.0
      %v293 = vadd.f32 %v291, %v292
      %v294 = vsel %vm169, %v253, 0.0
      %v295 = vadd.f32 %v293, %v294
      %v296 = vsel %vm169, %v254, 0.0
      %v297 = vadd.f32 %v295, %v296
      %v298 = vsel %vm169, %v255, 0.0
      %v299 = vadd.f32 %v297, %v298
      %v300 = vsel %vm169, %v256, 0.0
      %v301 = vadd.f32 %v299, %v300
      %v302 = vsel %vm169, %v257, 0.0
      %v303 = vadd.f32 %v301, %v302
      %v304 = vsel %vm169, %v258, 0.0
      %v305 = vadd.f32 %v303, %v304
      %v306 = vsel %vm169, %v259, 0.0
      %v307 = vadd.f32 %v305, %v306
      %v308 = vsel %vm169, %v260, 0.0
      %v309 = vadd.f32 %v307, %v308
      %v310 = vsel %vm169, %v261, 0.0
      %v311 = vadd.f32 %v309, %v310
      %v312 = vsel %vm169, %v262, 0.0
      %v313 = vadd.f32 %v311, %v312
      %v314 = vsel %vm169, %v263, 0.0
      %v315 = vadd.f32 %v313, %v314
      %v316 = vsel %vm169, %v264, 0.0
      %v317 = vadd.f32 %v315, %v316
      %v318 = vsel %vm169, %v265, 0.0
      %v319 = vadd.f32 %v317, %v318
      %v320 = vsel %vm169, %v266, 0.0
      %v321 = vadd.f32 %v319, %v320
      %v322 = vsel %vm169, %v267, 0.0
      %v323 = vadd.f32 %v321, %v322
      %v324 = vsel %vm169, %v268, 0.0
      %v325 = vadd.f32 %v323, %v324
      %v326 = vsel %vm169, %v269, 0.0
      %v327 = vadd.f32 %v325, %v326
      %v328 = vsel %vm169, %v270, 0.0
      %v329 = vadd.f32 %v327, %v328
      %v330 = vsel %vm169, %v271, 0.0
      %v331 = vadd.f32 %v329, %v330
      %v332 = vsel %vm169, %v272, 0.0
      %v333 = vadd.f32 %v331, %v332
      %v334 = vsel %vm169, %v273, 0.0
      %v335 = vadd.f32 %v333, %v334
      %v336 = vsel %vm169, %v274, 0.0
      %v337 = vadd.f32 %v335, %v336
      %v338 = vrot.slane %v337, 4
      %v339 = vadd.f32 %v337, %v338
      %v340 = vrot.slane %v339, 2
      %v341 = vadd.f32 %v339, %v340
      %v342 = vrot.slane %v341, 1
      %v343 = vadd.f32 %v341, %v342
      %v344 = vadd.f32 %v242, %v343
      %345 = vst.msk [vmem:[%s2] sm:$0x1] %vm240, %v344
      // Predicated region
      $region29: #{flow_forward.4} parent=23 // pred_check
        %p346 = pneg %p53
      $region30: #{flow_forward.4} parent=23 // pred_check_branch
        %348 = sbr.rel (%p346) target = $region32
      $region31: #{flow_forward.4} parent=23 // pred_region
        _
      $region32: #{flow_forward.4} parent=23 // pred_fallthru
        _
      // Predicated region
      $region33: #{flow_forward.4} parent=23 // pred_check
        %p349 = pneg %p74
      $region34: #{flow_forward.4} parent=23 // pred_check_branch
        %351 = sbr.rel (%p349) target = $region36
      $region35: #{flow_forward.4} parent=23 // pred_region
        _
      $region36: #{flow_forward.4} parent=23 // pred_fallthru
        _
      // Predicated region
      $region37: #{flow_forward.4} parent=23 // pred_check
        %p352 = pneg %p53
      $region38: #{flow_forward.4} parent=23 // pred_check_branch
        %354 = sbr.rel (%p352) target = $region40
      $region39: #{flow_forward.4} parent=23 // pred_region
        _
      $region40: #{flow_forward.4} parent=23 // pred_fallthru
        _
      // Predicated region
      $region41: #{flow_forward.4} parent=23 // pred_check
        %p355 = pneg %p74
      $region42: #{flow_forward.4} parent=23 // pred_check_branch
        %357 = sbr.rel (%p355) target = $region44
      $region43: #{flow_forward.4} parent=23 // pred_region
        _
      $region44: #{flow_forward.4} parent=23 // pred_fallthru
        _
    $region24: #{flow_forward.4} parent=5 // pred_fallthru
      _
    %p358 = scmp.le.s32.totalorder 2, %s9
    // Predicated region
    $region45: #{flow_forward.4} parent=5 // pred_check
      %p359 = pneg %p358
    $region46: #{flow_forward.4} parent=5 // pred_check_branch
      %361 = sbr.rel (%p359) target = $region48
    $region47: #{flow_forward.4} parent=5 // pred_region
      %s362 = ssub.s32 %s9, 2
    $region48: #{flow_forward.4} parent=5 // pred_fallthru
      _
  $region6: #{flow_forward.4} parent=0 // loop_footer
    %s13 = sadd.s32 1, %s9
  $region7: #{flow_forward.4} parent=0 // loop_footer_branch
    %8 = sbr.rel target = $region3
  $region8: #{flow_forward.4} parent=0 // loop_exit
    _

// kernel: flow_forward.5
$region0: #{flow_forward.5}
  #allocation0 [shape = 'u32[]', space=smem, size = 0x4, offset = 0x4, fixed_abs, tag = 'smem constant byte address 0x4 - core index']
  #allocation1 [shape = 'u32[144,128]{1,0:T(1,128)}', space=vmem, size = 0x12000, scoped, tag = 'internal scratch']
  %s0 = inlined_call_operand.vmem [shape: f32[512,4], index: 0, kind: input, shape index: {}]
  %s1 = inlined_call_operand.vmem [shape: f32[4,4], index: 1, kind: input, shape index: {}]
  %s2 = inlined_call_operand.vmem [shape: f32[1,4], index: 2, kind: input, shape index: {}]
  %s3 = inlined_call_operand.vmem [shape: f32[512,4], index: 3, kind: output, shape index: {}]
  %s4 = sld [smem:[#allocation0]]
  $region45: #{flow_forward.5} parent=0
    _
  %s6 = ssub.s32 1, %s4
  %s7 = scalar_select 0, %s6, %s4
  loop: start=0, step=1, limit=4
  $region2: #{flow_forward.5} parent=0 // loop_pre_header
    _
  $region3: #{flow_forward.5} parent=0 // loop_header
    %s9 = sphi 0, %s13
    %p10 = scmp.ge.s32.totalorder %s9, 4
    %s19 = sphi 0, %s21
    %s22 = sphi 0, %s19
    %s23 = sphi 0, %s22
    %s39 = sphi 0, %s23
    %s43 = sphi 0, %s43
    %s45 = sphi 0, %s43
    %s46 = sphi 0, %s45
    %s60 = sphi 0, %s46
    %s64 = sphi 0, %s64
    %s66 = sphi 0, %s64
    %s67 = sphi 0, %s66
    %s81 = sphi 0, %s67
    %s87 = sphi 0, %s89
    %s90 = sphi 0, %s87
    %s91 = sphi 0, %s90
    %s107 = sphi 0, %s91
  $region4: #{flow_forward.5} parent=0 // loop_header_branch
    %12 = sbr.rel (%p10) target = $region8
  $region5: #{flow_forward.5} parent=0 // loop_body
    %s14 = ssub.s32 %s9, 1
    %s15 = ssub.s32 %s9, 2
    %s16 = sadd.s32 %s9, 1
    %s17 = ssub.s32 %s9, %s16
    %p18 = scmp.eq.s32.totalorder %s17, 0
    %s20 = sadd.s32 %s19, 1
    %s21 = scalar_select %p18, %s19, %s20
    %p24 = pneg %p18
    %p25 = scmp.eq.s32.totalorder %s9, 1
    %p26 = por %p24, %p25
    %p27 = scmp.ne.s32.totalorder %s19, %s22
    %p28 = scmp.eq.s32.totalorder %s9, 0
    %p29 = por %p27, %p28
    %p30 = scmp.ne.s32.totalorder %s19, %s22
    %p31 = scmp.eq.s32.totalorder %s14, 1
    %p32 = por %p30, %p31
    %p33 = scmp.ne.s32.totalorder %s22, %s23
    %p34 = scmp.eq.s32.totalorder %s14, 0
    %p35 = por %p33, %p34
    %p36 = scmp.ne.s32.totalorder %s22, %s23
    %p37 = scmp.eq.s32.totalorder %s15, 1
    %p38 = por %p36, %p37
    %p40 = scmp.ne.s32.totalorder %s23, %s39
    %p41 = scmp.eq.s32.totalorder %s15, 0
    %p42 = por %p40, %p41
    %s44 = sadd.s32 %s43, 1
    %p47 = scmp.eq.s32.totalorder %s9, 1
    %p48 = scmp.ne.s32.totalorder %s43, %s45
    %p49 = scmp.eq.s32.totalorder %s9, 0
    %p50 = por %p48, %p49
    %p51 = scmp.ne.s32.totalorder %s43, %s45
    %p52 = scmp.eq.s32.totalorder %s14, 1
    %p53 = por %p51, %p52
    %p54 = scmp.ne.s32.totalorder %s45, %s46
    %p55 = scmp.eq.s32.totalorder %s14, 0
    %p56 = por %p54, %p55
    %p57 = scmp.ne.s32.totalorder %s45, %s46
    %p58 = scmp.eq.s32.totalorder %s15, 1
    %p59 = por %p57, %p58
    %p61 = scmp.ne.s32.totalorder %s46, %s60
    %p62 = scmp.eq.s32.totalorder %s15, 0
    %p63 = por %p61, %p62
    %s65 = sadd.s32 %s64, 1
    %p68 = scmp.eq.s32.totalorder %s9, 1
    %p69 = scmp.ne.s32.totalorder %s64, %s66
    %p70 = scmp.eq.s32.totalorder %s9, 0
    %p71 = por %p69, %p70
    %p72 = scmp.ne.s32.totalorder %s64, %s66
    %p73 = scmp.eq.s32.totalorder %s14, 1
    %p74 = por %p72, %p73
    %p75 = scmp.ne.s32.totalorder %s66, %s67
    %p76 = scmp.eq.s32.totalorder %s14, 0
    %p77 = por %p75, %p76
    %p78 = scmp.ne.s32.totalorder %s66, %s67
    %p79 = scmp.eq.s32.totalorder %s15, 1
    %p80 = por %p78, %p79
    %p82 = scmp.ne.s32.totalorder %s67, %s81
    %p83 = scmp.eq.s32.totalorder %s15, 0
    %p84 = por %p82, %p83
    %s85 = ssub.s32 %s9, %s16
    %p86 = scmp.eq.s32.totalorder %s85, 0
    %s88 = sadd.s32 %s87, 1
    %s89 = scalar_select %p86, %s87, %s88
    %p92 = pneg %p86
    %p93 = scmp.eq.s32.totalorder %s9, 1
    %p94 = por %p92, %p93
    %p95 = scmp.ne.s32.totalorder %s87, %s90
    %p96 = scmp.eq.s32.totalorder %s9, 0
    %p97 = por %p95, %p96
    %p98 = scmp.ne.s32.totalorder %s87, %s90
    %p99 = scmp.eq.s32.totalorder %s14, 1
    %p100 = por %p98, %p99
    %p101 = scmp.ne.s32.totalorder %s90, %s91
    %p102 = scmp.eq.s32.totalorder %s14, 0
    %p103 = por %p101, %p102
    %p104 = scmp.ne.s32.totalorder %s90, %s91
    %p105 = scmp.eq.s32.totalorder %s15, 1
    %p106 = por %p104, %p105
    %p108 = scmp.ne.s32.totalorder %s91, %s107
    %p109 = scmp.eq.s32.totalorder %s15, 0
    %p110 = por %p108, %p109
    %p111 = scmp.le.s32.totalorder 1, %s9
    %p112 = scmp.lt.s32.totalorder %s9, 3
    %p113 = pnand %p111, %p112
    %p114 = pneg %p113
    // Predicated region
    $region9: #{flow_forward.5} parent=5 // pred_check
      _
    $region10: #{flow_forward.5} parent=5 // pred_check_branch
      %116 = sbr.rel (%p113) target = $region12
    $region11: #{flow_forward.5} parent=5 // pred_region
      %s117 = ssub.s32 %s9, 1
      // Predicated region
      $region13: #{flow_forward.5} parent=11 // pred_check
        %p118 = pneg %p56
      $region14: #{flow_forward.5} parent=11 // pred_check_branch
        %120 = sbr.rel (%p118) target = $region16
      $region15: #{flow_forward.5} parent=11 // pred_region
        _
      $region16: #{flow_forward.5} parent=11 // pred_fallthru
        _
      // Predicated region
      $region17: #{flow_forward.5} parent=11 // pred_check
        %p121 = pneg %p77
      $region18: #{flow_forward.5} parent=11 // pred_check_branch
        %123 = sbr.rel (%p121) target = $region20
      $region19: #{flow_forward.5} parent=11 // pred_region
        _
      $region20: #{flow_forward.5} parent=11 // pred_fallthru
        _
    $region12: #{flow_forward.5} parent=5 // pred_fallthru
      _
    %p124 = scmp.lt.s32.totalorder %s9, 2
    // Predicated region
    $region21: #{flow_forward.5} parent=5 // pred_check
      %p125 = pneg %p124
    $region22: #{flow_forward.5} parent=5 // pred_check_branch
      %127 = sbr.rel (%p125) target = $region24
    $region23: #{flow_forward.5} parent=5 // pred_region
      // Predicated region
      $region25: #{flow_forward.5} parent=23 // pred_check
        %p128 = pneg %p29
      $region26: #{flow_forward.5} parent=23 // pred_check_branch
        %130 = sbr.rel (%p128) target = $region28
      $region27: #{flow_forward.5} parent=23 // pred_region
        %s131 = smul.u32 32, %s9
        %p132 = scmp.lt.s32.totalorder %s131, 63
        %s133 = scalar_select %p132, %s131, 63
        %s134 = smul.addr %s133, 8
        %s135 = scalar_lea.vmem %s0, %s134
        %s136 = smul.u32 32, %s9
      $region28: #{flow_forward.5} parent=23 // pred_fallthru
        _
    $region24: #{flow_forward.5} parent=5 // pred_fallthru
      _
    %p137 = scmp.le.s32.totalorder 1, %s9
    %p138 = scmp.lt.s32.totalorder %s9, 3
    %p139 = pnand %p137, %p138
    %p140 = pneg %p139
    // Predicated region
    $region29: #{flow_forward.5} parent=5 // pred_check
      _
    $region30: #{flow_forward.5} parent=5 // pred_check_branch
      %142 = sbr.rel (%p139) target = $region32
    $region31: #{flow_forward.5} parent=5 // pred_region
      %s143 = ssub.s32 %s9, 1
      %s144 = smul.u32 32, %s14
      %p145 = scmp.lt.s32.totalorder %s144, 63
      %s146 = scalar_select %p145, %s144, 63
      %s147 = smul.addr %s146, 8
      %s148 = scalar_lea.vmem %s0, %s147
      %p149 = pneg %p35
      %p150 = pneg %p32
      %p151 = pneg %p56
      %p152 = pneg %p53
      %p153 = pneg %p77
      %p154 = pneg %p74
      %p155 = pneg %p103
      %p156 = pneg %p100
      %s157 = smul.u32 32, %s14
      %p158 = scmp.lt.s32.totalorder %s157, 63
      %s159 = scalar_select %p158, %s157, 63
      %s160 = smul.addr %s159, 8
      %s161 = scalar_lea.vmem %s3, %s160
      %s162 = smul.u32 32, %s14
      %p163 = scmp.lt.s32.totalorder %s162, 63
      %s164 = scalar_select %p163, %s162, 63
      %s165 = smul.addr %s164, 8
      %s166 = scalar_lea.vmem %s0, %s165
      %s167 = smul.u32 32, %s14
      %s168 = smul.u32 32, %s14
      %p169 = scmp.lt.s32.totalorder %s168, 63
      %s170 = scalar_select %p169, %s168, 63
      %s171 = smul.addr %s170, 8
      %s172 = scalar_lea.vmem %s3, %s171
      %s173 = smul.u32 32, %s14
      %v174 = vld [vmem:[%s166] sm:$0xff]
      %v175 = vld [vmem:[%s166 + $0x8] sm:$0xff]
      %v176 = vld [vmem:[%s166 + $0x10] sm:$0xff]
      %v177 = vld [vmem:[%s166 + $0x18] sm:$0xff]
      %v178 = vld [vmem:[%s166 + $0x20] sm:$0xff]
      %v179 = vld [vmem:[%s166 + $0x28] sm:$0xff]
      %v180 = vld [vmem:[%s166 + $0x30] sm:$0xff]
      %v181 = vld [vmem:[%s166 + $0x38] sm:$0xff]
      %v182 = vld [vmem:[%s166 + $0x40] sm:$0xff]
      %v183 = vld [vmem:[%s166 + $0x48] sm:$0xff]
      %v184 = vld [vmem:[%s166 + $0x50] sm:$0xff]
      %v185 = vld [vmem:[%s166 + $0x58] sm:$0xff]
      %v186 = vld [vmem:[%s166 + $0x60] sm:$0xff]
      %v187 = vld [vmem:[%s166 + $0x68] sm:$0xff]
      %v188 = vld [vmem:[%s166 + $0x70] sm:$0xff]
      %v189 = vld [vmem:[%s166 + $0x78] sm:$0xff]
      %v190 = vld [vmem:[%s166 + $0x80] sm:$0xff]
      %v191 = vld [vmem:[%s166 + $0x88] sm:$0xff]
      %v192 = vld [vmem:[%s166 + $0x90] sm:$0xff]
      %v193 = vld [vmem:[%s166 + $0x98] sm:$0xff]
      %v194 = vld [vmem:[%s166 + $0xa0] sm:$0xff]
      %v195 = vld [vmem:[%s166 + $0xa8] sm:$0xff]
      %v196 = vld [vmem:[%s166 + $0xb0] sm:$0xff]
      %v197 = vld [vmem:[%s166 + $0xb8] sm:$0xff]
      %v198 = vld [vmem:[%s166 + $0xc0] sm:$0xff]
      %v199 = vld [vmem:[%s166 + $0xc8] sm:$0xff]
      %v200 = vld [vmem:[%s166 + $0xd0] sm:$0xff]
      %v201 = vld [vmem:[%s166 + $0xd8] sm:$0xff]
      %v202 = vld [vmem:[%s166 + $0xe0] sm:$0xff]
      %v203 = vld [vmem:[%s166 + $0xe8] sm:$0xff]
      %v204 = vld [vmem:[%s166 + $0xf0] sm:$0xff]
      %v205 = vld [vmem:[%s166 + $0xf8] sm:$0xff]
      %v206 = vld [vmem:[%s1] sm:$0xf]
      %v207 = vld [vmem:[%s2] sm:$0x1]
      %v209 = vlaneseq
      %v210 = vshrl.u32 %v209, 7
      %v211 = vsub.s32 0, %v210
      %v212 = vrot.slane %v207, %v211
      %vm214 = vcmask 31744
      %v216 = vsel %vm214, %v174, 0
      %v219 = vsel %vm214, %v175, 0
      %v222 = vsel %vm214, %v176, 0
      %v225 = vsel %vm214, %v177, 0
      %v228 = vsel %vm214, %v178, 0
      %v231 = vsel %vm214, %v179, 0
      %v234 = vsel %vm214, %v180, 0
      %v237 = vsel %vm214, %v181, 0
      %v240 = vsel %vm214, %v182, 0
      %v243 = vsel %vm214, %v183, 0
      %v246 = vsel %vm214, %v184, 0
      %v249 = vsel %vm214, %v185, 0
      %v252 = vsel %vm214, %v186, 0
      %v255 = vsel %vm214, %v187, 0
      %v258 = vsel %vm214, %v188, 0
      %v261 = vsel %vm214, %v189, 0
      %v264 = vsel %vm214, %v190, 0
      %v267 = vsel %vm214, %v191, 0
      %v270 = vsel %vm214, %v192, 0
      %v273 = vsel %vm214, %v193, 0
      %v276 = vsel %vm214, %v194, 0
      %v279 = vsel %vm214, %v195, 0
      %v282 = vsel %vm214, %v196, 0
      %v285 = vsel %vm214, %v197, 0
      %v288 = vsel %vm214, %v198, 0
      %v291 = vsel %vm214, %v199, 0
      %v294 = vsel %vm214, %v200, 0
      %v297 = vsel %vm214, %v201, 0
      %v300 = vsel %vm214, %v202, 0
      %v303 = vsel %vm214, %v203, 0
      %v306 = vsel %vm214, %v204, 0
      %v309 = vsel %vm214, %v205, 0
      %vm311 = vcmask 1043456
      %v313 = vsel %vm311, %v206, 0
      %315 = vmatprep.subr.mxu0 0.0
      %316 = vmatpush1.msra.mxu0 0.0
      %317 = vmatprep.subr.mxu0 0.0
      %318 = vmatpush1.msra.mxu0 0.0
      %319 = vmatprep.subr.mxu0 0.0
      %320 = vmatpush1.msra.mxu0 0.0
      %321 = vmatprep.subr.mxu0 0.0
      %322 = vmatpush1.msra.mxu0 0.0
      %323 = vmatprep.subr.mxu0 0.0
      %324 = vmatpush1.msra.mxu0 0.0
      %325 = vmatprep.subr.mxu0 0.0
      %326 = vmatpush1.msra.mxu0 0.0
      %327 = vmatprep.subr.mxu0 0.0
      %328 = vmatpush1.msra.mxu0 0.0
      %329 = vmatprep.subr.mxu0 0.0
      %330 = vmatpush1.msra.mxu0 0.0
      %331 = vmatprep.subr.mxu0 0.0
      %332 = vmatpush1.msra.mxu0 0.0
      %333 = vmatprep.subr.mxu0 0.0
      %334 = vmatpush1.msra.mxu0 0.0
      %335 = vmatprep.subr.mxu0 0.0
      %336 = vmatpush1.msra.mxu0 0.0
      %337 = vmatprep.subr.mxu0 0.0
      %338 = vmatpush1.msra.mxu0 0.0
      %339 = vmatprep.subr.mxu0 0.0
      %340 = vmatpush1.msra.mxu0 0.0
      %341 = vmatprep.subr.mxu0 0.0
      %342 = vmatpush1.msra.mxu0 0.0
      %343 = vmatprep.subr.mxu0 0.0
      %344 = vmatpush1.msra.mxu0 0.0
      %345 = vmatprep.subr.mxu0 0.0
      %346 = vmatpush1.msra.mxu0 %v313
      %347 = vmatprep.subr.mxu0 0.0
      %348 = vmatpush2.msra.mxu0 0.0
      %349 = vmatprep.subr.mxu0 0.0
      %350 = vmatpush2.msra.mxu0 0.0
      %351 = vmatprep.subr.mxu0 0.0
      %352 = vmatpush2.msra.mxu0 0.0
      %353 = vmatprep.subr.mxu0 0.0
      %354 = vmatpush2.msra.mxu0 0.0
      %355 = vmatprep.subr.mxu0 0.0
      %356 = vmatpush2.msra.mxu0 0.0
      %357 = vmatprep.subr.mxu0 0.0
      %358 = vmatpush2.msra.mxu0 0.0
      %359 = vmatprep.subr.mxu0 0.0
      %360 = vmatpush2.msra.mxu0 0.0
      %361 = vmatprep.subr.mxu0 0.0
      %362 = vmatpush2.msra.mxu0 0.0
      %363 = vmatprep.subr.mxu0 0.0
      %364 = vmatpush2.msra.mxu0 0.0
      %365 = vmatprep.subr.mxu0 0.0
      %366 = vmatpush2.msra.mxu0 0.0
      %367 = vmatprep.subr.mxu0 0.0
      %368 = vmatpush2.msra.mxu0 0.0
      %369 = vmatprep.subr.mxu0 0.0
      %370 = vmatpush2.msra.mxu0 0.0
      %371 = vmatprep.subr.mxu0 0.0
      %372 = vmatpush2.msra.mxu0 0.0
      %373 = vmatprep.subr.mxu0 0.0
      %374 = vmatpush2.msra.mxu0 0.0
      %375 = vmatprep.subr.mxu0 0.0
      %376 = vmatpush2.msra.mxu0 0.0
      %377 = vmatprep.subr.mxu0 0.0
      %378 = vmatpush2.msra.mxu0 0.0
      %379 = vmatprep.mubr.f32.mxu0 0.0
      %380 = vmatmul.mubr.f32.gmra.mxu0 %v216
      %v381 = vpop.f32.mrf.mxu0
      %v382 = vadd.f32 %v212, %v381
      %v383 = vpop.f32.mrf.mxu0
      %384 = vmatprep.mubr.f32.mxu0 0.0
      %385 = vmatmul.mubr.f32.gmra.mxu0 %v219
      %v386 = vpop.f32.mrf.mxu0
      %v387 = vadd.f32 %v212, %v386
      %v388 = vpop.f32.mrf.mxu0
      %389 = vmatprep.mubr.f32.mxu0 0.0
      %390 = vmatmul.mubr.f32.gmra.mxu0 %v222
      %v391 = vpop.f32.mrf.mxu0
      %v392 = vadd.f32 %v212, %v391
      %v393 = vpop.f32.mrf.mxu0
      %394 = vmatprep.mubr.f32.mxu0 0.0
      %395 = vmatmul.mubr.f32.gmra.mxu0 %v225
      %v396 = vpop.f32.mrf.mxu0
      %v397 = vadd.f32 %v212, %v396
      %v398 = vpop.f32.mrf.mxu0
      %399 = vmatprep.mubr.f32.mxu0 0.0
      %400 = vmatmul.mubr.f32.gmra.mxu0 %v228
      %v401 = vpop.f32.mrf.mxu0
      %v402 = vadd.f32 %v212, %v401
      %v403 = vpop.f32.mrf.mxu0
      %404 = vmatprep.mubr.f32.mxu0 0.0
      %405 = vmatmul.mubr.f32.gmra.mxu0 %v231
      %v406 = vpop.f32.mrf.mxu0
      %v407 = vadd.f32 %v212, %v406
      %v408 = vpop.f32.mrf.mxu0
      %409 = vmatprep.mubr.f32.mxu0 0.0
      %410 = vmatmul.mubr.f32.gmra.mxu0 %v234
      %v411 = vpop.f32.mrf.mxu0
      %v412 = vadd.f32 %v212, %v411
      %v413 = vpop.f32.mrf.mxu0
      %414 = vmatprep.mubr.f32.mxu0 0.0
      %415 = vmatmul.mubr.f32.gmra.mxu0 %v237
      %v416 = vpop.f32.mrf.mxu0
      %v417 = vadd.f32 %v212, %v416
      %v418 = vpop.f32.mrf.mxu0
      %419 = vmatprep.mubr.f32.mxu0 0.0
      %420 = vmatmul.mubr.f32.gmra.mxu0 %v240
      %v421 = vpop.f32.mrf.mxu0
      %v422 = vadd.f32 %v212, %v421
      %v423 = vpop.f32.mrf.mxu0
      %424 = vmatprep.mubr.f32.mxu0 0.0
      %425 = vmatmul.mubr.f32.gmra.mxu0 %v243
      %v426 = vpop.f32.mrf.mxu0
      %v427 = vadd.f32 %v212, %v426
      %v428 = vpop.f32.mrf.mxu0
      %429 = vmatprep.mubr.f32.mxu0 0.0
      %430 = vmatmul.mubr.f32.gmra.mxu0 %v246
      %v431 = vpop.f32.mrf.mxu0
      %v432 = vadd.f32 %v212, %v431
      %v433 = vpop.f32.mrf.mxu0
      %434 = vmatprep.mubr.f32.mxu0 0.0
      %435 = vmatmul.mubr.f32.gmra.mxu0 %v249
      %v436 = vpop.f32.mrf.mxu0
      %v437 = vadd.f32 %v212, %v436
      %v438 = vpop.f32.mrf.mxu0
      %439 = vmatprep.mubr.f32.mxu0 0.0
      %440 = vmatmul.mubr.f32.gmra.mxu0 %v252
      %v441 = vpop.f32.mrf.mxu0
      %v442 = vadd.f32 %v212, %v441
      %v443 = vpop.f32.mrf.mxu0
      %444 = vmatprep.mubr.f32.mxu0 0.0
      %445 = vmatmul.mubr.f32.gmra.mxu0 %v255
      %v446 = vpop.f32.mrf.mxu0
      %v447 = vadd.f32 %v212, %v446
      %v448 = vpop.f32.mrf.mxu0
      %449 = vmatprep.mubr.f32.mxu0 0.0
      %450 = vmatmul.mubr.f32.gmra.mxu0 %v258
      %v451 = vpop.f32.mrf.mxu0
      %v452 = vadd.f32 %v212, %v451
      %v453 = vpop.f32.mrf.mxu0
      %454 = vmatprep.mubr.f32.mxu0 0.0
      %455 = vmatmul.mubr.f32.gmra.mxu0 %v261
      %v456 = vpop.f32.mrf.mxu0
      %v457 = vadd.f32 %v212, %v456
      %v458 = vpop.f32.mrf.mxu0
      %459 = vmatprep.mubr.f32.mxu0 0.0
      %460 = vmatmul.mubr.f32.gmra.mxu0 %v264
      %v461 = vpop.f32.mrf.mxu0
      %v462 = vadd.f32 %v212, %v461
      %v463 = vpop.f32.mrf.mxu0
      %464 = vmatprep.mubr.f32.mxu0 0.0
      %465 = vmatmul.mubr.f32.gmra.mxu0 %v267
      %v466 = vpop.f32.mrf.mxu0
      %v467 = vadd.f32 %v212, %v466
      %v468 = vpop.f32.mrf.mxu0
      %469 = vmatprep.mubr.f32.mxu0 0.0
      %470 = vmatmul.mubr.f32.gmra.mxu0 %v270
      %v471 = vpop.f32.mrf.mxu0
      %v472 = vadd.f32 %v212, %v471
      %v473 = vpop.f32.mrf.mxu0
      %474 = vmatprep.mubr.f32.mxu0 0.0
      %475 = vmatmul.mubr.f32.gmra.mxu0 %v273
      %v476 = vpop.f32.mrf.mxu0
      %v477 = vadd.f32 %v212, %v476
      %v478 = vpop.f32.mrf.mxu0
      %479 = vmatprep.mubr.f32.mxu0 0.0
      %480 = vmatmul.mubr.f32.gmra.mxu0 %v276
      %v481 = vpop.f32.mrf.mxu0
      %v482 = vadd.f32 %v212, %v481
      %v483 = vpop.f32.mrf.mxu0
      %484 = vmatprep.mubr.f32.mxu0 0.0
      %485 = vmatmul.mubr.f32.gmra.mxu0 %v279
      %v486 = vpop.f32.mrf.mxu0
      %v487 = vadd.f32 %v212, %v486
      %v488 = vpop.f32.mrf.mxu0
      %489 = vmatprep.mubr.f32.mxu0 0.0
      %490 = vmatmul.mubr.f32.gmra.mxu0 %v282
      %v491 = vpop.f32.mrf.mxu0
      %v492 = vadd.f32 %v212, %v491
      %v493 = vpop.f32.mrf.mxu0
      %494 = vmatprep.mubr.f32.mxu0 0.0
      %495 = vmatmul.mubr.f32.gmra.mxu0 %v285
      %v496 = vpop.f32.mrf.mxu0
      %v497 = vadd.f32 %v212, %v496
      %v498 = vpop.f32.mrf.mxu0
      %499 = vmatprep.mubr.f32.mxu0 0.0
      %500 = vmatmul.mubr.f32.gmra.mxu0 %v288
      %v501 = vpop.f32.mrf.mxu0
      %v502 = vadd.f32 %v212, %v501
      %v503 = vpop.f32.mrf.mxu0
      %504 = vmatprep.mubr.f32.mxu0 0.0
      %505 = vmatmul.mubr.f32.gmra.mxu0 %v291
      %v506 = vpop.f32.mrf.mxu0
      %v507 = vadd.f32 %v212, %v506
      %v508 = vpop.f32.mrf.mxu0
      %509 = vmatprep.mubr.f32.mxu0 0.0
      %510 = vmatmul.mubr.f32.gmra.mxu0 %v294
      %v511 = vpop.f32.mrf.mxu0
      %v512 = vadd.f32 %v212, %v511
      %v513 = vpop.f32.mrf.mxu0
      %514 = vmatprep.mubr.f32.mxu0 0.0
      %515 = vmatmul.mubr.f32.gmra.mxu0 %v297
      %v516 = vpop.f32.mrf.mxu0
      %v517 = vadd.f32 %v212, %v516
      %v518 = vpop.f32.mrf.mxu0
      %519 = vmatprep.mubr.f32.mxu0 0.0
      %520 = vmatmul.mubr.f32.gmra.mxu0 %v300
      %v521 = vpop.f32.mrf.mxu0
      %v522 = vadd.f32 %v212, %v521
      %v523 = vpop.f32.mrf.mxu0
      %524 = vmatprep.mubr.f32.mxu0 0.0
      %525 = vmatmul.mubr.f32.gmra.mxu0 %v303
      %v526 = vpop.f32.mrf.mxu0
      %v527 = vadd.f32 %v212, %v526
      %v528 = vpop.f32.mrf.mxu0
      %529 = vmatprep.mubr.f32.mxu0 0.0
      %530 = vmatmul.mubr.f32.gmra.mxu0 %v306
      %v531 = vpop.f32.mrf.mxu0
      %v532 = vadd.f32 %v212, %v531
      %v533 = vpop.f32.mrf.mxu0
      %534 = vmatprep.mubr.f32.mxu0 0.0
      %535 = vmatmul.mubr.f32.gmra.mxu0 %v309
      %v536 = vpop.f32.mrf.mxu0
      %v537 = vadd.f32 %v212, %v536
      %v538 = vpop.f32.mrf.mxu0
      %539 = vdwg.mxu0
      %540 = vst.msk [vmem:[%s172] sm:$0xff] %vm214, %v382
      %541 = vst.msk [vmem:[%s172 + $0x8] sm:$0xff] %vm214, %v387
      %542 = vst.msk [vmem:[%s172 + $0x10] sm:$0xff] %vm214, %v392
      %543 = vst.msk [vmem:[%s172 + $0x18] sm:$0xff] %vm214, %v397
      %544 = vst.msk [vmem:[%s172 + $0x20] sm:$0xff] %vm214, %v402
      %545 = vst.msk [vmem:[%s172 + $0x28] sm:$0xff] %vm214, %v407
      %546 = vst.msk [vmem:[%s172 + $0x30] sm:$0xff] %vm214, %v412
      %547 = vst.msk [vmem:[%s172 + $0x38] sm:$0xff] %vm214, %v417
      %548 = vst.msk [vmem:[%s172 + $0x40] sm:$0xff] %vm214, %v422
      %549 = vst.msk [vmem:[%s172 + $0x48] sm:$0xff] %vm214, %v427
      %550 = vst.msk [vmem:[%s172 + $0x50] sm:$0xff] %vm214, %v432
      %551 = vst.msk [vmem:[%s172 + $0x58] sm:$0xff] %vm214, %v437
      %552 = vst.msk [vmem:[%s172 + $0x60] sm:$0xff] %vm214, %v442
      %553 = vst.msk [vmem:[%s172 + $0x68] sm:$0xff] %vm214, %v447
      %554 = vst.msk [vmem:[%s172 + $0x70] sm:$0xff] %vm214, %v452
      %555 = vst.msk [vmem:[%s172 + $0x78] sm:$0xff] %vm214, %v457
      %556 = vst.msk [vmem:[%s172 + $0x80] sm:$0xff] %vm214, %v462
      %557 = vst.msk [vmem:[%s172 + $0x88] sm:$0xff] %vm214, %v467
      %558 = vst.msk [vmem:[%s172 + $0x90] sm:$0xff] %vm214, %v472
      %559 = vst.msk [vmem:[%s172 + $0x98] sm:$0xff] %vm214, %v477
      %560 = vst.msk [vmem:[%s172 + $0xa0] sm:$0xff] %vm214, %v482
      %561 = vst.msk [vmem:[%s172 + $0xa8] sm:$0xff] %vm214, %v487
      %562 = vst.msk [vmem:[%s172 + $0xb0] sm:$0xff] %vm214, %v492
      %563 = vst.msk [vmem:[%s172 + $0xb8] sm:$0xff] %vm214, %v497
      %564 = vst.msk [vmem:[%s172 + $0xc0] sm:$0xff] %vm214, %v502
      %565 = vst.msk [vmem:[%s172 + $0xc8] sm:$0xff] %vm214, %v507
      %566 = vst.msk [vmem:[%s172 + $0xd0] sm:$0xff] %vm214, %v512
      %567 = vst.msk [vmem:[%s172 + $0xd8] sm:$0xff] %vm214, %v517
      %568 = vst.msk [vmem:[%s172 + $0xe0] sm:$0xff] %vm214, %v522
      %569 = vst.msk [vmem:[%s172 + $0xe8] sm:$0xff] %vm214, %v527
      %570 = vst.msk [vmem:[%s172 + $0xf0] sm:$0xff] %vm214, %v532
      %571 = vst.msk [vmem:[%s172 + $0xf8] sm:$0xff] %vm214, %v537
      %s572 = smul.u32 32, %s14
      %p573 = scmp.lt.s32.totalorder %s572, 63
      %s574 = scalar_select %p573, %s572, 63
      %s575 = smul.addr %s574, 8
      %s576 = scalar_lea.vmem %s3, %s575
      // Predicated region
      $region33: #{flow_forward.5} parent=31 // pred_check
        %p577 = pneg %p100
      $region34: #{flow_forward.5} parent=31 // pred_check_branch
        %579 = sbr.rel (%p577) target = $region36
      $region35: #{flow_forward.5} parent=31 // pred_region
        %s580 = smul.u32 32, %s14
      $region36: #{flow_forward.5} parent=31 // pred_fallthru
        _
    $region32: #{flow_forward.5} parent=5 // pred_fallthru
      _
    %p581 = scmp.le.s32.totalorder 2, %s9
    // Predicated region
    $region37: #{flow_forward.5} parent=5 // pred_check
      %p582 = pneg %p581
    $region38: #{flow_forward.5} parent=5 // pred_check_branch
      %584 = sbr.rel (%p582) target = $region40
    $region39: #{flow_forward.5} parent=5 // pred_region
      %s585 = ssub.s32 %s9, 2
      // Predicated region
      $region41: #{flow_forward.5} parent=39 // pred_check
        %p586 = pneg %p106
      $region42: #{flow_forward.5} parent=39 // pred_check_branch
        %588 = sbr.rel (%p586) target = $region44
      $region43: #{flow_forward.5} parent=39 // pred_region
        %s589 = smul.u32 32, %s15
        %p590 = scmp.lt.s32.totalorder %s589, 63
        %s591 = scalar_select %p590, %s589, 63
        %s592 = smul.addr %s591, 8
        %s593 = scalar_lea.vmem %s3, %s592
      $region44: #{flow_forward.5} parent=39 // pred_fallthru
        _
    $region40: #{flow_forward.5} parent=5 // pred_fallthru
      _
  $region6: #{flow_forward.5} parent=0 // loop_footer
    %s13 = sadd.s32 1, %s9
  $region7: #{flow_forward.5} parent=0 // loop_footer_branch
    %8 = sbr.rel target = $region3
  $region8: #{flow_forward.5} parent=0 // loop_exit
    _

// kernel: flow_forward.6
$region0: #{flow_forward.6}
  #allocation0 [shape = 'u32[]', space=smem, size = 0x4, offset = 0x4, fixed_abs, tag = 'smem constant byte address 0x4 - core index']
  #allocation1 [shape = 'u32[144,128]{1,0:T(1,128)}', space=vmem, size = 0x12000, scoped, tag = 'internal scratch']
  %s0 = inlined_call_operand.vmem [shape: bf16[512,18], index: 0, kind: input, shape index: {}]
  %s1 = inlined_call_operand.vmem [shape: bf16[18,512], index: 1, kind: input, shape index: {}]
  %s2 = inlined_call_operand.vmem [shape: f32[1,512], index: 2, kind: input, shape index: {}]
  %s3 = inlined_call_operand.vmem [shape: bf16[512,512], index: 3, kind: input, shape index: {}]
  %s4 = inlined_call_operand.vmem [shape: f32[1,512], index: 4, kind: input, shape index: {}]
  %s5 = inlined_call_operand.vmem [shape: bf16[512,512], index: 5, kind: output, shape index: {}]
  %s6 = sld [smem:[#allocation0]]
  $region53: #{flow_forward.6} parent=0
    _
  %s8 = ssub.s32 1, %s6
  %s9 = scalar_select 0, %s8, %s6
  loop: start=0, step=1, limit=4
  $region2: #{flow_forward.6} parent=0 // loop_pre_header
    _
  $region3: #{flow_forward.6} parent=0 // loop_header
    %s11 = sphi 0, %s15
    %p12 = scmp.ge.s32.totalorder %s11, 4
    %s21 = sphi 0, %s23
    %s24 = sphi 0, %s21
    %s25 = sphi 0, %s24
    %s41 = sphi 0, %s25
    %s45 = sphi 0, %s45
    %s47 = sphi 0, %s45
    %s48 = sphi 0, %s47
    %s62 = sphi 0, %s48
    %s66 = sphi 0, %s66
    %s68 = sphi 0, %s66
    %s69 = sphi 0, %s68
    %s83 = sphi 0, %s69
    %s87 = sphi 0, %s87
    %s89 = sphi 0, %s87
    %s90 = sphi 0, %s89
    %s104 = sphi 0, %s90
    %s108 = sphi 0, %s108
    %s110 = sphi 0, %s108
    %s111 = sphi 0, %s110
    %s125 = sphi 0, %s111
    %s131 = sphi 0, %s133
    %s134 = sphi 0, %s131
    %s135 = sphi 0, %s134
    %s151 = sphi 0, %s135
  $region4: #{flow_forward.6} parent=0 // loop_header_branch
    %14 = sbr.rel (%p12) target = $region8
  $region5: #{flow_forward.6} parent=0 // loop_body
    %s16 = ssub.s32 %s11, 1
    %s17 = ssub.s32 %s11, 2
    %s18 = sadd.s32 %s11, 1
    %s19 = ssub.s32 %s11, %s18
    %p20 = scmp.eq.s32.totalorder %s19, 0
    %s22 = sadd.s32 %s21, 1
    %s23 = scalar_select %p20, %s21, %s22
    %p26 = pneg %p20
    %p27 = scmp.eq.s32.totalorder %s11, 1
    %p28 = por %p26, %p27
    %p29 = scmp.ne.s32.totalorder %s21, %s24
    %p30 = scmp.eq.s32.totalorder %s11, 0
    %p31 = por %p29, %p30
    %p32 = scmp.ne.s32.totalorder %s21, %s24
    %p33 = scmp.eq.s32.totalorder %s16, 1
    %p34 = por %p32, %p33
    %p35 = scmp.ne.s32.totalorder %s24, %s25
    %p36 = scmp.eq.s32.totalorder %s16, 0
    %p37 = por %p35, %p36
    %p38 = scmp.ne.s32.totalorder %s24, %s25
    %p39 = scmp.eq.s32.totalorder %s17, 1
    %p40 = por %p38, %p39
    %p42 = scmp.ne.s32.totalorder %s25, %s41
    %p43 = scmp.eq.s32.totalorder %s17, 0
    %p44 = por %p42, %p43
    %s46 = sadd.s32 %s45, 1
    %p49 = scmp.eq.s32.totalorder %s11, 1
    %p50 = scmp.ne.s32.totalorder %s45, %s47
    %p51 = scmp.eq.s32.totalorder %s11, 0
    %p52 = por %p50, %p51
    %p53 = scmp.ne.s32.totalorder %s45, %s47
    %p54 = scmp.eq.s32.totalorder %s16, 1
    %p55 = por %p53, %p54
    %p56 = scmp.ne.s32.totalorder %s47, %s48
    %p57 = scmp.eq.s32.totalorder %s16, 0
    %p58 = por %p56, %p57
    %p59 = scmp.ne.s32.totalorder %s47, %s48
    %p60 = scmp.eq.s32.totalorder %s17, 1
    %p61 = por %p59, %p60
    %p63 = scmp.ne.s32.totalorder %s48, %s62
    %p64 = scmp.eq.s32.totalorder %s17, 0
    %p65 = por %p63, %p64
    %s67 = sadd.s32 %s66, 1
    %p70 = scmp.eq.s32.totalorder %s11, 1
    %p71 = scmp.ne.s32.totalorder %s66, %s68
    %p72 = scmp.eq.s32.totalorder %s11, 0
    %p73 = por %p71, %p72
    %p74 = scmp.ne.s32.totalorder %s66, %s68
    %p75 = scmp.eq.s32.totalorder %s16, 1
    %p76 = por %p74, %p75
    %p77 = scmp.ne.s32.totalorder %s68, %s69
    %p78 = scmp.eq.s32.totalorder %s16, 0
    %p79 = por %p77, %p78
    %p80 = scmp.ne.s32.totalorder %s68, %s69
    %p81 = scmp.eq.s32.totalorder %s17, 1
    %p82 = por %p80, %p81
    %p84 = scmp.ne.s32.totalorder %s69, %s83
    %p85 = scmp.eq.s32.totalorder %s17, 0
    %p86 = por %p84, %p85
    %s88 = sadd.s32 %s87, 1
    %p91 = scmp.eq.s32.totalorder %s11, 1
    %p92 = scmp.ne.s32.totalorder %s87, %s89
    %p93 = scmp.eq.s32.totalorder %s11, 0
    %p94 = por %p92, %p93
    %p95 = scmp.ne.s32.totalorder %s87, %s89
    %p96 = scmp.eq.s32.totalorder %s16, 1
    %p97 = por %p95, %p96
    %p98 = scmp.ne.s32.totalorder %s89, %s90
    %p99 = scmp.eq.s32.totalorder %s16, 0
    %p100 = por %p98, %p99
    %p101 = scmp.ne.s32.totalorder %s89, %s90
    %p102 = scmp.eq.s32.totalorder %s17, 1
    %p103 = por %p101, %p102
    %p105 = scmp.ne.s32.totalorder %s90, %s104
    %p106 = scmp.eq.s32.totalorder %s17, 0
    %p107 = por %p105, %p106
    %s109 = sadd.s32 %s108, 1
    %p112 = scmp.eq.s32.totalorder %s11, 1
    %p113 = scmp.ne.s32.totalorder %s108, %s110
    %p114 = scmp.eq.s32.totalorder %s11, 0
    %p115 = por %p113, %p114
    %p116 = scmp.ne.s32.totalorder %s108, %s110
    %p117 = scmp.eq.s32.totalorder %s16, 1
    %p118 = por %p116, %p117
    %p119 = scmp.ne.s32.totalorder %s110, %s111
    %p120 = scmp.eq.s32.totalorder %s16, 0
    %p121 = por %p119, %p120
    %p122 = scmp.ne.s32.totalorder %s110, %s111
    %p123 = scmp.eq.s32.totalorder %s17, 1
    %p124 = por %p122, %p123
    %p126 = scmp.ne.s32.totalorder %s111, %s125
    %p127 = scmp.eq.s32.totalorder %s17, 0
    %p128 = por %p126, %p127
    %s129 = ssub.s32 %s11, %s18
    %p130 = scmp.eq.s32.totalorder %s129, 0
    %s132 = sadd.s32 %s131, 1
    %s133 = scalar_select %p130, %s131, %s132
    %p136 = pneg %p130
    %p137 = scmp.eq.s32.totalorder %s11, 1
    %p138 = por %p136, %p137
    %p139 = scmp.ne.s32.totalorder %s131, %s134
    %p140 = scmp.eq.s32.totalorder %s11, 0
    %p141 = por %p139, %p140
    %p142 = scmp.ne.s32.totalorder %s131, %s134
    %p143 = scmp.eq.s32.totalorder %s16, 1
    %p144 = por %p142, %p143
    %p145 = scmp.ne.s32.totalorder %s134, %s135
    %p146 = scmp.eq.s32.totalorder %s16, 0
    %p147 = por %p145, %p146
    %p148 = scmp.ne.s32.totalorder %s134, %s135
    %p149 = scmp.eq.s32.totalorder %s17, 1
    %p150 = por %p148, %p149
    %p152 = scmp.ne.s32.totalorder %s135, %s151
    %p153 = scmp.eq.s32.totalorder %s17, 0
    %p154 = por %p152, %p153
    %p155 = scmp.le.s32.totalorder 1, %s11
    %p156 = scmp.lt.s32.totalorder %s11, 3
    %p157 = pnand %p155, %p156
    %p158 = pneg %p157
    // Predicated region
    $region9: #{flow_forward.6} parent=5 // pred_check
      _
    $region10: #{flow_forward.6} parent=5 // pred_check_branch
      %160 = sbr.rel (%p157) target = $region12
    $region11: #{flow_forward.6} parent=5 // pred_region
      %s161 = ssub.s32 %s11, 1
      // Predicated region
      $region13: #{flow_forward.6} parent=11 // pred_check
        %p162 = pneg %p58
      $region14: #{flow_forward.6} parent=11 // pred_check_branch
        %164 = sbr.rel (%p162) target = $region16
      $region15: #{flow_forward.6} parent=11 // pred_region
        _
      $region16: #{flow_forward.6} parent=11 // pred_fallthru
        _
      // Predicated region
      $region17: #{flow_forward.6} parent=11 // pred_check
        %p165 = pneg %p79
      $region18: #{flow_forward.6} parent=11 // pred_check_branch
        %167 = sbr.rel (%p165) target = $region20
      $region19: #{flow_forward.6} parent=11 // pred_region
        _
      $region20: #{flow_forward.6} parent=11 // pred_fallthru
        _
      // Predicated region
      $region21: #{flow_forward.6} parent=11 // pred_check
        %p168 = pneg %p100
      $region22: #{flow_forward.6} parent=11 // pred_check_branch
        %170 = sbr.rel (%p168) target = $region24
      $region23: #{flow_forward.6} parent=11 // pred_region
        _
      $region24: #{flow_forward.6} parent=11 // pred_fallthru
        _
      // Predicated region
      $region25: #{flow_forward.6} parent=11 // pred_check
        %p171 = pneg %p121
      $region26: #{flow_forward.6} parent=11 // pred_check_branch
        %173 = sbr.rel (%p171) target = $region28
      $region27: #{flow_forward.6} parent=11 // pred_region
        _
      $region28: #{flow_forward.6} parent=11 // pred_fallthru
        _
    $region12: #{flow_forward.6} parent=5 // pred_fallthru
      _
    %p174 = scmp.lt.s32.totalorder %s11, 2
    // Predicated region
    $region29: #{flow_forward.6} parent=5 // pred_check
      %p175 = pneg %p174
    $region30: #{flow_forward.6} parent=5 // pred_check_branch
      %177 = sbr.rel (%p175) target = $region32
    $region31: #{flow_forward.6} parent=5 // pred_region
      // Predicated region
      $region33: #{flow_forward.6} parent=31 // pred_check
        %p178 = pneg %p31
      $region34: #{flow_forward.6} parent=31 // pred_check_branch
        %180 = sbr.rel (%p178) target = $region36
      $region35: #{flow_forward.6} parent=31 // pred_region
        %s181 = smul.u32 32, %s11
        %p182 = scmp.lt.s32.totalorder %s181, 63
        %s183 = scalar_select %p182, %s181, 63
        %s184 = smul.addr %s183, 4
        %s185 = scalar_lea.vmem %s0, %s184
        %s186 = smul.u32 32, %s11
      $region36: #{flow_forward.6} parent=31 // pred_fallthru
        _
    $region32: #{flow_forward.6} parent=5 // pred_fallthru
      _
    %p187 = scmp.le.s32.totalorder 1, %s11
    %p188 = scmp.lt.s32.totalorder %s11, 3
    %p189 = pnand %p187, %p188
    %p190 = pneg %p189
    // Predicated region
    $region37: #{flow_forward.6} parent=5 // pred_check
      _
    $region38: #{flow_forward.6} parent=5 // pred_check_branch
      %192 = sbr.rel (%p189) target = $region40
    $region39: #{flow_forward.6} parent=5 // pred_region
      %s193 = ssub.s32 %s11, 1
      %s194 = smul.u32 32, %s16
      %p195 = scmp.lt.s32.totalorder %s194, 63
      %s196 = scalar_select %p195, %s194, 63
      %s197 = smul.addr %s196, 4
      %s198 = scalar_lea.vmem %s0, %s197
      %p199 = pneg %p37
      %p200 = pneg %p34
      %p201 = pneg %p58
      %p202 = pneg %p55
      %p203 = pneg %p79
      %p204 = pneg %p76
      %p205 = pneg %p100
      %p206 = pneg %p97
      %p207 = pneg %p121
      %p208 = pneg %p118
      %p209 = pneg %p147
      %p210 = pneg %p144
      %s211 = smul.u32 32, %s16
      %p212 = scmp.lt.s32.totalorder %s211, 63
      %s213 = scalar_select %p212, %s211, 63
      %s214 = smul.addr %s213, 4
      %s215 = smul.addr %s214, 4
      %s216 = scalar_lea.vmem %s5, %s215
      %s217 = smul.u32 32, %s16
      %p218 = scmp.lt.s32.totalorder %s217, 63
      %s219 = scalar_select %p218, %s217, 63
      %s220 = smul.addr %s219, 4
      %s221 = scalar_lea.vmem %s0, %s220
      %s222 = smul.u32 32, %s16
      %s223 = smul.u32 32, %s16
      %p224 = scmp.lt.s32.totalorder %s223, 63
      %s225 = scalar_select %p224, %s223, 63
      %s226 = smul.addr %s225, 4
      %s227 = smul.addr %s226, 4
      %s228 = scalar_lea.vmem %s5, %s227
      %s229 = smul.u32 32, %s16
      %v231 = vld [vmem:[%s221] sm:$0xf]
      %v232 = vld [vmem:[%s221 + $0x4] sm:$0xf]
      %v233 = vld [vmem:[%s221 + $0x8] sm:$0xf]
      %v234 = vld [vmem:[%s221 + $0xc] sm:$0xf]
      %v235 = vld [vmem:[%s221 + $0x10] sm:$0xf]
      %v236 = vld [vmem:[%s221 + $0x14] sm:$0xf]
      %v237 = vld [vmem:[%s221 + $0x18] sm:$0xf]
      %v238 = vld [vmem:[%s221 + $0x1c] sm:$0xf]
      %v239 = vld [vmem:[%s221 + $0x20] sm:$0xf]
      %v240 = vld [vmem:[%s221 + $0x24] sm:$0xf]
      %v241 = vld [vmem:[%s221 + $0x28] sm:$0xf]
      %v242 = vld [vmem:[%s221 + $0x2c] sm:$0xf]
      %v243 = vld [vmem:[%s221 + $0x30] sm:$0xf]
      %v244 = vld [vmem:[%s221 + $0x34] sm:$0xf]
      %v245 = vld [vmem:[%s221 + $0x38] sm:$0xf]
      %v246 = vld [vmem:[%s221 + $0x3c] sm:$0xf]
      %v247 = vld [vmem:[%s221 + $0x40] sm:$0xf]
      %v248 = vld [vmem:[%s221 + $0x44] sm:$0xf]
      %v249 = vld [vmem:[%s221 + $0x48] sm:$0xf]
      %v250 = vld [vmem:[%s221 + $0x4c] sm:$0xf]
      %v251 = vld [vmem:[%s221 + $0x50] sm:$0xf]
      %v252 = vld [vmem:[%s221 + $0x54] sm:$0xf]
      %v253 = vld [vmem:[%s221 + $0x58] sm:$0xf]
      %v254 = vld [vmem:[%s221 + $0x5c] sm:$0xf]
      %v255 = vld [vmem:[%s221 + $0x60] sm:$0xf]
      %v256 = vld [vmem:[%s221 + $0x64] sm:$0xf]
      %v257 = vld [vmem:[%s221 + $0x68] sm:$0xf]
      %v258 = vld [vmem:[%s221 + $0x6c] sm:$0xf]
      %v259 = vld [vmem:[%s221 + $0x70] sm:$0xf]
      %v260 = vld [vmem:[%s221 + $0x74] sm:$0xf]
      %v261 = vld [vmem:[%s221 + $0x78] sm:$0xf]
      %v262 = vld [vmem:[%s221 + $0x7c] sm:$0xf]
      %v263 = vld [vmem:[%s1] sm:$0xff]
      %v264 = vld [vmem:[%s1 + $0x8] sm:$0xff]
      %v265 = vld [vmem:[%s1 + $0x10] sm:$0xff]
      %v266 = vld [vmem:[%s1 + $0x18] sm:$0xff]
      %v267 = vld [vmem:[%s1 + $0x20] sm:$0x11]
      %v268 = vld [vmem:[%s1 + $0x28] sm:$0x11]
      %v269 = vld [vmem:[%s2] sm:$0xf]
      %v271 = vlaneseq
      %v272 = vshrl.u32 %v271, 7
      %v273 = vsub.s32 0, %v272
      %v274 = vrot.slane %v269, %v273
      %v275 = vlaneseq
      %v276 = vshrl.u32 %v275, 7
      %v277 = vsub.s32 1, %v276
      %v278 = vrot.slane %v269, %v277
      %v279 = vlaneseq
      %v280 = vshrl.u32 %v279, 7
      %v281 = vsub.s32 2, %v280
      %v282 = vrot.slane %v269, %v281
      %v283 = vlaneseq
      %v284 = vshrl.u32 %v283, 7
      %v285 = vsub.s32 3, %v284
      %v286 = vrot.slane %v269, %v285
      %v323 = vunpack.c.l.b16 %v231
      %v324 = vunpack.c.l.b16 %v232
      %v325 = vunpack.c.l.b16 %v233
      %v326 = vunpack.c.l.b16 %v234
      %v327 = vunpack.c.l.b16 %v235
      %v328 = vunpack.c.l.b16 %v236
      %v329 = vunpack.c.l.b16 %v237
      %v330 = vunpack.c.l.b16 %v238
      %v331 = vunpack.c.l.b16 %v239
      %v332 = vunpack.c.l.b16 %v240
      %v333 = vunpack.c.l.b16 %v241
      %v334 = vunpack.c.l.b16 %v242
      %v335 = vunpack.c.l.b16 %v243
      %v336 = vunpack.c.l.b16 %v244
      %v337 = vunpack.c.l.b16 %v245
      %v338 = vunpack.c.l.b16 %v246
      %v339 = vunpack.c.l.b16 %v247
      %v340 = vunpack.c.l.b16 %v248
      %v341 = vunpack.c.l.b16 %v249
      %v342 = vunpack.c.l.b16 %v250
      %v343 = vunpack.c.l.b16 %v251
      %v344 = vunpack.c.l.b16 %v252
      %v345 = vunpack.c.l.b16 %v253
      %v346 = vunpack.c.l.b16 %v254
      %v347 = vunpack.c.l.b16 %v255
      %v348 = vunpack.c.l.b16 %v256
      %v349 = vunpack.c.l.b16 %v257
      %v350 = vunpack.c.l.b16 %v258
      %v351 = vunpack.c.l.b16 %v259
      %v352 = vunpack.c.l.b16 %v260
      %v353 = vunpack.c.l.b16 %v261
      %v354 = vunpack.c.l.b16 %v262
      %v355 = vpack.c.b16 %v324, %v323
      %v356 = vpack.c.b16 %v326, %v325
      %v357 = vpack.c.b16 %v328, %v327
      %v358 = vpack.c.b16 %v330, %v329
      %v359 = vpack.c.b16 %v332, %v331
      %v360 = vpack.c.b16 %v334, %v333
      %v361 = vpack.c.b16 %v336, %v335
      %v362 = vpack.c.b16 %v338, %v337
      %v363 = vpack.c.b16 %v340, %v339
      %v364 = vpack.c.b16 %v342, %v341
      %v365 = vpack.c.b16 %v344, %v343
      %v366 = vpack.c.b16 %v346, %v345
      %v367 = vpack.c.b16 %v348, %v347
      %v368 = vpack.c.b16 %v350, %v349
      %v369 = vpack.c.b16 %v352, %v351
      %v370 = vpack.c.b16 %v354, %v353
      %v377 = vunpack.c.l.b16 %v263
      %v378 = vunpack.c.h.b16 %v263
      %v379 = vunpack.c.l.b16 %v264
      %v380 = vunpack.c.h.b16 %v264
      %v381 = vunpack.c.l.b16 %v265
      %v382 = vunpack.c.h.b16 %v265
      %v383 = vunpack.c.l.b16 %v266
      %v384 = vunpack.c.h.b16 %v266
      %v385 = vunpack.c.l.b16 %v267
      %v386 = vunpack.c.h.b16 %v267
      %v387 = vunpack.c.l.b16 %v268
      %v388 = vunpack.c.h.b16 %v268
      %v389 = vpack.c.b16 %v381, %v377
      %v390 = vpack.c.b16 %v382, %v378
      %v391 = vpack.c.b16 %v383, %v379
      %v392 = vpack.c.b16 %v384, %v380
      %v393 = vpack.c.b16 %v385, %v385
      %v394 = vpack.c.b16 %v386, %v386
      %v395 = vpack.c.b16 %v387, %v387
      %v396 = vpack.c.b16 %v388, %v388
      %vm401 = vcmask 146432
      %v403 = vsel %vm401, %v355, 0
      %v406 = vsel %vm401, %v356, 0
      %v409 = vsel %vm401, %v357, 0
      %v412 = vsel %vm401, %v358, 0
      %v415 = vsel %vm401, %v359, 0
      %v418 = vsel %vm401, %v360, 0
      %v421 = vsel %vm401, %v361, 0
      %v424 = vsel %vm401, %v362, 0
      %v427 = vsel %vm401, %v363, 0
      %v430 = vsel %vm401, %v364, 0
      %v433 = vsel %vm401, %v365, 0
      %v436 = vsel %vm401, %v366, 0
      %v439 = vsel %vm401, %v367, 0
      %v442 = vsel %vm401, %v368, 0
      %v445 = vsel %vm401, %v369, 0
      %v448 = vsel %vm401, %v370, 0
      %vm450 = vcmask 1040384
      %v452 = vsel %vm450, %v393, 0
      %v455 = vsel %vm450, %v394, 0
      %v458 = vsel %vm450, %v395, 0
      %v461 = vsel %vm450, %v396, 0
      %463 = vmatprep.subr.bf16.mxu0 0
      %464 = vmatpush1.bf16.msra.mxu0 0
      %465 = vmatprep.subr.bf16.mxu0 0
      %466 = vmatpush1.bf16.msra.mxu0 0
      %467 = vmatprep.subr.bf16.mxu0 0
      %468 = vmatpush1.bf16.msra.mxu0 0
      %469 = vmatprep.subr.bf16.mxu0 0
      %470 = vmatpush1.bf16.msra.mxu0 0
      %471 = vmatprep.subr.bf16.mxu0 0
      %472 = vmatpush1.bf16.msra.mxu0 0
      %473 = vmatprep.subr.bf16.mxu0 0
      %474 = vmatpush1.bf16.msra.mxu0 0
      %475 = vmatprep.subr.bf16.mxu0 %v455
      %476 = vmatpush1.bf16.msra.mxu0 %v452
      %477 = vmatprep.subr.bf16.mxu0 %v390
      %478 = vmatpush1.bf16.msra.mxu0 %v389
      %479 = vmatprep.subr.bf16.mxu0 0
      %480 = vmatpush2.bf16.msra.mxu0 0
      %481 = vmatprep.subr.bf16.mxu0 0
      %482 = vmatpush2.bf16.msra.mxu0 0
      %483 = vmatprep.subr.bf16.mxu0 0
      %484 = vmatpush2.bf16.msra.mxu0 0
      %485 = vmatprep.subr.bf16.mxu0 0
      %486 = vmatpush2.bf16.msra.mxu0 0
      %487 = vmatprep.subr.bf16.mxu0 0
      %488 = vmatpush2.bf16.msra.mxu0 0
      %489 = vmatprep.subr.bf16.mxu0 0
      %490 = vmatpush2.bf16.msra.mxu0 0
      %491 = vmatprep.subr.bf16.mxu0 0
      %492 = vmatpush2.bf16.msra.mxu0 0
      %493 = vmatprep.subr.bf16.mxu0 0
      %494 = vmatpush2.bf16.msra.mxu0 0
      %495 = vmatprep.mubr.bf16.mxu0 0
      %496 = vmatmul.mubr.bf16.gmra.mxu0 %v403
      %v497 = vpop.f32.mrf.mxu0
      %v498 = vadd.f32 %v274, %v497
      %v499 = vpop.f32.mrf.mxu0
      %v500 = vadd.f32 %v278, %v499
      %v501 = vpop.f32.mrf.mxu0
      %v502 = vadd.f32 %v274, %v501
      %v503 = vpop.f32.mrf.mxu0
      %v504 = vadd.f32 %v278, %v503
      %505 = vmatprep.mubr.bf16.mxu0 0
      %506 = vmatmul.mubr.bf16.gmra.mxu0 %v406
      %v507 = vpop.f32.mrf.mxu0
      %v508 = vadd.f32 %v274, %v507
      %v509 = vpop.f32.mrf.mxu0
      %v510 = vadd.f32 %v278, %v509
      %v511 = vpop.f32.mrf.mxu0
      %v512 = vadd.f32 %v274, %v511
      %v513 = vpop.f32.mrf.mxu0
      %v514 = vadd.f32 %v278, %v513
      %515 = vmatprep.mubr.bf16.mxu0 0
      %516 = vmatmul.mubr.bf16.gmra.mxu0 %v409
      %v517 = vpop.f32.mrf.mxu0
      %v518 = vadd.f32 %v274, %v517
      %v519 = vpop.f32.mrf.mxu0
      %v520 = vadd.f32 %v278, %v519
      %v521 = vpop.f32.mrf.mxu0
      %v522 = vadd.f32 %v274, %v521
      %v523 = vpop.f32.mrf.mxu0
      %v524 = vadd.f32 %v278, %v523
      %525 = vmatprep.mubr.bf16.mxu0 0
      %526 = vmatmul.mubr.bf16.gmra.mxu0 %v412
      %v527 = vpop.f32.mrf.mxu0
      %v528 = vadd.f32 %v274, %v527
      %v529 = vpop.f32.mrf.mxu0
      %v530 = vadd.f32 %v278, %v529
      %v531 = vpop.f32.mrf.mxu0
      %v532 = vadd.f32 %v274, %v531
      %v533 = vpop.f32.mrf.mxu0
      %v534 = vadd.f32 %v278, %v533
      %535 = vmatprep.mubr.bf16.mxu0 0
      %536 = vmatmul.mubr.bf16.gmra.mxu0 %v415
      %v537 = vpop.f32.mrf.mxu0
      %v538 = vadd.f32 %v274, %v537
      %v539 = vpop.f32.mrf.mxu0
      %v540 = vadd.f32 %v278, %v539
      %v541 = vpop.f32.mrf.mxu0
      %v542 = vadd.f32 %v274, %v541
      %v543 = vpop.f32.mrf.mxu0
      %v544 = vadd.f32 %v278, %v543
      %545 = vmatprep.mubr.bf16.mxu0 0
      %546 = vmatmul.mubr.bf16.gmra.mxu0 %v418
      %v547 = vpop.f32.mrf.mxu0
      %v548 = vadd.f32 %v274, %v547
      %v549 = vpop.f32.mrf.mxu0
      %v550 = vadd.f32 %v278, %v549
      %v551 = vpop.f32.mrf.mxu0
      %v552 = vadd.f32 %v274, %v551
      %v553 = vpop.f32.mrf.mxu0
      %v554 = vadd.f32 %v278, %v553
      %555 = vmatprep.mubr.bf16.mxu0 0
      %556 = vmatmul.mubr.bf16.gmra.mxu0 %v421
      %v557 = vpop.f32.mrf.mxu0
      %v558 = vadd.f32 %v274, %v557
      %v559 = vpop.f32.mrf.mxu0
      %v560 = vadd.f32 %v278, %v559
      %v561 = vpop.f32.mrf.mxu0
      %v562 = vadd.f32 %v274, %v561
      %v563 = vpop.f32.mrf.mxu0
      %v564 = vadd.f32 %v278, %v563
      %565 = vmatprep.mubr.bf16.mxu0 0
      %566 = vmatmul.mubr.bf16.gmra.mxu0 %v424
      %v567 = vpop.f32.mrf.mxu0
      %v568 = vadd.f32 %v274, %v567
      %v569 = vpop.f32.mrf.mxu0
      %v570 = vadd.f32 %v278, %v569
      %v571 = vpop.f32.mrf.mxu0
      %v572 = vadd.f32 %v274, %v571
      %v573 = vpop.f32.mrf.mxu0
      %v574 = vadd.f32 %v278, %v573
      %575 = vmatprep.mubr.bf16.mxu0 0
      %576 = vmatmul.mubr.bf16.gmra.mxu0 %v427
      %v577 = vpop.f32.mrf.mxu0
      %v578 = vadd.f32 %v274, %v577
      %v579 = vpop.f32.mrf.mxu0
      %v580 = vadd.f32 %v278, %v579
      %v581 = vpop.f32.mrf.mxu0
      %v582 = vadd.f32 %v274, %v581
      %v583 = vpop.f32.mrf.mxu0
      %v584 = vadd.f32 %v278, %v583
      %585 = vmatprep.mubr.bf16.mxu0 0
      %586 = vmatmul.mubr.bf16.gmra.mxu0 %v430
      %v587 = vpop.f32.mrf.mxu0
      %v588 = vadd.f32 %v274, %v587
      %v589 = vpop.f32.mrf.mxu0
      %v590 = vadd.f32 %v278, %v589
      %v591 = vpop.f32.mrf.mxu0
      %v592 = vadd.f32 %v274, %v591
      %v593 = vpop.f32.mrf.mxu0
      %v594 = vadd.f32 %v278, %v593
      %595 = vmatprep.mubr.bf16.mxu0 0
      %596 = vmatmul.mubr.bf16.gmra.mxu0 %v433
      %v597 = vpop.f32.mrf.mxu0
      %v598 = vadd.f32 %v274, %v597
      %v599 = vpop.f32.mrf.mxu0
      %v600 = vadd.f32 %v278, %v599
      %v601 = vpop.f32.mrf.mxu0
      %v602 = vadd.f32 %v274, %v601
      %v603 = vpop.f32.mrf.mxu0
      %v604 = vadd.f32 %v278, %v603
      %605 = vmatprep.mubr.bf16.mxu0 0
      %606 = vmatmul.mubr.bf16.gmra.mxu0 %v436
      %v607 = vpop.f32.mrf.mxu0
      %v608 = vadd.f32 %v274, %v607
      %v609 = vpop.f32.mrf.mxu0
      %v610 = vadd.f32 %v278, %v609
      %v611 = vpop.f32.mrf.mxu0
      %v612 = vadd.f32 %v274, %v611
      %v613 = vpop.f32.mrf.mxu0
      %v614 = vadd.f32 %v278, %v613
      %615 = vmatprep.mubr.bf16.mxu0 0
      %616 = vmatmul.mubr.bf16.gmra.mxu0 %v439
      %v617 = vpop.f32.mrf.mxu0
      %v618 = vadd.f32 %v274, %v617
      %v619 = vpop.f32.mrf.mxu0
      %v620 = vadd.f32 %v278, %v619
      %v621 = vpop.f32.mrf.mxu0
      %v622 = vadd.f32 %v274, %v621
      %v623 = vpop.f32.mrf.mxu0
      %v624 = vadd.f32 %v278, %v623
      %625 = vmatprep.mubr.bf16.mxu0 0
      %626 = vmatmul.mubr.bf16.gmra.mxu0 %v442
      %v627 = vpop.f32.mrf.mxu0
      %v628 = vadd.f32 %v274, %v627
      %v629 = vpop.f32.mrf.mxu0
      %v630 = vadd.f32 %v278, %v629
      %v631 = vpop.f32.mrf.mxu0
      %v632 = vadd.f32 %v274, %v631
      %v633 = vpop.f32.mrf.mxu0
      %v634 = vadd.f32 %v278, %v633
      %635 = vmatprep.mubr.bf16.mxu0 0
      %636 = vmatmul.mubr.bf16.gmra.mxu0 %v445
      %v637 = vpop.f32.mrf.mxu0
      %v638 = vadd.f32 %v274, %v637
      %v639 = vpop.f32.mrf.mxu0
      %v640 = vadd.f32 %v278, %v639
      %v641 = vpop.f32.mrf.mxu0
      %v642 = vadd.f32 %v274, %v641
      %v643 = vpop.f32.mrf.mxu0
      %v644 = vadd.f32 %v278, %v643
      %645 = vmatprep.mubr.bf16.mxu0 0
      %646 = vmatmul.mubr.bf16.gmra.mxu0 %v448
      %v647 = vpop.f32.mrf.mxu0
      %v648 = vadd.f32 %v274, %v647
      %v649 = vpop.f32.mrf.mxu0
      %v650 = vadd.f32 %v278, %v649
      %v651 = vpop.f32.mrf.mxu0
      %v652 = vadd.f32 %v274, %v651
      %v653 = vpop.f32.mrf.mxu0
      %v654 = vadd.f32 %v278, %v653
      %655 = vdwg.mxu0
      %656 = vmatprep.subr.bf16.mxu0 0
      %657 = vmatpush1.bf16.msra.mxu0 0
      %658 = vmatprep.subr.bf16.mxu0 0
      %659 = vmatpush1.bf16.msra.mxu0 0
      %660 = vmatprep.subr.bf16.mxu0 0
      %661 = vmatpush1.bf16.msra.mxu0 0
      %662 = vmatprep.subr.bf16.mxu0 0
      %663 = vmatpush1.bf16.msra.mxu0 0
      %664 = vmatprep.subr.bf16.mxu0 0
      %665 = vmatpush1.bf16.msra.mxu0 0
      %666 = vmatprep.subr.bf16.mxu0 0
      %667 = vmatpush1.bf16.msra.mxu0 0
      %668 = vmatprep.subr.bf16.mxu0 %v461
      %669 = vmatpush1.bf16.msra.mxu0 %v458
      %670 = vmatprep.subr.bf16.mxu0 %v392
      %671 = vmatpush1.bf16.msra.mxu0 %v391
      %672 = vmatprep.subr.bf16.mxu0 0
      %673 = vmatpush2.bf16.msra.mxu0 0
      %674 = vmatprep.subr.bf16.mxu0 0
      %675 = vmatpush2.bf16.msra.mxu0 0
      %676 = vmatprep.subr.bf16.mxu0 0
      %677 = vmatpush2.bf16.msra.mxu0 0
      %678 = vmatprep.subr.bf16.mxu0 0
      %679 = vmatpush2.bf16.msra.mxu0 0
      %680 = vmatprep.subr.bf16.mxu0 0
      %681 = vmatpush2.bf16.msra.mxu0 0
      %682 = vmatprep.subr.bf16.mxu0 0
      %683 = vmatpush2.bf16.msra.mxu0 0
      %684 = vmatprep.subr.bf16.mxu0 0
      %685 = vmatpush2.bf16.msra.mxu0 0
      %686 = vmatprep.subr.bf16.mxu0 0
      %687 = vmatpush2.bf16.msra.mxu0 0
      %688 = vmatprep.mubr.bf16.mxu0 0
      %689 = vmatmul.mubr.bf16.gmra.mxu0 %v403
      %v690 = vpop.f32.mrf.mxu0
      %v691 = vadd.f32 %v282, %v690
      %v692 = vpop.f32.mrf.mxu0
      %v693 = vadd.f32 %v286, %v692
      %v694 = vpop.f32.mrf.mxu0
      %v695 = vadd.f32 %v282, %v694
      %v696 = vpop.f32.mrf.mxu0
      %v697 = vadd.f32 %v286, %v696
      %698 = vmatprep.mubr.bf16.mxu0 0
      %699 = vmatmul.mubr.bf16.gmra.mxu0 %v406
      %v700 = vpop.f32.mrf.mxu0
      %v701 = vadd.f32 %v282, %v700
      %v702 = vpop.f32.mrf.mxu0
      %v703 = vadd.f32 %v286, %v702
      %v704 = vpop.f32.mrf.mxu0
      %v705 = vadd.f32 %v282, %v704
      %v706 = vpop.f32.mrf.mxu0
      %v707 = vadd.f32 %v286, %v706
      %708 = vmatprep.mubr.bf16.mxu0 0
      %709 = vmatmul.mubr.bf16.gmra.mxu0 %v409
      %v710 = vpop.f32.mrf.mxu0
      %v711 = vadd.f32 %v282, %v710
      %v712 = vpop.f32.mrf.mxu0
      %v713 = vadd.f32 %v286, %v712
      %v714 = vpop.f32.mrf.mxu0
      %v715 = vadd.f32 %v282, %v714
      %v716 = vpop.f32.mrf.mxu0
      %v717 = vadd.f32 %v286, %v716
      %718 = vmatprep.mubr.bf16.mxu0 0
      %719 = vmatmul.mubr.bf16.gmra.mxu0 %v412
      %v720 = vpop.f32.mrf.mxu0
      %v721 = vadd.f32 %v282, %v720
      %v722 = vpop.f32.mrf.mxu0
      %v723 = vadd.f32 %v286, %v722
      %v724 = vpop.f32.mrf.mxu0
      %v725 = vadd.f32 %v282, %v724
      %v726 = vpop.f32.mrf.mxu0
      %v727 = vadd.f32 %v286, %v726
      %728 = vmatprep.mubr.bf16.mxu0 0
      %729 = vmatmul.mubr.bf16.gmra.mxu0 %v415
      %v730 = vpop.f32.mrf.mxu0
      %v731 = vadd.f32 %v282, %v730
      %v732 = vpop.f32.mrf.mxu0
      %v733 = vadd.f32 %v286, %v732
      %v734 = vpop.f32.mrf.mxu0
      %v735 = vadd.f32 %v282, %v734
      %v736 = vpop.f32.mrf.mxu0
      %v737 = vadd.f32 %v286, %v736
      %738 = vmatprep.mubr.bf16.mxu0 0
      %739 = vmatmul.mubr.bf16.gmra.mxu0 %v418
      %v740 = vpop.f32.mrf.mxu0
      %v741 = vadd.f32 %v282, %v740
      %v742 = vpop.f32.mrf.mxu0
      %v743 = vadd.f32 %v286, %v742
      %v744 = vpop.f32.mrf.mxu0
      %v745 = vadd.f32 %v282, %v744
      %v746 = vpop.f32.mrf.mxu0
      %v747 = vadd.f32 %v286, %v746
      %748 = vmatprep.mubr.bf16.mxu0 0
      %749 = vmatmul.mubr.bf16.gmra.mxu0 %v421
      %v750 = vpop.f32.mrf.mxu0
      %v751 = vadd.f32 %v282, %v750
      %v752 = vpop.f32.mrf.mxu0
      %v753 = vadd.f32 %v286, %v752
      %v754 = vpop.f32.mrf.mxu0
      %v755 = vadd.f32 %v282, %v754
      %v756 = vpop.f32.mrf.mxu0
      %v757 = vadd.f32 %v286, %v756
      %758 = vmatprep.mubr.bf16.mxu0 0
      %759 = vmatmul.mubr.bf16.gmra.mxu0 %v424
      %v760 = vpop.f32.mrf.mxu0
      %v761 = vadd.f32 %v282, %v760
      %v762 = vpop.f32.mrf.mxu0
      %v763 = vadd.f32 %v286, %v762
      %v764 = vpop.f32.mrf.mxu0
      %v765 = vadd.f32 %v282, %v764
      %v766 = vpop.f32.mrf.mxu0
      %v767 = vadd.f32 %v286, %v766
      %768 = vmatprep.mubr.bf16.mxu0 0
      %769 = vmatmul.mubr.bf16.gmra.mxu0 %v427
      %v770 = vpop.f32.mrf.mxu0
      %v771 = vadd.f32 %v282, %v770
      %v772 = vpop.f32.mrf.mxu0
      %v773 = vadd.f32 %v286, %v772
      %v774 = vpop.f32.mrf.mxu0
      %v775 = vadd.f32 %v282, %v774
      %v776 = vpop.f32.mrf.mxu0
      %v777 = vadd.f32 %v286, %v776
      %778 = vmatprep.mubr.bf16.mxu0 0
      %779 = vmatmul.mubr.bf16.gmra.mxu0 %v430
      %v780 = vpop.f32.mrf.mxu0
      %v781 = vadd.f32 %v282, %v780
      %v782 = vpop.f32.mrf.mxu0
      %v783 = vadd.f32 %v286, %v782
      %v784 = vpop.f32.mrf.mxu0
      %v785 = vadd.f32 %v282, %v784
      %v786 = vpop.f32.mrf.mxu0
      %v787 = vadd.f32 %v286, %v786
      %788 = vmatprep.mubr.bf16.mxu0 0
      %789 = vmatmul.mubr.bf16.gmra.mxu0 %v433
      %v790 = vpop.f32.mrf.mxu0
      %v791 = vadd.f32 %v282, %v790
      %v792 = vpop.f32.mrf.mxu0
      %v793 = vadd.f32 %v286, %v792
      %v794 = vpop.f32.mrf.mxu0
      %v795 = vadd.f32 %v282, %v794
      %v796 = vpop.f32.mrf.mxu0
      %v797 = vadd.f32 %v286, %v796
      %798 = vmatprep.mubr.bf16.mxu0 0
      %799 = vmatmul.mubr.bf16.gmra.mxu0 %v436
      %v800 = vpop.f32.mrf.mxu0
      %v801 = vadd.f32 %v282, %v800
      %v802 = vpop.f32.mrf.mxu0
      %v803 = vadd.f32 %v286, %v802
      %v804 = vpop.f32.mrf.mxu0
      %v805 = vadd.f32 %v282, %v804
      %v806 = vpop.f32.mrf.mxu0
      %v807 = vadd.f32 %v286, %v806
      %808 = vmatprep.mubr.bf16.mxu0 0
      %809 = vmatmul.mubr.bf16.gmra.mxu0 %v439
      %v810 = vpop.f32.mrf.mxu0
      %v811 = vadd.f32 %v282, %v810
      %v812 = vpop.f32.mrf.mxu0
      %v813 = vadd.f32 %v286, %v812
      %v814 = vpop.f32.mrf.mxu0
      %v815 = vadd.f32 %v282, %v814
      %v816 = vpop.f32.mrf.mxu0
      %v817 = vadd.f32 %v286, %v816
      %818 = vmatprep.mubr.bf16.mxu0 0
      %819 = vmatmul.mubr.bf16.gmra.mxu0 %v442
      %v820 = vpop.f32.mrf.mxu0
      %v821 = vadd.f32 %v282, %v820
      %v822 = vpop.f32.mrf.mxu0
      %v823 = vadd.f32 %v286, %v822
      %v824 = vpop.f32.mrf.mxu0
      %v825 = vadd.f32 %v282, %v824
      %v826 = vpop.f32.mrf.mxu0
      %v827 = vadd.f32 %v286, %v826
      %828 = vmatprep.mubr.bf16.mxu0 0
      %829 = vmatmul.mubr.bf16.gmra.mxu0 %v445
      %v830 = vpop.f32.mrf.mxu0
      %v831 = vadd.f32 %v282, %v830
      %v832 = vpop.f32.mrf.mxu0
      %v833 = vadd.f32 %v286, %v832
      %v834 = vpop.f32.mrf.mxu0
      %v835 = vadd.f32 %v282, %v834
      %v836 = vpop.f32.mrf.mxu0
      %v837 = vadd.f32 %v286, %v836
      %838 = vmatprep.mubr.bf16.mxu0 0
      %839 = vmatmul.mubr.bf16.gmra.mxu0 %v448
      %v840 = vpop.f32.mrf.mxu0
      %v841 = vadd.f32 %v282, %v840
      %v842 = vpop.f32.mrf.mxu0
      %v843 = vadd.f32 %v286, %v842
      %v844 = vpop.f32.mrf.mxu0
      %v845 = vadd.f32 %v282, %v844
      %v846 = vpop.f32.mrf.mxu0
      %v847 = vadd.f32 %v286, %v846
      %848 = vdwg.mxu0
      %v849 = vmax.f32 %v498, 0.0
      %v850 = vmax.f32 %v500, 0.0
      %v851 = vmax.f32 %v691, 0.0
      %v852 = vmax.f32 %v693, 0.0
      %v853 = vmax.f32 %v502, 0.0
      %v854 = vmax.f32 %v504, 0.0
      %v855 = vmax.f32 %v695, 0.0
      %v856 = vmax.f32 %v697, 0.0
      %v857 = vmax.f32 %v508, 0.0
      %v858 = vmax.f32 %v510, 0.0
      %v859 = vmax.f32 %v701, 0.0
      %v860 = vmax.f32 %v703, 0.0
      %v861 = vmax.f32 %v512, 0.0
      %v862 = vmax.f32 %v514, 0.0
      %v863 = vmax.f32 %v705, 0.0
      %v864 = vmax.f32 %v707, 0.0
      %v865 = vmax.f32 %v518, 0.0
      %v866 = vmax.f32 %v520, 0.0
      %v867 = vmax.f32 %v711, 0.0
      %v868 = vmax.f32 %v713, 0.0
      %v869 = vmax.f32 %v522, 0.0
      %v870 = vmax.f32 %v524, 0.0
      %v871 = vmax.f32 %v715, 0.0
      %v872 = vmax.f32 %v717, 0.0
      %v873 = vmax.f32 %v528, 0.0
      %v874 = vmax.f32 %v530, 0.0
      %v875 = vmax.f32 %v721, 0.0
      %v876 = vmax.f32 %v723, 0.0
      %v877 = vmax.f32 %v532, 0.0
      %v878 = vmax.f32 %v534, 0.0
      %v879 = vmax.f32 %v725, 0.0
      %v880 = vmax.f32 %v727, 0.0
      %v881 = vmax.f32 %v538, 0.0
      %v882 = vmax.f32 %v540, 0.0
      %v883 = vmax.f32 %v731, 0.0
      %v884 = vmax.f32 %v733, 0.0
      %v885 = vmax.f32 %v542, 0.0
      %v886 = vmax.f32 %v544, 0.0
      %v887 = vmax.f32 %v735, 0.0
      %v888 = vmax.f32 %v737, 0.0
      %v889 = vmax.f32 %v548, 0.0
      %v890 = vmax.f32 %v550, 0.0
      %v891 = vmax.f32 %v741, 0.0
      %v892 = vmax.f32 %v743, 0.0
      %v893 = vmax.f32 %v552, 0.0
      %v894 = vmax.f32 %v554, 0.0
      %v895 = vmax.f32 %v745, 0.0
      %v896 = vmax.f32 %v747, 0.0
      %v897 = vmax.f32 %v558, 0.0
      %v898 = vmax.f32 %v560, 0.0
      %v899 = vmax.f32 %v751, 0.0
      %v900 = vmax.f32 %v753, 0.0
      %v901 = vmax.f32 %v562, 0.0
      %v902 = vmax.f32 %v564, 0.0
      %v903 = vmax.f32 %v755, 0.0
      %v904 = vmax.f32 %v757, 0.0
      %v905 = vmax.f32 %v568, 0.0
      %v906 = vmax.f32 %v570, 0.0
      %v907 = vmax.f32 %v761, 0.0
      %v908 = vmax.f32 %v763, 0.0
      %v909 = vmax.f32 %v572, 0.0
      %v910 = vmax.f32 %v574, 0.0
      %v911 = vmax.f32 %v765, 0.0
      %v912 = vmax.f32 %v767, 0.0
      %v913 = vmax.f32 %v578, 0.0
      %v914 = vmax.f32 %v580, 0.0
      %v915 = vmax.f32 %v771, 0.0
      %v916 = vmax.f32 %v773, 0.0
      %v917 = vmax.f32 %v582, 0.0
      %v918 = vmax.f32 %v584, 0.0
      %v919 = vmax.f32 %v775, 0.0
      %v920 = vmax.f32 %v777, 0.0
      %v921 = vmax.f32 %v588, 0.0
      %v922 = vmax.f32 %v590, 0.0
      %v923 = vmax.f32 %v781, 0.0
      %v924 = vmax.f32 %v783, 0.0
      %v925 = vmax.f32 %v592, 0.0
      %v926 = vmax.f32 %v594, 0.0
      %v927 = vmax.f32 %v785, 0.0
      %v928 = vmax.f32 %v787, 0.0
      %v929 = vmax.f32 %v598, 0.0
      %v930 = vmax.f32 %v600, 0.0
      %v931 = vmax.f32 %v791, 0.0
      %v932 = vmax.f32 %v793, 0.0
      %v933 = vmax.f32 %v602, 0.0
      %v934 = vmax.f32 %v604, 0.0
      %v935 = vmax.f32 %v795, 0.0
      %v936 = vmax.f32 %v797, 0.0
      %v937 = vmax.f32 %v608, 0.0
      %v938 = vmax.f32 %v610, 0.0
      %v939 = vmax.f32 %v801, 0.0
      %v940 = vmax.f32 %v803, 0.0
      %v941 = vmax.f32 %v612, 0.0
      %v942 = vmax.f32 %v614, 0.0
      %v943 = vmax.f32 %v805, 0.0
      %v944 = vmax.f32 %v807, 0.0
      %v945 = vmax.f32 %v618, 0.0
      %v946 = vmax.f32 %v620, 0.0
      %v947 = vmax.f32 %v811, 0.0
      %v948 = vmax.f32 %v813, 0.0
      %v949 = vmax.f32 %v622, 0.0
      %v950 = vmax.f32 %v624, 0.0
      %v951 = vmax.f32 %v815, 0.0
      %v952 = vmax.f32 %v817, 0.0
      %v953 = vmax.f32 %v628, 0.0
      %v954 = vmax.f32 %v630, 0.0
      %v955 = vmax.f32 %v821, 0.0
      %v956 = vmax.f32 %v823, 0.0
      %v957 = vmax.f32 %v632, 0.0
      %v958 = vmax.f32 %v634, 0.0
      %v959 = vmax.f32 %v825, 0.0
      %v960 = vmax.f32 %v827, 0.0
      %v961 = vmax.f32 %v638, 0.0
      %v962 = vmax.f32 %v640, 0.0
      %v963 = vmax.f32 %v831, 0.0
      %v964 = vmax.f32 %v833, 0.0
      %v965 = vmax.f32 %v642, 0.0
      %v966 = vmax.f32 %v644, 0.0
      %v967 = vmax.f32 %v835, 0.0
      %v968 = vmax.f32 %v837, 0.0
      %v969 = vmax.f32 %v648, 0.0
      %v970 = vmax.f32 %v650, 0.0
      %v971 = vmax.f32 %v841, 0.0
      %v972 = vmax.f32 %v843, 0.0
      %v973 = vmax.f32 %v652, 0.0
      %v974 = vmax.f32 %v654, 0.0
      %v975 = vmax.f32 %v845, 0.0
      %v976 = vmax.f32 %v847, 0.0
      %v977 = vpack.c.bf16 %v853, %v849
      %v978 = vpack.c.bf16 %v854, %v850
      %v979 = vpack.c.bf16 %v855, %v851
      %v980 = vpack.c.bf16 %v856, %v852
      %v981 = vpack.c.bf16 %v861, %v857
      %v982 = vpack.c.bf16 %v862, %v858
      %v983 = vpack.c.bf16 %v863, %v859
      %v984 = vpack.c.bf16 %v864, %v860
      %v985 = vpack.c.bf16 %v869, %v865
      %v986 = vpack.c.bf16 %v870, %v866
      %v987 = vpack.c.bf16 %v871, %v867
      %v988 = vpack.c.bf16 %v872, %v868
      %v989 = vpack.c.bf16 %v877, %v873
      %v990 = vpack.c.bf16 %v878, %v874
      %v991 = vpack.c.bf16 %v879, %v875
      %v992 = vpack.c.bf16 %v880, %v876
      %v993 = vpack.c.bf16 %v885, %v881
      %v994 = vpack.c.bf16 %v886, %v882
      %v995 = vpack.c.bf16 %v887, %v883
      %v996 = vpack.c.bf16 %v888, %v884
      %v997 = vpack.c.bf16 %v893, %v889
      %v998 = vpack.c.bf16 %v894, %v890
      %v999 = vpack.c.bf16 %v895, %v891
      %v1000 = vpack.c.bf16 %v896, %v892
      %v1001 = vpack.c.bf16 %v901, %v897
      %v1002 = vpack.c.bf16 %v902, %v898
      %v1003 = vpack.c.bf16 %v903, %v899
      %v1004 = vpack.c.bf16 %v904, %v900
      %v1005 = vpack.c.bf16 %v909, %v905
      %v1006 = vpack.c.bf16 %v910, %v906
      %v1007 = vpack.c.bf16 %v911, %v907
      %v1008 = vpack.c.bf16 %v912, %v908
      %v1009 = vpack.c.bf16 %v917, %v913
      %v1010 = vpack.c.bf16 %v918, %v914
      %v1011 = vpack.c.bf16 %v919, %v915
      %v1012 = vpack.c.bf16 %v920, %v916
      %v1013 = vpack.c.bf16 %v925, %v921
      %v1014 = vpack.c.bf16 %v926, %v922
      %v1015 = vpack.c.bf16 %v927, %v923
      %v1016 = vpack.c.bf16 %v928, %v924
      %v1017 = vpack.c.bf16 %v933, %v929
      %v1018 = vpack.c.bf16 %v934, %v930
      %v1019 = vpack.c.bf16 %v935, %v931
      %v1020 = vpack.c.bf16 %v936, %v932
      %v1021 = vpack.c.bf16 %v941, %v937
      %v1022 = vpack.c.bf16 %v942, %v938
      %v1023 = vpack.c.bf16 %v943, %v939
      %v1024 = vpack.c.bf16 %v944, %v940
      %v1025 = vpack.c.bf16 %v949, %v945
      %v1026 = vpack.c.bf16 %v950, %v946
      %v1027 = vpack.c.bf16 %v951, %v947
      %v1028 = vpack.c.bf16 %v952, %v948
      %v1029 = vpack.c.bf16 %v957, %v953
      %v1030 = vpack.c.bf16 %v958, %v954
      %v1031 = vpack.c.bf16 %v959, %v955
      %v1032 = vpack.c.bf16 %v960, %v956
      %v1033 = vpack.c.bf16 %v965, %v961
      %v1034 = vpack.c.bf16 %v966, %v962
      %v1035 = vpack.c.bf16 %v967, %v963
      %v1036 = vpack.c.bf16 %v968, %v964
      %v1037 = vpack.c.bf16 %v973, %v969
      %v1038 = vpack.c.bf16 %v974, %v970
      %v1039 = vpack.c.bf16 %v975, %v971
      %v1040 = vpack.c.bf16 %v976, %v972
      %v1041 = vld [vmem:[%s3] sm:$0xff]
      %v1042 = vld [vmem:[%s3 + $0x8] sm:$0xff]
      %v1043 = vld [vmem:[%s3 + $0x10] sm:$0xff]
      %v1044 = vld [vmem:[%s3 + $0x18] sm:$0xff]
      %v1045 = vld [vmem:[%s3 + $0x20] sm:$0xff]
      %v1046 = vld [vmem:[%s3 + $0x28] sm:$0xff]
      %v1047 = vld [vmem:[%s3 + $0x30] sm:$0xff]
      %v1048 = vld [vmem:[%s3 + $0x38] sm:$0xff]
      %v1049 = vld [vmem:[%s3 + $0x40] sm:$0xff]
      %v1050 = vld [vmem:[%s3 + $0x48] sm:$0xff]
      %v1051 = vld [vmem:[%s3 + $0x50] sm:$0xff]
      %v1052 = vld [vmem:[%s3 + $0x58] sm:$0xff]
      %v1053 = vld [vmem:[%s3 + $0x60] sm:$0xff]
      %v1054 = vld [vmem:[%s3 + $0x68] sm:$0xff]
      %v1055 = vld [vmem:[%s3 + $0x70] sm:$0xff]
      %v1056 = vld [vmem:[%s3 + $0x78] sm:$0xff]
      %v1057 = vld [vmem:[%s3 + $0x80] sm:$0xff]
      %v1058 = vld [vmem:[%s3 + $0x88] sm:$0xff]
      %v1059 = vld [vmem:[%s3 + $0x90] sm:$0xff]
      %v1060 = vld [vmem:[%s3 + $0x98] sm:$0xff]
      %v1061 = vld [vmem:[%s3 + $0xa0] sm:$0xff]
      %v1062 = vld [vmem:[%s3 + $0xa8] sm:$0xff]
      %v1063 = vld [vmem:[%s3 + $0xb0] sm:$0xff]
      %v1064 = vld [vmem:[%s3 + $0xb8] sm:$0xff]
      %v1065 = vld [vmem:[%s3 + $0xc0] sm:$0xff]
      %v1066 = vld [vmem:[%s3 + $0xc8] sm:$0xff]
      %v1067 = vld [vmem:[%s3 + $0xd0] sm:$0xff]
      %v1068 = vld [vmem:[%s3 + $0xd8] sm:$0xff]
      %v1069 = vld [vmem:[%s3 + $0xe0] sm:$0xff]
      %v1070 = vld [vmem:[%s3 + $0xe8] sm:$0xff]
      %v1071 = vld [vmem:[%s3 + $0xf0] sm:$0xff]
      %v1072 = vld [vmem:[%s3 + $0xf8] sm:$0xff]
      %v1073 = vld [vmem:[%s3 + $0x100] sm:$0xff]
      %v1074 = vld [vmem:[%s3 + $0x108] sm:$0xff]
      %v1075 = vld [vmem:[%s3 + $0x110] sm:$0xff]
      %v1076 = vld [vmem:[%s3 + $0x118] sm:$0xff]
      %v1077 = vld [vmem:[%s3 + $0x120] sm:$0xff]
      %v1078 = vld [vmem:[%s3 + $0x128] sm:$0xff]
      %v1079 = vld [vmem:[%s3 + $0x130] sm:$0xff]
      %v1080 = vld [vmem:[%s3 + $0x138] sm:$0xff]
      %v1081 = vld [vmem:[%s3 + $0x140] sm:$0xff]
      %v1082 = vld [vmem:[%s3 + $0x148] sm:$0xff]
      %v1083 = vld [vmem:[%s3 + $0x150] sm:$0xff]
      %v1084 = vld [vmem:[%s3 + $0x158] sm:$0xff]
      %v1085 = vld [vmem:[%s3 + $0x160] sm:$0xff]
      %v1086 = vld [vmem:[%s3 + $0x168] sm:$0xff]
      %v1087 = vld [vmem:[%s3 + $0x170] sm:$0xff]
      %v1088 = vld [vmem:[%s3 + $0x178] sm:$0xff]
      %v1089 = vld [vmem:[%s3 + $0x180] sm:$0xff]
      %v1090 = vld [vmem:[%s3 + $0x188] sm:$0xff]
      %v1091 = vld [vmem:[%s3 + $0x190] sm:$0xff]
      %v1092 = vld [vmem:[%s3 + $0x198] sm:$0xff]
      %v1093 = vld [vmem:[%s3 + $0x1a0] sm:$0xff]
      %v1094 = vld [vmem:[%s3 + $0x1a8] sm:$0xff]
      %v1095 = vld [vmem:[%s3 + $0x1b0] sm:$0xff]
      %v1096 = vld [vmem:[%s3 + $0x1b8] sm:$0xff]
      %v1097 = vld [vmem:[%s3 + $0x1c0] sm:$0xff]
      %v1098 = vld [vmem:[%s3 + $0x1c8] sm:$0xff]
      %v1099 = vld [vmem:[%s3 + $0x1d0] sm:$0xff]
      %v1100 = vld [vmem:[%s3 + $0x1d8] sm:$0xff]
      %v1101 = vld [vmem:[%s3 + $0x1e0] sm:$0xff]
      %v1102 = vld [vmem:[%s3 + $0x1e8] sm:$0xff]
      %v1103 = vld [vmem:[%s3 + $0x1f0] sm:$0xff]
      %v1104 = vld [vmem:[%s3 + $0x1f8] sm:$0xff]
      %v1105 = vld [vmem:[%s3 + $0x200] sm:$0xff]
      %v1106 = vld [vmem:[%s3 + $0x208] sm:$0xff]
      %v1107 = vld [vmem:[%s3 + $0x210] sm:$0xff]
      %v1108 = vld [vmem:[%s3 + $0x218] sm:$0xff]
      %v1109 = vld [vmem:[%s3 + $0x220] sm:$0xff]
      %v1110 = vld [vmem:[%s3 + $0x228] sm:$0xff]
      %v1111 = vld [vmem:[%s3 + $0x230] sm:$0xff]
      %v1112 = vld [vmem:[%s3 + $0x238] sm:$0xff]
      %v1113 = vld [vmem:[%s3 + $0x240] sm:$0xff]
      %v1114 = vld [vmem:[%s3 + $0x248] sm:$0xff]
      %v1115 = vld [vmem:[%s3 + $0x250] sm:$0xff]
      %v1116 = vld [vmem:[%s3 + $0x258] sm:$0xff]
      %v1117 = vld [vmem:[%s3 + $0x260] sm:$0xff]
      %v1118 = vld [vmem:[%s3 + $0x268] sm:$0xff]
      %v1119 = vld [vmem:[%s3 + $0x270] sm:$0xff]
      %v1120 = vld [vmem:[%s3 + $0x278] sm:$0xff]
      %v1121 = vld [vmem:[%s3 + $0x280] sm:$0xff]
      %v1122 = vld [vmem:[%s3 + $0x288] sm:$0xff]
      %v1123 = vld [vmem:[%s3 + $0x290] sm:$0xff]
      %v1124 = vld [vmem:[%s3 + $0x298] sm:$0xff]
      %v1125 = vld [vmem:[%s3 + $0x2a0] sm:$0xff]
      %v1126 = vld [vmem:[%s3 + $0x2a8] sm:$0xff]
      %v1127 = vld [vmem:[%s3 + $0x2b0] sm:$0xff]
      %v1128 = vld [vmem:[%s3 + $0x2b8] sm:$0xff]
      %v1129 = vld [vmem:[%s3 + $0x2c0] sm:$0xff]
      %v1130 = vld [vmem:[%s3 + $0x2c8] sm:$0xff]
      %v1131 = vld [vmem:[%s3 + $0x2d0] sm:$0xff]
      %v1132 = vld [vmem:[%s3 + $0x2d8] sm:$0xff]
      %v1133 = vld [vmem:[%s3 + $0x2e0] sm:$0xff]
      %v1134 = vld [vmem:[%s3 + $0x2e8] sm:$0xff]
      %v1135 = vld [vmem:[%s3 + $0x2f0] sm:$0xff]
      %v1136 = vld [vmem:[%s3 + $0x2f8] sm:$0xff]
      %v1137 = vld [vmem:[%s3 + $0x300] sm:$0xff]
      %v1138 = vld [vmem:[%s3 + $0x308] sm:$0xff]
      %v1139 = vld [vmem:[%s3 + $0x310] sm:$0xff]
      %v1140 = vld [vmem:[%s3 + $0x318] sm:$0xff]
      %v1141 = vld [vmem:[%s3 + $0x320] sm:$0xff]
      %v1142 = vld [vmem:[%s3 + $0x328] sm:$0xff]
      %v1143 = vld [vmem:[%s3 + $0x330] sm:$0xff]
      %v1144 = vld [vmem:[%s3 + $0x338] sm:$0xff]
      %v1145 = vld [vmem:[%s3 + $0x340] sm:$0xff]
      %v1146 = vld [vmem:[%s3 + $0x348] sm:$0xff]
      %v1147 = vld [vmem:[%s3 + $0x350] sm:$0xff]
      %v1148 = vld [vmem:[%s3 + $0x358] sm:$0xff]
      %v1149 = vld [vmem:[%s3 + $0x360] sm:$0xff]
      %v1150 = vld [vmem:[%s3 + $0x368] sm:$0xff]
      %v1151 = vld [vmem:[%s3 + $0x370] sm:$0xff]
      %v1152 = vld [vmem:[%s3 + $0x378] sm:$0xff]
      %v1153 = vld [vmem:[%s3 + $0x380] sm:$0xff]
      %v1154 = vld [vmem:[%s3 + $0x388] sm:$0xff]
      %v1155 = vld [vmem:[%s3 + $0x390] sm:$0xff]
      %v1156 = vld [vmem:[%s3 + $0x398] sm:$0xff]
      %v1157 = vld [vmem:[%s3 + $0x3a0] sm:$0xff]
      %v1158 = vld [vmem:[%s3 + $0x3a8] sm:$0xff]
      %v1159 = vld [vmem:[%s3 + $0x3b0] sm:$0xff]
      %v1160 = vld [vmem:[%s3 + $0x3b8] sm:$0xff]
      %v1161 = vld [vmem:[%s3 + $0x3c0] sm:$0xff]
      %v1162 = vld [vmem:[%s3 + $0x3c8] sm:$0xff]
      %v1163 = vld [vmem:[%s3 + $0x3d0] sm:$0xff]
      %v1164 = vld [vmem:[%s3 + $0x3d8] sm:$0xff]
      %v1165 = vld [vmem:[%s3 + $0x3e0] sm:$0xff]
      %v1166 = vld [vmem:[%s3 + $0x3e8] sm:$0xff]
      %v1167 = vld [vmem:[%s3 + $0x3f0] sm:$0xff]
      %v1168 = vld [vmem:[%s3 + $0x3f8] sm:$0xff]
      %v1169 = vld [vmem:[%s4] sm:$0xf]
      %v1171 = vlaneseq
      %v1172 = vshrl.u32 %v1171, 7
      %v1173 = vsub.s32 0, %v1172
      %v1174 = vrot.slane %v1169, %v1173
      %v1175 = vlaneseq
      %v1176 = vshrl.u32 %v1175, 7
      %v1177 = vsub.s32 1, %v1176
      %v1178 = vrot.slane %v1169, %v1177
      %v1179 = vlaneseq
      %v1180 = vshrl.u32 %v1179, 7
      %v1181 = vsub.s32 2, %v1180
      %v1182 = vrot.slane %v1169, %v1181
      %v1183 = vlaneseq
      %v1184 = vshrl.u32 %v1183, 7
      %v1185 = vsub.s32 3, %v1184
      %v1186 = vrot.slane %v1169, %v1185
      %v1319 = vunpack.c.l.b16 %v1041
      %v1320 = vunpack.c.h.b16 %v1041
      %v1321 = vunpack.c.l.b16 %v1042
      %v1322 = vunpack.c.h.b16 %v1042
      %v1323 = vunpack.c.l.b16 %v1043
      %v1324 = vunpack.c.h.b16 %v1043
      %v1325 = vunpack.c.l.b16 %v1044
      %v1326 = vunpack.c.h.b16 %v1044
      %v1327 = vunpack.c.l.b16 %v1045
      %v1328 = vunpack.c.h.b16 %v1045
      %v1329 = vunpack.c.l.b16 %v1046
      %v1330 = vunpack.c.h.b16 %v1046
      %v1331 = vunpack.c.l.b16 %v1047
      %v1332 = vunpack.c.h.b16 %v1047
      %v1333 = vunpack.c.l.b16 %v1048
      %v1334 = vunpack.c.h.b16 %v1048
      %v1335 = vunpack.c.l.b16 %v1049
      %v1336 = vunpack.c.h.b16 %v1049
      %v1337 = vunpack.c.l.b16 %v1050
      %v1338 = vunpack.c.h.b16 %v1050
      %v1339 = vunpack.c.l.b16 %v1051
      %v1340 = vunpack.c.h.b16 %v1051
      %v1341 = vunpack.c.l.b16 %v1052
      %v1342 = vunpack.c.h.b16 %v1052
      %v1343 = vunpack.c.l.b16 %v1053
      %v1344 = vunpack.c.h.b16 %v1053
      %v1345 = vunpack.c.l.b16 %v1054
      %v1346 = vunpack.c.h.b16 %v1054
      %v1347 = vunpack.c.l.b16 %v1055
      %v1348 = vunpack.c.h.b16 %v1055
      %v1349 = vunpack.c.l.b16 %v1056
      %v1350 = vunpack.c.h.b16 %v1056
      %v1351 = vunpack.c.l.b16 %v1057
      %v1352 = vunpack.c.h.b16 %v1057
      %v1353 = vunpack.c.l.b16 %v1058
      %v1354 = vunpack.c.h.b16 %v1058
      %v1355 = vunpack.c.l.b16 %v1059
      %v1356 = vunpack.c.h.b16 %v1059
      %v1357 = vunpack.c.l.b16 %v1060
      %v1358 = vunpack.c.h.b16 %v1060
      %v1359 = vunpack.c.l.b16 %v1061
      %v1360 = vunpack.c.h.b16 %v1061
      %v1361 = vunpack.c.l.b16 %v1062
      %v1362 = vunpack.c.h.b16 %v1062
      %v1363 = vunpack.c.l.b16 %v1063
      %v1364 = vunpack.c.h.b16 %v1063
      %v1365 = vunpack.c.l.b16 %v1064
      %v1366 = vunpack.c.h.b16 %v1064
      %v1367 = vunpack.c.l.b16 %v1065
      %v1368 = vunpack.c.h.b16 %v1065
      %v1369 = vunpack.c.l.b16 %v1066
      %v1370 = vunpack.c.h.b16 %v1066
      %v1371 = vunpack.c.l.b16 %v1067
      %v1372 = vunpack.c.h.b16 %v1067
      %v1373 = vunpack.c.l.b16 %v1068
      %v1374 = vunpack.c.h.b16 %v1068
      %v1375 = vunpack.c.l.b16 %v1069
      %v1376 = vunpack.c.h.b16 %v1069
      %v1377 = vunpack.c.l.b16 %v1070
      %v1378 = vunpack.c.h.b16 %v1070
      %v1379 = vunpack.c.l.b16 %v1071
      %v1380 = vunpack.c.h.b16 %v1071
      %v1381 = vunpack.c.l.b16 %v1072
      %v1382 = vunpack.c.h.b16 %v1072
      %v1383 = vunpack.c.l.b16 %v1073
      %v1384 = vunpack.c.h.b16 %v1073
      %v1385 = vunpack.c.l.b16 %v1074
      %v1386 = vunpack.c.h.b16 %v1074
      %v1387 = vunpack.c.l.b16 %v1075
      %v1388 = vunpack.c.h.b16 %v1075
      %v1389 = vunpack.c.l.b16 %v1076
      %v1390 = vunpack.c.h.b16 %v1076
      %v1391 = vunpack.c.l.b16 %v1077
      %v1392 = vunpack.c.h.b16 %v1077
      %v1393 = vunpack.c.l.b16 %v1078
      %v1394 = vunpack.c.h.b16 %v1078
      %v1395 = vunpack.c.l.b16 %v1079
      %v1396 = vunpack.c.h.b16 %v1079
      %v1397 = vunpack.c.l.b16 %v1080
      %v1398 = vunpack.c.h.b16 %v1080
      %v1399 = vunpack.c.l.b16 %v1081
      %v1400 = vunpack.c.h.b16 %v1081
      %v1401 = vunpack.c.l.b16 %v1082
      %v1402 = vunpack.c.h.b16 %v1082
      %v1403 = vunpack.c.l.b16 %v1083
      %v1404 = vunpack.c.h.b16 %v1083
      %v1405 = vunpack.c.l.b16 %v1084
      %v1406 = vunpack.c.h.b16 %v1084
      %v1407 = vunpack.c.l.b16 %v1085
      %v1408 = vunpack.c.h.b16 %v1085
      %v1409 = vunpack.c.l.b16 %v1086
      %v1410 = vunpack.c.h.b16 %v1086
      %v1411 = vunpack.c.l.b16 %v1087
      %v1412 = vunpack.c.h.b16 %v1087
      %v1413 = vunpack.c.l.b16 %v1088
      %v1414 = vunpack.c.h.b16 %v1088
      %v1415 = vunpack.c.l.b16 %v1089
      %v1416 = vunpack.c.h.b16 %v1089
      %v1417 = vunpack.c.l.b16 %v1090
      %v1418 = vunpack.c.h.b16 %v1090
      %v1419 = vunpack.c.l.b16 %v1091
      %v1420 = vunpack.c.h.b16 %v1091
      %v1421 = vunpack.c.l.b16 %v1092
      %v1422 = vunpack.c.h.b16 %v1092
      %v1423 = vunpack.c.l.b16 %v1093
      %v1424 = vunpack.c.h.b16 %v1093
      %v1425 = vunpack.c.l.b16 %v1094
      %v1426 = vunpack.c.h.b16 %v1094
      %v1427 = vunpack.c.l.b16 %v1095
      %v1428 = vunpack.c.h.b16 %v1095
      %v1429 = vunpack.c.l.b16 %v1096
      %v1430 = vunpack.c.h.b16 %v1096
      %v1431 = vunpack.c.l.b16 %v1097
      %v1432 = vunpack.c.h.b16 %v1097
      %v1433 = vunpack.c.l.b16 %v1098
      %v1434 = vunpack.c.h.b16 %v1098
      %v1435 = vunpack.c.l.b16 %v1099
      %v1436 = vunpack.c.h.b16 %v1099
      %v1437 = vunpack.c.l.b16 %v1100
      %v1438 = vunpack.c.h.b16 %v1100
      %v1439 = vunpack.c.l.b16 %v1101
      %v1440 = vunpack.c.h.b16 %v1101
      %v1441 = vunpack.c.l.b16 %v1102
      %v1442 = vunpack.c.h.b16 %v1102
      %v1443 = vunpack.c.l.b16 %v1103
      %v1444 = vunpack.c.h.b16 %v1103
      %v1445 = vunpack.c.l.b16 %v1104
      %v1446 = vunpack.c.h.b16 %v1104
      %v1447 = vunpack.c.l.b16 %v1105
      %v1448 = vunpack.c.h.b16 %v1105
      %v1449 = vunpack.c.l.b16 %v1106
      %v1450 = vunpack.c.h.b16 %v1106
      %v1451 = vunpack.c.l.b16 %v1107
      %v1452 = vunpack.c.h.b16 %v1107
      %v1453 = vunpack.c.l.b16 %v1108
      %v1454 = vunpack.c.h.b16 %v1108
      %v1455 = vunpack.c.l.b16 %v1109
      %v1456 = vunpack.c.h.b16 %v1109
      %v1457 = vunpack.c.l.b16 %v1110
      %v1458 = vunpack.c.h.b16 %v1110
      %v1459 = vunpack.c.l.b16 %v1111
      %v1460 = vunpack.c.h.b16 %v1111
      %v1461 = vunpack.c.l.b16 %v1112
      %v1462 = vunpack.c.h.b16 %v1112
      %v1463 = vunpack.c.l.b16 %v1113
      %v1464 = vunpack.c.h.b16 %v1113
      %v1465 = vunpack.c.l.b16 %v1114
      %v1466 = vunpack.c.h.b16 %v1114
      %v1467 = vunpack.c.l.b16 %v1115
      %v1468 = vunpack.c.h.b16 %v1115
      %v1469 = vunpack.c.l.b16 %v1116
      %v1470 = vunpack.c.h.b16 %v1116
      %v1471 = vunpack.c.l.b16 %v1117
      %v1472 = vunpack.c.h.b16 %v1117
      %v1473 = vunpack.c.l.b16 %v1118
      %v1474 = vunpack.c.h.b16 %v1118
      %v1475 = vunpack.c.l.b16 %v1119
      %v1476 = vunpack.c.h.b16 %v1119
      %v1477 = vunpack.c.l.b16 %v1120
      %v1478 = vunpack.c.h.b16 %v1120
      %v1479 = vunpack.c.l.b16 %v1121
      %v1480 = vunpack.c.h.b16 %v1121
      %v1481 = vunpack.c.l.b16 %v1122
      %v1482 = vunpack.c.h.b16 %v1122
      %v1483 = vunpack.c.l.b16 %v1123
      %v1484 = vunpack.c.h.b16 %v1123
      %v1485 = vunpack.c.l.b16 %v1124
      %v1486 = vunpack.c.h.b16 %v1124
      %v1487 = vunpack.c.l.b16 %v1125
      %v1488 = vunpack.c.h.b16 %v1125
      %v1489 = vunpack.c.l.b16 %v1126
      %v1490 = vunpack.c.h.b16 %v1126
      %v1491 = vunpack.c.l.b16 %v1127
      %v1492 = vunpack.c.h.b16 %v1127
      %v1493 = vunpack.c.l.b16 %v1128
      %v1494 = vunpack.c.h.b16 %v1128
      %v1495 = vunpack.c.l.b16 %v1129
      %v1496 = vunpack.c.h.b16 %v1129
      %v1497 = vunpack.c.l.b16 %v1130
      %v1498 = vunpack.c.h.b16 %v1130
      %v1499 = vunpack.c.l.b16 %v1131
      %v1500 = vunpack.c.h.b16 %v1131
      %v1501 = vunpack.c.l.b16 %v1132
      %v1502 = vunpack.c.h.b16 %v1132
      %v1503 = vunpack.c.l.b16 %v1133
      %v1504 = vunpack.c.h.b16 %v1133
      %v1505 = vunpack.c.l.b16 %v1134
      %v1506 = vunpack.c.h.b16 %v1134
      %v1507 = vunpack.c.l.b16 %v1135
      %v1508 = vunpack.c.h.b16 %v1135
      %v1509 = vunpack.c.l.b16 %v1136
      %v1510 = vunpack.c.h.b16 %v1136
      %v1511 = vunpack.c.l.b16 %v1137
      %v1512 = vunpack.c.h.b16 %v1137
      %v1513 = vunpack.c.l.b16 %v1138
      %v1514 = vunpack.c.h.b16 %v1138
      %v1515 = vunpack.c.l.b16 %v1139
      %v1516 = vunpack.c.h.b16 %v1139
      %v1517 = vunpack.c.l.b16 %v1140
      %v1518 = vunpack.c.h.b16 %v1140
      %v1519 = vunpack.c.l.b16 %v1141
      %v1520 = vunpack.c.h.b16 %v1141
      %v1521 = vunpack.c.l.b16 %v1142
      %v1522 = vunpack.c.h.b16 %v1142
      %v1523 = vunpack.c.l.b16 %v1143
      %v1524 = vunpack.c.h.b16 %v1143
      %v1525 = vunpack.c.l.b16 %v1144
      %v1526 = vunpack.c.h.b16 %v1144
      %v1527 = vunpack.c.l.b16 %v1145
      %v1528 = vunpack.c.h.b16 %v1145
      %v1529 = vunpack.c.l.b16 %v1146
      %v1530 = vunpack.c.h.b16 %v1146
      %v1531 = vunpack.c.l.b16 %v1147
      %v1532 = vunpack.c.h.b16 %v1147
      %v1533 = vunpack.c.l.b16 %v1148
      %v1534 = vunpack.c.h.b16 %v1148
      %v1535 = vunpack.c.l.b16 %v1149
      %v1536 = vunpack.c.h.b16 %v1149
      %v1537 = vunpack.c.l.b16 %v1150
      %v1538 = vunpack.c.h.b16 %v1150
      %v1539 = vunpack.c.l.b16 %v1151
      %v1540 = vunpack.c.h.b16 %v1151
      %v1541 = vunpack.c.l.b16 %v1152
      %v1542 = vunpack.c.h.b16 %v1152
      %v1543 = vunpack.c.l.b16 %v1153
      %v1544 = vunpack.c.h.b16 %v1153
      %v1545 = vunpack.c.l.b16 %v1154
      %v1546 = vunpack.c.h.b16 %v1154
      %v1547 = vunpack.c.l.b16 %v1155
      %v1548 = vunpack.c.h.b16 %v1155
      %v1549 = vunpack.c.l.b16 %v1156
      %v1550 = vunpack.c.h.b16 %v1156
      %v1551 = vunpack.c.l.b16 %v1157
      %v1552 = vunpack.c.h.b16 %v1157
      %v1553 = vunpack.c.l.b16 %v1158
      %v1554 = vunpack.c.h.b16 %v1158
      %v1555 = vunpack.c.l.b16 %v1159
      %v1556 = vunpack.c.h.b16 %v1159
      %v1557 = vunpack.c.l.b16 %v1160
      %v1558 = vunpack.c.h.b16 %v1160
      %v1559 = vunpack.c.l.b16 %v1161
      %v1560 = vunpack.c.h.b16 %v1161
      %v1561 = vunpack.c.l.b16 %v1162
      %v1562 = vunpack.c.h.b16 %v1162
      %v1563 = vunpack.c.l.b16 %v1163
      %v1564 = vunpack.c.h.b16 %v1163
      %v1565 = vunpack.c.l.b16 %v1164
      %v1566 = vunpack.c.h.b16 %v1164
      %v1567 = vunpack.c.l.b16 %v1165
      %v1568 = vunpack.c.h.b16 %v1165
      %v1569 = vunpack.c.l.b16 %v1166
      %v1570 = vunpack.c.h.b16 %v1166
      %v1571 = vunpack.c.l.b16 %v1167
      %v1572 = vunpack.c.h.b16 %v1167
      %v1573 = vunpack.c.l.b16 %v1168
      %v1574 = vunpack.c.h.b16 %v1168
      %v1575 = vpack.c.b16 %v1323, %v1319
      %v1576 = vpack.c.b16 %v1324, %v1320
      %v1577 = vpack.c.b16 %v1325, %v1321
      %v1578 = vpack.c.b16 %v1326, %v1322
      %v1579 = vpack.c.b16 %v1331, %v1327
      %v1580 = vpack.c.b16 %v1332, %v1328
      %v1581 = vpack.c.b16 %v1333, %v1329
      %v1582 = vpack.c.b16 %v1334, %v1330
      %v1583 = vpack.c.b16 %v1339, %v1335
      %v1584 = vpack.c.b16 %v1340, %v1336
      %v1585 = vpack.c.b16 %v1341, %v1337
      %v1586 = vpack.c.b16 %v1342, %v1338
      %v1587 = vpack.c.b16 %v1347, %v1343
      %v1588 = vpack.c.b16 %v1348, %v1344
      %v1589 = vpack.c.b16 %v1349, %v1345
      %v1590 = vpack.c.b16 %v1350, %v1346
      %v1591 = vpack.c.b16 %v1355, %v1351
      %v1592 = vpack.c.b16 %v1356, %v1352
      %v1593 = vpack.c.b16 %v1357, %v1353
      %v1594 = vpack.c.b16 %v1358, %v1354
      %v1595 = vpack.c.b16 %v1363, %v1359
      %v1596 = vpack.c.b16 %v1364, %v1360
      %v1597 = vpack.c.b16 %v1365, %v1361
      %v1598 = vpack.c.b16 %v1366, %v1362
      %v1599 = vpack.c.b16 %v1371, %v1367
      %v1600 = vpack.c.b16 %v1372, %v1368
      %v1601 = vpack.c.b16 %v1373, %v1369
      %v1602 = vpack.c.b16 %v1374, %v1370
      %v1603 = vpack.c.b16 %v1379, %v1375
      %v1604 = vpack.c.b16 %v1380, %v1376
      %v1605 = vpack.c.b16 %v1381, %v1377
      %v1606 = vpack.c.b16 %v1382, %v1378
      %v1607 = vpack.c.b16 %v1387, %v1383
      %v1608 = vpack.c.b16 %v1388, %v1384
      %v1609 = vpack.c.b16 %v1389, %v1385
      %v1610 = vpack.c.b16 %v1390, %v1386
      %v1611 = vpack.c.b16 %v1395, %v1391
      %v1612 = vpack.c.b16 %v1396, %v1392
      %v1613 = vpack.c.b16 %v1397, %v1393
      %v1614 = vpack.c.b16 %v1398, %v1394
      %v1615 = vpack.c.b16 %v1403, %v1399
      %v1616 = vpack.c.b16 %v1404, %v1400
      %v1617 = vpack.c.b16 %v1405, %v1401
      %v1618 = vpack.c.b16 %v1406, %v1402
      %v1619 = vpack.c.b16 %v1411, %v1407
      %v1620 = vpack.c.b16 %v1412, %v1408
      %v1621 = vpack.c.b16 %v1413, %v1409
      %v1622 = vpack.c.b16 %v1414, %v1410
      %v1623 = vpack.c.b16 %v1419, %v1415
      %v1624 = vpack.c.b16 %v1420, %v1416
      %v1625 = vpack.c.b16 %v1421, %v1417
      %v1626 = vpack.c.b16 %v1422, %v1418
      %v1627 = vpack.c.b16 %v1427, %v1423
      %v1628 = vpack.c.b16 %v1428, %v1424
      %v1629 = vpack.c.b16 %v1429, %v1425
      %v1630 = vpack.c.b16 %v1430, %v1426
      %v1631 = vpack.c.b16 %v1435, %v1431
      %v1632 = vpack.c.b16 %v1436, %v1432
      %v1633 = vpack.c.b16 %v1437, %v1433
      %v1634 = vpack.c.b16 %v1438, %v1434
      %v1635 = vpack.c.b16 %v1443, %v1439
      %v1636 = vpack.c.b16 %v1444, %v1440
      %v1637 = vpack.c.b16 %v1445, %v1441
      %v1638 = vpack.c.b16 %v1446, %v1442
      %v1639 = vpack.c.b16 %v1451, %v1447
      %v1640 = vpack.c.b16 %v1452, %v1448
      %v1641 = vpack.c.b16 %v1453, %v1449
      %v1642 = vpack.c.b16 %v1454, %v1450
      %v1643 = vpack.c.b16 %v1459, %v1455
      %v1644 = vpack.c.b16 %v1460, %v1456
      %v1645 = vpack.c.b16 %v1461, %v1457
      %v1646 = vpack.c.b16 %v1462, %v1458
      %v1647 = vpack.c.b16 %v1467, %v1463
      %v1648 = vpack.c.b16 %v1468, %v1464
      %v1649 = vpack.c.b16 %v1469, %v1465
      %v1650 = vpack.c.b16 %v1470, %v1466
      %v1651 = vpack.c.b16 %v1475, %v1471
      %v1652 = vpack.c.b16 %v1476, %v1472
      %v1653 = vpack.c.b16 %v1477, %v1473
      %v1654 = vpack.c.b16 %v1478, %v1474
      %v1655 = vpack.c.b16 %v1483, %v1479
      %v1656 = vpack.c.b16 %v1484, %v1480
      %v1657 = vpack.c.b16 %v1485, %v1481
      %v1658 = vpack.c.b16 %v1486, %v1482
      %v1659 = vpack.c.b16 %v1491, %v1487
      %v1660 = vpack.c.b16 %v1492, %v1488
      %v1661 = vpack.c.b16 %v1493, %v1489
      %v1662 = vpack.c.b16 %v1494, %v1490
      %v1663 = vpack.c.b16 %v1499, %v1495
      %v1664 = vpack.c.b16 %v1500, %v1496
      %v1665 = vpack.c.b16 %v1501, %v1497
      %v1666 = vpack.c.b16 %v1502, %v1498
      %v1667 = vpack.c.b16 %v1507, %v1503
      %v1668 = vpack.c.b16 %v1508, %v1504
      %v1669 = vpack.c.b16 %v1509, %v1505
      %v1670 = vpack.c.b16 %v1510, %v1506
      %v1671 = vpack.c.b16 %v1515, %v1511
      %v1672 = vpack.c.b16 %v1516, %v1512
      %v1673 = vpack.c.b16 %v1517, %v1513
      %v1674 = vpack.c.b16 %v1518, %v1514
      %v1675 = vpack.c.b16 %v1523, %v1519
      %v1676 = vpack.c.b16 %v1524, %v1520
      %v1677 = vpack.c.b16 %v1525, %v1521
      %v1678 = vpack.c.b16 %v1526, %v1522
      %v1679 = vpack.c.b16 %v1531, %v1527
      %v1680 = vpack.c.b16 %v1532, %v1528
      %v1681 = vpack.c.b16 %v1533, %v1529
      %v1682 = vpack.c.b16 %v1534, %v1530
      %v1683 = vpack.c.b16 %v1539, %v1535
      %v1684 = vpack.c.b16 %v1540, %v1536
      %v1685 = vpack.c.b16 %v1541, %v1537
      %v1686 = vpack.c.b16 %v1542, %v1538
      %v1687 = vpack.c.b16 %v1547, %v1543
      %v1688 = vpack.c.b16 %v1548, %v1544
      %v1689 = vpack.c.b16 %v1549, %v1545
      %v1690 = vpack.c.b16 %v1550, %v1546
      %v1691 = vpack.c.b16 %v1555, %v1551
      %v1692 = vpack.c.b16 %v1556, %v1552
      %v1693 = vpack.c.b16 %v1557, %v1553
      %v1694 = vpack.c.b16 %v1558, %v1554
      %v1695 = vpack.c.b16 %v1563, %v1559
      %v1696 = vpack.c.b16 %v1564, %v1560
      %v1697 = vpack.c.b16 %v1565, %v1561
      %v1698 = vpack.c.b16 %v1566, %v1562
      %v1699 = vpack.c.b16 %v1571, %v1567
      %v1700 = vpack.c.b16 %v1572, %v1568
      %v1701 = vpack.c.b16 %v1573, %v1569
      %v1702 = vpack.c.b16 %v1574, %v1570
      %1831 = vmatprep.subr.bf16.mxu0 %v1604
      %1832 = vmatpush1.bf16.msra.mxu0 %v1603
      %1833 = vmatprep.subr.bf16.mxu0 %v1600
      %1834 = vmatpush1.bf16.msra.mxu0 %v1599
      %1835 = vmatprep.subr.bf16.mxu0 %v1596
      %1836 = vmatpush1.bf16.msra.mxu0 %v1595
      %1837 = vmatprep.subr.bf16.mxu0 %v1592
      %1838 = vmatpush1.bf16.msra.mxu0 %v1591
      %1839 = vmatprep.subr.bf16.mxu0 %v1588
      %1840 = vmatpush1.bf16.msra.mxu0 %v1587
      %1841 = vmatprep.subr.bf16.mxu0 %v1584
      %1842 = vmatpush1.bf16.msra.mxu0 %v1583
      %1843 = vmatprep.subr.bf16.mxu0 %v1580
      %1844 = vmatpush1.bf16.msra.mxu0 %v1579
      %1845 = vmatprep.subr.bf16.mxu0 %v1576
      %1846 = vmatpush1.bf16.msra.mxu0 %v1575
      %1847 = vmatprep.subr.bf16.mxu0 %v1636
      %1848 = vmatpush2.bf16.msra.mxu0 %v1635
      %1849 = vmatprep.subr.bf16.mxu0 %v1632
      %1850 = vmatpush2.bf16.msra.mxu0 %v1631
      %1851 = vmatprep.subr.bf16.mxu0 %v1628
      %1852 = vmatpush2.bf16.msra.mxu0 %v1627
      %1853 = vmatprep.subr.bf16.mxu0 %v1624
      %1854 = vmatpush2.bf16.msra.mxu0 %v1623
      %1855 = vmatprep.subr.bf16.mxu0 %v1620
      %1856 = vmatpush2.bf16.msra.mxu0 %v1619
      %1857 = vmatprep.subr.bf16.mxu0 %v1616
      %1858 = vmatpush2.bf16.msra.mxu0 %v1615
      %1859 = vmatprep.subr.bf16.mxu0 %v1612
      %1860 = vmatpush2.bf16.msra.mxu0 %v1611
      %1861 = vmatprep.subr.bf16.mxu0 %v1608
      %1862 = vmatpush2.bf16.msra.mxu0 %v1607
      %1863 = vmatprep.mubr.bf16.mxu0 %v978
      %1864 = vmatmul.mubr.bf16.gmra.mxu0 %v977
      %v1865 = vpop.f32.mrf.mxu0
      %v1866 = vadd.f32 %v1174, %v1865
      %v1867 = vpop.f32.mrf.mxu0
      %v1868 = vadd.f32 %v1178, %v1867
      %v1869 = vpop.f32.mrf.mxu0
      %v1870 = vadd.f32 %v1174, %v1869
      %v1871 = vpop.f32.mrf.mxu0
      %v1872 = vadd.f32 %v1178, %v1871
      %1873 = vmatprep.mubr.bf16.mxu0 %v982
      %1874 = vmatmul.mubr.bf16.gmra.mxu0 %v981
      %v1875 = vpop.f32.mrf.mxu0
      %v1876 = vadd.f32 %v1174, %v1875
      %v1877 = vpop.f32.mrf.mxu0
      %v1878 = vadd.f32 %v1178, %v1877
      %v1879 = vpop.f32.mrf.mxu0
      %v1880 = vadd.f32 %v1174, %v1879
      %v1881 = vpop.f32.mrf.mxu0
      %v1882 = vadd.f32 %v1178, %v1881
      %1883 = vmatprep.mubr.bf16.mxu0 %v986
      %1884 = vmatmul.mubr.bf16.gmra.mxu0 %v985
      %v1885 = vpop.f32.mrf.mxu0
      %v1886 = vadd.f32 %v1174, %v1885
      %v1887 = vpop.f32.mrf.mxu0
      %v1888 = vadd.f32 %v1178, %v1887
      %v1889 = vpop.f32.mrf.mxu0
      %v1890 = vadd.f32 %v1174, %v1889
      %v1891 = vpop.f32.mrf.mxu0
      %v1892 = vadd.f32 %v1178, %v1891
      %1893 = vmatprep.mubr.bf16.mxu0 %v990
      %1894 = vmatmul.mubr.bf16.gmra.mxu0 %v989
      %v1895 = vpop.f32.mrf.mxu0
      %v1896 = vadd.f32 %v1174, %v1895
      %v1897 = vpop.f32.mrf.mxu0
      %v1898 = vadd.f32 %v1178, %v1897
      %v1899 = vpop.f32.mrf.mxu0
      %v1900 = vadd.f32 %v1174, %v1899
      %v1901 = vpop.f32.mrf.mxu0
      %v1902 = vadd.f32 %v1178, %v1901
      %1903 = vmatprep.mubr.bf16.mxu0 %v994
      %1904 = vmatmul.mubr.bf16.gmra.mxu0 %v993
      %v1905 = vpop.f32.mrf.mxu0
      %v1906 = vadd.f32 %v1174, %v1905
      %v1907 = vpop.f32.mrf.mxu0
      %v1908 = vadd.f32 %v1178, %v1907
      %v1909 = vpop.f32.mrf.mxu0
      %v1910 = vadd.f32 %v1174, %v1909
      %v1911 = vpop.f32.mrf.mxu0
      %v1912 = vadd.f32 %v1178, %v1911
      %1913 = vmatprep.mubr.bf16.mxu0 %v998
      %1914 = vmatmul.mubr.bf16.gmra.mxu0 %v997
      %v1915 = vpop.f32.mrf.mxu0
      %v1916 = vadd.f32 %v1174, %v1915
      %v1917 = vpop.f32.mrf.mxu0
      %v1918 = vadd.f32 %v1178, %v1917
      %v1919 = vpop.f32.mrf.mxu0
      %v1920 = vadd.f32 %v1174, %v1919
      %v1921 = vpop.f32.mrf.mxu0
      %v1922 = vadd.f32 %v1178, %v1921
      %1923 = vmatprep.mubr.bf16.mxu0 %v1002
      %1924 = vmatmul.mubr.bf16.gmra.mxu0 %v1001
      %v1925 = vpop.f32.mrf.mxu0
      %v1926 = vadd.f32 %v1174, %v1925
      %v1927 = vpop.f32.mrf.mxu0
      %v1928 = vadd.f32 %v1178, %v1927
      %v1929 = vpop.f32.mrf.mxu0
      %v1930 = vadd.f32 %v1174, %v1929
      %v1931 = vpop.f32.mrf.mxu0
      %v1932 = vadd.f32 %v1178, %v1931
      %1933 = vmatprep.mubr.bf16.mxu0 %v1006
      %1934 = vmatmul.mubr.bf16.gmra.mxu0 %v1005
      %v1935 = vpop.f32.mrf.mxu0
      %v1936 = vadd.f32 %v1174, %v1935
      %v1937 = vpop.f32.mrf.mxu0
      %v1938 = vadd.f32 %v1178, %v1937
      %v1939 = vpop.f32.mrf.mxu0
      %v1940 = vadd.f32 %v1174, %v1939
      %v1941 = vpop.f32.mrf.mxu0
      %v1942 = vadd.f32 %v1178, %v1941
      %1943 = vmatprep.mubr.bf16.mxu0 %v1010
      %1944 = vmatmul.mubr.bf16.gmra.mxu0 %v1009
      %v1945 = vpop.f32.mrf.mxu0
      %v1946 = vadd.f32 %v1174, %v1945
      %v1947 = vpop.f32.mrf.mxu0
      %v1948 = vadd.f32 %v1178, %v1947
      %v1949 = vpop.f32.mrf.mxu0
      %v1950 = vadd.f32 %v1174, %v1949
      %v1951 = vpop.f32.mrf.mxu0
      %v1952 = vadd.f32 %v1178, %v1951
      %1953 = vmatprep.mubr.bf16.mxu0 %v1014
      %1954 = vmatmul.mubr.bf16.gmra.mxu0 %v1013
      %v1955 = vpop.f32.mrf.mxu0
      %v1956 = vadd.f32 %v1174, %v1955
      %v1957 = vpop.f32.mrf.mxu0
      %v1958 = vadd.f32 %v1178, %v1957
      %v1959 = vpop.f32.mrf.mxu0
      %v1960 = vadd.f32 %v1174, %v1959
      %v1961 = vpop.f32.mrf.mxu0
      %v1962 = vadd.f32 %v1178, %v1961
      %1963 = vmatprep.mubr.bf16.mxu0 %v1018
      %1964 = vmatmul.mubr.bf16.gmra.mxu0 %v1017
      %v1965 = vpop.f32.mrf.mxu0
      %v1966 = vadd.f32 %v1174, %v1965
      %v1967 = vpop.f32.mrf.mxu0
      %v1968 = vadd.f32 %v1178, %v1967
      %v1969 = vpop.f32.mrf.mxu0
      %v1970 = vadd.f32 %v1174, %v1969
      %v1971 = vpop.f32.mrf.mxu0
      %v1972 = vadd.f32 %v1178, %v1971
      %1973 = vmatprep.mubr.bf16.mxu0 %v1022
      %1974 = vmatmul.mubr.bf16.gmra.mxu0 %v1021
      %v1975 = vpop.f32.mrf.mxu0
      %v1976 = vadd.f32 %v1174, %v1975
      %v1977 = vpop.f32.mrf.mxu0
      %v1978 = vadd.f32 %v1178, %v1977
      %v1979 = vpop.f32.mrf.mxu0
      %v1980 = vadd.f32 %v1174, %v1979
      %v1981 = vpop.f32.mrf.mxu0
      %v1982 = vadd.f32 %v1178, %v1981
      %1983 = vmatprep.mubr.bf16.mxu0 %v1026
      %1984 = vmatmul.mubr.bf16.gmra.mxu0 %v1025
      %v1985 = vpop.f32.mrf.mxu0
      %v1986 = vadd.f32 %v1174, %v1985
      %v1987 = vpop.f32.mrf.mxu0
      %v1988 = vadd.f32 %v1178, %v1987
      %v1989 = vpop.f32.mrf.mxu0
      %v1990 = vadd.f32 %v1174, %v1989
      %v1991 = vpop.f32.mrf.mxu0
      %v1992 = vadd.f32 %v1178, %v1991
      %1993 = vmatprep.mubr.bf16.mxu0 %v1030
      %1994 = vmatmul.mubr.bf16.gmra.mxu0 %v1029
      %v1995 = vpop.f32.mrf.mxu0
      %v1996 = vadd.f32 %v1174, %v1995
      %v1997 = vpop.f32.mrf.mxu0
      %v1998 = vadd.f32 %v1178, %v1997
      %v1999 = vpop.f32.mrf.mxu0
      %v2000 = vadd.f32 %v1174, %v1999
      %v2001 = vpop.f32.mrf.mxu0
      %v2002 = vadd.f32 %v1178, %v2001
      %2003 = vmatprep.mubr.bf16.mxu0 %v1034
      %2004 = vmatmul.mubr.bf16.gmra.mxu0 %v1033
      %v2005 = vpop.f32.mrf.mxu0
      %v2006 = vadd.f32 %v1174, %v2005
      %v2007 = vpop.f32.mrf.mxu0
      %v2008 = vadd.f32 %v1178, %v2007
      %v2009 = vpop.f32.mrf.mxu0
      %v2010 = vadd.f32 %v1174, %v2009
      %v2011 = vpop.f32.mrf.mxu0
      %v2012 = vadd.f32 %v1178, %v2011
      %2013 = vmatprep.mubr.bf16.mxu0 %v1038
      %2014 = vmatmul.mubr.bf16.gmra.mxu0 %v1037
      %v2015 = vpop.f32.mrf.mxu0
      %v2016 = vadd.f32 %v1174, %v2015
      %v2017 = vpop.f32.mrf.mxu0
      %v2018 = vadd.f32 %v1178, %v2017
      %v2019 = vpop.f32.mrf.mxu0
      %v2020 = vadd.f32 %v1174, %v2019
      %v2021 = vpop.f32.mrf.mxu0
      %v2022 = vadd.f32 %v1178, %v2021
      %2023 = vdwg.mxu0
      %2024 = vmatprep.subr.bf16.mxu0 %v1668
      %2025 = vmatpush1.bf16.msra.mxu0 %v1667
      %2026 = vmatprep.subr.bf16.mxu0 %v1664
      %2027 = vmatpush1.bf16.msra.mxu0 %v1663
      %2028 = vmatprep.subr.bf16.mxu0 %v1660
      %2029 = vmatpush1.bf16.msra.mxu0 %v1659
      %2030 = vmatprep.subr.bf16.mxu0 %v1656
      %2031 = vmatpush1.bf16.msra.mxu0 %v1655
      %2032 = vmatprep.subr.bf16.mxu0 %v1652
      %2033 = vmatpush1.bf16.msra.mxu0 %v1651
      %2034 = vmatprep.subr.bf16.mxu0 %v1648
      %2035 = vmatpush1.bf16.msra.mxu0 %v1647
      %2036 = vmatprep.subr.bf16.mxu0 %v1644
      %2037 = vmatpush1.bf16.msra.mxu0 %v1643
      %2038 = vmatprep.subr.bf16.mxu0 %v1640
      %2039 = vmatpush1.bf16.msra.mxu0 %v1639
      %2040 = vmatprep.subr.bf16.mxu0 %v1700
      %2041 = vmatpush2.bf16.msra.mxu0 %v1699
      %2042 = vmatprep.subr.bf16.mxu0 %v1696
      %2043 = vmatpush2.bf16.msra.mxu0 %v1695
      %2044 = vmatprep.subr.bf16.mxu0 %v1692
      %2045 = vmatpush2.bf16.msra.mxu0 %v1691
      %2046 = vmatprep.subr.bf16.mxu0 %v1688
      %2047 = vmatpush2.bf16.msra.mxu0 %v1687
      %2048 = vmatprep.subr.bf16.mxu0 %v1684
      %2049 = vmatpush2.bf16.msra.mxu0 %v1683
      %2050 = vmatprep.subr.bf16.mxu0 %v1680
      %2051 = vmatpush2.bf16.msra.mxu0 %v1679
      %2052 = vmatprep.subr.bf16.mxu0 %v1676
      %2053 = vmatpush2.bf16.msra.mxu0 %v1675
      %2054 = vmatprep.subr.bf16.mxu0 %v1672
      %2055 = vmatpush2.bf16.msra.mxu0 %v1671
      %2056 = vmatprep.mubr.bf16.mxu0 %v980
      %2057 = vmatmul.mubr.bf16.gmra.mxu0 %v979
      %v2058 = vpop.f32.mrf.mxu0
      %v2059 = vadd.f32 %v1866, %v2058
      %v2060 = vpop.f32.mrf.mxu0
      %v2061 = vadd.f32 %v1868, %v2060
      %v2062 = vpop.f32.mrf.mxu0
      %v2063 = vadd.f32 %v1870, %v2062
      %v2064 = vpop.f32.mrf.mxu0
      %v2065 = vadd.f32 %v1872, %v2064
      %2066 = vmatprep.mubr.bf16.mxu0 %v984
      %2067 = vmatmul.mubr.bf16.gmra.mxu0 %v983
      %v2068 = vpop.f32.mrf.mxu0
      %v2069 = vadd.f32 %v1876, %v2068
      %v2070 = vpop.f32.mrf.mxu0
      %v2071 = vadd.f32 %v1878, %v2070
      %v2072 = vpop.f32.mrf.mxu0
      %v2073 = vadd.f32 %v1880, %v2072
      %v2074 = vpop.f32.mrf.mxu0
      %v2075 = vadd.f32 %v1882, %v2074
      %2076 = vmatprep.mubr.bf16.mxu0 %v988
      %2077 = vmatmul.mubr.bf16.gmra.mxu0 %v987
      %v2078 = vpop.f32.mrf.mxu0
      %v2079 = vadd.f32 %v1886, %v2078
      %v2080 = vpop.f32.mrf.mxu0
      %v2081 = vadd.f32 %v1888, %v2080
      %v2082 = vpop.f32.mrf.mxu0
      %v2083 = vadd.f32 %v1890, %v2082
      %v2084 = vpop.f32.mrf.mxu0
      %v2085 = vadd.f32 %v1892, %v2084
      %2086 = vmatprep.mubr.bf16.mxu0 %v992
      %2087 = vmatmul.mubr.bf16.gmra.mxu0 %v991
      %v2088 = vpop.f32.mrf.mxu0
      %v2089 = vadd.f32 %v1896, %v2088
      %v2090 = vpop.f32.mrf.mxu0
      %v2091 = vadd.f32 %v1898, %v2090
      %v2092 = vpop.f32.mrf.mxu0
      %v2093 = vadd.f32 %v1900, %v2092
      %v2094 = vpop.f32.mrf.mxu0
      %v2095 = vadd.f32 %v1902, %v2094
      %2096 = vmatprep.mubr.bf16.mxu0 %v996
      %2097 = vmatmul.mubr.bf16.gmra.mxu0 %v995
      %v2098 = vpop.f32.mrf.mxu0
      %v2099 = vadd.f32 %v1906, %v2098
      %v2100 = vpop.f32.mrf.mxu0
      %v2101 = vadd.f32 %v1908, %v2100
      %v2102 = vpop.f32.mrf.mxu0
      %v2103 = vadd.f32 %v1910, %v2102
      %v2104 = vpop.f32.mrf.mxu0
      %v2105 = vadd.f32 %v1912, %v2104
      %2106 = vmatprep.mubr.bf16.mxu0 %v1000
      %2107 = vmatmul.mubr.bf16.gmra.mxu0 %v999
      %v2108 = vpop.f32.mrf.mxu0
      %v2109 = vadd.f32 %v1916, %v2108
      %v2110 = vpop.f32.mrf.mxu0
      %v2111 = vadd.f32 %v1918, %v2110
      %v2112 = vpop.f32.mrf.mxu0
      %v2113 = vadd.f32 %v1920, %v2112
      %v2114 = vpop.f32.mrf.mxu0
      %v2115 = vadd.f32 %v1922, %v2114
      %2116 = vmatprep.mubr.bf16.mxu0 %v1004
      %2117 = vmatmul.mubr.bf16.gmra.mxu0 %v1003
      %v2118 = vpop.f32.mrf.mxu0
      %v2119 = vadd.f32 %v1926, %v2118
      %v2120 = vpop.f32.mrf.mxu0
      %v2121 = vadd.f32 %v1928, %v2120
      %v2122 = vpop.f32.mrf.mxu0
      %v2123 = vadd.f32 %v1930, %v2122
      %v2124 = vpop.f32.mrf.mxu0
      %v2125 = vadd.f32 %v1932, %v2124
      %2126 = vmatprep.mubr.bf16.mxu0 %v1008
      %2127 = vmatmul.mubr.bf16.gmra.mxu0 %v1007
      %v2128 = vpop.f32.mrf.mxu0
      %v2129 = vadd.f32 %v1936, %v2128
      %v2130 = vpop.f32.mrf.mxu0
      %v2131 = vadd.f32 %v1938, %v2130
      %v2132 = vpop.f32.mrf.mxu0
      %v2133 = vadd.f32 %v1940, %v2132
      %v2134 = vpop.f32.mrf.mxu0
      %v2135 = vadd.f32 %v1942, %v2134
      %2136 = vmatprep.mubr.bf16.mxu0 %v1012
      %2137 = vmatmul.mubr.bf16.gmra.mxu0 %v1011
      %v2138 = vpop.f32.mrf.mxu0
      %v2139 = vadd.f32 %v1946, %v2138
      %v2140 = vpop.f32.mrf.mxu0
      %v2141 = vadd.f32 %v1948, %v2140
      %v2142 = vpop.f32.mrf.mxu0
      %v2143 = vadd.f32 %v1950, %v2142
      %v2144 = vpop.f32.mrf.mxu0
      %v2145 = vadd.f32 %v1952, %v2144
      %2146 = vmatprep.mubr.bf16.mxu0 %v1016
      %2147 = vmatmul.mubr.bf16.gmra.mxu0 %v1015
      %v2148 = vpop.f32.mrf.mxu0
      %v2149 = vadd.f32 %v1956, %v2148
      %v2150 = vpop.f32.mrf.mxu0
      %v2151 = vadd.f32 %v1958, %v2150
      %v2152 = vpop.f32.mrf.mxu0
      %v2153 = vadd.f32 %v1960, %v2152
      %v2154 = vpop.f32.mrf.mxu0
      %v2155 = vadd.f32 %v1962, %v2154
      %2156 = vmatprep.mubr.bf16.mxu0 %v1020
      %2157 = vmatmul.mubr.bf16.gmra.mxu0 %v1019
      %v2158 = vpop.f32.mrf.mxu0
      %v2159 = vadd.f32 %v1966, %v2158
      %v2160 = vpop.f32.mrf.mxu0
      %v2161 = vadd.f32 %v1968, %v2160
      %v2162 = vpop.f32.mrf.mxu0
      %v2163 = vadd.f32 %v1970, %v2162
      %v2164 = vpop.f32.mrf.mxu0
      %v2165 = vadd.f32 %v1972, %v2164
      %2166 = vmatprep.mubr.bf16.mxu0 %v1024
      %2167 = vmatmul.mubr.bf16.gmra.mxu0 %v1023
      %v2168 = vpop.f32.mrf.mxu0
      %v2169 = vadd.f32 %v1976, %v2168
      %v2170 = vpop.f32.mrf.mxu0
      %v2171 = vadd.f32 %v1978, %v2170
      %v2172 = vpop.f32.mrf.mxu0
      %v2173 = vadd.f32 %v1980, %v2172
      %v2174 = vpop.f32.mrf.mxu0
      %v2175 = vadd.f32 %v1982, %v2174
      %2176 = vmatprep.mubr.bf16.mxu0 %v1028
      %2177 = vmatmul.mubr.bf16.gmra.mxu0 %v1027
      %v2178 = vpop.f32.mrf.mxu0
      %v2179 = vadd.f32 %v1986, %v2178
      %v2180 = vpop.f32.mrf.mxu0
      %v2181 = vadd.f32 %v1988, %v2180
      %v2182 = vpop.f32.mrf.mxu0
      %v2183 = vadd.f32 %v1990, %v2182
      %v2184 = vpop.f32.mrf.mxu0
      %v2185 = vadd.f32 %v1992, %v2184
      %2186 = vmatprep.mubr.bf16.mxu0 %v1032
      %2187 = vmatmul.mubr.bf16.gmra.mxu0 %v1031
      %v2188 = vpop.f32.mrf.mxu0
      %v2189 = vadd.f32 %v1996, %v2188
      %v2190 = vpop.f32.mrf.mxu0
      %v2191 = vadd.f32 %v1998, %v2190
      %v2192 = vpop.f32.mrf.mxu0
      %v2193 = vadd.f32 %v2000, %v2192
      %v2194 = vpop.f32.mrf.mxu0
      %v2195 = vadd.f32 %v2002, %v2194
      %2196 = vmatprep.mubr.bf16.mxu0 %v1036
      %2197 = vmatmul.mubr.bf16.gmra.mxu0 %v1035
      %v2198 = vpop.f32.mrf.mxu0
      %v2199 = vadd.f32 %v2006, %v2198
      %v2200 = vpop.f32.mrf.mxu0
      %v2201 = vadd.f32 %v2008, %v2200
      %v2202 = vpop.f32.mrf.mxu0
      %v2203 = vadd.f32 %v2010, %v2202
      %v2204 = vpop.f32.mrf.mxu0
      %v2205 = vadd.f32 %v2012, %v2204
      %2206 = vmatprep.mubr.bf16.mxu0 %v1040
      %2207 = vmatmul.mubr.bf16.gmra.mxu0 %v1039
      %v2208 = vpop.f32.mrf.mxu0
      %v2209 = vadd.f32 %v2016, %v2208
      %v2210 = vpop.f32.mrf.mxu0
      %v2211 = vadd.f32 %v2018, %v2210
      %v2212 = vpop.f32.mrf.mxu0
      %v2213 = vadd.f32 %v2020, %v2212
      %v2214 = vpop.f32.mrf.mxu0
      %v2215 = vadd.f32 %v2022, %v2214
      %2216 = vdwg.mxu0
      %2217 = vmatprep.subr.bf16.mxu0 %v1606
      %2218 = vmatpush1.bf16.msra.mxu0 %v1605
      %2219 = vmatprep.subr.bf16.mxu0 %v1602
      %2220 = vmatpush1.bf16.msra.mxu0 %v1601
      %2221 = vmatprep.subr.bf16.mxu0 %v1598
      %2222 = vmatpush1.bf16.msra.mxu0 %v1597
      %2223 = vmatprep.subr.bf16.mxu0 %v1594
      %2224 = vmatpush1.bf16.msra.mxu0 %v1593
      %2225 = vmatprep.subr.bf16.mxu0 %v1590
      %2226 = vmatpush1.bf16.msra.mxu0 %v1589
      %2227 = vmatprep.subr.bf16.mxu0 %v1586
      %2228 = vmatpush1.bf16.msra.mxu0 %v1585
      %2229 = vmatprep.subr.bf16.mxu0 %v1582
      %2230 = vmatpush1.bf16.msra.mxu0 %v1581
      %2231 = vmatprep.subr.bf16.mxu0 %v1578
      %2232 = vmatpush1.bf16.msra.mxu0 %v1577
      %2233 = vmatprep.subr.bf16.mxu0 %v1638
      %2234 = vmatpush2.bf16.msra.mxu0 %v1637
      %2235 = vmatprep.subr.bf16.mxu0 %v1634
      %2236 = vmatpush2.bf16.msra.mxu0 %v1633
      %2237 = vmatprep.subr.bf16.mxu0 %v1630
      %2238 = vmatpush2.bf16.msra.mxu0 %v1629
      %2239 = vmatprep.subr.bf16.mxu0 %v1626
      %2240 = vmatpush2.bf16.msra.mxu0 %v1625
      %2241 = vmatprep.subr.bf16.mxu0 %v1622
      %2242 = vmatpush2.bf16.msra.mxu0 %v1621
      %2243 = vmatprep.subr.bf16.mxu0 %v1618
      %2244 = vmatpush2.bf16.msra.mxu0 %v1617
      %2245 = vmatprep.subr.bf16.mxu0 %v1614
      %2246 = vmatpush2.bf16.msra.mxu0 %v1613
      %2247 = vmatprep.subr.bf16.mxu0 %v1610
      %2248 = vmatpush2.bf16.msra.mxu0 %v1609
      %2249 = vmatprep.mubr.bf16.mxu0 %v978
      %2250 = vmatmul.mubr.bf16.gmra.mxu0 %v977
      %v2251 = vpop.f32.mrf.mxu0
      %v2252 = vadd.f32 %v1182, %v2251
      %v2253 = vpop.f32.mrf.mxu0
      %v2254 = vadd.f32 %v1186, %v2253
      %v2255 = vpop.f32.mrf.mxu0
      %v2256 = vadd.f32 %v1182, %v2255
      %v2257 = vpop.f32.mrf.mxu0
      %v2258 = vadd.f32 %v1186, %v2257
      %2259 = vmatprep.mubr.bf16.mxu0 %v982
      %2260 = vmatmul.mubr.bf16.gmra.mxu0 %v981
      %v2261 = vpop.f32.mrf.mxu0
      %v2262 = vadd.f32 %v1182, %v2261
      %v2263 = vpop.f32.mrf.mxu0
      %v2264 = vadd.f32 %v1186, %v2263
      %v2265 = vpop.f32.mrf.mxu0
      %v2266 = vadd.f32 %v1182, %v2265
      %v2267 = vpop.f32.mrf.mxu0
      %v2268 = vadd.f32 %v1186, %v2267
      %2269 = vmatprep.mubr.bf16.mxu0 %v986
      %2270 = vmatmul.mubr.bf16.gmra.mxu0 %v985
      %v2271 = vpop.f32.mrf.mxu0
      %v2272 = vadd.f32 %v1182, %v2271
      %v2273 = vpop.f32.mrf.mxu0
      %v2274 = vadd.f32 %v1186, %v2273
      %v2275 = vpop.f32.mrf.mxu0
      %v2276 = vadd.f32 %v1182, %v2275
      %v2277 = vpop.f32.mrf.mxu0
      %v2278 = vadd.f32 %v1186, %v2277
      %2279 = vmatprep.mubr.bf16.mxu0 %v990
      %2280 = vmatmul.mubr.bf16.gmra.mxu0 %v989
      %v2281 = vpop.f32.mrf.mxu0
      %v2282 = vadd.f32 %v1182, %v2281
      %v2283 = vpop.f32.mrf.mxu0
      %v2284 = vadd.f32 %v1186, %v2283
      %v2285 = vpop.f32.mrf.mxu0
      %v2286 = vadd.f32 %v1182, %v2285
      %v2287 = vpop.f32.mrf.mxu0
      %v2288 = vadd.f32 %v1186, %v2287
      %2289 = vmatprep.mubr.bf16.mxu0 %v994
      %2290 = vmatmul.mubr.bf16.gmra.mxu0 %v993
      %v2291 = vpop.f32.mrf.mxu0
      %v2292 = vadd.f32 %v1182, %v2291
      %v2293 = vpop.f32.mrf.mxu0
      %v2294 = vadd.f32 %v1186, %v2293
      %v2295 = vpop.f32.mrf.mxu0
      %v2296 = vadd.f32 %v1182, %v2295
      %v2297 = vpop.f32.mrf.mxu0
      %v2298 = vadd.f32 %v1186, %v2297
      %2299 = vmatprep.mubr.bf16.mxu0 %v998
      %2300 = vmatmul.mubr.bf16.gmra.mxu0 %v997
      %v2301 = vpop.f32.mrf.mxu0
      %v2302 = vadd.f32 %v1182, %v2301
      %v2303 = vpop.f32.mrf.mxu0
      %v2304 = vadd.f32 %v1186, %v2303
      %v2305 = vpop.f32.mrf.mxu0
      %v2306 = vadd.f32 %v1182, %v2305
      %v2307 = vpop.f32.mrf.mxu0
      %v2308 = vadd.f32 %v1186, %v2307
      %2309 = vmatprep.mubr.bf16.mxu0 %v1002
      %2310 = vmatmul.mubr.bf16.gmra.mxu0 %v1001
      %v2311 = vpop.f32.mrf.mxu0
      %v2312 = vadd.f32 %v1182, %v2311
      %v2313 = vpop.f32.mrf.mxu0
      %v2314 = vadd.f32 %v1186, %v2313
      %v2315 = vpop.f32.mrf.mxu0
      %v2316 = vadd.f32 %v1182, %v2315
      %v2317 = vpop.f32.mrf.mxu0
      %v2318 = vadd.f32 %v1186, %v2317
      %2319 = vmatprep.mubr.bf16.mxu0 %v1006
      %2320 = vmatmul.mubr.bf16.gmra.mxu0 %v1005
      %v2321 = vpop.f32.mrf.mxu0
      %v2322 = vadd.f32 %v1182, %v2321
      %v2323 = vpop.f32.mrf.mxu0
      %v2324 = vadd.f32 %v1186, %v2323
      %v2325 = vpop.f32.mrf.mxu0
      %v2326 = vadd.f32 %v1182, %v2325
      %v2327 = vpop.f32.mrf.mxu0
      %v2328 = vadd.f32 %v1186, %v2327
      %2329 = vmatprep.mubr.bf16.mxu0 %v1010
      %2330 = vmatmul.mubr.bf16.gmra.mxu0 %v1009
      %v2331 = vpop.f32.mrf.mxu0
      %v2332 = vadd.f32 %v1182, %v2331
      %v2333 = vpop.f32.mrf.mxu0
      %v2334 = vadd.f32 %v1186, %v2333
      %v2335 = vpop.f32.mrf.mxu0
      %v2336 = vadd.f32 %v1182, %v2335
      %v2337 = vpop.f32.mrf.mxu0
      %v2338 = vadd.f32 %v1186, %v2337
      %2339 = vmatprep.mubr.bf16.mxu0 %v1014
      %2340 = vmatmul.mubr.bf16.gmra.mxu0 %v1013
      %v2341 = vpop.f32.mrf.mxu0
      %v2342 = vadd.f32 %v1182, %v2341
      %v2343 = vpop.f32.mrf.mxu0
      %v2344 = vadd.f32 %v1186, %v2343
      %v2345 = vpop.f32.mrf.mxu0
      %v2346 = vadd.f32 %v1182, %v2345
      %v2347 = vpop.f32.mrf.mxu0
      %v2348 = vadd.f32 %v1186, %v2347
      %2349 = vmatprep.mubr.bf16.mxu0 %v1018
      %2350 = vmatmul.mubr.bf16.gmra.mxu0 %v1017
      %v2351 = vpop.f32.mrf.mxu0
      %v2352 = vadd.f32 %v1182, %v2351
      %v2353 = vpop.f32.mrf.mxu0
      %v2354 = vadd.f32 %v1186, %v2353
      %v2355 = vpop.f32.mrf.mxu0
      %v2356 = vadd.f32 %v1182, %v2355
      %v2357 = vpop.f32.mrf.mxu0
      %v2358 = vadd.f32 %v1186, %v2357
      %2359 = vmatprep.mubr.bf16.mxu0 %v1022
      %2360 = vmatmul.mubr.bf16.gmra.mxu0 %v1021
      %v2361 = vpop.f32.mrf.mxu0
      %v2362 = vadd.f32 %v1182, %v2361
      %v2363 = vpop.f32.mrf.mxu0
      %v2364 = vadd.f32 %v1186, %v2363
      %v2365 = vpop.f32.mrf.mxu0
      %v2366 = vadd.f32 %v1182, %v2365
      %v2367 = vpop.f32.mrf.mxu0
      %v2368 = vadd.f32 %v1186, %v2367
      %2369 = vmatprep.mubr.bf16.mxu0 %v1026
      %2370 = vmatmul.mubr.bf16.gmra.mxu0 %v1025
      %v2371 = vpop.f32.mrf.mxu0
      %v2372 = vadd.f32 %v1182, %v2371
      %v2373 = vpop.f32.mrf.mxu0
      %v2374 = vadd.f32 %v1186, %v2373
      %v2375 = vpop.f32.mrf.mxu0
      %v2376 = vadd.f32 %v1182, %v2375
      %v2377 = vpop.f32.mrf.mxu0
      %v2378 = vadd.f32 %v1186, %v2377
      %2379 = vmatprep.mubr.bf16.mxu0 %v1030
      %2380 = vmatmul.mubr.bf16.gmra.mxu0 %v1029
      %v2381 = vpop.f32.mrf.mxu0
      %v2382 = vadd.f32 %v1182, %v2381
      %v2383 = vpop.f32.mrf.mxu0
      %v2384 = vadd.f32 %v1186, %v2383
      %v2385 = vpop.f32.mrf.mxu0
      %v2386 = vadd.f32 %v1182, %v2385
      %v2387 = vpop.f32.mrf.mxu0
      %v2388 = vadd.f32 %v1186, %v2387
      %2389 = vmatprep.mubr.bf16.mxu0 %v1034
      %2390 = vmatmul.mubr.bf16.gmra.mxu0 %v1033
      %v2391 = vpop.f32.mrf.mxu0
      %v2392 = vadd.f32 %v1182, %v2391
      %v2393 = vpop.f32.mrf.mxu0
      %v2394 = vadd.f32 %v1186, %v2393
      %v2395 = vpop.f32.mrf.mxu0
      %v2396 = vadd.f32 %v1182, %v2395
      %v2397 = vpop.f32.mrf.mxu0
      %v2398 = vadd.f32 %v1186, %v2397
      %2399 = vmatprep.mubr.bf16.mxu0 %v1038
      %2400 = vmatmul.mubr.bf16.gmra.mxu0 %v1037
      %v2401 = vpop.f32.mrf.mxu0
      %v2402 = vadd.f32 %v1182, %v2401
      %v2403 = vpop.f32.mrf.mxu0
      %v2404 = vadd.f32 %v1186, %v2403
      %v2405 = vpop.f32.mrf.mxu0
      %v2406 = vadd.f32 %v1182, %v2405
      %v2407 = vpop.f32.mrf.mxu0
      %v2408 = vadd.f32 %v1186, %v2407
      %2409 = vdwg.mxu0
      %2410 = vmatprep.subr.bf16.mxu0 %v1670
      %2411 = vmatpush1.bf16.msra.mxu0 %v1669
      %2412 = vmatprep.subr.bf16.mxu0 %v1666
      %2413 = vmatpush1.bf16.msra.mxu0 %v1665
      %2414 = vmatprep.subr.bf16.mxu0 %v1662
      %2415 = vmatpush1.bf16.msra.mxu0 %v1661
      %2416 = vmatprep.subr.bf16.mxu0 %v1658
      %2417 = vmatpush1.bf16.msra.mxu0 %v1657
      %2418 = vmatprep.subr.bf16.mxu0 %v1654
      %2419 = vmatpush1.bf16.msra.mxu0 %v1653
      %2420 = vmatprep.subr.bf16.mxu0 %v1650
      %2421 = vmatpush1.bf16.msra.mxu0 %v1649
      %2422 = vmatprep.subr.bf16.mxu0 %v1646
      %2423 = vmatpush1.bf16.msra.mxu0 %v1645
      %2424 = vmatprep.subr.bf16.mxu0 %v1642
      %2425 = vmatpush1.bf16.msra.mxu0 %v1641
      %2426 = vmatprep.subr.bf16.mxu0 %v1702
      %2427 = vmatpush2.bf16.msra.mxu0 %v1701
      %2428 = vmatprep.subr.bf16.mxu0 %v1698
      %2429 = vmatpush2.bf16.msra.mxu0 %v1697
      %2430 = vmatprep.subr.bf16.mxu0 %v1694
      %2431 = vmatpush2.bf16.msra.mxu0 %v1693
      %2432 = vmatprep.subr.bf16.mxu0 %v1690
      %2433 = vmatpush2.bf16.msra.mxu0 %v1689
      %2434 = vmatprep.subr.bf16.mxu0 %v1686
      %2435 = vmatpush2.bf16.msra.mxu0 %v1685
      %2436 = vmatprep.subr.bf16.mxu0 %v1682
      %2437 = vmatpush2.bf16.msra.mxu0 %v1681
      %2438 = vmatprep.subr.bf16.mxu0 %v1678
      %2439 = vmatpush2.bf16.msra.mxu0 %v1677
      %2440 = vmatprep.subr.bf16.mxu0 %v1674
      %2441 = vmatpush2.bf16.msra.mxu0 %v1673
      %2442 = vmatprep.mubr.bf16.mxu0 %v980
      %2443 = vmatmul.mubr.bf16.gmra.mxu0 %v979
      %v2444 = vpop.f32.mrf.mxu0
      %v2445 = vadd.f32 %v2252, %v2444
      %v2446 = vpop.f32.mrf.mxu0
      %v2447 = vadd.f32 %v2254, %v2446
      %v2448 = vpop.f32.mrf.mxu0
      %v2449 = vadd.f32 %v2256, %v2448
      %v2450 = vpop.f32.mrf.mxu0
      %v2451 = vadd.f32 %v2258, %v2450
      %2452 = vmatprep.mubr.bf16.mxu0 %v984
      %2453 = vmatmul.mubr.bf16.gmra.mxu0 %v983
      %v2454 = vpop.f32.mrf.mxu0
      %v2455 = vadd.f32 %v2262, %v2454
      %v2456 = vpop.f32.mrf.mxu0
      %v2457 = vadd.f32 %v2264, %v2456
      %v2458 = vpop.f32.mrf.mxu0
      %v2459 = vadd.f32 %v2266, %v2458
      %v2460 = vpop.f32.mrf.mxu0
      %v2461 = vadd.f32 %v2268, %v2460
      %2462 = vmatprep.mubr.bf16.mxu0 %v988
      %2463 = vmatmul.mubr.bf16.gmra.mxu0 %v987
      %v2464 = vpop.f32.mrf.mxu0
      %v2465 = vadd.f32 %v2272, %v2464
      %v2466 = vpop.f32.mrf.mxu0
      %v2467 = vadd.f32 %v2274, %v2466
      %v2468 = vpop.f32.mrf.mxu0
      %v2469 = vadd.f32 %v2276, %v2468
      %v2470 = vpop.f32.mrf.mxu0
      %v2471 = vadd.f32 %v2278, %v2470
      %2472 = vmatprep.mubr.bf16.mxu0 %v992
      %2473 = vmatmul.mubr.bf16.gmra.mxu0 %v991
      %v2474 = vpop.f32.mrf.mxu0
      %v2475 = vadd.f32 %v2282, %v2474
      %v2476 = vpop.f32.mrf.mxu0
      %v2477 = vadd.f32 %v2284, %v2476
      %v2478 = vpop.f32.mrf.mxu0
      %v2479 = vadd.f32 %v2286, %v2478
      %v2480 = vpop.f32.mrf.mxu0
      %v2481 = vadd.f32 %v2288, %v2480
      %2482 = vmatprep.mubr.bf16.mxu0 %v996
      %2483 = vmatmul.mubr.bf16.gmra.mxu0 %v995
      %v2484 = vpop.f32.mrf.mxu0
      %v2485 = vadd.f32 %v2292, %v2484
      %v2486 = vpop.f32.mrf.mxu0
      %v2487 = vadd.f32 %v2294, %v2486
      %v2488 = vpop.f32.mrf.mxu0
      %v2489 = vadd.f32 %v2296, %v2488
      %v2490 = vpop.f32.mrf.mxu0
      %v2491 = vadd.f32 %v2298, %v2490
      %2492 = vmatprep.mubr.bf16.mxu0 %v1000
      %2493 = vmatmul.mubr.bf16.gmra.mxu0 %v999
      %v2494 = vpop.f32.mrf.mxu0
      %v2495 = vadd.f32 %v2302, %v2494
      %v2496 = vpop.f32.mrf.mxu0
      %v2497 = vadd.f32 %v2304, %v2496
      %v2498 = vpop.f32.mrf.mxu0
      %v2499 = vadd.f32 %v2306, %v2498
      %v2500 = vpop.f32.mrf.mxu0
      %v2501 = vadd.f32 %v2308, %v2500
      %2502 = vmatprep.mubr.bf16.mxu0 %v1004
      %2503 = vmatmul.mubr.bf16.gmra.mxu0 %v1003
      %v2504 = vpop.f32.mrf.mxu0
      %v2505 = vadd.f32 %v2312, %v2504
      %v2506 = vpop.f32.mrf.mxu0
      %v2507 = vadd.f32 %v2314, %v2506
      %v2508 = vpop.f32.mrf.mxu0
      %v2509 = vadd.f32 %v2316, %v2508
      %v2510 = vpop.f32.mrf.mxu0
      %v2511 = vadd.f32 %v2318, %v2510
      %2512 = vmatprep.mubr.bf16.mxu0 %v1008
      %2513 = vmatmul.mubr.bf16.gmra.mxu0 %v1007
      %v2514 = vpop.f32.mrf.mxu0
      %v2515 = vadd.f32 %v2322, %v2514
      %v2516 = vpop.f32.mrf.mxu0
      %v2517 = vadd.f32 %v2324, %v2516
      %v2518 = vpop.f32.mrf.mxu0
      %v2519 = vadd.f32 %v2326, %v2518
      %v2520 = vpop.f32.mrf.mxu0
      %v2521 = vadd.f32 %v2328, %v2520
      %2522 = vmatprep.mubr.bf16.mxu0 %v1012
      %2523 = vmatmul.mubr.bf16.gmra.mxu0 %v1011
      %v2524 = vpop.f32.mrf.mxu0
      %v2525 = vadd.f32 %v2332, %v2524
      %v2526 = vpop.f32.mrf.mxu0
      %v2527 = vadd.f32 %v2334, %v2526
      %v2528 = vpop.f32.mrf.mxu0
      %v2529 = vadd.f32 %v2336, %v2528
      %v2530 = vpop.f32.mrf.mxu0
      %v2531 = vadd.f32 %v2338, %v2530
      %2532 = vmatprep.mubr.bf16.mxu0 %v1016
      %2533 = vmatmul.mubr.bf16.gmra.mxu0 %v1015
      %v2534 = vpop.f32.mrf.mxu0
      %v2535 = vadd.f32 %v2342, %v2534
      %v2536 = vpop.f32.mrf.mxu0
      %v2537 = vadd.f32 %v2344, %v2536
      %v2538 = vpop.f32.mrf.mxu0
      %v2539 = vadd.f32 %v2346, %v2538
      %v2540 = vpop.f32.mrf.mxu0
      %v2541 = vadd.f32 %v2348, %v2540
      %2542 = vmatprep.mubr.bf16.mxu0 %v1020
      %2543 = vmatmul.mubr.bf16.gmra.mxu0 %v1019
      %v2544 = vpop.f32.mrf.mxu0
      %v2545 = vadd.f32 %v2352, %v2544
      %v2546 = vpop.f32.mrf.mxu0
      %v2547 = vadd.f32 %v2354, %v2546
      %v2548 = vpop.f32.mrf.mxu0
      %v2549 = vadd.f32 %v2356, %v2548
      %v2550 = vpop.f32.mrf.mxu0
      %v2551 = vadd.f32 %v2358, %v2550
      %2552 = vmatprep.mubr.bf16.mxu0 %v1024
      %2553 = vmatmul.mubr.bf16.gmra.mxu0 %v1023
      %v2554 = vpop.f32.mrf.mxu0
      %v2555 = vadd.f32 %v2362, %v2554
      %v2556 = vpop.f32.mrf.mxu0
      %v2557 = vadd.f32 %v2364, %v2556
      %v2558 = vpop.f32.mrf.mxu0
      %v2559 = vadd.f32 %v2366, %v2558
      %v2560 = vpop.f32.mrf.mxu0
      %v2561 = vadd.f32 %v2368, %v2560
      %2562 = vmatprep.mubr.bf16.mxu0 %v1028
      %2563 = vmatmul.mubr.bf16.gmra.mxu0 %v1027
      %v2564 = vpop.f32.mrf.mxu0
      %v2565 = vadd.f32 %v2372, %v2564
      %v2566 = vpop.f32.mrf.mxu0
      %v2567 = vadd.f32 %v2374, %v2566
      %v2568 = vpop.f32.mrf.mxu0
      %v2569 = vadd.f32 %v2376, %v2568
      %v2570 = vpop.f32.mrf.mxu0
      %v2571 = vadd.f32 %v2378, %v2570
      %2572 = vmatprep.mubr.bf16.mxu0 %v1032
      %2573 = vmatmul.mubr.bf16.gmra.mxu0 %v1031
      %v2574 = vpop.f32.mrf.mxu0
      %v2575 = vadd.f32 %v2382, %v2574
      %v2576 = vpop.f32.mrf.mxu0
      %v2577 = vadd.f32 %v2384, %v2576
      %v2578 = vpop.f32.mrf.mxu0
      %v2579 = vadd.f32 %v2386, %v2578
      %v2580 = vpop.f32.mrf.mxu0
      %v2581 = vadd.f32 %v2388, %v2580
      %2582 = vmatprep.mubr.bf16.mxu0 %v1036
      %2583 = vmatmul.mubr.bf16.gmra.mxu0 %v1035
      %v2584 = vpop.f32.mrf.mxu0
      %v2585 = vadd.f32 %v2392, %v2584
      %v2586 = vpop.f32.mrf.mxu0
      %v2587 = vadd.f32 %v2394, %v2586
      %v2588 = vpop.f32.mrf.mxu0
      %v2589 = vadd.f32 %v2396, %v2588
      %v2590 = vpop.f32.mrf.mxu0
      %v2591 = vadd.f32 %v2398, %v2590
      %2592 = vmatprep.mubr.bf16.mxu0 %v1040
      %2593 = vmatmul.mubr.bf16.gmra.mxu0 %v1039
      %v2594 = vpop.f32.mrf.mxu0
      %v2595 = vadd.f32 %v2402, %v2594
      %v2596 = vpop.f32.mrf.mxu0
      %v2597 = vadd.f32 %v2404, %v2596
      %v2598 = vpop.f32.mrf.mxu0
      %v2599 = vadd.f32 %v2406, %v2598
      %v2600 = vpop.f32.mrf.mxu0
      %v2601 = vadd.f32 %v2408, %v2600
      %2602 = vdwg.mxu0
      %v2603 = vmax.f32 %v2059, 0.0
      %v2604 = vmax.f32 %v2061, 0.0
      %v2605 = vmax.f32 %v2445, 0.0
      %v2606 = vmax.f32 %v2447, 0.0
      %v2607 = vmax.f32 %v2063, 0.0
      %v2608 = vmax.f32 %v2065, 0.0
      %v2609 = vmax.f32 %v2449, 0.0
      %v2610 = vmax.f32 %v2451, 0.0
      %v2611 = vmax.f32 %v2069, 0.0
      %v2612 = vmax.f32 %v2071, 0.0
      %v2613 = vmax.f32 %v2455, 0.0
      %v2614 = vmax.f32 %v2457, 0.0
      %v2615 = vmax.f32 %v2073, 0.0
      %v2616 = vmax.f32 %v2075, 0.0
      %v2617 = vmax.f32 %v2459, 0.0
      %v2618 = vmax.f32 %v2461, 0.0
      %v2619 = vmax.f32 %v2079, 0.0
      %v2620 = vmax.f32 %v2081, 0.0
      %v2621 = vmax.f32 %v2465, 0.0
      %v2622 = vmax.f32 %v2467, 0.0
      %v2623 = vmax.f32 %v2083, 0.0
      %v2624 = vmax.f32 %v2085, 0.0
      %v2625 = vmax.f32 %v2469, 0.0
      %v2626 = vmax.f32 %v2471, 0.0
      %v2627 = vmax.f32 %v2089, 0.0
      %v2628 = vmax.f32 %v2091, 0.0
      %v2629 = vmax.f32 %v2475, 0.0
      %v2630 = vmax.f32 %v2477, 0.0
      %v2631 = vmax.f32 %v2093, 0.0
      %v2632 = vmax.f32 %v2095, 0.0
      %v2633 = vmax.f32 %v2479, 0.0
      %v2634 = vmax.f32 %v2481, 0.0
      %v2635 = vmax.f32 %v2099, 0.0
      %v2636 = vmax.f32 %v2101, 0.0
      %v2637 = vmax.f32 %v2485, 0.0
      %v2638 = vmax.f32 %v2487, 0.0
      %v2639 = vmax.f32 %v2103, 0.0
      %v2640 = vmax.f32 %v2105, 0.0
      %v2641 = vmax.f32 %v2489, 0.0
      %v2642 = vmax.f32 %v2491, 0.0
      %v2643 = vmax.f32 %v2109, 0.0
      %v2644 = vmax.f32 %v2111, 0.0
      %v2645 = vmax.f32 %v2495, 0.0
      %v2646 = vmax.f32 %v2497, 0.0
      %v2647 = vmax.f32 %v2113, 0.0
      %v2648 = vmax.f32 %v2115, 0.0
      %v2649 = vmax.f32 %v2499, 0.0
      %v2650 = vmax.f32 %v2501, 0.0
      %v2651 = vmax.f32 %v2119, 0.0
      %v2652 = vmax.f32 %v2121, 0.0
      %v2653 = vmax.f32 %v2505, 0.0
      %v2654 = vmax.f32 %v2507, 0.0
      %v2655 = vmax.f32 %v2123, 0.0
      %v2656 = vmax.f32 %v2125, 0.0
      %v2657 = vmax.f32 %v2509, 0.0
      %v2658 = vmax.f32 %v2511, 0.0
      %v2659 = vmax.f32 %v2129, 0.0
      %v2660 = vmax.f32 %v2131, 0.0
      %v2661 = vmax.f32 %v2515, 0.0
      %v2662 = vmax.f32 %v2517, 0.0
      %v2663 = vmax.f32 %v2133, 0.0
      %v2664 = vmax.f32 %v2135, 0.0
      %v2665 = vmax.f32 %v2519, 0.0
      %v2666 = vmax.f32 %v2521, 0.0
      %v2667 = vmax.f32 %v2139, 0.0
      %v2668 = vmax.f32 %v2141, 0.0
      %v2669 = vmax.f32 %v2525, 0.0
      %v2670 = vmax.f32 %v2527, 0.0
      %v2671 = vmax.f32 %v2143, 0.0
      %v2672 = vmax.f32 %v2145, 0.0
      %v2673 = vmax.f32 %v2529, 0.0
      %v2674 = vmax.f32 %v2531, 0.0
      %v2675 = vmax.f32 %v2149, 0.0
      %v2676 = vmax.f32 %v2151, 0.0
      %v2677 = vmax.f32 %v2535, 0.0
      %v2678 = vmax.f32 %v2537, 0.0
      %v2679 = vmax.f32 %v2153, 0.0
      %v2680 = vmax.f32 %v2155, 0.0
      %v2681 = vmax.f32 %v2539, 0.0
      %v2682 = vmax.f32 %v2541, 0.0
      %v2683 = vmax.f32 %v2159, 0.0
      %v2684 = vmax.f32 %v2161, 0.0
      %v2685 = vmax.f32 %v2545, 0.0
      %v2686 = vmax.f32 %v2547, 0.0
      %v2687 = vmax.f32 %v2163, 0.0
      %v2688 = vmax.f32 %v2165, 0.0
      %v2689 = vmax.f32 %v2549, 0.0
      %v2690 = vmax.f32 %v2551, 0.0
      %v2691 = vmax.f32 %v2169, 0.0
      %v2692 = vmax.f32 %v2171, 0.0
      %v2693 = vmax.f32 %v2555, 0.0
      %v2694 = vmax.f32 %v2557, 0.0
      %v2695 = vmax.f32 %v2173, 0.0
      %v2696 = vmax.f32 %v2175, 0.0
      %v2697 = vmax.f32 %v2559, 0.0
      %v2698 = vmax.f32 %v2561, 0.0
      %v2699 = vmax.f32 %v2179, 0.0
      %v2700 = vmax.f32 %v2181, 0.0
      %v2701 = vmax.f32 %v2565, 0.0
      %v2702 = vmax.f32 %v2567, 0.0
      %v2703 = vmax.f32 %v2183, 0.0
      %v2704 = vmax.f32 %v2185, 0.0
      %v2705 = vmax.f32 %v2569, 0.0
      %v2706 = vmax.f32 %v2571, 0.0
      %v2707 = vmax.f32 %v2189, 0.0
      %v2708 = vmax.f32 %v2191, 0.0
      %v2709 = vmax.f32 %v2575, 0.0
      %v2710 = vmax.f32 %v2577, 0.0
      %v2711 = vmax.f32 %v2193, 0.0
      %v2712 = vmax.f32 %v2195, 0.0
      %v2713 = vmax.f32 %v2579, 0.0
      %v2714 = vmax.f32 %v2581, 0.0
      %v2715 = vmax.f32 %v2199, 0.0
      %v2716 = vmax.f32 %v2201, 0.0
      %v2717 = vmax.f32 %v2585, 0.0
      %v2718 = vmax.f32 %v2587, 0.0
      %v2719 = vmax.f32 %v2203, 0.0
      %v2720 = vmax.f32 %v2205, 0.0
      %v2721 = vmax.f32 %v2589, 0.0
      %v2722 = vmax.f32 %v2591, 0.0
      %v2723 = vmax.f32 %v2209, 0.0
      %v2724 = vmax.f32 %v2211, 0.0
      %v2725 = vmax.f32 %v2595, 0.0
      %v2726 = vmax.f32 %v2597, 0.0
      %v2727 = vmax.f32 %v2213, 0.0
      %v2728 = vmax.f32 %v2215, 0.0
      %v2729 = vmax.f32 %v2599, 0.0
      %v2730 = vmax.f32 %v2601, 0.0
      %v2731 = vpack.c.bf16 %v2607, %v2603
      %v2732 = vpack.c.bf16 %v2608, %v2604
      %v2733 = vpack.c.bf16 %v2609, %v2605
      %v2734 = vpack.c.bf16 %v2610, %v2606
      %v2735 = vpack.c.bf16 %v2615, %v2611
      %v2736 = vpack.c.bf16 %v2616, %v2612
      %v2737 = vpack.c.bf16 %v2617, %v2613
      %v2738 = vpack.c.bf16 %v2618, %v2614
      %v2739 = vpack.c.bf16 %v2623, %v2619
      %v2740 = vpack.c.bf16 %v2624, %v2620
      %v2741 = vpack.c.bf16 %v2625, %v2621
      %v2742 = vpack.c.bf16 %v2626, %v2622
      %v2743 = vpack.c.bf16 %v2631, %v2627
      %v2744 = vpack.c.bf16 %v2632, %v2628
      %v2745 = vpack.c.bf16 %v2633, %v2629
      %v2746 = vpack.c.bf16 %v2634, %v2630
      %v2747 = vpack.c.bf16 %v2639, %v2635
      %v2748 = vpack.c.bf16 %v2640, %v2636
      %v2749 = vpack.c.bf16 %v2641, %v2637
      %v2750 = vpack.c.bf16 %v2642, %v2638
      %v2751 = vpack.c.bf16 %v2647, %v2643
      %v2752 = vpack.c.bf16 %v2648, %v2644
      %v2753 = vpack.c.bf16 %v2649, %v2645
      %v2754 = vpack.c.bf16 %v2650, %v2646
      %v2755 = vpack.c.bf16 %v2655, %v2651
      %v2756 = vpack.c.bf16 %v2656, %v2652
      %v2757 = vpack.c.bf16 %v2657, %v2653
      %v2758 = vpack.c.bf16 %v2658, %v2654
      %v2759 = vpack.c.bf16 %v2663, %v2659
      %v2760 = vpack.c.bf16 %v2664, %v2660
      %v2761 = vpack.c.bf16 %v2665, %v2661
      %v2762 = vpack.c.bf16 %v2666, %v2662
      %v2763 = vpack.c.bf16 %v2671, %v2667
      %v2764 = vpack.c.bf16 %v2672, %v2668
      %v2765 = vpack.c.bf16 %v2673, %v2669
      %v2766 = vpack.c.bf16 %v2674, %v2670
      %v2767 = vpack.c.bf16 %v2679, %v2675
      %v2768 = vpack.c.bf16 %v2680, %v2676
      %v2769 = vpack.c.bf16 %v2681, %v2677
      %v2770 = vpack.c.bf16 %v2682, %v2678
      %v2771 = vpack.c.bf16 %v2687, %v2683
      %v2772 = vpack.c.bf16 %v2688, %v2684
      %v2773 = vpack.c.bf16 %v2689, %v2685
      %v2774 = vpack.c.bf16 %v2690, %v2686
      %v2775 = vpack.c.bf16 %v2695, %v2691
      %v2776 = vpack.c.bf16 %v2696, %v2692
      %v2777 = vpack.c.bf16 %v2697, %v2693
      %v2778 = vpack.c.bf16 %v2698, %v2694
      %v2779 = vpack.c.bf16 %v2703, %v2699
      %v2780 = vpack.c.bf16 %v2704, %v2700
      %v2781 = vpack.c.bf16 %v2705, %v2701
      %v2782 = vpack.c.bf16 %v2706, %v2702
      %v2783 = vpack.c.bf16 %v2711, %v2707
      %v2784 = vpack.c.bf16 %v2712, %v2708
      %v2785 = vpack.c.bf16 %v2713, %v2709
      %v2786 = vpack.c.bf16 %v2714, %v2710
      %v2787 = vpack.c.bf16 %v2719, %v2715
      %v2788 = vpack.c.bf16 %v2720, %v2716
      %v2789 = vpack.c.bf16 %v2721, %v2717
      %v2790 = vpack.c.bf16 %v2722, %v2718
      %v2791 = vpack.c.bf16 %v2727, %v2723
      %v2792 = vpack.c.bf16 %v2728, %v2724
      %v2793 = vpack.c.bf16 %v2729, %v2725
      %v2794 = vpack.c.bf16 %v2730, %v2726
      %v2859 = vunpack.c.l.b16 %v2731
      %v2860 = vunpack.c.l.b16 %v2732
      %v2861 = vunpack.c.l.b16 %v2733
      %v2862 = vunpack.c.l.b16 %v2734
      %v2863 = vunpack.c.h.b16 %v2731
      %v2864 = vunpack.c.h.b16 %v2732
      %v2865 = vunpack.c.h.b16 %v2733
      %v2866 = vunpack.c.h.b16 %v2734
      %v2867 = vunpack.c.l.b16 %v2735
      %v2868 = vunpack.c.l.b16 %v2736
      %v2869 = vunpack.c.l.b16 %v2737
      %v2870 = vunpack.c.l.b16 %v2738
      %v2871 = vunpack.c.h.b16 %v2735
      %v2872 = vunpack.c.h.b16 %v2736
      %v2873 = vunpack.c.h.b16 %v2737
      %v2874 = vunpack.c.h.b16 %v2738
      %v2875 = vunpack.c.l.b16 %v2739
      %v2876 = vunpack.c.l.b16 %v2740
      %v2877 = vunpack.c.l.b16 %v2741
      %v2878 = vunpack.c.l.b16 %v2742
      %v2879 = vunpack.c.h.b16 %v2739
      %v2880 = vunpack.c.h.b16 %v2740
      %v2881 = vunpack.c.h.b16 %v2741
      %v2882 = vunpack.c.h.b16 %v2742
      %v2883 = vunpack.c.l.b16 %v2743
      %v2884 = vunpack.c.l.b16 %v2744
      %v2885 = vunpack.c.l.b16 %v2745
      %v2886 = vunpack.c.l.b16 %v2746
      %v2887 = vunpack.c.h.b16 %v2743
      %v2888 = vunpack.c.h.b16 %v2744
      %v2889 = vunpack.c.h.b16 %v2745
      %v2890 = vunpack.c.h.b16 %v2746
      %v2891 = vunpack.c.l.b16 %v2747
      %v2892 = vunpack.c.l.b16 %v2748
      %v2893 = vunpack.c.l.b16 %v2749
      %v2894 = vunpack.c.l.b16 %v2750
      %v2895 = vunpack.c.h.b16 %v2747
      %v2896 = vunpack.c.h.b16 %v2748
      %v2897 = vunpack.c.h.b16 %v2749
      %v2898 = vunpack.c.h.b16 %v2750
      %v2899 = vunpack.c.l.b16 %v2751
      %v2900 = vunpack.c.l.b16 %v2752
      %v2901 = vunpack.c.l.b16 %v2753
      %v2902 = vunpack.c.l.b16 %v2754
      %v2903 = vunpack.c.h.b16 %v2751
      %v2904 = vunpack.c.h.b16 %v2752
      %v2905 = vunpack.c.h.b16 %v2753
      %v2906 = vunpack.c.h.b16 %v2754
      %v2907 = vunpack.c.l.b16 %v2755
      %v2908 = vunpack.c.l.b16 %v2756
      %v2909 = vunpack.c.l.b16 %v2757
      %v2910 = vunpack.c.l.b16 %v2758
      %v2911 = vunpack.c.h.b16 %v2755
      %v2912 = vunpack.c.h.b16 %v2756
      %v2913 = vunpack.c.h.b16 %v2757
      %v2914 = vunpack.c.h.b16 %v2758
      %v2915 = vunpack.c.l.b16 %v2759
      %v2916 = vunpack.c.l.b16 %v2760
      %v2917 = vunpack.c.l.b16 %v2761
      %v2918 = vunpack.c.l.b16 %v2762
      %v2919 = vunpack.c.h.b16 %v2759
      %v2920 = vunpack.c.h.b16 %v2760
      %v2921 = vunpack.c.h.b16 %v2761
      %v2922 = vunpack.c.h.b16 %v2762
      %v2923 = vunpack.c.l.b16 %v2763
      %v2924 = vunpack.c.l.b16 %v2764
      %v2925 = vunpack.c.l.b16 %v2765
      %v2926 = vunpack.c.l.b16 %v2766
      %v2927 = vunpack.c.h.b16 %v2763
      %v2928 = vunpack.c.h.b16 %v2764
      %v2929 = vunpack.c.h.b16 %v2765
      %v2930 = vunpack.c.h.b16 %v2766
      %v2931 = vunpack.c.l.b16 %v2767
      %v2932 = vunpack.c.l.b16 %v2768
      %v2933 = vunpack.c.l.b16 %v2769
      %v2934 = vunpack.c.l.b16 %v2770
      %v2935 = vunpack.c.h.b16 %v2767
      %v2936 = vunpack.c.h.b16 %v2768
      %v2937 = vunpack.c.h.b16 %v2769
      %v2938 = vunpack.c.h.b16 %v2770
      %v2939 = vunpack.c.l.b16 %v2771
      %v2940 = vunpack.c.l.b16 %v2772
      %v2941 = vunpack.c.l.b16 %v2773
      %v2942 = vunpack.c.l.b16 %v2774
      %v2943 = vunpack.c.h.b16 %v2771
      %v2944 = vunpack.c.h.b16 %v2772
      %v2945 = vunpack.c.h.b16 %v2773
      %v2946 = vunpack.c.h.b16 %v2774
      %v2947 = vunpack.c.l.b16 %v2775
      %v2948 = vunpack.c.l.b16 %v2776
      %v2949 = vunpack.c.l.b16 %v2777
      %v2950 = vunpack.c.l.b16 %v2778
      %v2951 = vunpack.c.h.b16 %v2775
      %v2952 = vunpack.c.h.b16 %v2776
      %v2953 = vunpack.c.h.b16 %v2777
      %v2954 = vunpack.c.h.b16 %v2778
      %v2955 = vunpack.c.l.b16 %v2779
      %v2956 = vunpack.c.l.b16 %v2780
      %v2957 = vunpack.c.l.b16 %v2781
      %v2958 = vunpack.c.l.b16 %v2782
      %v2959 = vunpack.c.h.b16 %v2779
      %v2960 = vunpack.c.h.b16 %v2780
      %v2961 = vunpack.c.h.b16 %v2781
      %v2962 = vunpack.c.h.b16 %v2782
      %v2963 = vunpack.c.l.b16 %v2783
      %v2964 = vunpack.c.l.b16 %v2784
      %v2965 = vunpack.c.l.b16 %v2785
      %v2966 = vunpack.c.l.b16 %v2786
      %v2967 = vunpack.c.h.b16 %v2783
      %v2968 = vunpack.c.h.b16 %v2784
      %v2969 = vunpack.c.h.b16 %v2785
      %v2970 = vunpack.c.h.b16 %v2786
      %v2971 = vunpack.c.l.b16 %v2787
      %v2972 = vunpack.c.l.b16 %v2788
      %v2973 = vunpack.c.l.b16 %v2789
      %v2974 = vunpack.c.l.b16 %v2790
      %v2975 = vunpack.c.h.b16 %v2787
      %v2976 = vunpack.c.h.b16 %v2788
      %v2977 = vunpack.c.h.b16 %v2789
      %v2978 = vunpack.c.h.b16 %v2790
      %v2979 = vunpack.c.l.b16 %v2791
      %v2980 = vunpack.c.l.b16 %v2792
      %v2981 = vunpack.c.l.b16 %v2793
      %v2982 = vunpack.c.l.b16 %v2794
      %v2983 = vunpack.c.h.b16 %v2791
      %v2984 = vunpack.c.h.b16 %v2792
      %v2985 = vunpack.c.h.b16 %v2793
      %v2986 = vunpack.c.h.b16 %v2794
      %v2987 = vpack.c.b16 %v2860, %v2859
      %v2988 = vpack.c.b16 %v2862, %v2861
      %v2989 = vpack.c.b16 %v2864, %v2863
      %v2990 = vpack.c.b16 %v2866, %v2865
      %v2991 = vpack.c.b16 %v2868, %v2867
      %v2992 = vpack.c.b16 %v2870, %v2869
      %v2993 = vpack.c.b16 %v2872, %v2871
      %v2994 = vpack.c.b16 %v2874, %v2873
      %v2995 = vpack.c.b16 %v2876, %v2875
      %v2996 = vpack.c.b16 %v2878, %v2877
      %v2997 = vpack.c.b16 %v2880, %v2879
      %v2998 = vpack.c.b16 %v2882, %v2881
      %v2999 = vpack.c.b16 %v2884, %v2883
      %v3000 = vpack.c.b16 %v2886, %v2885
      %v3001 = vpack.c.b16 %v2888, %v2887
      %v3002 = vpack.c.b16 %v2890, %v2889
      %v3003 = vpack.c.b16 %v2892, %v2891
      %v3004 = vpack.c.b16 %v2894, %v2893
      %v3005 = vpack.c.b16 %v2896, %v2895
      %v3006 = vpack.c.b16 %v2898, %v2897
      %v3007 = vpack.c.b16 %v2900, %v2899
      %v3008 = vpack.c.b16 %v2902, %v2901
      %v3009 = vpack.c.b16 %v2904, %v2903
      %v3010 = vpack.c.b16 %v2906, %v2905
      %v3011 = vpack.c.b16 %v2908, %v2907
      %v3012 = vpack.c.b16 %v2910, %v2909
      %v3013 = vpack.c.b16 %v2912, %v2911
      %v3014 = vpack.c.b16 %v2914, %v2913
      %v3015 = vpack.c.b16 %v2916, %v2915
      %v3016 = vpack.c.b16 %v2918, %v2917
      %v3017 = vpack.c.b16 %v2920, %v2919
      %v3018 = vpack.c.b16 %v2922, %v2921
      %v3019 = vpack.c.b16 %v2924, %v2923
      %v3020 = vpack.c.b16 %v2926, %v2925
      %v3021 = vpack.c.b16 %v2928, %v2927
      %v3022 = vpack.c.b16 %v2930, %v2929
      %v3023 = vpack.c.b16 %v2932, %v2931
      %v3024 = vpack.c.b16 %v2934, %v2933
      %v3025 = vpack.c.b16 %v2936, %v2935
      %v3026 = vpack.c.b16 %v2938, %v2937
      %v3027 = vpack.c.b16 %v2940, %v2939
      %v3028 = vpack.c.b16 %v2942, %v2941
      %v3029 = vpack.c.b16 %v2944, %v2943
      %v3030 = vpack.c.b16 %v2946, %v2945
      %v3031 = vpack.c.b16 %v2948, %v2947
      %v3032 = vpack.c.b16 %v2950, %v2949
      %v3033 = vpack.c.b16 %v2952, %v2951
      %v3034 = vpack.c.b16 %v2954, %v2953
      %v3035 = vpack.c.b16 %v2956, %v2955
      %v3036 = vpack.c.b16 %v2958, %v2957
      %v3037 = vpack.c.b16 %v2960, %v2959
      %v3038 = vpack.c.b16 %v2962, %v2961
      %v3039 = vpack.c.b16 %v2964, %v2963
      %v3040 = vpack.c.b16 %v2966, %v2965
      %v3041 = vpack.c.b16 %v2968, %v2967
      %v3042 = vpack.c.b16 %v2970, %v2969
      %v3043 = vpack.c.b16 %v2972, %v2971
      %v3044 = vpack.c.b16 %v2974, %v2973
      %v3045 = vpack.c.b16 %v2976, %v2975
      %v3046 = vpack.c.b16 %v2978, %v2977
      %v3047 = vpack.c.b16 %v2980, %v2979
      %v3048 = vpack.c.b16 %v2982, %v2981
      %v3049 = vpack.c.b16 %v2984, %v2983
      %v3050 = vpack.c.b16 %v2986, %v2985
      %3115 = vst [vmem:[%s228] sm:$0xff] %v2987
      %3116 = vst [vmem:[%s228 + $0x8] sm:$0xff] %v2988
      %3117 = vst [vmem:[%s228 + $0x10] sm:$0xff] %v2989
      %3118 = vst [vmem:[%s228 + $0x18] sm:$0xff] %v2990
      %3119 = vst [vmem:[%s228 + $0x20] sm:$0xff] %v2991
      %3120 = vst [vmem:[%s228 + $0x28] sm:$0xff] %v2992
      %3121 = vst [vmem:[%s228 + $0x30] sm:$0xff] %v2993
      %3122 = vst [vmem:[%s228 + $0x38] sm:$0xff] %v2994
      %3123 = vst [vmem:[%s228 + $0x40] sm:$0xff] %v2995
      %3124 = vst [vmem:[%s228 + $0x48] sm:$0xff] %v2996
      %3125 = vst [vmem:[%s228 + $0x50] sm:$0xff] %v2997
      %3126 = vst [vmem:[%s228 + $0x58] sm:$0xff] %v2998
      %3127 = vst [vmem:[%s228 + $0x60] sm:$0xff] %v2999
      %3128 = vst [vmem:[%s228 + $0x68] sm:$0xff] %v3000
      %3129 = vst [vmem:[%s228 + $0x70] sm:$0xff] %v3001
      %3130 = vst [vmem:[%s228 + $0x78] sm:$0xff] %v3002
      %3131 = vst [vmem:[%s228 + $0x80] sm:$0xff] %v3003
      %3132 = vst [vmem:[%s228 + $0x88] sm:$0xff] %v3004
      %3133 = vst [vmem:[%s228 + $0x90] sm:$0xff] %v3005
      %3134 = vst [vmem:[%s228 + $0x98] sm:$0xff] %v3006
      %3135 = vst [vmem:[%s228 + $0xa0] sm:$0xff] %v3007
      %3136 = vst [vmem:[%s228 + $0xa8] sm:$0xff] %v3008
      %3137 = vst [vmem:[%s228 + $0xb0] sm:$0xff] %v3009
      %3138 = vst [vmem:[%s228 + $0xb8] sm:$0xff] %v3010
      %3139 = vst [vmem:[%s228 + $0xc0] sm:$0xff] %v3011
      %3140 = vst [vmem:[%s228 + $0xc8] sm:$0xff] %v3012
      %3141 = vst [vmem:[%s228 + $0xd0] sm:$0xff] %v3013
      %3142 = vst [vmem:[%s228 + $0xd8] sm:$0xff] %v3014
      %3143 = vst [vmem:[%s228 + $0xe0] sm:$0xff] %v3015
      %3144 = vst [vmem:[%s228 + $0xe8] sm:$0xff] %v3016
      %3145 = vst [vmem:[%s228 + $0xf0] sm:$0xff] %v3017
      %3146 = vst [vmem:[%s228 + $0xf8] sm:$0xff] %v3018
      %3147 = vst [vmem:[%s228 + $0x100] sm:$0xff] %v3019
      %3148 = vst [vmem:[%s228 + $0x108] sm:$0xff] %v3020
      %3149 = vst [vmem:[%s228 + $0x110] sm:$0xff] %v3021
      %3150 = vst [vmem:[%s228 + $0x118] sm:$0xff] %v3022
      %3151 = vst [vmem:[%s228 + $0x120] sm:$0xff] %v3023
      %3152 = vst [vmem:[%s228 + $0x128] sm:$0xff] %v3024
      %3153 = vst [vmem:[%s228 + $0x130] sm:$0xff] %v3025
      %3154 = vst [vmem:[%s228 + $0x138] sm:$0xff] %v3026
      %3155 = vst [vmem:[%s228 + $0x140] sm:$0xff] %v3027
      %3156 = vst [vmem:[%s228 + $0x148] sm:$0xff] %v3028
      %3157 = vst [vmem:[%s228 + $0x150] sm:$0xff] %v3029
      %3158 = vst [vmem:[%s228 + $0x158] sm:$0xff] %v3030
      %3159 = vst [vmem:[%s228 + $0x160] sm:$0xff] %v3031
      %3160 = vst [vmem:[%s228 + $0x168] sm:$0xff] %v3032
      %3161 = vst [vmem:[%s228 + $0x170] sm:$0xff] %v3033
      %3162 = vst [vmem:[%s228 + $0x178] sm:$0xff] %v3034
      %3163 = vst [vmem:[%s228 + $0x180] sm:$0xff] %v3035
      %3164 = vst [vmem:[%s228 + $0x188] sm:$0xff] %v3036
      %3165 = vst [vmem:[%s228 + $0x190] sm:$0xff] %v3037
      %3166 = vst [vmem:[%s228 + $0x198] sm:$0xff] %v3038
      %3167 = vst [vmem:[%s228 + $0x1a0] sm:$0xff] %v3039
      %3168 = vst [vmem:[%s228 + $0x1a8] sm:$0xff] %v3040
      %3169 = vst [vmem:[%s228 + $0x1b0] sm:$0xff] %v3041
      %3170 = vst [vmem:[%s228 + $0x1b8] sm:$0xff] %v3042
      %3171 = vst [vmem:[%s228 + $0x1c0] sm:$0xff] %v3043
      %3172 = vst [vmem:[%s228 + $0x1c8] sm:$0xff] %v3044
      %3173 = vst [vmem:[%s228 + $0x1d0] sm:$0xff] %v3045
      %3174 = vst [vmem:[%s228 + $0x1d8] sm:$0xff] %v3046
      %3175 = vst [vmem:[%s228 + $0x1e0] sm:$0xff] %v3047
      %3176 = vst [vmem:[%s228 + $0x1e8] sm:$0xff] %v3048
      %3177 = vst [vmem:[%s228 + $0x1f0] sm:$0xff] %v3049
      %3178 = vst [vmem:[%s228 + $0x1f8] sm:$0xff] %v3050
      %s3179 = smul.u32 32, %s16
      %p3180 = scmp.lt.s32.totalorder %s3179, 63
      %s3181 = scalar_select %p3180, %s3179, 63
      %s3182 = smul.addr %s3181, 4
      %s3183 = smul.addr %s3182, 4
      %s3184 = scalar_lea.vmem %s5, %s3183
      // Predicated region
      $region41: #{flow_forward.6} parent=39 // pred_check
        %p3185 = pneg %p144
      $region42: #{flow_forward.6} parent=39 // pred_check_branch
        %3187 = sbr.rel (%p3185) target = $region44
      $region43: #{flow_forward.6} parent=39 // pred_region
        %s3188 = smul.u32 32, %s16
      $region44: #{flow_forward.6} parent=39 // pred_fallthru
        _
    $region40: #{flow_forward.6} parent=5 // pred_fallthru
      _
    %p3189 = scmp.le.s32.totalorder 2, %s11
    // Predicated region
    $region45: #{flow_forward.6} parent=5 // pred_check
      %p3190 = pneg %p3189
    $region46: #{flow_forward.6} parent=5 // pred_check_branch
      %3192 = sbr.rel (%p3190) target = $region48
    $region47: #{flow_forward.6} parent=5 // pred_region
      %s3193 = ssub.s32 %s11, 2
      // Predicated region
      $region49: #{flow_forward.6} parent=47 // pred_check
        %p3194 = pneg %p150
      $region50: #{flow_forward.6} parent=47 // pred_check_branch
        %3196 = sbr.rel (%p3194) target = $region52
      $region51: #{flow_forward.6} parent=47 // pred_region
        %s3197 = smul.u32 32, %s17
        %p3198 = scmp.lt.s32.totalorder %s3197, 63
        %s3199 = scalar_select %p3198, %s3197, 63
        %s3200 = smul.addr %s3199, 4
        %s3201 = smul.addr %s3200, 4
        %s3202 = scalar_lea.vmem %s5, %s3201
      $region52: #{flow_forward.6} parent=47 // pred_fallthru
        _
    $region48: #{flow_forward.6} parent=5 // pred_fallthru
      _
  $region6: #{flow_forward.6} parent=0 // loop_footer
    %s15 = sadd.s32 1, %s11
  $region7: #{flow_forward.6} parent=0 // loop_footer_branch
    %10 = sbr.rel target = $region3
  $region8: #{flow_forward.6} parent=0 // loop_exit
    _

// kernel: flow_forward.7
$region0: #{flow_forward.7}
  #allocation0 [shape = 'u32[]', space=smem, size = 0x4, offset = 0x4, fixed_abs, tag = 'smem constant byte address 0x4 - core index']
  #allocation1 [shape = 'u32[144,128]{1,0:T(1,128)}', space=vmem, size = 0x12000, scoped, tag = 'internal scratch']
  #allocation2 [shape = 'bf16[2,10,24,512]{3,2,1,0:T(8,128)(2,1)}', space=vmem, size = 0x78000, scoped, tag = 'scratch operand']
  #allocation3 [shape = 's32[2]{0}', space=sflag, size = 0x8, scoped, tag = 'scratch operand']
  #allocation4 [shape = 's32[]', space=sflag, size = 0x4, offset = 0, fixed_abs, tag = 'sflag constant byte address 0x0 - dummy sync flag']
  #allocation5 [shape = 's32[]', space=sflag, size = 0x4, offset = 0, fixed_abs, tag = 'sflag constant byte address 0x0 - dummy sync flag']
  %s0 = inlined_call_operand.vmem [shape: f32[2,16,16,4], index: 0, kind: input, shape index: {}]
  %s1 = inlined_call_operand.vmem [shape: bf16[9,512,4], index: 1, kind: input, shape index: {}]
  %s2 = inlined_call_operand.vmem [shape: f32[1,4], index: 2, kind: input, shape index: {}]
  %s3 = inlined_call_operand.vmem [shape: f32[1,4], index: 3, kind: input, shape index: {}]
  %s4 = inlined_call_operand.vmem [shape: bf16[2,18,24,512], index: 4, kind: input, shape index: {}]
  %s5 = inlined_call_operand.vmem [shape: f32[2,16,16,4], index: 5, kind: output, shape index: {}]
  %s6 = sld [smem:[#allocation0]]
  $region125: #{flow_forward.7} parent=0
    _
  %s8 = ssub.s32 1, %s6
  %s9 = scalar_select 0, %s8, %s6
  loop: start=0, step=1, limit=6
  $region2: #{flow_forward.7} parent=0 // loop_pre_header
    _
  $region3: #{flow_forward.7} parent=0 // loop_header
    %s11 = sphi 0, %s15
    %p12 = scmp.ge.s32.totalorder %s11, 6
    %s18 = sphi 0, %s30
    %s19 = sphi 0, %s26
    %s20 = sphi 0, %s18
    %s21 = sphi 0, %s19
    %s22 = sphi 0, %s20
    %s23 = sphi 0, %s21
    %s35 = sphi 0, %s37
    %s38 = sphi 0, %s35
    %s39 = sphi 0, %s38
    %s55 = sphi 0, %s39
    %s59 = sphi 0, %s59
    %s61 = sphi 0, %s59
    %s62 = sphi 0, %s61
    %s76 = sphi 0, %s62
    %s80 = sphi 0, %s80
    %s82 = sphi 0, %s80
    %s83 = sphi 0, %s82
    %s97 = sphi 0, %s83
    %s101 = sphi 0, %s101
    %s103 = sphi 0, %s101
    %s104 = sphi 0, %s103
    %s118 = sphi 0, %s104
    %s126 = sphi 0, %s128
    %s129 = sphi 0, %s126
    %s130 = sphi 0, %s129
    %s146 = sphi 0, %s130
  $region4: #{flow_forward.7} parent=0 // loop_header_branch
    %14 = sbr.rel (%p12) target = $region8
  $region5: #{flow_forward.7} parent=0 // loop_body
    %s16 = ssub.s32 %s11, 1
    %s17 = ssub.s32 %s11, 2
    %s24 = sadd.s32 1, %s19
    %p25 = scmp.ge.s32.totalorder %s24, 2
    %s26 = scalar_select %p25, 0, %s24
    %s27 = sadd.s32 1, %s18
    %s28 = scalar_select %p25, %s27, %s18
    %p29 = scmp.ge.s32.totalorder %s28, 2
    %s30 = scalar_select %p29, 0, %s28
    %s31 = ssub.s32 %s18, %s30
    %s32 = ssub.s32 %s19, %s26
    %s33 = sor.u32 %s31, %s32
    %p34 = scmp.eq.s32.totalorder %s33, 0
    %s36 = sadd.s32 %s35, 1
    %s37 = scalar_select %p34, %s35, %s36
    %p40 = pneg %p34
    %p41 = scmp.eq.s32.totalorder %s11, 3
    %p42 = por %p40, %p41
    %p43 = scmp.ne.s32.totalorder %s35, %s38
    %p44 = scmp.eq.s32.totalorder %s11, 0
    %p45 = por %p43, %p44
    %p46 = scmp.ne.s32.totalorder %s35, %s38
    %p47 = scmp.eq.s32.totalorder %s16, 3
    %p48 = por %p46, %p47
    %p49 = scmp.ne.s32.totalorder %s38, %s39
    %p50 = scmp.eq.s32.totalorder %s16, 0
    %p51 = por %p49, %p50
    %p52 = scmp.ne.s32.totalorder %s38, %s39
    %p53 = scmp.eq.s32.totalorder %s17, 3
    %p54 = por %p52, %p53
    %p56 = scmp.ne.s32.totalorder %s39, %s55
    %p57 = scmp.eq.s32.totalorder %s17, 0
    %p58 = por %p56, %p57
    %s60 = sadd.s32 %s59, 1
    %p63 = scmp.eq.s32.totalorder %s11, 3
    %p64 = scmp.ne.s32.totalorder %s59, %s61
    %p65 = scmp.eq.s32.totalorder %s11, 0
    %p66 = por %p64, %p65
    %p67 = scmp.ne.s32.totalorder %s59, %s61
    %p68 = scmp.eq.s32.totalorder %s16, 3
    %p69 = por %p67, %p68
    %p70 = scmp.ne.s32.totalorder %s61, %s62
    %p71 = scmp.eq.s32.totalorder %s16, 0
    %p72 = por %p70, %p71
    %p73 = scmp.ne.s32.totalorder %s61, %s62
    %p74 = scmp.eq.s32.totalorder %s17, 3
    %p75 = por %p73, %p74
    %p77 = scmp.ne.s32.totalorder %s62, %s76
    %p78 = scmp.eq.s32.totalorder %s17, 0
    %p79 = por %p77, %p78
    %s81 = sadd.s32 %s80, 1
    %p84 = scmp.eq.s32.totalorder %s11, 3
    %p85 = scmp.ne.s32.totalorder %s80, %s82
    %p86 = scmp.eq.s32.totalorder %s11, 0
    %p87 = por %p85, %p86
    %p88 = scmp.ne.s32.totalorder %s80, %s82
    %p89 = scmp.eq.s32.totalorder %s16, 3
    %p90 = por %p88, %p89
    %p91 = scmp.ne.s32.totalorder %s82, %s83
    %p92 = scmp.eq.s32.totalorder %s16, 0
    %p93 = por %p91, %p92
    %p94 = scmp.ne.s32.totalorder %s82, %s83
    %p95 = scmp.eq.s32.totalorder %s17, 3
    %p96 = por %p94, %p95
    %p98 = scmp.ne.s32.totalorder %s83, %s97
    %p99 = scmp.eq.s32.totalorder %s17, 0
    %p100 = por %p98, %p99
    %s102 = sadd.s32 %s101, 1
    %p105 = scmp.eq.s32.totalorder %s11, 3
    %p106 = scmp.ne.s32.totalorder %s101, %s103
    %p107 = scmp.eq.s32.totalorder %s11, 0
    %p108 = por %p106, %p107
    %p109 = scmp.ne.s32.totalorder %s101, %s103
    %p110 = scmp.eq.s32.totalorder %s16, 3
    %p111 = por %p109, %p110
    %p112 = scmp.ne.s32.totalorder %s103, %s104
    %p113 = scmp.eq.s32.totalorder %s16, 0
    %p114 = por %p112, %p113
    %p115 = scmp.ne.s32.totalorder %s103, %s104
    %p116 = scmp.eq.s32.totalorder %s17, 3
    %p117 = por %p115, %p116
    %p119 = scmp.ne.s32.totalorder %s104, %s118
    %p120 = scmp.eq.s32.totalorder %s17, 0
    %p121 = por %p119, %p120
    %s122 = ssub.s32 %s18, %s30
    %s123 = ssub.s32 %s19, %s26
    %s124 = sor.u32 %s122, %s123
    %p125 = scmp.eq.s32.totalorder %s124, 0
    %s127 = sadd.s32 %s126, 1
    %s128 = scalar_select %p125, %s126, %s127
    %p131 = pneg %p125
    %p132 = scmp.eq.s32.totalorder %s11, 3
    %p133 = por %p131, %p132
    %p134 = scmp.ne.s32.totalorder %s126, %s129
    %p135 = scmp.eq.s32.totalorder %s11, 0
    %p136 = por %p134, %p135
    %p137 = scmp.ne.s32.totalorder %s126, %s129
    %p138 = scmp.eq.s32.totalorder %s16, 3
    %p139 = por %p137, %p138
    %p140 = scmp.ne.s32.totalorder %s129, %s130
    %p141 = scmp.eq.s32.totalorder %s16, 0
    %p142 = por %p140, %p141
    %p143 = scmp.ne.s32.totalorder %s129, %s130
    %p144 = scmp.eq.s32.totalorder %s17, 3
    %p145 = por %p143, %p144
    %p147 = scmp.ne.s32.totalorder %s130, %s146
    %p148 = scmp.eq.s32.totalorder %s17, 0
    %p149 = por %p147, %p148
    %p150 = scmp.le.s32.totalorder 1, %s11
    %p151 = scmp.lt.s32.totalorder %s11, 5
    %p152 = pnand %p150, %p151
    %p153 = pneg %p152
    // Predicated region
    $region9: #{flow_forward.7} parent=5 // pred_check
      _
    $region10: #{flow_forward.7} parent=5 // pred_check_branch
      %155 = sbr.rel (%p152) target = $region12
    $region11: #{flow_forward.7} parent=5 // pred_region
      %s156 = ssub.s32 %s11, 1
      // Predicated region
      $region13: #{flow_forward.7} parent=11 // pred_check
        %p157 = pneg %p72
      $region14: #{flow_forward.7} parent=11 // pred_check_branch
        %159 = sbr.rel (%p157) target = $region16
      $region15: #{flow_forward.7} parent=11 // pred_region
        _
      $region16: #{flow_forward.7} parent=11 // pred_fallthru
        _
      // Predicated region
      $region17: #{flow_forward.7} parent=11 // pred_check
        %p160 = pneg %p93
      $region18: #{flow_forward.7} parent=11 // pred_check_branch
        %162 = sbr.rel (%p160) target = $region20
      $region19: #{flow_forward.7} parent=11 // pred_region
        _
      $region20: #{flow_forward.7} parent=11 // pred_fallthru
        _
      // Predicated region
      $region21: #{flow_forward.7} parent=11 // pred_check
        %p163 = pneg %p114
      $region22: #{flow_forward.7} parent=11 // pred_check_branch
        %165 = sbr.rel (%p163) target = $region24
      $region23: #{flow_forward.7} parent=11 // pred_region
        _
      $region24: #{flow_forward.7} parent=11 // pred_fallthru
        _
    $region12: #{flow_forward.7} parent=5 // pred_fallthru
      _
    %p166 = scmp.lt.s32.totalorder %s11, 4
    // Predicated region
    $region25: #{flow_forward.7} parent=5 // pred_check
      %p167 = pneg %p166
    $region26: #{flow_forward.7} parent=5 // pred_check_branch
      %169 = sbr.rel (%p167) target = $region28
    $region27: #{flow_forward.7} parent=5 // pred_region
      // Predicated region
      $region29: #{flow_forward.7} parent=27 // pred_check
        %p170 = pneg %p45
      $region30: #{flow_forward.7} parent=27 // pred_check_branch
        %172 = sbr.rel (%p170) target = $region32
      $region31: #{flow_forward.7} parent=27 // pred_region
        %s173 = smul.u32 8, %s19
        %p174 = scmp.lt.s32.totalorder %s18, 1
        %s175 = scalar_select %p174, %s18, 1
        %p176 = scmp.lt.s32.totalorder %s173, 15
        %s177 = scalar_select %p176, %s173, 15
        %s178 = smul.addr %s177, 2
        %s179 = smul.addr %s175, 32
        %s180 = sadd.s32 %s178, %s179
        %s181 = smul.addr %s180, 8
        %s182 = scalar_lea.vmem %s0, %s181
        %s183 = smul.u32 8, %s19
      $region32: #{flow_forward.7} parent=27 // pred_fallthru
        _
    $region28: #{flow_forward.7} parent=5 // pred_fallthru
      _
    %p184 = scmp.le.s32.totalorder 1, %s11
    %p185 = scmp.lt.s32.totalorder %s11, 5
    %p186 = pnand %p184, %p185
    %p187 = pneg %p186
    // Predicated region
    $region33: #{flow_forward.7} parent=5 // pred_check
      _
    $region34: #{flow_forward.7} parent=5 // pred_check_branch
      %189 = sbr.rel (%p186) target = $region36
    $region35: #{flow_forward.7} parent=5 // pred_region
      %s190 = ssub.s32 %s11, 1
      %s191 = smul.u32 8, %s21
      %p192 = scmp.lt.s32.totalorder %s20, 1
      %s193 = scalar_select %p192, %s20, 1
      %p194 = scmp.lt.s32.totalorder %s191, 15
      %s195 = scalar_select %p194, %s191, 15
      %s196 = smul.addr %s195, 2
      %s197 = smul.addr %s193, 32
      %s198 = sadd.s32 %s196, %s197
      %s199 = smul.addr %s198, 8
      %s200 = scalar_lea.vmem %s0, %s199
      %p201 = pneg %p51
      %p202 = pneg %p48
      %p203 = pneg %p72
      %p204 = pneg %p69
      %p205 = pneg %p93
      %p206 = pneg %p90
      %p207 = pneg %p114
      %p208 = pneg %p111
      %p209 = pneg %p142
      %p210 = pneg %p139
      %s211 = smul.u32 8, %s21
      %p212 = scmp.lt.s32.totalorder %s20, 1
      %s213 = scalar_select %p212, %s20, 1
      %p214 = scmp.lt.s32.totalorder %s211, 15
      %s215 = scalar_select %p214, %s211, 15
      %s216 = smul.addr %s215, 2
      %s217 = smul.addr %s213, 32
      %s218 = sadd.s32 %s216, %s217
      %s219 = smul.addr %s218, 8
      %s220 = scalar_lea.vmem %s5, %s219
      %s221 = smul.u32 8, %s21
      %p222 = scmp.lt.s32.totalorder %s20, 1
      %s223 = scalar_select %p222, %s20, 1
      %p224 = scmp.lt.s32.totalorder %s221, 15
      %s225 = scalar_select %p224, %s221, 15
      %s226 = smul.addr %s225, 2
      %s227 = smul.addr %s223, 32
      %s228 = sadd.s32 %s226, %s227
      %s229 = smul.addr %s228, 8
      %s230 = scalar_lea.vmem %s0, %s229
      %s231 = smul.u32 8, %s21
      %s232 = smul.u32 8, %s21
      %p233 = scmp.lt.s32.totalorder %s20, 1
      %s234 = scalar_select %p233, %s20, 1
      %p235 = scmp.lt.s32.totalorder %s232, 15
      %s236 = scalar_select %p235, %s232, 15
      %s237 = smul.addr %s236, 2
      %s238 = smul.addr %s234, 32
      %s239 = sadd.s32 %s237, %s238
      %s240 = smul.addr %s239, 8
      %s241 = scalar_lea.vmem %s5, %s240
      %s242 = smul.u32 8, %s21
      %p244 = scmp.lt.s32.totalorder %s21, 0
      %s245 = ssub.s32 0, %s21
      %s246 = scalar_select %p244, %s245, %s21
      %s247 = sand.u32 %s246, 1
      %s248 = ssub.s32 0, %s247
      %s249 = scalar_select %p244, %s248, %s247
      %p250 = scmp.ne.s32.totalorder %s249, 0
      %p251 = scmp.lt.s32.totalorder %s249, 0
      %p252 = pnand %p251, %p250
      %p253 = pneg %p252
      %s254 = sadd.s32 %s249, 2
      %s255 = scalar_select %p253, %s254, %s249
      %p256 = scmp.eq.s32.totalorder %s21, 0
      // Predicated region
      $region37: #{flow_forward.7} parent=35 // pred_check
        %p257 = pneg %p256
      $region38: #{flow_forward.7} parent=35 // pred_check_branch
        %259 = sbr.rel (%p257) target = $region40
      $region39: #{flow_forward.7} parent=35 // pred_region
        %s260 = smul.u32 %s20, 216
        %s261 = smul.addr %s260, 4
        %s262 = scalar_lea.vmem %s4, %s261
        %p264 = scmp.lt.u32.totalorder 480, 8
        %p265 = pneg %p264
        // Predicated region
        $region41: #{flow_forward.7} parent=39 // pred_check
          _
        $region42: #{flow_forward.7} parent=39 // pred_check_branch
          %267 = sbr.rel (%p264) target = $region44
        $region43: #{flow_forward.7} parent=39 // pred_region
          %s283 = sand.u32 480, 7
          %p284 = scmp.eq.s32.totalorder %s283, 0
          // Predicated region
          $region56: #{flow_forward.7} parent=43 // pred_check
            %p285 = pneg %p284
          $region57: #{flow_forward.7} parent=43 // pred_check_branch
            %287 = sbr.rel (%p285) target = $region59
          $region58: #{flow_forward.7} parent=43 // pred_region
            loop: start=0, step=1, limit=1
            $region60: #{flow_forward.7} parent=58 // loop_pre_header
              _
            $region61: #{flow_forward.7} parent=58 // loop_header
              %s289 = sphi 0, %s293
              %p290 = scmp.ge.s32.totalorder %s289, 1
              %s294 = sphi %s262, %s262
              %s295 = sphi [#allocation2], [#allocation2]
            $region62: #{flow_forward.7} parent=58 // loop_header_branch
              %292 = sbr.rel (%p290) target = $region66
            $region63: #{flow_forward.7} parent=58 // loop_body
              %v296 = vld [vmem:[%s294] sm:$0xff]
              %297 = vst [vmem:[%s295] sm:$0xff] %v296
              %v298 = vld [vmem:[%s294 + $0x8] sm:$0xff]
              %299 = vst [vmem:[%s295 + $0x8] sm:$0xff] %v298
              %v300 = vld [vmem:[%s294 + $0x10] sm:$0xff]
              %301 = vst [vmem:[%s295 + $0x10] sm:$0xff] %v300
              %v302 = vld [vmem:[%s294 + $0x18] sm:$0xff]
              %303 = vst [vmem:[%s295 + $0x18] sm:$0xff] %v302
              %v304 = vld [vmem:[%s294 + $0x20] sm:$0xff]
              %305 = vst [vmem:[%s295 + $0x20] sm:$0xff] %v304
              %v306 = vld [vmem:[%s294 + $0x28] sm:$0xff]
              %307 = vst [vmem:[%s295 + $0x28] sm:$0xff] %v306
              %v308 = vld [vmem:[%s294 + $0x30] sm:$0xff]
              %309 = vst [vmem:[%s295 + $0x30] sm:$0xff] %v308
              %v310 = vld [vmem:[%s294 + $0x38] sm:$0xff]
              %311 = vst [vmem:[%s295 + $0x38] sm:$0xff] %v310
              %v312 = vld [vmem:[%s294 + $0x40] sm:$0xff]
              %313 = vst [vmem:[%s295 + $0x40] sm:$0xff] %v312
              %v314 = vld [vmem:[%s294 + $0x48] sm:$0xff]
              %315 = vst [vmem:[%s295 + $0x48] sm:$0xff] %v314
              %v316 = vld [vmem:[%s294 + $0x50] sm:$0xff]
              %317 = vst [vmem:[%s295 + $0x50] sm:$0xff] %v316
              %v318 = vld [vmem:[%s294 + $0x58] sm:$0xff]
              %319 = vst [vmem:[%s295 + $0x58] sm:$0xff] %v318
              %v320 = vld [vmem:[%s294 + $0x60] sm:$0xff]
              %321 = vst [vmem:[%s295 + $0x60] sm:$0xff] %v320
              %v322 = vld [vmem:[%s294 + $0x68] sm:$0xff]
              %323 = vst [vmem:[%s295 + $0x68] sm:$0xff] %v322
              %v324 = vld [vmem:[%s294 + $0x70] sm:$0xff]
              %325 = vst [vmem:[%s295 + $0x70] sm:$0xff] %v324
              %v326 = vld [vmem:[%s294 + $0x78] sm:$0xff]
              %327 = vst [vmem:[%s295 + $0x78] sm:$0xff] %v326
              %v328 = vld [vmem:[%s294 + $0x80] sm:$0xff]
              %329 = vst [vmem:[%s295 + $0x80] sm:$0xff] %v328
              %v330 = vld [vmem:[%s294 + $0x88] sm:$0xff]
              %331 = vst [vmem:[%s295 + $0x88] sm:$0xff] %v330
              %v332 = vld [vmem:[%s294 + $0x90] sm:$0xff]
              %333 = vst [vmem:[%s295 + $0x90] sm:$0xff] %v332
              %v334 = vld [vmem:[%s294 + $0x98] sm:$0xff]
              %335 = vst [vmem:[%s295 + $0x98] sm:$0xff] %v334
              %v336 = vld [vmem:[%s294 + $0xa0] sm:$0xff]
              %337 = vst [vmem:[%s295 + $0xa0] sm:$0xff] %v336
              %v338 = vld [vmem:[%s294 + $0xa8] sm:$0xff]
              %339 = vst [vmem:[%s295 + $0xa8] sm:$0xff] %v338
              %v340 = vld [vmem:[%s294 + $0xb0] sm:$0xff]
              %341 = vst [vmem:[%s295 + $0xb0] sm:$0xff] %v340
              %v342 = vld [vmem:[%s294 + $0xb8] sm:$0xff]
              %343 = vst [vmem:[%s295 + $0xb8] sm:$0xff] %v342
              %v344 = vld [vmem:[%s294 + $0xc0] sm:$0xff]
              %345 = vst [vmem:[%s295 + $0xc0] sm:$0xff] %v344
              %v346 = vld [vmem:[%s294 + $0xc8] sm:$0xff]
              %347 = vst [vmem:[%s295 + $0xc8] sm:$0xff] %v346
              %v348 = vld [vmem:[%s294 + $0xd0] sm:$0xff]
              %349 = vst [vmem:[%s295 + $0xd0] sm:$0xff] %v348
              %v350 = vld [vmem:[%s294 + $0xd8] sm:$0xff]
              %351 = vst [vmem:[%s295 + $0xd8] sm:$0xff] %v350
              %v352 = vld [vmem:[%s294 + $0xe0] sm:$0xff]
              %353 = vst [vmem:[%s295 + $0xe0] sm:$0xff] %v352
              %v354 = vld [vmem:[%s294 + $0xe8] sm:$0xff]
              %355 = vst [vmem:[%s295 + $0xe8] sm:$0xff] %v354
              %v356 = vld [vmem:[%s294 + $0xf0] sm:$0xff]
              %357 = vst [vmem:[%s295 + $0xf0] sm:$0xff] %v356
              %v358 = vld [vmem:[%s294 + $0xf8] sm:$0xff]
              %359 = vst [vmem:[%s295 + $0xf8] sm:$0xff] %v358
              %v360 = vld [vmem:[%s294 + $0x100] sm:$0xff]
              %361 = vst [vmem:[%s295 + $0x100] sm:$0xff] %v360
              %v362 = vld [vmem:[%s294 + $0x108] sm:$0xff]
              %363 = vst [vmem:[%s295 + $0x108] sm:$0xff] %v362
              %v364 = vld [vmem:[%s294 + $0x110] sm:$0xff]
              %365 = vst [vmem:[%s295 + $0x110] sm:$0xff] %v364
              %v366 = vld [vmem:[%s294 + $0x118] sm:$0xff]
              %367 = vst [vmem:[%s295 + $0x118] sm:$0xff] %v366
              %v368 = vld [vmem:[%s294 + $0x120] sm:$0xff]
              %369 = vst [vmem:[%s295 + $0x120] sm:$0xff] %v368
              %v370 = vld [vmem:[%s294 + $0x128] sm:$0xff]
              %371 = vst [vmem:[%s295 + $0x128] sm:$0xff] %v370
              %v372 = vld [vmem:[%s294 + $0x130] sm:$0xff]
              %373 = vst [vmem:[%s295 + $0x130] sm:$0xff] %v372
              %v374 = vld [vmem:[%s294 + $0x138] sm:$0xff]
              %375 = vst [vmem:[%s295 + $0x138] sm:$0xff] %v374
              %v376 = vld [vmem:[%s294 + $0x140] sm:$0xff]
              %377 = vst [vmem:[%s295 + $0x140] sm:$0xff] %v376
              %v378 = vld [vmem:[%s294 + $0x148] sm:$0xff]
              %379 = vst [vmem:[%s295 + $0x148] sm:$0xff] %v378
              %v380 = vld [vmem:[%s294 + $0x150] sm:$0xff]
              %381 = vst [vmem:[%s295 + $0x150] sm:$0xff] %v380
              %v382 = vld [vmem:[%s294 + $0x158] sm:$0xff]
              %383 = vst [vmem:[%s295 + $0x158] sm:$0xff] %v382
              %v384 = vld [vmem:[%s294 + $0x160] sm:$0xff]
              %385 = vst [vmem:[%s295 + $0x160] sm:$0xff] %v384
              %v386 = vld [vmem:[%s294 + $0x168] sm:$0xff]
              %387 = vst [vmem:[%s295 + $0x168] sm:$0xff] %v386
              %v388 = vld [vmem:[%s294 + $0x170] sm:$0xff]
              %389 = vst [vmem:[%s295 + $0x170] sm:$0xff] %v388
              %v390 = vld [vmem:[%s294 + $0x178] sm:$0xff]
              %391 = vst [vmem:[%s295 + $0x178] sm:$0xff] %v390
              %v392 = vld [vmem:[%s294 + $0x180] sm:$0xff]
              %393 = vst [vmem:[%s295 + $0x180] sm:$0xff] %v392
              %v394 = vld [vmem:[%s294 + $0x188] sm:$0xff]
              %395 = vst [vmem:[%s295 + $0x188] sm:$0xff] %v394
              %v396 = vld [vmem:[%s294 + $0x190] sm:$0xff]
              %397 = vst [vmem:[%s295 + $0x190] sm:$0xff] %v396
              %v398 = vld [vmem:[%s294 + $0x198] sm:$0xff]
              %399 = vst [vmem:[%s295 + $0x198] sm:$0xff] %v398
              %v400 = vld [vmem:[%s294 + $0x1a0] sm:$0xff]
              %401 = vst [vmem:[%s295 + $0x1a0] sm:$0xff] %v400
              %v402 = vld [vmem:[%s294 + $0x1a8] sm:$0xff]
              %403 = vst [vmem:[%s295 + $0x1a8] sm:$0xff] %v402
              %v404 = vld [vmem:[%s294 + $0x1b0] sm:$0xff]
              %405 = vst [vmem:[%s295 + $0x1b0] sm:$0xff] %v404
              %v406 = vld [vmem:[%s294 + $0x1b8] sm:$0xff]
              %407 = vst [vmem:[%s295 + $0x1b8] sm:$0xff] %v406
              %v408 = vld [vmem:[%s294 + $0x1c0] sm:$0xff]
              %409 = vst [vmem:[%s295 + $0x1c0] sm:$0xff] %v408
              %v410 = vld [vmem:[%s294 + $0x1c8] sm:$0xff]
              %411 = vst [vmem:[%s295 + $0x1c8] sm:$0xff] %v410
              %v412 = vld [vmem:[%s294 + $0x1d0] sm:$0xff]
              %413 = vst [vmem:[%s295 + $0x1d0] sm:$0xff] %v412
              %v414 = vld [vmem:[%s294 + $0x1d8] sm:$0xff]
              %415 = vst [vmem:[%s295 + $0x1d8] sm:$0xff] %v414
            $region64: #{flow_forward.7} parent=58 // loop_footer
              %s293 = sadd.s32 1, %s289
            $region65: #{flow_forward.7} parent=58 // loop_footer_branch
              %288 = sbr.rel target = $region61
            $region66: #{flow_forward.7} parent=58 // loop_exit
              _
          $region59: #{flow_forward.7} parent=43 // pred_fallthru
            _
          %p416 = pneg %p284
          // Predicated region
          $region67: #{flow_forward.7} parent=43 // pred_check
            _
          $region68: #{flow_forward.7} parent=43 // pred_check_branch
            %418 = sbr.rel (%p284) target = $region70
          $region69: #{flow_forward.7} parent=43 // pred_region
            %s419 = sand.u32 480, 7
          $region70: #{flow_forward.7} parent=43 // pred_fallthru
            _
        $region44: #{flow_forward.7} parent=39 // pred_fallthru
          _
        // Predicated region
        $region45: #{flow_forward.7} parent=39 // pred_check
          %p268 = pneg %p264
        $region46: #{flow_forward.7} parent=39 // pred_check_branch
          %270 = sbr.rel (%p268) target = $region48
        $region47: #{flow_forward.7} parent=39 // pred_region
          %s271 = sshll.u32 1, 480
          %s272 = ssub.s32 %s271, 1
          loop: start=0, step=1, limit=1
          $region49: #{flow_forward.7} parent=47 // loop_pre_header
            _
          $region50: #{flow_forward.7} parent=47 // loop_header
            %s274 = sphi 0, %s278
            %p275 = scmp.ge.s32.totalorder %s274, 1
            %s279 = sphi %s262, %s262
            %s280 = sphi [#allocation2], [#allocation2]
          $region51: #{flow_forward.7} parent=47 // loop_header_branch
            %277 = sbr.rel (%p275) target = $region55
          $region52: #{flow_forward.7} parent=47 // loop_body
            %v281 = vld [vmem:[%s279] sm:%s272]
            %282 = vst [vmem:[%s280] sm:%s272] %v281
          $region53: #{flow_forward.7} parent=47 // loop_footer
            %s278 = sadd.s32 1, %s274
          $region54: #{flow_forward.7} parent=47 // loop_footer_branch
            %273 = sbr.rel target = $region50
          $region55: #{flow_forward.7} parent=47 // loop_exit
            _
        $region48: #{flow_forward.7} parent=39 // pred_fallthru
          _
        // Predicated region
        $region71: #{flow_forward.7} parent=39 // pred_check
          _
        $region72: #{flow_forward.7} parent=39 // pred_check_branch
          %422 = sbr.rel (0) target = $region74
        $region73: #{flow_forward.7} parent=39 // pred_region
          %423 = vsyncadd [#allocation3], 7680
        $region74: #{flow_forward.7} parent=39 // pred_fallthru
          _
      $region40: #{flow_forward.7} parent=35 // pred_fallthru
        _
      %s424 = smul.u32 %s255, 120
      %s425 = smul.addr %s424, 4
      %s426 = scalar_lea.vmem [#allocation2], %s425
      %s427 = scalar_lea.sflag [#allocation3], %s255
      %s428 = smul.u32 4, 10
      %s429 = smul.u32 %s428, 3
      %s430 = smul.u32 %s429, 4
      %s431 = sshll.u32 %s430, 4
      %432 = dma.done %s427, %s431
      %s433 = sadd.s32 %s21, 1
      %p434 = scmp.lt.s32.totalorder %s433, 2
      // Predicated region
      $region75: #{flow_forward.7} parent=35 // pred_check
        %p435 = pneg %p434
      $region76: #{flow_forward.7} parent=35 // pred_check_branch
        %437 = sbr.rel (%p435) target = $region78
      $region77: #{flow_forward.7} parent=35 // pred_region
        %s438 = ssub.s32 1, %s255
        %s439 = smul.u32 %s433, 8
        %s440 = smul.u32 %s439, 12
        %s441 = smul.u32 %s20, 216
        %s442 = sadd.s32 %s440, %s441
        %s443 = smul.addr %s442, 4
        %s444 = scalar_lea.vmem %s4, %s443
        %s445 = smul.u32 %s438, 120
        %s446 = smul.addr %s445, 4
        %s447 = scalar_lea.vmem [#allocation2], %s446
        %s448 = scalar_lea.sflag [#allocation3], %s438
        %p450 = scmp.lt.u32.totalorder 480, 8
        %p451 = pneg %p450
        // Predicated region
        $region79: #{flow_forward.7} parent=77 // pred_check
          _
        $region80: #{flow_forward.7} parent=77 // pred_check_branch
          %453 = sbr.rel (%p450) target = $region82
        $region81: #{flow_forward.7} parent=77 // pred_region
          %s469 = sand.u32 480, 7
          %p470 = scmp.eq.s32.totalorder %s469, 0
          // Predicated region
          $region94: #{flow_forward.7} parent=81 // pred_check
            %p471 = pneg %p470
          $region95: #{flow_forward.7} parent=81 // pred_check_branch
            %473 = sbr.rel (%p471) target = $region97
          $region96: #{flow_forward.7} parent=81 // pred_region
            loop: start=0, step=1, limit=1
            $region98: #{flow_forward.7} parent=96 // loop_pre_header
              _
            $region99: #{flow_forward.7} parent=96 // loop_header
              %s475 = sphi 0, %s479
              %p476 = scmp.ge.s32.totalorder %s475, 1
              %s480 = sphi %s444, %s444
              %s481 = sphi %s447, %s447
            $region100: #{flow_forward.7} parent=96 // loop_header_branch
              %478 = sbr.rel (%p476) target = $region104
            $region101: #{flow_forward.7} parent=96 // loop_body
              %v482 = vld [vmem:[%s480] sm:$0xff]
              %483 = vst [vmem:[%s481] sm:$0xff] %v482
              %v484 = vld [vmem:[%s480 + $0x8] sm:$0xff]
              %485 = vst [vmem:[%s481 + $0x8] sm:$0xff] %v484
              %v486 = vld [vmem:[%s480 + $0x10] sm:$0xff]
              %487 = vst [vmem:[%s481 + $0x10] sm:$0xff] %v486
              %v488 = vld [vmem:[%s480 + $0x18] sm:$0xff]
              %489 = vst [vmem:[%s481 + $0x18] sm:$0xff] %v488
              %v490 = vld [vmem:[%s480 + $0x20] sm:$0xff]
              %491 = vst [vmem:[%s481 + $0x20] sm:$0xff] %v490
              %v492 = vld [vmem:[%s480 + $0x28] sm:$0xff]
              %493 = vst [vmem:[%s481 + $0x28] sm:$0xff] %v492
              %v494 = vld [vmem:[%s480 + $0x30] sm:$0xff]
              %495 = vst [vmem:[%s481 + $0x30] sm:$0xff] %v494
              %v496 = vld [vmem:[%s480 + $0x38] sm:$0xff]
              %497 = vst [vmem:[%s481 + $0x38] sm:$0xff] %v496
              %v498 = vld [vmem:[%s480 + $0x40] sm:$0xff]
              %499 = vst [vmem:[%s481 + $0x40] sm:$0xff] %v498
              %v500 = vld [vmem:[%s480 + $0x48] sm:$0xff]
              %501 = vst [vmem:[%s481 + $0x48] sm:$0xff] %v500
              %v502 = vld [vmem:[%s480 + $0x50] sm:$0xff]
              %503 = vst [vmem:[%s481 + $0x50] sm:$0xff] %v502
              %v504 = vld [vmem:[%s480 + $0x58] sm:$0xff]
              %505 = vst [vmem:[%s481 + $0x58] sm:$0xff] %v504
              %v506 = vld [vmem:[%s480 + $0x60] sm:$0xff]
              %507 = vst [vmem:[%s481 + $0x60] sm:$0xff] %v506
              %v508 = vld [vmem:[%s480 + $0x68] sm:$0xff]
              %509 = vst [vmem:[%s481 + $0x68] sm:$0xff] %v508
              %v510 = vld [vmem:[%s480 + $0x70] sm:$0xff]
              %511 = vst [vmem:[%s481 + $0x70] sm:$0xff] %v510
              %v512 = vld [vmem:[%s480 + $0x78] sm:$0xff]
              %513 = vst [vmem:[%s481 + $0x78] sm:$0xff] %v512
              %v514 = vld [vmem:[%s480 + $0x80] sm:$0xff]
              %515 = vst [vmem:[%s481 + $0x80] sm:$0xff] %v514
              %v516 = vld [vmem:[%s480 + $0x88] sm:$0xff]
              %517 = vst [vmem:[%s481 + $0x88] sm:$0xff] %v516
              %v518 = vld [vmem:[%s480 + $0x90] sm:$0xff]
              %519 = vst [vmem:[%s481 + $0x90] sm:$0xff] %v518
              %v520 = vld [vmem:[%s480 + $0x98] sm:$0xff]
              %521 = vst [vmem:[%s481 + $0x98] sm:$0xff] %v520
              %v522 = vld [vmem:[%s480 + $0xa0] sm:$0xff]
              %523 = vst [vmem:[%s481 + $0xa0] sm:$0xff] %v522
              %v524 = vld [vmem:[%s480 + $0xa8] sm:$0xff]
              %525 = vst [vmem:[%s481 + $0xa8] sm:$0xff] %v524
              %v526 = vld [vmem:[%s480 + $0xb0] sm:$0xff]
              %527 = vst [vmem:[%s481 + $0xb0] sm:$0xff] %v526
              %v528 = vld [vmem:[%s480 + $0xb8] sm:$0xff]
              %529 = vst [vmem:[%s481 + $0xb8] sm:$0xff] %v528
              %v530 = vld [vmem:[%s480 + $0xc0] sm:$0xff]
              %531 = vst [vmem:[%s481 + $0xc0] sm:$0xff] %v530
              %v532 = vld [vmem:[%s480 + $0xc8] sm:$0xff]
              %533 = vst [vmem:[%s481 + $0xc8] sm:$0xff] %v532
              %v534 = vld [vmem:[%s480 + $0xd0] sm:$0xff]
              %535 = vst [vmem:[%s481 + $0xd0] sm:$0xff] %v534
              %v536 = vld [vmem:[%s480 + $0xd8] sm:$0xff]
              %537 = vst [vmem:[%s481 + $0xd8] sm:$0xff] %v536
              %v538 = vld [vmem:[%s480 + $0xe0] sm:$0xff]
              %539 = vst [vmem:[%s481 + $0xe0] sm:$0xff] %v538
              %v540 = vld [vmem:[%s480 + $0xe8] sm:$0xff]
              %541 = vst [vmem:[%s481 + $0xe8] sm:$0xff] %v540
              %v542 = vld [vmem:[%s480 + $0xf0] sm:$0xff]
              %543 = vst [vmem:[%s481 + $0xf0] sm:$0xff] %v542
              %v544 = vld [vmem:[%s480 + $0xf8] sm:$0xff]
              %545 = vst [vmem:[%s481 + $0xf8] sm:$0xff] %v544
              %v546 = vld [vmem:[%s480 + $0x100] sm:$0xff]
              %547 = vst [vmem:[%s481 + $0x100] sm:$0xff] %v546
              %v548 = vld [vmem:[%s480 + $0x108] sm:$0xff]
              %549 = vst [vmem:[%s481 + $0x108] sm:$0xff] %v548
              %v550 = vld [vmem:[%s480 + $0x110] sm:$0xff]
              %551 = vst [vmem:[%s481 + $0x110] sm:$0xff] %v550
              %v552 = vld [vmem:[%s480 + $0x118] sm:$0xff]
              %553 = vst [vmem:[%s481 + $0x118] sm:$0xff] %v552
              %v554 = vld [vmem:[%s480 + $0x120] sm:$0xff]
              %555 = vst [vmem:[%s481 + $0x120] sm:$0xff] %v554
              %v556 = vld [vmem:[%s480 + $0x128] sm:$0xff]
              %557 = vst [vmem:[%s481 + $0x128] sm:$0xff] %v556
              %v558 = vld [vmem:[%s480 + $0x130] sm:$0xff]
              %559 = vst [vmem:[%s481 + $0x130] sm:$0xff] %v558
              %v560 = vld [vmem:[%s480 + $0x138] sm:$0xff]
              %561 = vst [vmem:[%s481 + $0x138] sm:$0xff] %v560
              %v562 = vld [vmem:[%s480 + $0x140] sm:$0xff]
              %563 = vst [vmem:[%s481 + $0x140] sm:$0xff] %v562
              %v564 = vld [vmem:[%s480 + $0x148] sm:$0xff]
              %565 = vst [vmem:[%s481 + $0x148] sm:$0xff] %v564
              %v566 = vld [vmem:[%s480 + $0x150] sm:$0xff]
              %567 = vst [vmem:[%s481 + $0x150] sm:$0xff] %v566
              %v568 = vld [vmem:[%s480 + $0x158] sm:$0xff]
              %569 = vst [vmem:[%s481 + $0x158] sm:$0xff] %v568
              %v570 = vld [vmem:[%s480 + $0x160] sm:$0xff]
              %571 = vst [vmem:[%s481 + $0x160] sm:$0xff] %v570
              %v572 = vld [vmem:[%s480 + $0x168] sm:$0xff]
              %573 = vst [vmem:[%s481 + $0x168] sm:$0xff] %v572
              %v574 = vld [vmem:[%s480 + $0x170] sm:$0xff]
              %575 = vst [vmem:[%s481 + $0x170] sm:$0xff] %v574
              %v576 = vld [vmem:[%s480 + $0x178] sm:$0xff]
              %577 = vst [vmem:[%s481 + $0x178] sm:$0xff] %v576
              %v578 = vld [vmem:[%s480 + $0x180] sm:$0xff]
              %579 = vst [vmem:[%s481 + $0x180] sm:$0xff] %v578
              %v580 = vld [vmem:[%s480 + $0x188] sm:$0xff]
              %581 = vst [vmem:[%s481 + $0x188] sm:$0xff] %v580
              %v582 = vld [vmem:[%s480 + $0x190] sm:$0xff]
              %583 = vst [vmem:[%s481 + $0x190] sm:$0xff] %v582
              %v584 = vld [vmem:[%s480 + $0x198] sm:$0xff]
              %585 = vst [vmem:[%s481 + $0x198] sm:$0xff] %v584
              %v586 = vld [vmem:[%s480 + $0x1a0] sm:$0xff]
              %587 = vst [vmem:[%s481 + $0x1a0] sm:$0xff] %v586
              %v588 = vld [vmem:[%s480 + $0x1a8] sm:$0xff]
              %589 = vst [vmem:[%s481 + $0x1a8] sm:$0xff] %v588
              %v590 = vld [vmem:[%s480 + $0x1b0] sm:$0xff]
              %591 = vst [vmem:[%s481 + $0x1b0] sm:$0xff] %v590
              %v592 = vld [vmem:[%s480 + $0x1b8] sm:$0xff]
              %593 = vst [vmem:[%s481 + $0x1b8] sm:$0xff] %v592
              %v594 = vld [vmem:[%s480 + $0x1c0] sm:$0xff]
              %595 = vst [vmem:[%s481 + $0x1c0] sm:$0xff] %v594
              %v596 = vld [vmem:[%s480 + $0x1c8] sm:$0xff]
              %597 = vst [vmem:[%s481 + $0x1c8] sm:$0xff] %v596
              %v598 = vld [vmem:[%s480 + $0x1d0] sm:$0xff]
              %599 = vst [vmem:[%s481 + $0x1d0] sm:$0xff] %v598
              %v600 = vld [vmem:[%s480 + $0x1d8] sm:$0xff]
              %601 = vst [vmem:[%s481 + $0x1d8] sm:$0xff] %v600
            $region102: #{flow_forward.7} parent=96 // loop_footer
              %s479 = sadd.s32 1, %s475
            $region103: #{flow_forward.7} parent=96 // loop_footer_branch
              %474 = sbr.rel target = $region99
            $region104: #{flow_forward.7} parent=96 // loop_exit
              _
          $region97: #{flow_forward.7} parent=81 // pred_fallthru
            _
          %p602 = pneg %p470
          // Predicated region
          $region105: #{flow_forward.7} parent=81 // pred_check
            _
          $region106: #{flow_forward.7} parent=81 // pred_check_branch
            %604 = sbr.rel (%p470) target = $region108
          $region107: #{flow_forward.7} parent=81 // pred_region
            %s605 = sand.u32 480, 7
          $region108: #{flow_forward.7} parent=81 // pred_fallthru
            _
        $region82: #{flow_forward.7} parent=77 // pred_fallthru
          _
        // Predicated region
        $region83: #{flow_forward.7} parent=77 // pred_check
          %p454 = pneg %p450
        $region84: #{flow_forward.7} parent=77 // pred_check_branch
          %456 = sbr.rel (%p454) target = $region86
        $region85: #{flow_forward.7} parent=77 // pred_region
          %s457 = sshll.u32 1, 480
          %s458 = ssub.s32 %s457, 1
          loop: start=0, step=1, limit=1
          $region87: #{flow_forward.7} parent=85 // loop_pre_header
            _
          $region88: #{flow_forward.7} parent=85 // loop_header
            %s460 = sphi 0, %s464
            %p461 = scmp.ge.s32.totalorder %s460, 1
            %s465 = sphi %s444, %s444
            %s466 = sphi %s447, %s447
          $region89: #{flow_forward.7} parent=85 // loop_header_branch
            %463 = sbr.rel (%p461) target = $region93
          $region90: #{flow_forward.7} parent=85 // loop_body
            %v467 = vld [vmem:[%s465] sm:%s458]
            %468 = vst [vmem:[%s466] sm:%s458] %v467
          $region91: #{flow_forward.7} parent=85 // loop_footer
            %s464 = sadd.s32 1, %s460
          $region92: #{flow_forward.7} parent=85 // loop_footer_branch
            %459 = sbr.rel target = $region88
          $region93: #{flow_forward.7} parent=85 // loop_exit
            _
        $region86: #{flow_forward.7} parent=77 // pred_fallthru
          _
        // Predicated region
        $region109: #{flow_forward.7} parent=77 // pred_check
          _
        $region110: #{flow_forward.7} parent=77 // pred_check_branch
          %608 = sbr.rel (0) target = $region112
        $region111: #{flow_forward.7} parent=77 // pred_region
          %609 = vsyncadd %s448, 7680
        $region112: #{flow_forward.7} parent=77 // pred_fallthru
          _
      $region78: #{flow_forward.7} parent=35 // pred_fallthru
        _
      %v610 = vld [vmem:[%s426] sm:$0xff]
      %v611 = vld [vmem:[%s426 + $0x8] sm:$0xff]
      %v612 = vld [vmem:[%s426 + $0x10] sm:$0xff]
      %v613 = vld [vmem:[%s426 + $0x18] sm:$0xff]
      %v614 = vld [vmem:[%s426 + $0x20] sm:$0xff]
      %v615 = vld [vmem:[%s426 + $0x28] sm:$0xff]
      %v616 = vld [vmem:[%s426 + $0x30] sm:$0xff]
      %v617 = vld [vmem:[%s426 + $0x38] sm:$0xff]
      %v618 = vld [vmem:[%s426 + $0x40] sm:$0xff]
      %v619 = vld [vmem:[%s426 + $0x48] sm:$0xff]
      %v620 = vld [vmem:[%s426 + $0x50] sm:$0xff]
      %v621 = vld [vmem:[%s426 + $0x58] sm:$0xff]
      %v622 = vld [vmem:[%s426 + $0x60] sm:$0xff]
      %v623 = vld [vmem:[%s426 + $0x68] sm:$0xff]
      %v624 = vld [vmem:[%s426 + $0x70] sm:$0xff]
      %v625 = vld [vmem:[%s426 + $0x78] sm:$0xff]
      %v626 = vld [vmem:[%s426 + $0x80] sm:$0xff]
      %v627 = vld [vmem:[%s426 + $0x88] sm:$0xff]
      %v628 = vld [vmem:[%s426 + $0x90] sm:$0xff]
      %v629 = vld [vmem:[%s426 + $0x98] sm:$0xff]
      %v630 = vld [vmem:[%s426 + $0xa0] sm:$0xff]
      %v631 = vld [vmem:[%s426 + $0xa8] sm:$0xff]
      %v632 = vld [vmem:[%s426 + $0xb0] sm:$0xff]
      %v633 = vld [vmem:[%s426 + $0xb8] sm:$0xff]
      %v634 = vld [vmem:[%s426 + $0xc0] sm:$0xff]
      %v635 = vld [vmem:[%s426 + $0xc8] sm:$0xff]
      %v636 = vld [vmem:[%s426 + $0xd0] sm:$0xff]
      %v637 = vld [vmem:[%s426 + $0xd8] sm:$0xff]
      %v638 = vld [vmem:[%s426 + $0xe0] sm:$0xff]
      %v639 = vld [vmem:[%s426 + $0xe8] sm:$0xff]
      %v640 = vld [vmem:[%s426 + $0xf0] sm:$0xff]
      %v641 = vld [vmem:[%s426 + $0xf8] sm:$0xff]
      %v642 = vld [vmem:[%s426 + $0x100] sm:$0xff]
      %v643 = vld [vmem:[%s426 + $0x108] sm:$0xff]
      %v644 = vld [vmem:[%s426 + $0x110] sm:$0xff]
      %v645 = vld [vmem:[%s426 + $0x118] sm:$0xff]
      %v646 = vld [vmem:[%s426 + $0x120] sm:$0xff]
      %v647 = vld [vmem:[%s426 + $0x128] sm:$0xff]
      %v648 = vld [vmem:[%s426 + $0x130] sm:$0xff]
      %v649 = vld [vmem:[%s426 + $0x138] sm:$0xff]
      %v650 = vld [vmem:[%s426 + $0x140] sm:$0xff]
      %v651 = vld [vmem:[%s426 + $0x148] sm:$0xff]
      %v652 = vld [vmem:[%s426 + $0x150] sm:$0xff]
      %v653 = vld [vmem:[%s426 + $0x158] sm:$0xff]
      %v654 = vld [vmem:[%s426 + $0x160] sm:$0xff]
      %v655 = vld [vmem:[%s426 + $0x168] sm:$0xff]
      %v656 = vld [vmem:[%s426 + $0x170] sm:$0xff]
      %v657 = vld [vmem:[%s426 + $0x178] sm:$0xff]
      %v658 = vld [vmem:[%s426 + $0x180] sm:$0xff]
      %v659 = vld [vmem:[%s426 + $0x188] sm:$0xff]
      %v660 = vld [vmem:[%s426 + $0x190] sm:$0xff]
      %v661 = vld [vmem:[%s426 + $0x198] sm:$0xff]
      %v662 = vld [vmem:[%s426 + $0x1a0] sm:$0xff]
      %v663 = vld [vmem:[%s426 + $0x1a8] sm:$0xff]
      %v664 = vld [vmem:[%s426 + $0x1b0] sm:$0xff]
      %v665 = vld [vmem:[%s426 + $0x1b8] sm:$0xff]
      %v666 = vld [vmem:[%s426 + $0x1c0] sm:$0xff]
      %v667 = vld [vmem:[%s426 + $0x1c8] sm:$0xff]
      %v668 = vld [vmem:[%s426 + $0x1d0] sm:$0xff]
      %v669 = vld [vmem:[%s426 + $0x1d8] sm:$0xff]
      %v670 = vld [vmem:[%s1] sm:$0xf]
      %v671 = vld [vmem:[%s1 + $0x4] sm:$0xf]
      %v672 = vld [vmem:[%s1 + $0x8] sm:$0xf]
      %v673 = vld [vmem:[%s1 + $0xc] sm:$0xf]
      %v674 = vld [vmem:[%s1 + $0x10] sm:$0xf]
      %v675 = vld [vmem:[%s1 + $0x14] sm:$0xf]
      %v676 = vld [vmem:[%s1 + $0x18] sm:$0xf]
      %v677 = vld [vmem:[%s1 + $0x1c] sm:$0xf]
      %v678 = vld [vmem:[%s1 + $0x20] sm:$0xf]
      %v679 = vld [vmem:[%s1 + $0x24] sm:$0xf]
      %v680 = vld [vmem:[%s1 + $0x28] sm:$0xf]
      %v681 = vld [vmem:[%s1 + $0x2c] sm:$0xf]
      %v682 = vld [vmem:[%s1 + $0x30] sm:$0xf]
      %v683 = vld [vmem:[%s1 + $0x34] sm:$0xf]
      %v684 = vld [vmem:[%s1 + $0x38] sm:$0xf]
      %v685 = vld [vmem:[%s1 + $0x3c] sm:$0xf]
      %v686 = vld [vmem:[%s1 + $0x40] sm:$0xf]
      %v687 = vld [vmem:[%s1 + $0x44] sm:$0xf]
      %v688 = vld [vmem:[%s1 + $0x48] sm:$0xf]
      %v689 = vld [vmem:[%s1 + $0x4c] sm:$0xf]
      %v690 = vld [vmem:[%s1 + $0x50] sm:$0xf]
      %v691 = vld [vmem:[%s1 + $0x54] sm:$0xf]
      %v692 = vld [vmem:[%s1 + $0x58] sm:$0xf]
      %v693 = vld [vmem:[%s1 + $0x5c] sm:$0xf]
      %v694 = vld [vmem:[%s1 + $0x60] sm:$0xf]
      %v695 = vld [vmem:[%s1 + $0x64] sm:$0xf]
      %v696 = vld [vmem:[%s1 + $0x68] sm:$0xf]
      %v697 = vld [vmem:[%s1 + $0x6c] sm:$0xf]
      %v698 = vld [vmem:[%s1 + $0x70] sm:$0xf]
      %v699 = vld [vmem:[%s1 + $0x74] sm:$0xf]
      %v700 = vld [vmem:[%s1 + $0x78] sm:$0xf]
      %v701 = vld [vmem:[%s1 + $0x7c] sm:$0xf]
      %v702 = vld [vmem:[%s1 + $0x80] sm:$0xf]
      %v703 = vld [vmem:[%s1 + $0x84] sm:$0xf]
      %v704 = vld [vmem:[%s1 + $0x88] sm:$0xf]
      %v705 = vld [vmem:[%s1 + $0x8c] sm:$0xf]
      %v706 = vld [vmem:[%s1 + $0x90] sm:$0xf]
      %v707 = vld [vmem:[%s1 + $0x94] sm:$0xf]
      %v708 = vld [vmem:[%s1 + $0x98] sm:$0xf]
      %v709 = vld [vmem:[%s1 + $0x9c] sm:$0xf]
      %v710 = vld [vmem:[%s1 + $0xa0] sm:$0xf]
      %v711 = vld [vmem:[%s1 + $0xa4] sm:$0xf]
      %v712 = vld [vmem:[%s1 + $0xa8] sm:$0xf]
      %v713 = vld [vmem:[%s1 + $0xac] sm:$0xf]
      %v714 = vld [vmem:[%s1 + $0xb0] sm:$0xf]
      %v715 = vld [vmem:[%s1 + $0xb4] sm:$0xf]
      %v716 = vld [vmem:[%s1 + $0xb8] sm:$0xf]
      %v717 = vld [vmem:[%s1 + $0xbc] sm:$0xf]
      %v718 = vld [vmem:[%s1 + $0xc0] sm:$0xf]
      %v719 = vld [vmem:[%s1 + $0xc4] sm:$0xf]
      %v720 = vld [vmem:[%s1 + $0xc8] sm:$0xf]
      %v721 = vld [vmem:[%s1 + $0xcc] sm:$0xf]
      %v722 = vld [vmem:[%s1 + $0xd0] sm:$0xf]
      %v723 = vld [vmem:[%s1 + $0xd4] sm:$0xf]
      %v724 = vld [vmem:[%s1 + $0xd8] sm:$0xf]
      %v725 = vld [vmem:[%s1 + $0xdc] sm:$0xf]
      %v726 = vld [vmem:[%s1 + $0xe0] sm:$0xf]
      %v727 = vld [vmem:[%s1 + $0xe4] sm:$0xf]
      %v728 = vld [vmem:[%s1 + $0xe8] sm:$0xf]
      %v729 = vld [vmem:[%s1 + $0xec] sm:$0xf]
      %v730 = vld [vmem:[%s1 + $0xf0] sm:$0xf]
      %v731 = vld [vmem:[%s1 + $0xf4] sm:$0xf]
      %v732 = vld [vmem:[%s1 + $0xf8] sm:$0xf]
      %v733 = vld [vmem:[%s1 + $0xfc] sm:$0xf]
      %vm734 = vsmask.f32 3328
      %vm735 = vsmask.f32 7440
      %vm736 = vmor %vm734, %vm735
      %v738 = vshrl.u32 %v610, 16
      %v740 = vrot.slane %v738, 4
      %v741 = vshll.u32 %v610, 16
      %v743 = vrot.slane %v741, 5
      %v744 = vor.u32 %v740, %v743
      %v745 = vrot.slane %v744, 4
      %v747 = vshll.u32 %v612, 16
      %v749 = vrot.slane %v747, 5
      %v750 = vsel %vm736, %v745, %v749
      %v752 = vshrl.u32 %v611, 16
      %v754 = vrot.slane %v752, 4
      %v755 = vshll.u32 %v611, 16
      %v757 = vrot.slane %v755, 5
      %v758 = vor.u32 %v754, %v757
      %v759 = vrot.slane %v758, 4
      %v761 = vshll.u32 %v613, 16
      %v763 = vrot.slane %v761, 5
      %v764 = vsel %vm736, %v759, %v763
      %v765 = vshrl.u32 %v612, 16
      %v767 = vrot.slane %v765, 4
      %v768 = vor.u32 %v767, %v749
      %v769 = vrot.slane %v768, 4
      %v771 = vshll.u32 %v614, 16
      %v773 = vrot.slane %v771, 5
      %v774 = vsel %vm736, %v769, %v773
      %v775 = vshrl.u32 %v613, 16
      %v777 = vrot.slane %v775, 4
      %v778 = vor.u32 %v777, %v763
      %v779 = vrot.slane %v778, 4
      %v781 = vshll.u32 %v615, 16
      %v783 = vrot.slane %v781, 5
      %v784 = vsel %vm736, %v779, %v783
      %v786 = vshrl.u32 %v616, 16
      %v788 = vrot.slane %v786, 4
      %v789 = vshll.u32 %v616, 16
      %v791 = vrot.slane %v789, 5
      %v792 = vor.u32 %v788, %v791
      %v793 = vrot.slane %v792, 4
      %v795 = vshll.u32 %v618, 16
      %v797 = vrot.slane %v795, 5
      %v798 = vsel %vm736, %v793, %v797
      %v800 = vshrl.u32 %v617, 16
      %v802 = vrot.slane %v800, 4
      %v803 = vshll.u32 %v617, 16
      %v805 = vrot.slane %v803, 5
      %v806 = vor.u32 %v802, %v805
      %v807 = vrot.slane %v806, 4
      %v809 = vshll.u32 %v619, 16
      %v811 = vrot.slane %v809, 5
      %v812 = vsel %vm736, %v807, %v811
      %v813 = vshrl.u32 %v618, 16
      %v815 = vrot.slane %v813, 4
      %v816 = vor.u32 %v815, %v797
      %v817 = vrot.slane %v816, 4
      %v819 = vshll.u32 %v620, 16
      %v821 = vrot.slane %v819, 5
      %v822 = vsel %vm736, %v817, %v821
      %v823 = vshrl.u32 %v619, 16
      %v825 = vrot.slane %v823, 4
      %v826 = vor.u32 %v825, %v811
      %v827 = vrot.slane %v826, 4
      %v829 = vshll.u32 %v621, 16
      %v831 = vrot.slane %v829, 5
      %v832 = vsel %vm736, %v827, %v831
      %v834 = vshrl.u32 %v622, 16
      %v836 = vrot.slane %v834, 4
      %v837 = vshll.u32 %v622, 16
      %v839 = vrot.slane %v837, 5
      %v840 = vor.u32 %v836, %v839
      %v841 = vrot.slane %v840, 4
      %v843 = vshll.u32 %v624, 16
      %v845 = vrot.slane %v843, 5
      %v846 = vsel %vm736, %v841, %v845
      %v848 = vshrl.u32 %v623, 16
      %v850 = vrot.slane %v848, 4
      %v851 = vshll.u32 %v623, 16
      %v853 = vrot.slane %v851, 5
      %v854 = vor.u32 %v850, %v853
      %v855 = vrot.slane %v854, 4
      %v857 = vshll.u32 %v625, 16
      %v859 = vrot.slane %v857, 5
      %v860 = vsel %vm736, %v855, %v859
      %v861 = vshrl.u32 %v624, 16
      %v863 = vrot.slane %v861, 4
      %v864 = vor.u32 %v863, %v845
      %v865 = vrot.slane %v864, 4
      %v867 = vshll.u32 %v626, 16
      %v869 = vrot.slane %v867, 5
      %v870 = vsel %vm736, %v865, %v869
      %v871 = vshrl.u32 %v625, 16
      %v873 = vrot.slane %v871, 4
      %v874 = vor.u32 %v873, %v859
      %v875 = vrot.slane %v874, 4
      %v877 = vshll.u32 %v627, 16
      %v879 = vrot.slane %v877, 5
      %v880 = vsel %vm736, %v875, %v879
      %v882 = vshrl.u32 %v628, 16
      %v884 = vrot.slane %v882, 4
      %v885 = vshll.u32 %v628, 16
      %v887 = vrot.slane %v885, 5
      %v888 = vor.u32 %v884, %v887
      %v889 = vrot.slane %v888, 4
      %v891 = vshll.u32 %v630, 16
      %v893 = vrot.slane %v891, 5
      %v894 = vsel %vm736, %v889, %v893
      %v896 = vshrl.u32 %v629, 16
      %v898 = vrot.slane %v896, 4
      %v899 = vshll.u32 %v629, 16
      %v901 = vrot.slane %v899, 5
      %v902 = vor.u32 %v898, %v901
      %v903 = vrot.slane %v902, 4
      %v905 = vshll.u32 %v631, 16
      %v907 = vrot.slane %v905, 5
      %v908 = vsel %vm736, %v903, %v907
      %v909 = vshrl.u32 %v630, 16
      %v911 = vrot.slane %v909, 4
      %v912 = vor.u32 %v911, %v893
      %v913 = vrot.slane %v912, 4
      %v915 = vshll.u32 %v632, 16
      %v917 = vrot.slane %v915, 5
      %v918 = vsel %vm736, %v913, %v917
      %v919 = vshrl.u32 %v631, 16
      %v921 = vrot.slane %v919, 4
      %v922 = vor.u32 %v921, %v907
      %v923 = vrot.slane %v922, 4
      %v925 = vshll.u32 %v633, 16
      %v927 = vrot.slane %v925, 5
      %v928 = vsel %vm736, %v923, %v927
      %v930 = vshrl.u32 %v634, 16
      %v932 = vrot.slane %v930, 4
      %v933 = vshll.u32 %v634, 16
      %v935 = vrot.slane %v933, 5
      %v936 = vor.u32 %v932, %v935
      %v937 = vrot.slane %v936, 4
      %v939 = vshll.u32 %v636, 16
      %v941 = vrot.slane %v939, 5
      %v942 = vsel %vm736, %v937, %v941
      %v944 = vshrl.u32 %v635, 16
      %v946 = vrot.slane %v944, 4
      %v947 = vshll.u32 %v635, 16
      %v949 = vrot.slane %v947, 5
      %v950 = vor.u32 %v946, %v949
      %v951 = vrot.slane %v950, 4
      %v953 = vshll.u32 %v637, 16
      %v955 = vrot.slane %v953, 5
      %v956 = vsel %vm736, %v951, %v955
      %v957 = vshrl.u32 %v636, 16
      %v959 = vrot.slane %v957, 4
      %v960 = vor.u32 %v959, %v941
      %v961 = vrot.slane %v960, 4
      %v963 = vshll.u32 %v638, 16
      %v965 = vrot.slane %v963, 5
      %v966 = vsel %vm736, %v961, %v965
      %v967 = vshrl.u32 %v637, 16
      %v969 = vrot.slane %v967, 4
      %v970 = vor.u32 %v969, %v955
      %v971 = vrot.slane %v970, 4
      %v973 = vshll.u32 %v639, 16
      %v975 = vrot.slane %v973, 5
      %v976 = vsel %vm736, %v971, %v975
      %v978 = vshrl.u32 %v640, 16
      %v980 = vrot.slane %v978, 4
      %v981 = vshll.u32 %v640, 16
      %v983 = vrot.slane %v981, 5
      %v984 = vor.u32 %v980, %v983
      %v985 = vrot.slane %v984, 4
      %v987 = vshll.u32 %v642, 16
      %v989 = vrot.slane %v987, 5
      %v990 = vsel %vm736, %v985, %v989
      %v992 = vshrl.u32 %v641, 16
      %v994 = vrot.slane %v992, 4
      %v995 = vshll.u32 %v641, 16
      %v997 = vrot.slane %v995, 5
      %v998 = vor.u32 %v994, %v997
      %v999 = vrot.slane %v998, 4
      %v1001 = vshll.u32 %v643, 16
      %v1003 = vrot.slane %v1001, 5
      %v1004 = vsel %vm736, %v999, %v1003
      %v1005 = vshrl.u32 %v642, 16
      %v1007 = vrot.slane %v1005, 4
      %v1008 = vor.u32 %v1007, %v989
      %v1009 = vrot.slane %v1008, 4
      %v1011 = vshll.u32 %v644, 16
      %v1013 = vrot.slane %v1011, 5
      %v1014 = vsel %vm736, %v1009, %v1013
      %v1015 = vshrl.u32 %v643, 16
      %v1017 = vrot.slane %v1015, 4
      %v1018 = vor.u32 %v1017, %v1003
      %v1019 = vrot.slane %v1018, 4
      %v1021 = vshll.u32 %v645, 16
      %v1023 = vrot.slane %v1021, 5
      %v1024 = vsel %vm736, %v1019, %v1023
      %v1026 = vshrl.u32 %v646, 16
      %v1028 = vrot.slane %v1026, 4
      %v1029 = vshll.u32 %v646, 16
      %v1031 = vrot.slane %v1029, 5
      %v1032 = vor.u32 %v1028, %v1031
      %v1033 = vrot.slane %v1032, 4
      %v1035 = vshll.u32 %v648, 16
      %v1037 = vrot.slane %v1035, 5
      %v1038 = vsel %vm736, %v1033, %v1037
      %v1040 = vshrl.u32 %v647, 16
      %v1042 = vrot.slane %v1040, 4
      %v1043 = vshll.u32 %v647, 16
      %v1045 = vrot.slane %v1043, 5
      %v1046 = vor.u32 %v1042, %v1045
      %v1047 = vrot.slane %v1046, 4
      %v1049 = vshll.u32 %v649, 16
      %v1051 = vrot.slane %v1049, 5
      %v1052 = vsel %vm736, %v1047, %v1051
      %v1053 = vshrl.u32 %v648, 16
      %v1055 = vrot.slane %v1053, 4
      %v1056 = vor.u32 %v1055, %v1037
      %v1057 = vrot.slane %v1056, 4
      %v1059 = vshll.u32 %v650, 16
      %v1061 = vrot.slane %v1059, 5
      %v1062 = vsel %vm736, %v1057, %v1061
      %v1063 = vshrl.u32 %v649, 16
      %v1065 = vrot.slane %v1063, 4
      %v1066 = vor.u32 %v1065, %v1051
      %v1067 = vrot.slane %v1066, 4
      %v1069 = vshll.u32 %v651, 16
      %v1071 = vrot.slane %v1069, 5
      %v1072 = vsel %vm736, %v1067, %v1071
      %v1074 = vshrl.u32 %v652, 16
      %v1076 = vrot.slane %v1074, 4
      %v1077 = vshll.u32 %v652, 16
      %v1079 = vrot.slane %v1077, 5
      %v1080 = vor.u32 %v1076, %v1079
      %v1081 = vrot.slane %v1080, 4
      %v1083 = vshll.u32 %v654, 16
      %v1085 = vrot.slane %v1083, 5
      %v1086 = vsel %vm736, %v1081, %v1085
      %v1088 = vshrl.u32 %v653, 16
      %v1090 = vrot.slane %v1088, 4
      %v1091 = vshll.u32 %v653, 16
      %v1093 = vrot.slane %v1091, 5
      %v1094 = vor.u32 %v1090, %v1093
      %v1095 = vrot.slane %v1094, 4
      %v1097 = vshll.u32 %v655, 16
      %v1099 = vrot.slane %v1097, 5
      %v1100 = vsel %vm736, %v1095, %v1099
      %v1101 = vshrl.u32 %v654, 16
      %v1103 = vrot.slane %v1101, 4
      %v1104 = vor.u32 %v1103, %v1085
      %v1105 = vrot.slane %v1104, 4
      %v1107 = vshll.u32 %v656, 16
      %v1109 = vrot.slane %v1107, 5
      %v1110 = vsel %vm736, %v1105, %v1109
      %v1111 = vshrl.u32 %v655, 16
      %v1113 = vrot.slane %v1111, 4
      %v1114 = vor.u32 %v1113, %v1099
      %v1115 = vrot.slane %v1114, 4
      %v1117 = vshll.u32 %v657, 16
      %v1119 = vrot.slane %v1117, 5
      %v1120 = vsel %vm736, %v1115, %v1119
      %s1121 = scalar_lea.vmem %s1, 256
      %v1122 = vld [vmem:[%s1121] sm:$0xf]
      %v1123 = vld [vmem:[%s1121 + $0x4] sm:$0xf]
      %v1124 = vld [vmem:[%s1121 + $0x8] sm:$0xf]
      %v1125 = vld [vmem:[%s1121 + $0xc] sm:$0xf]
      %v1126 = vld [vmem:[%s1121 + $0x10] sm:$0xf]
      %v1127 = vld [vmem:[%s1121 + $0x14] sm:$0xf]
      %v1128 = vld [vmem:[%s1121 + $0x18] sm:$0xf]
      %v1129 = vld [vmem:[%s1121 + $0x1c] sm:$0xf]
      %v1130 = vld [vmem:[%s1121 + $0x20] sm:$0xf]
      %v1131 = vld [vmem:[%s1121 + $0x24] sm:$0xf]
      %v1132 = vld [vmem:[%s1121 + $0x28] sm:$0xf]
      %v1133 = vld [vmem:[%s1121 + $0x2c] sm:$0xf]
      %v1134 = vld [vmem:[%s1121 + $0x30] sm:$0xf]
      %v1135 = vld [vmem:[%s1121 + $0x34] sm:$0xf]
      %v1136 = vld [vmem:[%s1121 + $0x38] sm:$0xf]
      %v1137 = vld [vmem:[%s1121 + $0x3c] sm:$0xf]
      %v1138 = vld [vmem:[%s1121 + $0x40] sm:$0xf]
      %v1139 = vld [vmem:[%s1121 + $0x44] sm:$0xf]
      %v1140 = vld [vmem:[%s1121 + $0x48] sm:$0xf]
      %v1141 = vld [vmem:[%s1121 + $0x4c] sm:$0xf]
      %v1142 = vld [vmem:[%s1121 + $0x50] sm:$0xf]
      %v1143 = vld [vmem:[%s1121 + $0x54] sm:$0xf]
      %v1144 = vld [vmem:[%s1121 + $0x58] sm:$0xf]
      %v1145 = vld [vmem:[%s1121 + $0x5c] sm:$0xf]
      %v1146 = vld [vmem:[%s1121 + $0x60] sm:$0xf]
      %v1147 = vld [vmem:[%s1121 + $0x64] sm:$0xf]
      %v1148 = vld [vmem:[%s1121 + $0x68] sm:$0xf]
      %v1149 = vld [vmem:[%s1121 + $0x6c] sm:$0xf]
      %v1150 = vld [vmem:[%s1121 + $0x70] sm:$0xf]
      %v1151 = vld [vmem:[%s1121 + $0x74] sm:$0xf]
      %v1152 = vld [vmem:[%s1121 + $0x78] sm:$0xf]
      %v1153 = vld [vmem:[%s1121 + $0x7c] sm:$0xf]
      %v1154 = vld [vmem:[%s1121 + $0x80] sm:$0xf]
      %v1155 = vld [vmem:[%s1121 + $0x84] sm:$0xf]
      %v1156 = vld [vmem:[%s1121 + $0x88] sm:$0xf]
      %v1157 = vld [vmem:[%s1121 + $0x8c] sm:$0xf]
      %v1158 = vld [vmem:[%s1121 + $0x90] sm:$0xf]
      %v1159 = vld [vmem:[%s1121 + $0x94] sm:$0xf]
      %v1160 = vld [vmem:[%s1121 + $0x98] sm:$0xf]
      %v1161 = vld [vmem:[%s1121 + $0x9c] sm:$0xf]
      %v1162 = vld [vmem:[%s1121 + $0xa0] sm:$0xf]
      %v1163 = vld [vmem:[%s1121 + $0xa4] sm:$0xf]
      %v1164 = vld [vmem:[%s1121 + $0xa8] sm:$0xf]
      %v1165 = vld [vmem:[%s1121 + $0xac] sm:$0xf]
      %v1166 = vld [vmem:[%s1121 + $0xb0] sm:$0xf]
      %v1167 = vld [vmem:[%s1121 + $0xb4] sm:$0xf]
      %v1168 = vld [vmem:[%s1121 + $0xb8] sm:$0xf]
      %v1169 = vld [vmem:[%s1121 + $0xbc] sm:$0xf]
      %v1170 = vld [vmem:[%s1121 + $0xc0] sm:$0xf]
      %v1171 = vld [vmem:[%s1121 + $0xc4] sm:$0xf]
      %v1172 = vld [vmem:[%s1121 + $0xc8] sm:$0xf]
      %v1173 = vld [vmem:[%s1121 + $0xcc] sm:$0xf]
      %v1174 = vld [vmem:[%s1121 + $0xd0] sm:$0xf]
      %v1175 = vld [vmem:[%s1121 + $0xd4] sm:$0xf]
      %v1176 = vld [vmem:[%s1121 + $0xd8] sm:$0xf]
      %v1177 = vld [vmem:[%s1121 + $0xdc] sm:$0xf]
      %v1178 = vld [vmem:[%s1121 + $0xe0] sm:$0xf]
      %v1179 = vld [vmem:[%s1121 + $0xe4] sm:$0xf]
      %v1180 = vld [vmem:[%s1121 + $0xe8] sm:$0xf]
      %v1181 = vld [vmem:[%s1121 + $0xec] sm:$0xf]
      %v1182 = vld [vmem:[%s1121 + $0xf0] sm:$0xf]
      %v1183 = vld [vmem:[%s1121 + $0xf4] sm:$0xf]
      %v1184 = vld [vmem:[%s1121 + $0xf8] sm:$0xf]
      %v1185 = vld [vmem:[%s1121 + $0xfc] sm:$0xf]
      %v1186 = vunpack.c.l.b16 %v750
      %v1187 = vunpack.c.h.b16 %v750
      %v1188 = vunpack.c.l.b16 %v764
      %v1189 = vunpack.c.h.b16 %v764
      %v1190 = vunpack.c.l.b16 %v774
      %v1191 = vunpack.c.h.b16 %v774
      %v1192 = vunpack.c.l.b16 %v784
      %v1193 = vunpack.c.h.b16 %v784
      %v1194 = vunpack.c.l.b16 %v798
      %v1195 = vunpack.c.h.b16 %v798
      %v1196 = vunpack.c.l.b16 %v812
      %v1197 = vunpack.c.h.b16 %v812
      %v1198 = vunpack.c.l.b16 %v822
      %v1199 = vunpack.c.h.b16 %v822
      %v1200 = vunpack.c.l.b16 %v832
      %v1201 = vunpack.c.h.b16 %v832
      %v1202 = vunpack.c.l.b16 %v846
      %v1203 = vunpack.c.h.b16 %v846
      %v1204 = vunpack.c.l.b16 %v860
      %v1205 = vunpack.c.h.b16 %v860
      %v1206 = vunpack.c.l.b16 %v870
      %v1207 = vunpack.c.h.b16 %v870
      %v1208 = vunpack.c.l.b16 %v880
      %v1209 = vunpack.c.h.b16 %v880
      %v1210 = vunpack.c.l.b16 %v894
      %v1211 = vunpack.c.h.b16 %v894
      %v1212 = vunpack.c.l.b16 %v908
      %v1213 = vunpack.c.h.b16 %v908
      %v1214 = vunpack.c.l.b16 %v918
      %v1215 = vunpack.c.h.b16 %v918
      %v1216 = vunpack.c.l.b16 %v928
      %v1217 = vunpack.c.h.b16 %v928
      %v1218 = vunpack.c.l.b16 %v942
      %v1219 = vunpack.c.h.b16 %v942
      %v1220 = vunpack.c.l.b16 %v956
      %v1221 = vunpack.c.h.b16 %v956
      %v1222 = vunpack.c.l.b16 %v966
      %v1223 = vunpack.c.h.b16 %v966
      %v1224 = vunpack.c.l.b16 %v976
      %v1225 = vunpack.c.h.b16 %v976
      %v1226 = vunpack.c.l.b16 %v990
      %v1227 = vunpack.c.h.b16 %v990
      %v1228 = vunpack.c.l.b16 %v1004
      %v1229 = vunpack.c.h.b16 %v1004
      %v1230 = vunpack.c.l.b16 %v1014
      %v1231 = vunpack.c.h.b16 %v1014
      %v1232 = vunpack.c.l.b16 %v1024
      %v1233 = vunpack.c.h.b16 %v1024
      %v1234 = vunpack.c.l.b16 %v1038
      %v1235 = vunpack.c.h.b16 %v1038
      %v1236 = vunpack.c.l.b16 %v1052
      %v1237 = vunpack.c.h.b16 %v1052
      %v1238 = vunpack.c.l.b16 %v1062
      %v1239 = vunpack.c.h.b16 %v1062
      %v1240 = vunpack.c.l.b16 %v1072
      %v1241 = vunpack.c.h.b16 %v1072
      %v1242 = vunpack.c.l.b16 %v1086
      %v1243 = vunpack.c.h.b16 %v1086
      %v1244 = vunpack.c.l.b16 %v1100
      %v1245 = vunpack.c.h.b16 %v1100
      %v1246 = vunpack.c.l.b16 %v1110
      %v1247 = vunpack.c.h.b16 %v1110
      %v1248 = vunpack.c.l.b16 %v1120
      %v1249 = vunpack.c.h.b16 %v1120
      %v1250 = vpack.c.b16 %v1190, %v1186
      %v1251 = vpack.c.b16 %v1191, %v1187
      %v1252 = vpack.c.b16 %v1192, %v1188
      %v1253 = vpack.c.b16 %v1193, %v1189
      %v1254 = vpack.c.b16 %v1198, %v1194
      %v1255 = vpack.c.b16 %v1199, %v1195
      %v1256 = vpack.c.b16 %v1200, %v1196
      %v1257 = vpack.c.b16 %v1201, %v1197
      %v1258 = vpack.c.b16 %v1206, %v1202
      %v1259 = vpack.c.b16 %v1207, %v1203
      %v1260 = vpack.c.b16 %v1208, %v1204
      %v1261 = vpack.c.b16 %v1209, %v1205
      %v1262 = vpack.c.b16 %v1214, %v1210
      %v1263 = vpack.c.b16 %v1215, %v1211
      %v1264 = vpack.c.b16 %v1216, %v1212
      %v1265 = vpack.c.b16 %v1217, %v1213
      %v1266 = vpack.c.b16 %v1222, %v1218
      %v1267 = vpack.c.b16 %v1223, %v1219
      %v1268 = vpack.c.b16 %v1224, %v1220
      %v1269 = vpack.c.b16 %v1225, %v1221
      %v1270 = vpack.c.b16 %v1230, %v1226
      %v1271 = vpack.c.b16 %v1231, %v1227
      %v1272 = vpack.c.b16 %v1232, %v1228
      %v1273 = vpack.c.b16 %v1233, %v1229
      %v1274 = vpack.c.b16 %v1238, %v1234
      %v1275 = vpack.c.b16 %v1239, %v1235
      %v1276 = vpack.c.b16 %v1240, %v1236
      %v1277 = vpack.c.b16 %v1241, %v1237
      %v1278 = vpack.c.b16 %v1246, %v1242
      %v1279 = vpack.c.b16 %v1247, %v1243
      %v1280 = vpack.c.b16 %v1248, %v1244
      %v1281 = vpack.c.b16 %v1249, %v1245
      %v1378 = vunpack.c.l.b16 %v1122
      %v1379 = vunpack.c.l.b16 %v1123
      %v1380 = vunpack.c.l.b16 %v1124
      %v1381 = vunpack.c.l.b16 %v1125
      %v1382 = vunpack.c.l.b16 %v1126
      %v1383 = vunpack.c.l.b16 %v1127
      %v1384 = vunpack.c.l.b16 %v1128
      %v1385 = vunpack.c.l.b16 %v1129
      %v1386 = vunpack.c.l.b16 %v1130
      %v1387 = vunpack.c.l.b16 %v1131
      %v1388 = vunpack.c.l.b16 %v1132
      %v1389 = vunpack.c.l.b16 %v1133
      %v1390 = vunpack.c.l.b16 %v1134
      %v1391 = vunpack.c.l.b16 %v1135
      %v1392 = vunpack.c.l.b16 %v1136
      %v1393 = vunpack.c.l.b16 %v1137
      %v1394 = vunpack.c.l.b16 %v1138
      %v1395 = vunpack.c.l.b16 %v1139
      %v1396 = vunpack.c.l.b16 %v1140
      %v1397 = vunpack.c.l.b16 %v1141
      %v1398 = vunpack.c.l.b16 %v1142
      %v1399 = vunpack.c.l.b16 %v1143
      %v1400 = vunpack.c.l.b16 %v1144
      %v1401 = vunpack.c.l.b16 %v1145
      %v1402 = vunpack.c.l.b16 %v1146
      %v1403 = vunpack.c.l.b16 %v1147
      %v1404 = vunpack.c.l.b16 %v1148
      %v1405 = vunpack.c.l.b16 %v1149
      %v1406 = vunpack.c.l.b16 %v1150
      %v1407 = vunpack.c.l.b16 %v1151
      %v1408 = vunpack.c.l.b16 %v1152
      %v1409 = vunpack.c.l.b16 %v1153
      %v1410 = vunpack.c.l.b16 %v1154
      %v1411 = vunpack.c.l.b16 %v1155
      %v1412 = vunpack.c.l.b16 %v1156
      %v1413 = vunpack.c.l.b16 %v1157
      %v1414 = vunpack.c.l.b16 %v1158
      %v1415 = vunpack.c.l.b16 %v1159
      %v1416 = vunpack.c.l.b16 %v1160
      %v1417 = vunpack.c.l.b16 %v1161
      %v1418 = vunpack.c.l.b16 %v1162
      %v1419 = vunpack.c.l.b16 %v1163
      %v1420 = vunpack.c.l.b16 %v1164
      %v1421 = vunpack.c.l.b16 %v1165
      %v1422 = vunpack.c.l.b16 %v1166
      %v1423 = vunpack.c.l.b16 %v1167
      %v1424 = vunpack.c.l.b16 %v1168
      %v1425 = vunpack.c.l.b16 %v1169
      %v1426 = vunpack.c.l.b16 %v1170
      %v1427 = vunpack.c.l.b16 %v1171
      %v1428 = vunpack.c.l.b16 %v1172
      %v1429 = vunpack.c.l.b16 %v1173
      %v1430 = vunpack.c.l.b16 %v1174
      %v1431 = vunpack.c.l.b16 %v1175
      %v1432 = vunpack.c.l.b16 %v1176
      %v1433 = vunpack.c.l.b16 %v1177
      %v1434 = vunpack.c.l.b16 %v1178
      %v1435 = vunpack.c.l.b16 %v1179
      %v1436 = vunpack.c.l.b16 %v1180
      %v1437 = vunpack.c.l.b16 %v1181
      %v1438 = vunpack.c.l.b16 %v1182
      %v1439 = vunpack.c.l.b16 %v1183
      %v1440 = vunpack.c.l.b16 %v1184
      %v1441 = vunpack.c.l.b16 %v1185
      %v1442 = vpack.c.b16 %v1379, %v1378
      %v1443 = vpack.c.b16 %v1381, %v1380
      %v1444 = vpack.c.b16 %v1383, %v1382
      %v1445 = vpack.c.b16 %v1385, %v1384
      %v1446 = vpack.c.b16 %v1387, %v1386
      %v1447 = vpack.c.b16 %v1389, %v1388
      %v1448 = vpack.c.b16 %v1391, %v1390
      %v1449 = vpack.c.b16 %v1393, %v1392
      %v1450 = vpack.c.b16 %v1395, %v1394
      %v1451 = vpack.c.b16 %v1397, %v1396
      %v1452 = vpack.c.b16 %v1399, %v1398
      %v1453 = vpack.c.b16 %v1401, %v1400
      %v1454 = vpack.c.b16 %v1403, %v1402
      %v1455 = vpack.c.b16 %v1405, %v1404
      %v1456 = vpack.c.b16 %v1407, %v1406
      %v1457 = vpack.c.b16 %v1409, %v1408
      %v1458 = vpack.c.b16 %v1411, %v1410
      %v1459 = vpack.c.b16 %v1413, %v1412
      %v1460 = vpack.c.b16 %v1415, %v1414
      %v1461 = vpack.c.b16 %v1417, %v1416
      %v1462 = vpack.c.b16 %v1419, %v1418
      %v1463 = vpack.c.b16 %v1421, %v1420
      %v1464 = vpack.c.b16 %v1423, %v1422
      %v1465 = vpack.c.b16 %v1425, %v1424
      %v1466 = vpack.c.b16 %v1427, %v1426
      %v1467 = vpack.c.b16 %v1429, %v1428
      %v1468 = vpack.c.b16 %v1431, %v1430
      %v1469 = vpack.c.b16 %v1433, %v1432
      %v1470 = vpack.c.b16 %v1435, %v1434
      %v1471 = vpack.c.b16 %v1437, %v1436
      %v1472 = vpack.c.b16 %v1439, %v1438
      %v1473 = vpack.c.b16 %v1441, %v1440
      %1506 = vmatprep.subr.bf16.mxu0 0
      %1507 = vmatpush1.bf16.msra.mxu0 %v1449
      %1508 = vmatprep.subr.bf16.mxu0 0
      %1509 = vmatpush1.bf16.msra.mxu0 %v1448
      %1510 = vmatprep.subr.bf16.mxu0 0
      %1511 = vmatpush1.bf16.msra.mxu0 %v1447
      %1512 = vmatprep.subr.bf16.mxu0 0
      %1513 = vmatpush1.bf16.msra.mxu0 %v1446
      %1514 = vmatprep.subr.bf16.mxu0 0
      %1515 = vmatpush1.bf16.msra.mxu0 %v1445
      %1516 = vmatprep.subr.bf16.mxu0 0
      %1517 = vmatpush1.bf16.msra.mxu0 %v1444
      %1518 = vmatprep.subr.bf16.mxu0 0
      %1519 = vmatpush1.bf16.msra.mxu0 %v1443
      %1520 = vmatprep.subr.bf16.mxu0 0
      %1521 = vmatpush1.bf16.msra.mxu0 %v1442
      %1522 = vmatprep.subr.bf16.mxu0 0
      %1523 = vmatpush2.bf16.msra.mxu0 %v1457
      %1524 = vmatprep.subr.bf16.mxu0 0
      %1525 = vmatpush2.bf16.msra.mxu0 %v1456
      %1526 = vmatprep.subr.bf16.mxu0 0
      %1527 = vmatpush2.bf16.msra.mxu0 %v1455
      %1528 = vmatprep.subr.bf16.mxu0 0
      %1529 = vmatpush2.bf16.msra.mxu0 %v1454
      %1530 = vmatprep.subr.bf16.mxu0 0
      %1531 = vmatpush2.bf16.msra.mxu0 %v1453
      %1532 = vmatprep.subr.bf16.mxu0 0
      %1533 = vmatpush2.bf16.msra.mxu0 %v1452
      %1534 = vmatprep.subr.bf16.mxu0 0
      %1535 = vmatpush2.bf16.msra.mxu0 %v1451
      %1536 = vmatprep.subr.bf16.mxu0 0
      %1537 = vmatpush2.bf16.msra.mxu0 %v1450
      %1538 = vmatprep.mubr.bf16.mxu0 %v1251
      %1539 = vmatmul.mubr.bf16.gmra.mxu0 %v1250
      %v1540 = vpop.f32.mrf.mxu0
      %v1541 = vadd.f32 0.0, %v1540
      %v1542 = vpop.f32.mrf.mxu0
      %v1543 = vpop.f32.mrf.mxu0
      %v1544 = vadd.f32 0.0, %v1543
      %v1545 = vpop.f32.mrf.mxu0
      %1546 = vmatprep.mubr.bf16.mxu0 %v1255
      %1547 = vmatmul.mubr.bf16.gmra.mxu0 %v1254
      %v1548 = vpop.f32.mrf.mxu0
      %v1549 = vadd.f32 0.0, %v1548
      %v1550 = vpop.f32.mrf.mxu0
      %v1551 = vpop.f32.mrf.mxu0
      %v1552 = vadd.f32 0.0, %v1551
      %v1553 = vpop.f32.mrf.mxu0
      %1554 = vmatprep.mubr.bf16.mxu0 %v1259
      %1555 = vmatmul.mubr.bf16.gmra.mxu0 %v1258
      %v1556 = vpop.f32.mrf.mxu0
      %v1557 = vadd.f32 0.0, %v1556
      %v1558 = vpop.f32.mrf.mxu0
      %v1559 = vpop.f32.mrf.mxu0
      %v1560 = vadd.f32 0.0, %v1559
      %v1561 = vpop.f32.mrf.mxu0
      %1562 = vmatprep.mubr.bf16.mxu0 %v1263
      %1563 = vmatmul.mubr.bf16.gmra.mxu0 %v1262
      %v1564 = vpop.f32.mrf.mxu0
      %v1565 = vadd.f32 0.0, %v1564
      %v1566 = vpop.f32.mrf.mxu0
      %v1567 = vpop.f32.mrf.mxu0
      %v1568 = vadd.f32 0.0, %v1567
      %v1569 = vpop.f32.mrf.mxu0
      %1570 = vmatprep.mubr.bf16.mxu0 %v1267
      %1571 = vmatmul.mubr.bf16.gmra.mxu0 %v1266
      %v1572 = vpop.f32.mrf.mxu0
      %v1573 = vadd.f32 0.0, %v1572
      %v1574 = vpop.f32.mrf.mxu0
      %v1575 = vpop.f32.mrf.mxu0
      %v1576 = vadd.f32 0.0, %v1575
      %v1577 = vpop.f32.mrf.mxu0
      %1578 = vmatprep.mubr.bf16.mxu0 %v1271
      %1579 = vmatmul.mubr.bf16.gmra.mxu0 %v1270
      %v1580 = vpop.f32.mrf.mxu0
      %v1581 = vadd.f32 0.0, %v1580
      %v1582 = vpop.f32.mrf.mxu0
      %v1583 = vpop.f32.mrf.mxu0
      %v1584 = vadd.f32 0.0, %v1583
      %v1585 = vpop.f32.mrf.mxu0
      %1586 = vmatprep.mubr.bf16.mxu0 %v1275
      %1587 = vmatmul.mubr.bf16.gmra.mxu0 %v1274
      %v1588 = vpop.f32.mrf.mxu0
      %v1589 = vadd.f32 0.0, %v1588
      %v1590 = vpop.f32.mrf.mxu0
      %v1591 = vpop.f32.mrf.mxu0
      %v1592 = vadd.f32 0.0, %v1591
      %v1593 = vpop.f32.mrf.mxu0
      %1594 = vmatprep.mubr.bf16.mxu0 %v1279
      %1595 = vmatmul.mubr.bf16.gmra.mxu0 %v1278
      %v1596 = vpop.f32.mrf.mxu0
      %v1597 = vadd.f32 0.0, %v1596
      %v1598 = vpop.f32.mrf.mxu0
      %v1599 = vpop.f32.mrf.mxu0
      %v1600 = vadd.f32 0.0, %v1599
      %v1601 = vpop.f32.mrf.mxu0
      %1602 = vdwg.mxu0
      %1603 = vmatprep.subr.bf16.mxu0 0
      %1604 = vmatpush1.bf16.msra.mxu0 %v1465
      %1605 = vmatprep.subr.bf16.mxu0 0
      %1606 = vmatpush1.bf16.msra.mxu0 %v1464
      %1607 = vmatprep.subr.bf16.mxu0 0
      %1608 = vmatpush1.bf16.msra.mxu0 %v1463
      %1609 = vmatprep.subr.bf16.mxu0 0
      %1610 = vmatpush1.bf16.msra.mxu0 %v1462
      %1611 = vmatprep.subr.bf16.mxu0 0
      %1612 = vmatpush1.bf16.msra.mxu0 %v1461
      %1613 = vmatprep.subr.bf16.mxu0 0
      %1614 = vmatpush1.bf16.msra.mxu0 %v1460
      %1615 = vmatprep.subr.bf16.mxu0 0
      %1616 = vmatpush1.bf16.msra.mxu0 %v1459
      %1617 = vmatprep.subr.bf16.mxu0 0
      %1618 = vmatpush1.bf16.msra.mxu0 %v1458
      %1619 = vmatprep.subr.bf16.mxu0 0
      %1620 = vmatpush2.bf16.msra.mxu0 %v1473
      %1621 = vmatprep.subr.bf16.mxu0 0
      %1622 = vmatpush2.bf16.msra.mxu0 %v1472
      %1623 = vmatprep.subr.bf16.mxu0 0
      %1624 = vmatpush2.bf16.msra.mxu0 %v1471
      %1625 = vmatprep.subr.bf16.mxu0 0
      %1626 = vmatpush2.bf16.msra.mxu0 %v1470
      %1627 = vmatprep.subr.bf16.mxu0 0
      %1628 = vmatpush2.bf16.msra.mxu0 %v1469
      %1629 = vmatprep.subr.bf16.mxu0 0
      %1630 = vmatpush2.bf16.msra.mxu0 %v1468
      %1631 = vmatprep.subr.bf16.mxu0 0
      %1632 = vmatpush2.bf16.msra.mxu0 %v1467
      %1633 = vmatprep.subr.bf16.mxu0 0
      %1634 = vmatpush2.bf16.msra.mxu0 %v1466
      %1635 = vmatprep.mubr.bf16.mxu0 %v1253
      %1636 = vmatmul.mubr.bf16.gmra.mxu0 %v1252
      %v1637 = vpop.f32.mrf.mxu0
      %v1638 = vadd.f32 %v1541, %v1637
      %v1639 = vpop.f32.mrf.mxu0
      %v1640 = vpop.f32.mrf.mxu0
      %v1641 = vadd.f32 %v1544, %v1640
      %v1642 = vpop.f32.mrf.mxu0
      %1643 = vmatprep.mubr.bf16.mxu0 %v1257
      %1644 = vmatmul.mubr.bf16.gmra.mxu0 %v1256
      %v1645 = vpop.f32.mrf.mxu0
      %v1646 = vadd.f32 %v1549, %v1645
      %v1647 = vpop.f32.mrf.mxu0
      %v1648 = vpop.f32.mrf.mxu0
      %v1649 = vadd.f32 %v1552, %v1648
      %v1650 = vpop.f32.mrf.mxu0
      %1651 = vmatprep.mubr.bf16.mxu0 %v1261
      %1652 = vmatmul.mubr.bf16.gmra.mxu0 %v1260
      %v1653 = vpop.f32.mrf.mxu0
      %v1654 = vadd.f32 %v1557, %v1653
      %v1655 = vpop.f32.mrf.mxu0
      %v1656 = vpop.f32.mrf.mxu0
      %v1657 = vadd.f32 %v1560, %v1656
      %v1658 = vpop.f32.mrf.mxu0
      %1659 = vmatprep.mubr.bf16.mxu0 %v1265
      %1660 = vmatmul.mubr.bf16.gmra.mxu0 %v1264
      %v1661 = vpop.f32.mrf.mxu0
      %v1662 = vadd.f32 %v1565, %v1661
      %v1663 = vpop.f32.mrf.mxu0
      %v1664 = vpop.f32.mrf.mxu0
      %v1665 = vadd.f32 %v1568, %v1664
      %v1666 = vpop.f32.mrf.mxu0
      %1667 = vmatprep.mubr.bf16.mxu0 %v1269
      %1668 = vmatmul.mubr.bf16.gmra.mxu0 %v1268
      %v1669 = vpop.f32.mrf.mxu0
      %v1670 = vadd.f32 %v1573, %v1669
      %v1671 = vpop.f32.mrf.mxu0
      %v1672 = vpop.f32.mrf.mxu0
      %v1673 = vadd.f32 %v1576, %v1672
      %v1674 = vpop.f32.mrf.mxu0
      %1675 = vmatprep.mubr.bf16.mxu0 %v1273
      %1676 = vmatmul.mubr.bf16.gmra.mxu0 %v1272
      %v1677 = vpop.f32.mrf.mxu0
      %v1678 = vadd.f32 %v1581, %v1677
      %v1679 = vpop.f32.mrf.mxu0
      %v1680 = vpop.f32.mrf.mxu0
      %v1681 = vadd.f32 %v1584, %v1680
      %v1682 = vpop.f32.mrf.mxu0
      %1683 = vmatprep.mubr.bf16.mxu0 %v1277
      %1684 = vmatmul.mubr.bf16.gmra.mxu0 %v1276
      %v1685 = vpop.f32.mrf.mxu0
      %v1686 = vadd.f32 %v1589, %v1685
      %v1687 = vpop.f32.mrf.mxu0
      %v1688 = vpop.f32.mrf.mxu0
      %v1689 = vadd.f32 %v1592, %v1688
      %v1690 = vpop.f32.mrf.mxu0
      %1691 = vmatprep.mubr.bf16.mxu0 %v1281
      %1692 = vmatmul.mubr.bf16.gmra.mxu0 %v1280
      %v1693 = vpop.f32.mrf.mxu0
      %v1694 = vadd.f32 %v1597, %v1693
      %v1695 = vpop.f32.mrf.mxu0
      %v1696 = vpop.f32.mrf.mxu0
      %v1697 = vadd.f32 %v1600, %v1696
      %v1698 = vpop.f32.mrf.mxu0
      %1699 = vdwg.mxu0
      %v1732 = vunpack.c.l.b16 %v610
      %v1733 = vunpack.c.h.b16 %v610
      %v1734 = vunpack.c.l.b16 %v611
      %v1735 = vunpack.c.h.b16 %v611
      %v1736 = vunpack.c.l.b16 %v612
      %v1737 = vunpack.c.h.b16 %v612
      %v1738 = vunpack.c.l.b16 %v613
      %v1739 = vunpack.c.h.b16 %v613
      %v1740 = vunpack.c.l.b16 %v616
      %v1741 = vunpack.c.h.b16 %v616
      %v1742 = vunpack.c.l.b16 %v617
      %v1743 = vunpack.c.h.b16 %v617
      %v1744 = vunpack.c.l.b16 %v618
      %v1745 = vunpack.c.h.b16 %v618
      %v1746 = vunpack.c.l.b16 %v619
      %v1747 = vunpack.c.h.b16 %v619
      %v1748 = vunpack.c.l.b16 %v622
      %v1749 = vunpack.c.h.b16 %v622
      %v1750 = vunpack.c.l.b16 %v623
      %v1751 = vunpack.c.h.b16 %v623
      %v1752 = vunpack.c.l.b16 %v624
      %v1753 = vunpack.c.h.b16 %v624
      %v1754 = vunpack.c.l.b16 %v625
      %v1755 = vunpack.c.h.b16 %v625
      %v1756 = vunpack.c.l.b16 %v628
      %v1757 = vunpack.c.h.b16 %v628
      %v1758 = vunpack.c.l.b16 %v629
      %v1759 = vunpack.c.h.b16 %v629
      %v1760 = vunpack.c.l.b16 %v630
      %v1761 = vunpack.c.h.b16 %v630
      %v1762 = vunpack.c.l.b16 %v631
      %v1763 = vunpack.c.h.b16 %v631
      %v1764 = vunpack.c.l.b16 %v634
      %v1765 = vunpack.c.h.b16 %v634
      %v1766 = vunpack.c.l.b16 %v635
      %v1767 = vunpack.c.h.b16 %v635
      %v1768 = vunpack.c.l.b16 %v636
      %v1769 = vunpack.c.h.b16 %v636
      %v1770 = vunpack.c.l.b16 %v637
      %v1771 = vunpack.c.h.b16 %v637
      %v1772 = vunpack.c.l.b16 %v640
      %v1773 = vunpack.c.h.b16 %v640
      %v1774 = vunpack.c.l.b16 %v641
      %v1775 = vunpack.c.h.b16 %v641
      %v1776 = vunpack.c.l.b16 %v642
      %v1777 = vunpack.c.h.b16 %v642
      %v1778 = vunpack.c.l.b16 %v643
      %v1779 = vunpack.c.h.b16 %v643
      %v1780 = vunpack.c.l.b16 %v646
      %v1781 = vunpack.c.h.b16 %v646
      %v1782 = vunpack.c.l.b16 %v647
      %v1783 = vunpack.c.h.b16 %v647
      %v1784 = vunpack.c.l.b16 %v648
      %v1785 = vunpack.c.h.b16 %v648
      %v1786 = vunpack.c.l.b16 %v649
      %v1787 = vunpack.c.h.b16 %v649
      %v1788 = vunpack.c.l.b16 %v652
      %v1789 = vunpack.c.h.b16 %v652
      %v1790 = vunpack.c.l.b16 %v653
      %v1791 = vunpack.c.h.b16 %v653
      %v1792 = vunpack.c.l.b16 %v654
      %v1793 = vunpack.c.h.b16 %v654
      %v1794 = vunpack.c.l.b16 %v655
      %v1795 = vunpack.c.h.b16 %v655
      %v1796 = vpack.c.b16 %v1736, %v1732
      %v1797 = vpack.c.b16 %v1737, %v1733
      %v1798 = vpack.c.b16 %v1738, %v1734
      %v1799 = vpack.c.b16 %v1739, %v1735
      %v1800 = vpack.c.b16 %v1744, %v1740
      %v1801 = vpack.c.b16 %v1745, %v1741
      %v1802 = vpack.c.b16 %v1746, %v1742
      %v1803 = vpack.c.b16 %v1747, %v1743
      %v1804 = vpack.c.b16 %v1752, %v1748
      %v1805 = vpack.c.b16 %v1753, %v1749
      %v1806 = vpack.c.b16 %v1754, %v1750
      %v1807 = vpack.c.b16 %v1755, %v1751
      %v1808 = vpack.c.b16 %v1760, %v1756
      %v1809 = vpack.c.b16 %v1761, %v1757
      %v1810 = vpack.c.b16 %v1762, %v1758
      %v1811 = vpack.c.b16 %v1763, %v1759
      %v1812 = vpack.c.b16 %v1768, %v1764
      %v1813 = vpack.c.b16 %v1769, %v1765
      %v1814 = vpack.c.b16 %v1770, %v1766
      %v1815 = vpack.c.b16 %v1771, %v1767
      %v1816 = vpack.c.b16 %v1776, %v1772
      %v1817 = vpack.c.b16 %v1777, %v1773
      %v1818 = vpack.c.b16 %v1778, %v1774
      %v1819 = vpack.c.b16 %v1779, %v1775
      %v1820 = vpack.c.b16 %v1784, %v1780
      %v1821 = vpack.c.b16 %v1785, %v1781
      %v1822 = vpack.c.b16 %v1786, %v1782
      %v1823 = vpack.c.b16 %v1787, %v1783
      %v1824 = vpack.c.b16 %v1792, %v1788
      %v1825 = vpack.c.b16 %v1793, %v1789
      %v1826 = vpack.c.b16 %v1794, %v1790
      %v1827 = vpack.c.b16 %v1795, %v1791
      %v1924 = vunpack.c.l.b16 %v670
      %v1925 = vunpack.c.l.b16 %v671
      %v1926 = vunpack.c.l.b16 %v672
      %v1927 = vunpack.c.l.b16 %v673
      %v1928 = vunpack.c.l.b16 %v674
      %v1929 = vunpack.c.l.b16 %v675
      %v1930 = vunpack.c.l.b16 %v676
      %v1931 = vunpack.c.l.b16 %v677
      %v1932 = vunpack.c.l.b16 %v678
      %v1933 = vunpack.c.l.b16 %v679
      %v1934 = vunpack.c.l.b16 %v680
      %v1935 = vunpack.c.l.b16 %v681
      %v1936 = vunpack.c.l.b16 %v682
      %v1937 = vunpack.c.l.b16 %v683
      %v1938 = vunpack.c.l.b16 %v684
      %v1939 = vunpack.c.l.b16 %v685
      %v1940 = vunpack.c.l.b16 %v686
      %v1941 = vunpack.c.l.b16 %v687
      %v1942 = vunpack.c.l.b16 %v688
      %v1943 = vunpack.c.l.b16 %v689
      %v1944 = vunpack.c.l.b16 %v690
      %v1945 = vunpack.c.l.b16 %v691
      %v1946 = vunpack.c.l.b16 %v692
      %v1947 = vunpack.c.l.b16 %v693
      %v1948 = vunpack.c.l.b16 %v694
      %v1949 = vunpack.c.l.b16 %v695
      %v1950 = vunpack.c.l.b16 %v696
      %v1951 = vunpack.c.l.b16 %v697
      %v1952 = vunpack.c.l.b16 %v698
      %v1953 = vunpack.c.l.b16 %v699
      %v1954 = vunpack.c.l.b16 %v700
      %v1955 = vunpack.c.l.b16 %v701
      %v1956 = vunpack.c.l.b16 %v702
      %v1957 = vunpack.c.l.b16 %v703
      %v1958 = vunpack.c.l.b16 %v704
      %v1959 = vunpack.c.l.b16 %v705
      %v1960 = vunpack.c.l.b16 %v706
      %v1961 = vunpack.c.l.b16 %v707
      %v1962 = vunpack.c.l.b16 %v708
      %v1963 = vunpack.c.l.b16 %v709
      %v1964 = vunpack.c.l.b16 %v710
      %v1965 = vunpack.c.l.b16 %v711
      %v1966 = vunpack.c.l.b16 %v712
      %v1967 = vunpack.c.l.b16 %v713
      %v1968 = vunpack.c.l.b16 %v714
      %v1969 = vunpack.c.l.b16 %v715
      %v1970 = vunpack.c.l.b16 %v716
      %v1971 = vunpack.c.l.b16 %v717
      %v1972 = vunpack.c.l.b16 %v718
      %v1973 = vunpack.c.l.b16 %v719
      %v1974 = vunpack.c.l.b16 %v720
      %v1975 = vunpack.c.l.b16 %v721
      %v1976 = vunpack.c.l.b16 %v722
      %v1977 = vunpack.c.l.b16 %v723
      %v1978 = vunpack.c.l.b16 %v724
      %v1979 = vunpack.c.l.b16 %v725
      %v1980 = vunpack.c.l.b16 %v726
      %v1981 = vunpack.c.l.b16 %v727
      %v1982 = vunpack.c.l.b16 %v728
      %v1983 = vunpack.c.l.b16 %v729
      %v1984 = vunpack.c.l.b16 %v730
      %v1985 = vunpack.c.l.b16 %v731
      %v1986 = vunpack.c.l.b16 %v732
      %v1987 = vunpack.c.l.b16 %v733
      %v1988 = vpack.c.b16 %v1925, %v1924
      %v1989 = vpack.c.b16 %v1927, %v1926
      %v1990 = vpack.c.b16 %v1929, %v1928
      %v1991 = vpack.c.b16 %v1931, %v1930
      %v1992 = vpack.c.b16 %v1933, %v1932
      %v1993 = vpack.c.b16 %v1935, %v1934
      %v1994 = vpack.c.b16 %v1937, %v1936
      %v1995 = vpack.c.b16 %v1939, %v1938
      %v1996 = vpack.c.b16 %v1941, %v1940
      %v1997 = vpack.c.b16 %v1943, %v1942
      %v1998 = vpack.c.b16 %v1945, %v1944
      %v1999 = vpack.c.b16 %v1947, %v1946
      %v2000 = vpack.c.b16 %v1949, %v1948
      %v2001 = vpack.c.b16 %v1951, %v1950
      %v2002 = vpack.c.b16 %v1953, %v1952
      %v2003 = vpack.c.b16 %v1955, %v1954
      %v2004 = vpack.c.b16 %v1957, %v1956
      %v2005 = vpack.c.b16 %v1959, %v1958
      %v2006 = vpack.c.b16 %v1961, %v1960
      %v2007 = vpack.c.b16 %v1963, %v1962
      %v2008 = vpack.c.b16 %v1965, %v1964
      %v2009 = vpack.c.b16 %v1967, %v1966
      %v2010 = vpack.c.b16 %v1969, %v1968
      %v2011 = vpack.c.b16 %v1971, %v1970
      %v2012 = vpack.c.b16 %v1973, %v1972
      %v2013 = vpack.c.b16 %v1975, %v1974
      %v2014 = vpack.c.b16 %v1977, %v1976
      %v2015 = vpack.c.b16 %v1979, %v1978
      %v2016 = vpack.c.b16 %v1981, %v1980
      %v2017 = vpack.c.b16 %v1983, %v1982
      %v2018 = vpack.c.b16 %v1985, %v1984
      %v2019 = vpack.c.b16 %v1987, %v1986
      %2052 = vmatprep.subr.bf16.mxu0 0
      %2053 = vmatpush1.bf16.msra.mxu0 %v1995
      %2054 = vmatprep.subr.bf16.mxu0 0
      %2055 = vmatpush1.bf16.msra.mxu0 %v1994
      %2056 = vmatprep.subr.bf16.mxu0 0
      %2057 = vmatpush1.bf16.msra.mxu0 %v1993
      %2058 = vmatprep.subr.bf16.mxu0 0
      %2059 = vmatpush1.bf16.msra.mxu0 %v1992
      %2060 = vmatprep.subr.bf16.mxu0 0
      %2061 = vmatpush1.bf16.msra.mxu0 %v1991
      %2062 = vmatprep.subr.bf16.mxu0 0
      %2063 = vmatpush1.bf16.msra.mxu0 %v1990
      %2064 = vmatprep.subr.bf16.mxu0 0
      %2065 = vmatpush1.bf16.msra.mxu0 %v1989
      %2066 = vmatprep.subr.bf16.mxu0 0
      %2067 = vmatpush1.bf16.msra.mxu0 %v1988
      %2068 = vmatprep.subr.bf16.mxu0 0
      %2069 = vmatpush2.bf16.msra.mxu0 %v2003
      %2070 = vmatprep.subr.bf16.mxu0 0
      %2071 = vmatpush2.bf16.msra.mxu0 %v2002
      %2072 = vmatprep.subr.bf16.mxu0 0
      %2073 = vmatpush2.bf16.msra.mxu0 %v2001
      %2074 = vmatprep.subr.bf16.mxu0 0
      %2075 = vmatpush2.bf16.msra.mxu0 %v2000
      %2076 = vmatprep.subr.bf16.mxu0 0
      %2077 = vmatpush2.bf16.msra.mxu0 %v1999
      %2078 = vmatprep.subr.bf16.mxu0 0
      %2079 = vmatpush2.bf16.msra.mxu0 %v1998
      %2080 = vmatprep.subr.bf16.mxu0 0
      %2081 = vmatpush2.bf16.msra.mxu0 %v1997
      %2082 = vmatprep.subr.bf16.mxu0 0
      %2083 = vmatpush2.bf16.msra.mxu0 %v1996
      %2084 = vmatprep.mubr.bf16.mxu0 %v1797
      %2085 = vmatmul.mubr.bf16.gmra.mxu0 %v1796
      %v2086 = vpop.f32.mrf.mxu0
      %v2087 = vadd.f32 %v1638, %v2086
      %v2088 = vpop.f32.mrf.mxu0
      %v2089 = vpop.f32.mrf.mxu0
      %v2090 = vadd.f32 %v1641, %v2089
      %v2091 = vpop.f32.mrf.mxu0
      %2092 = vmatprep.mubr.bf16.mxu0 %v1801
      %2093 = vmatmul.mubr.bf16.gmra.mxu0 %v1800
      %v2094 = vpop.f32.mrf.mxu0
      %v2095 = vadd.f32 %v1646, %v2094
      %v2096 = vpop.f32.mrf.mxu0
      %v2097 = vpop.f32.mrf.mxu0
      %v2098 = vadd.f32 %v1649, %v2097
      %v2099 = vpop.f32.mrf.mxu0
      %2100 = vmatprep.mubr.bf16.mxu0 %v1805
      %2101 = vmatmul.mubr.bf16.gmra.mxu0 %v1804
      %v2102 = vpop.f32.mrf.mxu0
      %v2103 = vadd.f32 %v1654, %v2102
      %v2104 = vpop.f32.mrf.mxu0
      %v2105 = vpop.f32.mrf.mxu0
      %v2106 = vadd.f32 %v1657, %v2105
      %v2107 = vpop.f32.mrf.mxu0
      %2108 = vmatprep.mubr.bf16.mxu0 %v1809
      %2109 = vmatmul.mubr.bf16.gmra.mxu0 %v1808
      %v2110 = vpop.f32.mrf.mxu0
      %v2111 = vadd.f32 %v1662, %v2110
      %v2112 = vpop.f32.mrf.mxu0
      %v2113 = vpop.f32.mrf.mxu0
      %v2114 = vadd.f32 %v1665, %v2113
      %v2115 = vpop.f32.mrf.mxu0
      %2116 = vmatprep.mubr.bf16.mxu0 %v1813
      %2117 = vmatmul.mubr.bf16.gmra.mxu0 %v1812
      %v2118 = vpop.f32.mrf.mxu0
      %v2119 = vadd.f32 %v1670, %v2118
      %v2120 = vpop.f32.mrf.mxu0
      %v2121 = vpop.f32.mrf.mxu0
      %v2122 = vadd.f32 %v1673, %v2121
      %v2123 = vpop.f32.mrf.mxu0
      %2124 = vmatprep.mubr.bf16.mxu0 %v1817
      %2125 = vmatmul.mubr.bf16.gmra.mxu0 %v1816
      %v2126 = vpop.f32.mrf.mxu0
      %v2127 = vadd.f32 %v1678, %v2126
      %v2128 = vpop.f32.mrf.mxu0
      %v2129 = vpop.f32.mrf.mxu0
      %v2130 = vadd.f32 %v1681, %v2129
      %v2131 = vpop.f32.mrf.mxu0
      %2132 = vmatprep.mubr.bf16.mxu0 %v1821
      %2133 = vmatmul.mubr.bf16.gmra.mxu0 %v1820
      %v2134 = vpop.f32.mrf.mxu0
      %v2135 = vadd.f32 %v1686, %v2134
      %v2136 = vpop.f32.mrf.mxu0
      %v2137 = vpop.f32.mrf.mxu0
      %v2138 = vadd.f32 %v1689, %v2137
      %v2139 = vpop.f32.mrf.mxu0
      %2140 = vmatprep.mubr.bf16.mxu0 %v1825
      %2141 = vmatmul.mubr.bf16.gmra.mxu0 %v1824
      %v2142 = vpop.f32.mrf.mxu0
      %v2143 = vadd.f32 %v1694, %v2142
      %v2144 = vpop.f32.mrf.mxu0
      %v2145 = vpop.f32.mrf.mxu0
      %v2146 = vadd.f32 %v1697, %v2145
      %v2147 = vpop.f32.mrf.mxu0
      %2148 = vdwg.mxu0
      %2149 = vmatprep.subr.bf16.mxu0 0
      %2150 = vmatpush1.bf16.msra.mxu0 %v2011
      %2151 = vmatprep.subr.bf16.mxu0 0
      %2152 = vmatpush1.bf16.msra.mxu0 %v2010
      %2153 = vmatprep.subr.bf16.mxu0 0
      %2154 = vmatpush1.bf16.msra.mxu0 %v2009
      %2155 = vmatprep.subr.bf16.mxu0 0
      %2156 = vmatpush1.bf16.msra.mxu0 %v2008
      %2157 = vmatprep.subr.bf16.mxu0 0
      %2158 = vmatpush1.bf16.msra.mxu0 %v2007
      %2159 = vmatprep.subr.bf16.mxu0 0
      %2160 = vmatpush1.bf16.msra.mxu0 %v2006
      %2161 = vmatprep.subr.bf16.mxu0 0
      %2162 = vmatpush1.bf16.msra.mxu0 %v2005
      %2163 = vmatprep.subr.bf16.mxu0 0
      %2164 = vmatpush1.bf16.msra.mxu0 %v2004
      %2165 = vmatprep.subr.bf16.mxu0 0
      %2166 = vmatpush2.bf16.msra.mxu0 %v2019
      %2167 = vmatprep.subr.bf16.mxu0 0
      %2168 = vmatpush2.bf16.msra.mxu0 %v2018
      %2169 = vmatprep.subr.bf16.mxu0 0
      %2170 = vmatpush2.bf16.msra.mxu0 %v2017
      %2171 = vmatprep.subr.bf16.mxu0 0
      %2172 = vmatpush2.bf16.msra.mxu0 %v2016
      %2173 = vmatprep.subr.bf16.mxu0 0
      %2174 = vmatpush2.bf16.msra.mxu0 %v2015
      %2175 = vmatprep.subr.bf16.mxu0 0
      %2176 = vmatpush2.bf16.msra.mxu0 %v2014
      %2177 = vmatprep.subr.bf16.mxu0 0
      %2178 = vmatpush2.bf16.msra.mxu0 %v2013
      %2179 = vmatprep.subr.bf16.mxu0 0
      %2180 = vmatpush2.bf16.msra.mxu0 %v2012
      %2181 = vmatprep.mubr.bf16.mxu0 %v1799
      %2182 = vmatmul.mubr.bf16.gmra.mxu0 %v1798
      %v2183 = vpop.f32.mrf.mxu0
      %v2184 = vadd.f32 %v2087, %v2183
      %v2185 = vpop.f32.mrf.mxu0
      %v2186 = vpop.f32.mrf.mxu0
      %v2187 = vadd.f32 %v2090, %v2186
      %v2188 = vpop.f32.mrf.mxu0
      %2189 = vmatprep.mubr.bf16.mxu0 %v1803
      %2190 = vmatmul.mubr.bf16.gmra.mxu0 %v1802
      %v2191 = vpop.f32.mrf.mxu0
      %v2192 = vadd.f32 %v2095, %v2191
      %v2193 = vpop.f32.mrf.mxu0
      %v2194 = vpop.f32.mrf.mxu0
      %v2195 = vadd.f32 %v2098, %v2194
      %v2196 = vpop.f32.mrf.mxu0
      %2197 = vmatprep.mubr.bf16.mxu0 %v1807
      %2198 = vmatmul.mubr.bf16.gmra.mxu0 %v1806
      %v2199 = vpop.f32.mrf.mxu0
      %v2200 = vadd.f32 %v2103, %v2199
      %v2201 = vpop.f32.mrf.mxu0
      %v2202 = vpop.f32.mrf.mxu0
      %v2203 = vadd.f32 %v2106, %v2202
      %v2204 = vpop.f32.mrf.mxu0
      %2205 = vmatprep.mubr.bf16.mxu0 %v1811
      %2206 = vmatmul.mubr.bf16.gmra.mxu0 %v1810
      %v2207 = vpop.f32.mrf.mxu0
      %v2208 = vadd.f32 %v2111, %v2207
      %v2209 = vpop.f32.mrf.mxu0
      %v2210 = vpop.f32.mrf.mxu0
      %v2211 = vadd.f32 %v2114, %v2210
      %v2212 = vpop.f32.mrf.mxu0
      %2213 = vmatprep.mubr.bf16.mxu0 %v1815
      %2214 = vmatmul.mubr.bf16.gmra.mxu0 %v1814
      %v2215 = vpop.f32.mrf.mxu0
      %v2216 = vadd.f32 %v2119, %v2215
      %v2217 = vpop.f32.mrf.mxu0
      %v2218 = vpop.f32.mrf.mxu0
      %v2219 = vadd.f32 %v2122, %v2218
      %v2220 = vpop.f32.mrf.mxu0
      %2221 = vmatprep.mubr.bf16.mxu0 %v1819
      %2222 = vmatmul.mubr.bf16.gmra.mxu0 %v1818
      %v2223 = vpop.f32.mrf.mxu0
      %v2224 = vadd.f32 %v2127, %v2223
      %v2225 = vpop.f32.mrf.mxu0
      %v2226 = vpop.f32.mrf.mxu0
      %v2227 = vadd.f32 %v2130, %v2226
      %v2228 = vpop.f32.mrf.mxu0
      %2229 = vmatprep.mubr.bf16.mxu0 %v1823
      %2230 = vmatmul.mubr.bf16.gmra.mxu0 %v1822
      %v2231 = vpop.f32.mrf.mxu0
      %v2232 = vadd.f32 %v2135, %v2231
      %v2233 = vpop.f32.mrf.mxu0
      %v2234 = vpop.f32.mrf.mxu0
      %v2235 = vadd.f32 %v2138, %v2234
      %v2236 = vpop.f32.mrf.mxu0
      %2237 = vmatprep.mubr.bf16.mxu0 %v1827
      %2238 = vmatmul.mubr.bf16.gmra.mxu0 %v1826
      %v2239 = vpop.f32.mrf.mxu0
      %v2240 = vadd.f32 %v2143, %v2239
      %v2241 = vpop.f32.mrf.mxu0
      %v2242 = vpop.f32.mrf.mxu0
      %v2243 = vadd.f32 %v2146, %v2242
      %v2244 = vpop.f32.mrf.mxu0
      %2245 = vdwg.mxu0
      %vm2262 = vcmask 1042432
      %vm2263 = vcmask 1046532
      %vm2264 = vmor %vm2262, %vm2263
      %v2265 = vrot.slane %v610, 5
      %v2266 = vrot.slane %v2265, 4
      %v2267 = vrot.slane %v612, 5
      %v2268 = vsel %vm2264, %v2266, %v2267
      %v2269 = vrot.slane %v611, 5
      %v2270 = vrot.slane %v2269, 4
      %v2271 = vrot.slane %v613, 5
      %v2272 = vsel %vm2264, %v2270, %v2271
      %v2273 = vrot.slane %v2267, 4
      %v2274 = vrot.slane %v614, 5
      %v2275 = vsel %vm2264, %v2273, %v2274
      %v2276 = vrot.slane %v2271, 4
      %v2277 = vrot.slane %v615, 5
      %v2278 = vsel %vm2264, %v2276, %v2277
      %v2279 = vrot.slane %v616, 5
      %v2280 = vrot.slane %v2279, 4
      %v2281 = vrot.slane %v618, 5
      %v2282 = vsel %vm2264, %v2280, %v2281
      %v2283 = vrot.slane %v617, 5
      %v2284 = vrot.slane %v2283, 4
      %v2285 = vrot.slane %v619, 5
      %v2286 = vsel %vm2264, %v2284, %v2285
      %v2287 = vrot.slane %v2281, 4
      %v2288 = vrot.slane %v620, 5
      %v2289 = vsel %vm2264, %v2287, %v2288
      %v2290 = vrot.slane %v2285, 4
      %v2291 = vrot.slane %v621, 5
      %v2292 = vsel %vm2264, %v2290, %v2291
      %v2293 = vrot.slane %v622, 5
      %v2294 = vrot.slane %v2293, 4
      %v2295 = vrot.slane %v624, 5
      %v2296 = vsel %vm2264, %v2294, %v2295
      %v2297 = vrot.slane %v623, 5
      %v2298 = vrot.slane %v2297, 4
      %v2299 = vrot.slane %v625, 5
      %v2300 = vsel %vm2264, %v2298, %v2299
      %v2301 = vrot.slane %v2295, 4
      %v2302 = vrot.slane %v626, 5
      %v2303 = vsel %vm2264, %v2301, %v2302
      %v2304 = vrot.slane %v2299, 4
      %v2305 = vrot.slane %v627, 5
      %v2306 = vsel %vm2264, %v2304, %v2305
      %v2307 = vrot.slane %v628, 5
      %v2308 = vrot.slane %v2307, 4
      %v2309 = vrot.slane %v630, 5
      %v2310 = vsel %vm2264, %v2308, %v2309
      %v2311 = vrot.slane %v629, 5
      %v2312 = vrot.slane %v2311, 4
      %v2313 = vrot.slane %v631, 5
      %v2314 = vsel %vm2264, %v2312, %v2313
      %v2315 = vrot.slane %v2309, 4
      %v2316 = vrot.slane %v632, 5
      %v2317 = vsel %vm2264, %v2315, %v2316
      %v2318 = vrot.slane %v2313, 4
      %v2319 = vrot.slane %v633, 5
      %v2320 = vsel %vm2264, %v2318, %v2319
      %v2321 = vrot.slane %v634, 5
      %v2322 = vrot.slane %v2321, 4
      %v2323 = vrot.slane %v636, 5
      %v2324 = vsel %vm2264, %v2322, %v2323
      %v2325 = vrot.slane %v635, 5
      %v2326 = vrot.slane %v2325, 4
      %v2327 = vrot.slane %v637, 5
      %v2328 = vsel %vm2264, %v2326, %v2327
      %v2329 = vrot.slane %v2323, 4
      %v2330 = vrot.slane %v638, 5
      %v2331 = vsel %vm2264, %v2329, %v2330
      %v2332 = vrot.slane %v2327, 4
      %v2333 = vrot.slane %v639, 5
      %v2334 = vsel %vm2264, %v2332, %v2333
      %v2335 = vrot.slane %v640, 5
      %v2336 = vrot.slane %v2335, 4
      %v2337 = vrot.slane %v642, 5
      %v2338 = vsel %vm2264, %v2336, %v2337
      %v2339 = vrot.slane %v641, 5
      %v2340 = vrot.slane %v2339, 4
      %v2341 = vrot.slane %v643, 5
      %v2342 = vsel %vm2264, %v2340, %v2341
      %v2343 = vrot.slane %v2337, 4
      %v2344 = vrot.slane %v644, 5
      %v2345 = vsel %vm2264, %v2343, %v2344
      %v2346 = vrot.slane %v2341, 4
      %v2347 = vrot.slane %v645, 5
      %v2348 = vsel %vm2264, %v2346, %v2347
      %v2349 = vrot.slane %v646, 5
      %v2350 = vrot.slane %v2349, 4
      %v2351 = vrot.slane %v648, 5
      %v2352 = vsel %vm2264, %v2350, %v2351
      %v2353 = vrot.slane %v647, 5
      %v2354 = vrot.slane %v2353, 4
      %v2355 = vrot.slane %v649, 5
      %v2356 = vsel %vm2264, %v2354, %v2355
      %v2357 = vrot.slane %v2351, 4
      %v2358 = vrot.slane %v650, 5
      %v2359 = vsel %vm2264, %v2357, %v2358
      %v2360 = vrot.slane %v2355, 4
      %v2361 = vrot.slane %v651, 5
      %v2362 = vsel %vm2264, %v2360, %v2361
      %v2363 = vrot.slane %v652, 5
      %v2364 = vrot.slane %v2363, 4
      %v2365 = vrot.slane %v654, 5
      %v2366 = vsel %vm2264, %v2364, %v2365
      %v2367 = vrot.slane %v653, 5
      %v2368 = vrot.slane %v2367, 4
      %v2369 = vrot.slane %v655, 5
      %v2370 = vsel %vm2264, %v2368, %v2369
      %v2371 = vrot.slane %v2365, 4
      %v2372 = vrot.slane %v656, 5
      %v2373 = vsel %vm2264, %v2371, %v2372
      %v2374 = vrot.slane %v2369, 4
      %v2375 = vrot.slane %v657, 5
      %v2376 = vsel %vm2264, %v2374, %v2375
      %s2377 = scalar_lea.vmem %s1, 512
      %v2378 = vld [vmem:[%s2377] sm:$0xf]
      %v2379 = vld [vmem:[%s2377 + $0x4] sm:$0xf]
      %v2380 = vld [vmem:[%s2377 + $0x8] sm:$0xf]
      %v2381 = vld [vmem:[%s2377 + $0xc] sm:$0xf]
      %v2382 = vld [vmem:[%s2377 + $0x10] sm:$0xf]
      %v2383 = vld [vmem:[%s2377 + $0x14] sm:$0xf]
      %v2384 = vld [vmem:[%s2377 + $0x18] sm:$0xf]
      %v2385 = vld [vmem:[%s2377 + $0x1c] sm:$0xf]
      %v2386 = vld [vmem:[%s2377 + $0x20] sm:$0xf]
      %v2387 = vld [vmem:[%s2377 + $0x24] sm:$0xf]
      %v2388 = vld [vmem:[%s2377 + $0x28] sm:$0xf]
      %v2389 = vld [vmem:[%s2377 + $0x2c] sm:$0xf]
      %v2390 = vld [vmem:[%s2377 + $0x30] sm:$0xf]
      %v2391 = vld [vmem:[%s2377 + $0x34] sm:$0xf]
      %v2392 = vld [vmem:[%s2377 + $0x38] sm:$0xf]
      %v2393 = vld [vmem:[%s2377 + $0x3c] sm:$0xf]
      %v2394 = vld [vmem:[%s2377 + $0x40] sm:$0xf]
      %v2395 = vld [vmem:[%s2377 + $0x44] sm:$0xf]
      %v2396 = vld [vmem:[%s2377 + $0x48] sm:$0xf]
      %v2397 = vld [vmem:[%s2377 + $0x4c] sm:$0xf]
      %v2398 = vld [vmem:[%s2377 + $0x50] sm:$0xf]
      %v2399 = vld [vmem:[%s2377 + $0x54] sm:$0xf]
      %v2400 = vld [vmem:[%s2377 + $0x58] sm:$0xf]
      %v2401 = vld [vmem:[%s2377 + $0x5c] sm:$0xf]
      %v2402 = vld [vmem:[%s2377 + $0x60] sm:$0xf]
      %v2403 = vld [vmem:[%s2377 + $0x64] sm:$0xf]
      %v2404 = vld [vmem:[%s2377 + $0x68] sm:$0xf]
      %v2405 = vld [vmem:[%s2377 + $0x6c] sm:$0xf]
      %v2406 = vld [vmem:[%s2377 + $0x70] sm:$0xf]
      %v2407 = vld [vmem:[%s2377 + $0x74] sm:$0xf]
      %v2408 = vld [vmem:[%s2377 + $0x78] sm:$0xf]
      %v2409 = vld [vmem:[%s2377 + $0x7c] sm:$0xf]
      %v2410 = vld [vmem:[%s2377 + $0x80] sm:$0xf]
      %v2411 = vld [vmem:[%s2377 + $0x84] sm:$0xf]
      %v2412 = vld [vmem:[%s2377 + $0x88] sm:$0xf]
      %v2413 = vld [vmem:[%s2377 + $0x8c] sm:$0xf]
      %v2414 = vld [vmem:[%s2377 + $0x90] sm:$0xf]
      %v2415 = vld [vmem:[%s2377 + $0x94] sm:$0xf]
      %v2416 = vld [vmem:[%s2377 + $0x98] sm:$0xf]
      %v2417 = vld [vmem:[%s2377 + $0x9c] sm:$0xf]
      %v2418 = vld [vmem:[%s2377 + $0xa0] sm:$0xf]
      %v2419 = vld [vmem:[%s2377 + $0xa4] sm:$0xf]
      %v2420 = vld [vmem:[%s2377 + $0xa8] sm:$0xf]
      %v2421 = vld [vmem:[%s2377 + $0xac] sm:$0xf]
      %v2422 = vld [vmem:[%s2377 + $0xb0] sm:$0xf]
      %v2423 = vld [vmem:[%s2377 + $0xb4] sm:$0xf]
      %v2424 = vld [vmem:[%s2377 + $0xb8] sm:$0xf]
      %v2425 = vld [vmem:[%s2377 + $0xbc] sm:$0xf]
      %v2426 = vld [vmem:[%s2377 + $0xc0] sm:$0xf]
      %v2427 = vld [vmem:[%s2377 + $0xc4] sm:$0xf]
      %v2428 = vld [vmem:[%s2377 + $0xc8] sm:$0xf]
      %v2429 = vld [vmem:[%s2377 + $0xcc] sm:$0xf]
      %v2430 = vld [vmem:[%s2377 + $0xd0] sm:$0xf]
      %v2431 = vld [vmem:[%s2377 + $0xd4] sm:$0xf]
      %v2432 = vld [vmem:[%s2377 + $0xd8] sm:$0xf]
      %v2433 = vld [vmem:[%s2377 + $0xdc] sm:$0xf]
      %v2434 = vld [vmem:[%s2377 + $0xe0] sm:$0xf]
      %v2435 = vld [vmem:[%s2377 + $0xe4] sm:$0xf]
      %v2436 = vld [vmem:[%s2377 + $0xe8] sm:$0xf]
      %v2437 = vld [vmem:[%s2377 + $0xec] sm:$0xf]
      %v2438 = vld [vmem:[%s2377 + $0xf0] sm:$0xf]
      %v2439 = vld [vmem:[%s2377 + $0xf4] sm:$0xf]
      %v2440 = vld [vmem:[%s2377 + $0xf8] sm:$0xf]
      %v2441 = vld [vmem:[%s2377 + $0xfc] sm:$0xf]
      %v2442 = vunpack.c.l.b16 %v2268
      %v2443 = vunpack.c.h.b16 %v2268
      %v2444 = vunpack.c.l.b16 %v2272
      %v2445 = vunpack.c.h.b16 %v2272
      %v2446 = vunpack.c.l.b16 %v2275
      %v2447 = vunpack.c.h.b16 %v2275
      %v2448 = vunpack.c.l.b16 %v2278
      %v2449 = vunpack.c.h.b16 %v2278
      %v2450 = vunpack.c.l.b16 %v2282
      %v2451 = vunpack.c.h.b16 %v2282
      %v2452 = vunpack.c.l.b16 %v2286
      %v2453 = vunpack.c.h.b16 %v2286
      %v2454 = vunpack.c.l.b16 %v2289
      %v2455 = vunpack.c.h.b16 %v2289
      %v2456 = vunpack.c.l.b16 %v2292
      %v2457 = vunpack.c.h.b16 %v2292
      %v2458 = vunpack.c.l.b16 %v2296
      %v2459 = vunpack.c.h.b16 %v2296
      %v2460 = vunpack.c.l.b16 %v2300
      %v2461 = vunpack.c.h.b16 %v2300
      %v2462 = vunpack.c.l.b16 %v2303
      %v2463 = vunpack.c.h.b16 %v2303
      %v2464 = vunpack.c.l.b16 %v2306
      %v2465 = vunpack.c.h.b16 %v2306
      %v2466 = vunpack.c.l.b16 %v2310
      %v2467 = vunpack.c.h.b16 %v2310
      %v2468 = vunpack.c.l.b16 %v2314
      %v2469 = vunpack.c.h.b16 %v2314
      %v2470 = vunpack.c.l.b16 %v2317
      %v2471 = vunpack.c.h.b16 %v2317
      %v2472 = vunpack.c.l.b16 %v2320
      %v2473 = vunpack.c.h.b16 %v2320
      %v2474 = vunpack.c.l.b16 %v2324
      %v2475 = vunpack.c.h.b16 %v2324
      %v2476 = vunpack.c.l.b16 %v2328
      %v2477 = vunpack.c.h.b16 %v2328
      %v2478 = vunpack.c.l.b16 %v2331
      %v2479 = vunpack.c.h.b16 %v2331
      %v2480 = vunpack.c.l.b16 %v2334
      %v2481 = vunpack.c.h.b16 %v2334
      %v2482 = vunpack.c.l.b16 %v2338
      %v2483 = vunpack.c.h.b16 %v2338
      %v2484 = vunpack.c.l.b16 %v2342
      %v2485 = vunpack.c.h.b16 %v2342
      %v2486 = vunpack.c.l.b16 %v2345
      %v2487 = vunpack.c.h.b16 %v2345
      %v2488 = vunpack.c.l.b16 %v2348
      %v2489 = vunpack.c.h.b16 %v2348
      %v2490 = vunpack.c.l.b16 %v2352
      %v2491 = vunpack.c.h.b16 %v2352
      %v2492 = vunpack.c.l.b16 %v2356
      %v2493 = vunpack.c.h.b16 %v2356
      %v2494 = vunpack.c.l.b16 %v2359
      %v2495 = vunpack.c.h.b16 %v2359
      %v2496 = vunpack.c.l.b16 %v2362
      %v2497 = vunpack.c.h.b16 %v2362
      %v2498 = vunpack.c.l.b16 %v2366
      %v2499 = vunpack.c.h.b16 %v2366
      %v2500 = vunpack.c.l.b16 %v2370
      %v2501 = vunpack.c.h.b16 %v2370
      %v2502 = vunpack.c.l.b16 %v2373
      %v2503 = vunpack.c.h.b16 %v2373
      %v2504 = vunpack.c.l.b16 %v2376
      %v2505 = vunpack.c.h.b16 %v2376
      %v2506 = vpack.c.b16 %v2446, %v2442
      %v2507 = vpack.c.b16 %v2447, %v2443
      %v2508 = vpack.c.b16 %v2448, %v2444
      %v2509 = vpack.c.b16 %v2449, %v2445
      %v2510 = vpack.c.b16 %v2454, %v2450
      %v2511 = vpack.c.b16 %v2455, %v2451
      %v2512 = vpack.c.b16 %v2456, %v2452
      %v2513 = vpack.c.b16 %v2457, %v2453
      %v2514 = vpack.c.b16 %v2462, %v2458
      %v2515 = vpack.c.b16 %v2463, %v2459
      %v2516 = vpack.c.b16 %v2464, %v2460
      %v2517 = vpack.c.b16 %v2465, %v2461
      %v2518 = vpack.c.b16 %v2470, %v2466
      %v2519 = vpack.c.b16 %v2471, %v2467
      %v2520 = vpack.c.b16 %v2472, %v2468
      %v2521 = vpack.c.b16 %v2473, %v2469
      %v2522 = vpack.c.b16 %v2478, %v2474
      %v2523 = vpack.c.b16 %v2479, %v2475
      %v2524 = vpack.c.b16 %v2480, %v2476
      %v2525 = vpack.c.b16 %v2481, %v2477
      %v2526 = vpack.c.b16 %v2486, %v2482
      %v2527 = vpack.c.b16 %v2487, %v2483
      %v2528 = vpack.c.b16 %v2488, %v2484
      %v2529 = vpack.c.b16 %v2489, %v2485
      %v2530 = vpack.c.b16 %v2494, %v2490
      %v2531 = vpack.c.b16 %v2495, %v2491
      %v2532 = vpack.c.b16 %v2496, %v2492
      %v2533 = vpack.c.b16 %v2497, %v2493
      %v2534 = vpack.c.b16 %v2502, %v2498
      %v2535 = vpack.c.b16 %v2503, %v2499
      %v2536 = vpack.c.b16 %v2504, %v2500
      %v2537 = vpack.c.b16 %v2505, %v2501
      %v2634 = vunpack.c.l.b16 %v2378
      %v2635 = vunpack.c.l.b16 %v2379
      %v2636 = vunpack.c.l.b16 %v2380
      %v2637 = vunpack.c.l.b16 %v2381
      %v2638 = vunpack.c.l.b16 %v2382
      %v2639 = vunpack.c.l.b16 %v2383
      %v2640 = vunpack.c.l.b16 %v2384
      %v2641 = vunpack.c.l.b16 %v2385
      %v2642 = vunpack.c.l.b16 %v2386
      %v2643 = vunpack.c.l.b16 %v2387
      %v2644 = vunpack.c.l.b16 %v2388
      %v2645 = vunpack.c.l.b16 %v2389
      %v2646 = vunpack.c.l.b16 %v2390
      %v2647 = vunpack.c.l.b16 %v2391
      %v2648 = vunpack.c.l.b16 %v2392
      %v2649 = vunpack.c.l.b16 %v2393
      %v2650 = vunpack.c.l.b16 %v2394
      %v2651 = vunpack.c.l.b16 %v2395
      %v2652 = vunpack.c.l.b16 %v2396
      %v2653 = vunpack.c.l.b16 %v2397
      %v2654 = vunpack.c.l.b16 %v2398
      %v2655 = vunpack.c.l.b16 %v2399
      %v2656 = vunpack.c.l.b16 %v2400
      %v2657 = vunpack.c.l.b16 %v2401
      %v2658 = vunpack.c.l.b16 %v2402
      %v2659 = vunpack.c.l.b16 %v2403
      %v2660 = vunpack.c.l.b16 %v2404
      %v2661 = vunpack.c.l.b16 %v2405
      %v2662 = vunpack.c.l.b16 %v2406
      %v2663 = vunpack.c.l.b16 %v2407
      %v2664 = vunpack.c.l.b16 %v2408
      %v2665 = vunpack.c.l.b16 %v2409
      %v2666 = vunpack.c.l.b16 %v2410
      %v2667 = vunpack.c.l.b16 %v2411
      %v2668 = vunpack.c.l.b16 %v2412
      %v2669 = vunpack.c.l.b16 %v2413
      %v2670 = vunpack.c.l.b16 %v2414
      %v2671 = vunpack.c.l.b16 %v2415
      %v2672 = vunpack.c.l.b16 %v2416
      %v2673 = vunpack.c.l.b16 %v2417
      %v2674 = vunpack.c.l.b16 %v2418
      %v2675 = vunpack.c.l.b16 %v2419
      %v2676 = vunpack.c.l.b16 %v2420
      %v2677 = vunpack.c.l.b16 %v2421
      %v2678 = vunpack.c.l.b16 %v2422
      %v2679 = vunpack.c.l.b16 %v2423
      %v2680 = vunpack.c.l.b16 %v2424
      %v2681 = vunpack.c.l.b16 %v2425
      %v2682 = vunpack.c.l.b16 %v2426
      %v2683 = vunpack.c.l.b16 %v2427
      %v2684 = vunpack.c.l.b16 %v2428
      %v2685 = vunpack.c.l.b16 %v2429
      %v2686 = vunpack.c.l.b16 %v2430
      %v2687 = vunpack.c.l.b16 %v2431
      %v2688 = vunpack.c.l.b16 %v2432
      %v2689 = vunpack.c.l.b16 %v2433
      %v2690 = vunpack.c.l.b16 %v2434
      %v2691 = vunpack.c.l.b16 %v2435
      %v2692 = vunpack.c.l.b16 %v2436
      %v2693 = vunpack.c.l.b16 %v2437
      %v2694 = vunpack.c.l.b16 %v2438
      %v2695 = vunpack.c.l.b16 %v2439
      %v2696 = vunpack.c.l.b16 %v2440
      %v2697 = vunpack.c.l.b16 %v2441
      %v2698 = vpack.c.b16 %v2635, %v2634
      %v2699 = vpack.c.b16 %v2637, %v2636
      %v2700 = vpack.c.b16 %v2639, %v2638
      %v2701 = vpack.c.b16 %v2641, %v2640
      %v2702 = vpack.c.b16 %v2643, %v2642
      %v2703 = vpack.c.b16 %v2645, %v2644
      %v2704 = vpack.c.b16 %v2647, %v2646
      %v2705 = vpack.c.b16 %v2649, %v2648
      %v2706 = vpack.c.b16 %v2651, %v2650
      %v2707 = vpack.c.b16 %v2653, %v2652
      %v2708 = vpack.c.b16 %v2655, %v2654
      %v2709 = vpack.c.b16 %v2657, %v2656
      %v2710 = vpack.c.b16 %v2659, %v2658
      %v2711 = vpack.c.b16 %v2661, %v2660
      %v2712 = vpack.c.b16 %v2663, %v2662
      %v2713 = vpack.c.b16 %v2665, %v2664
      %v2714 = vpack.c.b16 %v2667, %v2666
      %v2715 = vpack.c.b16 %v2669, %v2668
      %v2716 = vpack.c.b16 %v2671, %v2670
      %v2717 = vpack.c.b16 %v2673, %v2672
      %v2718 = vpack.c.b16 %v2675, %v2674
      %v2719 = vpack.c.b16 %v2677, %v2676
      %v2720 = vpack.c.b16 %v2679, %v2678
      %v2721 = vpack.c.b16 %v2681, %v2680
      %v2722 = vpack.c.b16 %v2683, %v2682
      %v2723 = vpack.c.b16 %v2685, %v2684
      %v2724 = vpack.c.b16 %v2687, %v2686
      %v2725 = vpack.c.b16 %v2689, %v2688
      %v2726 = vpack.c.b16 %v2691, %v2690
      %v2727 = vpack.c.b16 %v2693, %v2692
      %v2728 = vpack.c.b16 %v2695, %v2694
      %v2729 = vpack.c.b16 %v2697, %v2696
      %2762 = vmatprep.subr.bf16.mxu0 0
      %2763 = vmatpush1.bf16.msra.mxu0 %v2705
      %2764 = vmatprep.subr.bf16.mxu0 0
      %2765 = vmatpush1.bf16.msra.mxu0 %v2704
      %2766 = vmatprep.subr.bf16.mxu0 0
      %2767 = vmatpush1.bf16.msra.mxu0 %v2703
      %2768 = vmatprep.subr.bf16.mxu0 0
      %2769 = vmatpush1.bf16.msra.mxu0 %v2702
      %2770 = vmatprep.subr.bf16.mxu0 0
      %2771 = vmatpush1.bf16.msra.mxu0 %v2701
      %2772 = vmatprep.subr.bf16.mxu0 0
      %2773 = vmatpush1.bf16.msra.mxu0 %v2700
      %2774 = vmatprep.subr.bf16.mxu0 0
      %2775 = vmatpush1.bf16.msra.mxu0 %v2699
      %2776 = vmatprep.subr.bf16.mxu0 0
      %2777 = vmatpush1.bf16.msra.mxu0 %v2698
      %2778 = vmatprep.subr.bf16.mxu0 0
      %2779 = vmatpush2.bf16.msra.mxu0 %v2713
      %2780 = vmatprep.subr.bf16.mxu0 0
      %2781 = vmatpush2.bf16.msra.mxu0 %v2712
      %2782 = vmatprep.subr.bf16.mxu0 0
      %2783 = vmatpush2.bf16.msra.mxu0 %v2711
      %2784 = vmatprep.subr.bf16.mxu0 0
      %2785 = vmatpush2.bf16.msra.mxu0 %v2710
      %2786 = vmatprep.subr.bf16.mxu0 0
      %2787 = vmatpush2.bf16.msra.mxu0 %v2709
      %2788 = vmatprep.subr.bf16.mxu0 0
      %2789 = vmatpush2.bf16.msra.mxu0 %v2708
      %2790 = vmatprep.subr.bf16.mxu0 0
      %2791 = vmatpush2.bf16.msra.mxu0 %v2707
      %2792 = vmatprep.subr.bf16.mxu0 0
      %2793 = vmatpush2.bf16.msra.mxu0 %v2706
      %2794 = vmatprep.mubr.bf16.mxu0 %v2507
      %2795 = vmatmul.mubr.bf16.gmra.mxu0 %v2506
      %v2796 = vpop.f32.mrf.mxu0
      %v2797 = vadd.f32 0.0, %v2796
      %v2798 = vpop.f32.mrf.mxu0
      %v2799 = vpop.f32.mrf.mxu0
      %v2800 = vadd.f32 0.0, %v2799
      %v2801 = vpop.f32.mrf.mxu0
      %2802 = vmatprep.mubr.bf16.mxu0 %v2511
      %2803 = vmatmul.mubr.bf16.gmra.mxu0 %v2510
      %v2804 = vpop.f32.mrf.mxu0
      %v2805 = vadd.f32 0.0, %v2804
      %v2806 = vpop.f32.mrf.mxu0
      %v2807 = vpop.f32.mrf.mxu0
      %v2808 = vadd.f32 0.0, %v2807
      %v2809 = vpop.f32.mrf.mxu0
      %2810 = vmatprep.mubr.bf16.mxu0 %v2515
      %2811 = vmatmul.mubr.bf16.gmra.mxu0 %v2514
      %v2812 = vpop.f32.mrf.mxu0
      %v2813 = vadd.f32 0.0, %v2812
      %v2814 = vpop.f32.mrf.mxu0
      %v2815 = vpop.f32.mrf.mxu0
      %v2816 = vadd.f32 0.0, %v2815
      %v2817 = vpop.f32.mrf.mxu0
      %2818 = vmatprep.mubr.bf16.mxu0 %v2519
      %2819 = vmatmul.mubr.bf16.gmra.mxu0 %v2518
      %v2820 = vpop.f32.mrf.mxu0
      %v2821 = vadd.f32 0.0, %v2820
      %v2822 = vpop.f32.mrf.mxu0
      %v2823 = vpop.f32.mrf.mxu0
      %v2824 = vadd.f32 0.0, %v2823
      %v2825 = vpop.f32.mrf.mxu0
      %2826 = vmatprep.mubr.bf16.mxu0 %v2523
      %2827 = vmatmul.mubr.bf16.gmra.mxu0 %v2522
      %v2828 = vpop.f32.mrf.mxu0
      %v2829 = vadd.f32 0.0, %v2828
      %v2830 = vpop.f32.mrf.mxu0
      %v2831 = vpop.f32.mrf.mxu0
      %v2832 = vadd.f32 0.0, %v2831
      %v2833 = vpop.f32.mrf.mxu0
      %2834 = vmatprep.mubr.bf16.mxu0 %v2527
      %2835 = vmatmul.mubr.bf16.gmra.mxu0 %v2526
      %v2836 = vpop.f32.mrf.mxu0
      %v2837 = vadd.f32 0.0, %v2836
      %v2838 = vpop.f32.mrf.mxu0
      %v2839 = vpop.f32.mrf.mxu0
      %v2840 = vadd.f32 0.0, %v2839
      %v2841 = vpop.f32.mrf.mxu0
      %2842 = vmatprep.mubr.bf16.mxu0 %v2531
      %2843 = vmatmul.mubr.bf16.gmra.mxu0 %v2530
      %v2844 = vpop.f32.mrf.mxu0
      %v2845 = vadd.f32 0.0, %v2844
      %v2846 = vpop.f32.mrf.mxu0
      %v2847 = vpop.f32.mrf.mxu0
      %v2848 = vadd.f32 0.0, %v2847
      %v2849 = vpop.f32.mrf.mxu0
      %2850 = vmatprep.mubr.bf16.mxu0 %v2535
      %2851 = vmatmul.mubr.bf16.gmra.mxu0 %v2534
      %v2852 = vpop.f32.mrf.mxu0
      %v2853 = vadd.f32 0.0, %v2852
      %v2854 = vpop.f32.mrf.mxu0
      %v2855 = vpop.f32.mrf.mxu0
      %v2856 = vadd.f32 0.0, %v2855
      %v2857 = vpop.f32.mrf.mxu0
      %2858 = vdwg.mxu0
      %2859 = vmatprep.subr.bf16.mxu0 0
      %2860 = vmatpush1.bf16.msra.mxu0 %v2721
      %2861 = vmatprep.subr.bf16.mxu0 0
      %2862 = vmatpush1.bf16.msra.mxu0 %v2720
      %2863 = vmatprep.subr.bf16.mxu0 0
      %2864 = vmatpush1.bf16.msra.mxu0 %v2719
      %2865 = vmatprep.subr.bf16.mxu0 0
      %2866 = vmatpush1.bf16.msra.mxu0 %v2718
      %2867 = vmatprep.subr.bf16.mxu0 0
      %2868 = vmatpush1.bf16.msra.mxu0 %v2717
      %2869 = vmatprep.subr.bf16.mxu0 0
      %2870 = vmatpush1.bf16.msra.mxu0 %v2716
      %2871 = vmatprep.subr.bf16.mxu0 0
      %2872 = vmatpush1.bf16.msra.mxu0 %v2715
      %2873 = vmatprep.subr.bf16.mxu0 0
      %2874 = vmatpush1.bf16.msra.mxu0 %v2714
      %2875 = vmatprep.subr.bf16.mxu0 0
      %2876 = vmatpush2.bf16.msra.mxu0 %v2729
      %2877 = vmatprep.subr.bf16.mxu0 0
      %2878 = vmatpush2.bf16.msra.mxu0 %v2728
      %2879 = vmatprep.subr.bf16.mxu0 0
      %2880 = vmatpush2.bf16.msra.mxu0 %v2727
      %2881 = vmatprep.subr.bf16.mxu0 0
      %2882 = vmatpush2.bf16.msra.mxu0 %v2726
      %2883 = vmatprep.subr.bf16.mxu0 0
      %2884 = vmatpush2.bf16.msra.mxu0 %v2725
      %2885 = vmatprep.subr.bf16.mxu0 0
      %2886 = vmatpush2.bf16.msra.mxu0 %v2724
      %2887 = vmatprep.subr.bf16.mxu0 0
      %2888 = vmatpush2.bf16.msra.mxu0 %v2723
      %2889 = vmatprep.subr.bf16.mxu0 0
      %2890 = vmatpush2.bf16.msra.mxu0 %v2722
      %2891 = vmatprep.mubr.bf16.mxu0 %v2509
      %2892 = vmatmul.mubr.bf16.gmra.mxu0 %v2508
      %v2893 = vpop.f32.mrf.mxu0
      %v2894 = vadd.f32 %v2797, %v2893
      %v2895 = vpop.f32.mrf.mxu0
      %v2896 = vpop.f32.mrf.mxu0
      %v2897 = vadd.f32 %v2800, %v2896
      %v2898 = vpop.f32.mrf.mxu0
      %2899 = vmatprep.mubr.bf16.mxu0 %v2513
      %2900 = vmatmul.mubr.bf16.gmra.mxu0 %v2512
      %v2901 = vpop.f32.mrf.mxu0
      %v2902 = vadd.f32 %v2805, %v2901
      %v2903 = vpop.f32.mrf.mxu0
      %v2904 = vpop.f32.mrf.mxu0
      %v2905 = vadd.f32 %v2808, %v2904
      %v2906 = vpop.f32.mrf.mxu0
      %2907 = vmatprep.mubr.bf16.mxu0 %v2517
      %2908 = vmatmul.mubr.bf16.gmra.mxu0 %v2516
      %v2909 = vpop.f32.mrf.mxu0
      %v2910 = vadd.f32 %v2813, %v2909
      %v2911 = vpop.f32.mrf.mxu0
      %v2912 = vpop.f32.mrf.mxu0
      %v2913 = vadd.f32 %v2816, %v2912
      %v2914 = vpop.f32.mrf.mxu0
      %2915 = vmatprep.mubr.bf16.mxu0 %v2521
      %2916 = vmatmul.mubr.bf16.gmra.mxu0 %v2520
      %v2917 = vpop.f32.mrf.mxu0
      %v2918 = vadd.f32 %v2821, %v2917
      %v2919 = vpop.f32.mrf.mxu0
      %v2920 = vpop.f32.mrf.mxu0
      %v2921 = vadd.f32 %v2824, %v2920
      %v2922 = vpop.f32.mrf.mxu0
      %2923 = vmatprep.mubr.bf16.mxu0 %v2525
      %2924 = vmatmul.mubr.bf16.gmra.mxu0 %v2524
      %v2925 = vpop.f32.mrf.mxu0
      %v2926 = vadd.f32 %v2829, %v2925
      %v2927 = vpop.f32.mrf.mxu0
      %v2928 = vpop.f32.mrf.mxu0
      %v2929 = vadd.f32 %v2832, %v2928
      %v2930 = vpop.f32.mrf.mxu0
      %2931 = vmatprep.mubr.bf16.mxu0 %v2529
      %2932 = vmatmul.mubr.bf16.gmra.mxu0 %v2528
      %v2933 = vpop.f32.mrf.mxu0
      %v2934 = vadd.f32 %v2837, %v2933
      %v2935 = vpop.f32.mrf.mxu0
      %v2936 = vpop.f32.mrf.mxu0
      %v2937 = vadd.f32 %v2840, %v2936
      %v2938 = vpop.f32.mrf.mxu0
      %2939 = vmatprep.mubr.bf16.mxu0 %v2533
      %2940 = vmatmul.mubr.bf16.gmra.mxu0 %v2532
      %v2941 = vpop.f32.mrf.mxu0
      %v2942 = vadd.f32 %v2845, %v2941
      %v2943 = vpop.f32.mrf.mxu0
      %v2944 = vpop.f32.mrf.mxu0
      %v2945 = vadd.f32 %v2848, %v2944
      %v2946 = vpop.f32.mrf.mxu0
      %2947 = vmatprep.mubr.bf16.mxu0 %v2537
      %2948 = vmatmul.mubr.bf16.gmra.mxu0 %v2536
      %v2949 = vpop.f32.mrf.mxu0
      %v2950 = vadd.f32 %v2853, %v2949
      %v2951 = vpop.f32.mrf.mxu0
      %v2952 = vpop.f32.mrf.mxu0
      %v2953 = vadd.f32 %v2856, %v2952
      %v2954 = vpop.f32.mrf.mxu0
      %2955 = vdwg.mxu0
      %v2956 = vadd.f32 %v2184, %v2894
      %v2957 = vadd.f32 %v2187, %v2897
      %v2958 = vadd.f32 %v2192, %v2902
      %v2959 = vadd.f32 %v2195, %v2905
      %v2960 = vadd.f32 %v2200, %v2910
      %v2961 = vadd.f32 %v2203, %v2913
      %v2962 = vadd.f32 %v2208, %v2918
      %v2963 = vadd.f32 %v2211, %v2921
      %v2964 = vadd.f32 %v2216, %v2926
      %v2965 = vadd.f32 %v2219, %v2929
      %v2966 = vadd.f32 %v2224, %v2934
      %v2967 = vadd.f32 %v2227, %v2937
      %v2968 = vadd.f32 %v2232, %v2942
      %v2969 = vadd.f32 %v2235, %v2945
      %v2970 = vadd.f32 %v2240, %v2950
      %v2971 = vadd.f32 %v2243, %v2953
      %s2972 = scalar_lea.vmem %s1, 768
      %v2973 = vld [vmem:[%s2972] sm:$0xf]
      %v2974 = vld [vmem:[%s2972 + $0x4] sm:$0xf]
      %v2975 = vld [vmem:[%s2972 + $0x8] sm:$0xf]
      %v2976 = vld [vmem:[%s2972 + $0xc] sm:$0xf]
      %v2977 = vld [vmem:[%s2972 + $0x10] sm:$0xf]
      %v2978 = vld [vmem:[%s2972 + $0x14] sm:$0xf]
      %v2979 = vld [vmem:[%s2972 + $0x18] sm:$0xf]
      %v2980 = vld [vmem:[%s2972 + $0x1c] sm:$0xf]
      %v2981 = vld [vmem:[%s2972 + $0x20] sm:$0xf]
      %v2982 = vld [vmem:[%s2972 + $0x24] sm:$0xf]
      %v2983 = vld [vmem:[%s2972 + $0x28] sm:$0xf]
      %v2984 = vld [vmem:[%s2972 + $0x2c] sm:$0xf]
      %v2985 = vld [vmem:[%s2972 + $0x30] sm:$0xf]
      %v2986 = vld [vmem:[%s2972 + $0x34] sm:$0xf]
      %v2987 = vld [vmem:[%s2972 + $0x38] sm:$0xf]
      %v2988 = vld [vmem:[%s2972 + $0x3c] sm:$0xf]
      %v2989 = vld [vmem:[%s2972 + $0x40] sm:$0xf]
      %v2990 = vld [vmem:[%s2972 + $0x44] sm:$0xf]
      %v2991 = vld [vmem:[%s2972 + $0x48] sm:$0xf]
      %v2992 = vld [vmem:[%s2972 + $0x4c] sm:$0xf]
      %v2993 = vld [vmem:[%s2972 + $0x50] sm:$0xf]
      %v2994 = vld [vmem:[%s2972 + $0x54] sm:$0xf]
      %v2995 = vld [vmem:[%s2972 + $0x58] sm:$0xf]
      %v2996 = vld [vmem:[%s2972 + $0x5c] sm:$0xf]
      %v2997 = vld [vmem:[%s2972 + $0x60] sm:$0xf]
      %v2998 = vld [vmem:[%s2972 + $0x64] sm:$0xf]
      %v2999 = vld [vmem:[%s2972 + $0x68] sm:$0xf]
      %v3000 = vld [vmem:[%s2972 + $0x6c] sm:$0xf]
      %v3001 = vld [vmem:[%s2972 + $0x70] sm:$0xf]
      %v3002 = vld [vmem:[%s2972 + $0x74] sm:$0xf]
      %v3003 = vld [vmem:[%s2972 + $0x78] sm:$0xf]
      %v3004 = vld [vmem:[%s2972 + $0x7c] sm:$0xf]
      %v3005 = vld [vmem:[%s2972 + $0x80] sm:$0xf]
      %v3006 = vld [vmem:[%s2972 + $0x84] sm:$0xf]
      %v3007 = vld [vmem:[%s2972 + $0x88] sm:$0xf]
      %v3008 = vld [vmem:[%s2972 + $0x8c] sm:$0xf]
      %v3009 = vld [vmem:[%s2972 + $0x90] sm:$0xf]
      %v3010 = vld [vmem:[%s2972 + $0x94] sm:$0xf]
      %v3011 = vld [vmem:[%s2972 + $0x98] sm:$0xf]
      %v3012 = vld [vmem:[%s2972 + $0x9c] sm:$0xf]
      %v3013 = vld [vmem:[%s2972 + $0xa0] sm:$0xf]
      %v3014 = vld [vmem:[%s2972 + $0xa4] sm:$0xf]
      %v3015 = vld [vmem:[%s2972 + $0xa8] sm:$0xf]
      %v3016 = vld [vmem:[%s2972 + $0xac] sm:$0xf]
      %v3017 = vld [vmem:[%s2972 + $0xb0] sm:$0xf]
      %v3018 = vld [vmem:[%s2972 + $0xb4] sm:$0xf]
      %v3019 = vld [vmem:[%s2972 + $0xb8] sm:$0xf]
      %v3020 = vld [vmem:[%s2972 + $0xbc] sm:$0xf]
      %v3021 = vld [vmem:[%s2972 + $0xc0] sm:$0xf]
      %v3022 = vld [vmem:[%s2972 + $0xc4] sm:$0xf]
      %v3023 = vld [vmem:[%s2972 + $0xc8] sm:$0xf]
      %v3024 = vld [vmem:[%s2972 + $0xcc] sm:$0xf]
      %v3025 = vld [vmem:[%s2972 + $0xd0] sm:$0xf]
      %v3026 = vld [vmem:[%s2972 + $0xd4] sm:$0xf]
      %v3027 = vld [vmem:[%s2972 + $0xd8] sm:$0xf]
      %v3028 = vld [vmem:[%s2972 + $0xdc] sm:$0xf]
      %v3029 = vld [vmem:[%s2972 + $0xe0] sm:$0xf]
      %v3030 = vld [vmem:[%s2972 + $0xe4] sm:$0xf]
      %v3031 = vld [vmem:[%s2972 + $0xe8] sm:$0xf]
      %v3032 = vld [vmem:[%s2972 + $0xec] sm:$0xf]
      %v3033 = vld [vmem:[%s2972 + $0xf0] sm:$0xf]
      %v3034 = vld [vmem:[%s2972 + $0xf4] sm:$0xf]
      %v3035 = vld [vmem:[%s2972 + $0xf8] sm:$0xf]
      %v3036 = vld [vmem:[%s2972 + $0xfc] sm:$0xf]
      %v3041 = vunpack.c.l.b16 %v658
      %v3042 = vunpack.c.h.b16 %v658
      %v3043 = vunpack.c.l.b16 %v659
      %v3044 = vunpack.c.h.b16 %v659
      %v3045 = vunpack.c.l.b16 %v660
      %v3046 = vunpack.c.h.b16 %v660
      %v3047 = vunpack.c.l.b16 %v661
      %v3048 = vunpack.c.h.b16 %v661
      %v3049 = vpack.c.b16 %v3045, %v3041
      %v3050 = vpack.c.b16 %v3046, %v3042
      %v3051 = vpack.c.b16 %v3047, %v3043
      %v3052 = vpack.c.b16 %v3048, %v3044
      %v3121 = vunpack.c.l.b16 %v2973
      %v3122 = vunpack.c.l.b16 %v2974
      %v3123 = vunpack.c.l.b16 %v2975
      %v3124 = vunpack.c.l.b16 %v2976
      %v3125 = vunpack.c.l.b16 %v2977
      %v3126 = vunpack.c.l.b16 %v2978
      %v3127 = vunpack.c.l.b16 %v2979
      %v3128 = vunpack.c.l.b16 %v2980
      %v3129 = vunpack.c.l.b16 %v2981
      %v3130 = vunpack.c.l.b16 %v2982
      %v3131 = vunpack.c.l.b16 %v2983
      %v3132 = vunpack.c.l.b16 %v2984
      %v3133 = vunpack.c.l.b16 %v2985
      %v3134 = vunpack.c.l.b16 %v2986
      %v3135 = vunpack.c.l.b16 %v2987
      %v3136 = vunpack.c.l.b16 %v2988
      %v3137 = vunpack.c.l.b16 %v2989
      %v3138 = vunpack.c.l.b16 %v2990
      %v3139 = vunpack.c.l.b16 %v2991
      %v3140 = vunpack.c.l.b16 %v2992
      %v3141 = vunpack.c.l.b16 %v2993
      %v3142 = vunpack.c.l.b16 %v2994
      %v3143 = vunpack.c.l.b16 %v2995
      %v3144 = vunpack.c.l.b16 %v2996
      %v3145 = vunpack.c.l.b16 %v2997
      %v3146 = vunpack.c.l.b16 %v2998
      %v3147 = vunpack.c.l.b16 %v2999
      %v3148 = vunpack.c.l.b16 %v3000
      %v3149 = vunpack.c.l.b16 %v3001
      %v3150 = vunpack.c.l.b16 %v3002
      %v3151 = vunpack.c.l.b16 %v3003
      %v3152 = vunpack.c.l.b16 %v3004
      %v3153 = vunpack.c.l.b16 %v3005
      %v3154 = vunpack.c.l.b16 %v3006
      %v3155 = vunpack.c.l.b16 %v3007
      %v3156 = vunpack.c.l.b16 %v3008
      %v3157 = vunpack.c.l.b16 %v3009
      %v3158 = vunpack.c.l.b16 %v3010
      %v3159 = vunpack.c.l.b16 %v3011
      %v3160 = vunpack.c.l.b16 %v3012
      %v3161 = vunpack.c.l.b16 %v3013
      %v3162 = vunpack.c.l.b16 %v3014
      %v3163 = vunpack.c.l.b16 %v3015
      %v3164 = vunpack.c.l.b16 %v3016
      %v3165 = vunpack.c.l.b16 %v3017
      %v3166 = vunpack.c.l.b16 %v3018
      %v3167 = vunpack.c.l.b16 %v3019
      %v3168 = vunpack.c.l.b16 %v3020
      %v3169 = vunpack.c.l.b16 %v3021
      %v3170 = vunpack.c.l.b16 %v3022
      %v3171 = vunpack.c.l.b16 %v3023
      %v3172 = vunpack.c.l.b16 %v3024
      %v3173 = vunpack.c.l.b16 %v3025
      %v3174 = vunpack.c.l.b16 %v3026
      %v3175 = vunpack.c.l.b16 %v3027
      %v3176 = vunpack.c.l.b16 %v3028
      %v3177 = vunpack.c.l.b16 %v3029
      %v3178 = vunpack.c.l.b16 %v3030
      %v3179 = vunpack.c.l.b16 %v3031
      %v3180 = vunpack.c.l.b16 %v3032
      %v3181 = vunpack.c.l.b16 %v3033
      %v3182 = vunpack.c.l.b16 %v3034
      %v3183 = vunpack.c.l.b16 %v3035
      %v3184 = vunpack.c.l.b16 %v3036
      %v3185 = vpack.c.b16 %v3122, %v3121
      %v3186 = vpack.c.b16 %v3124, %v3123
      %v3187 = vpack.c.b16 %v3126, %v3125
      %v3188 = vpack.c.b16 %v3128, %v3127
      %v3189 = vpack.c.b16 %v3130, %v3129
      %v3190 = vpack.c.b16 %v3132, %v3131
      %v3191 = vpack.c.b16 %v3134, %v3133
      %v3192 = vpack.c.b16 %v3136, %v3135
      %v3193 = vpack.c.b16 %v3138, %v3137
      %v3194 = vpack.c.b16 %v3140, %v3139
      %v3195 = vpack.c.b16 %v3142, %v3141
      %v3196 = vpack.c.b16 %v3144, %v3143
      %v3197 = vpack.c.b16 %v3146, %v3145
      %v3198 = vpack.c.b16 %v3148, %v3147
      %v3199 = vpack.c.b16 %v3150, %v3149
      %v3200 = vpack.c.b16 %v3152, %v3151
      %v3201 = vpack.c.b16 %v3154, %v3153
      %v3202 = vpack.c.b16 %v3156, %v3155
      %v3203 = vpack.c.b16 %v3158, %v3157
      %v3204 = vpack.c.b16 %v3160, %v3159
      %v3205 = vpack.c.b16 %v3162, %v3161
      %v3206 = vpack.c.b16 %v3164, %v3163
      %v3207 = vpack.c.b16 %v3166, %v3165
      %v3208 = vpack.c.b16 %v3168, %v3167
      %v3209 = vpack.c.b16 %v3170, %v3169
      %v3210 = vpack.c.b16 %v3172, %v3171
      %v3211 = vpack.c.b16 %v3174, %v3173
      %v3212 = vpack.c.b16 %v3176, %v3175
      %v3213 = vpack.c.b16 %v3178, %v3177
      %v3214 = vpack.c.b16 %v3180, %v3179
      %v3215 = vpack.c.b16 %v3182, %v3181
      %v3216 = vpack.c.b16 %v3184, %v3183
      %3249 = vmatprep.subr.bf16.mxu0 0
      %3250 = vmatpush1.bf16.msra.mxu0 %v3192
      %3251 = vmatprep.subr.bf16.mxu0 0
      %3252 = vmatpush1.bf16.msra.mxu0 %v3191
      %3253 = vmatprep.subr.bf16.mxu0 0
      %3254 = vmatpush1.bf16.msra.mxu0 %v3190
      %3255 = vmatprep.subr.bf16.mxu0 0
      %3256 = vmatpush1.bf16.msra.mxu0 %v3189
      %3257 = vmatprep.subr.bf16.mxu0 0
      %3258 = vmatpush1.bf16.msra.mxu0 %v3188
      %3259 = vmatprep.subr.bf16.mxu0 0
      %3260 = vmatpush1.bf16.msra.mxu0 %v3187
      %3261 = vmatprep.subr.bf16.mxu0 0
      %3262 = vmatpush1.bf16.msra.mxu0 %v3186
      %3263 = vmatprep.subr.bf16.mxu0 0
      %3264 = vmatpush1.bf16.msra.mxu0 %v3185
      %3265 = vmatprep.subr.bf16.mxu0 0
      %3266 = vmatpush2.bf16.msra.mxu0 %v3200
      %3267 = vmatprep.subr.bf16.mxu0 0
      %3268 = vmatpush2.bf16.msra.mxu0 %v3199
      %3269 = vmatprep.subr.bf16.mxu0 0
      %3270 = vmatpush2.bf16.msra.mxu0 %v3198
      %3271 = vmatprep.subr.bf16.mxu0 0
      %3272 = vmatpush2.bf16.msra.mxu0 %v3197
      %3273 = vmatprep.subr.bf16.mxu0 0
      %3274 = vmatpush2.bf16.msra.mxu0 %v3196
      %3275 = vmatprep.subr.bf16.mxu0 0
      %3276 = vmatpush2.bf16.msra.mxu0 %v3195
      %3277 = vmatprep.subr.bf16.mxu0 0
      %3278 = vmatpush2.bf16.msra.mxu0 %v3194
      %3279 = vmatprep.subr.bf16.mxu0 0
      %3280 = vmatpush2.bf16.msra.mxu0 %v3193
      %3281 = vmatprep.mubr.bf16.mxu0 %v1801
      %3282 = vmatmul.mubr.bf16.gmra.mxu0 %v1800
      %v3283 = vpop.f32.mrf.mxu0
      %v3284 = vadd.f32 0.0, %v3283
      %v3285 = vpop.f32.mrf.mxu0
      %v3286 = vpop.f32.mrf.mxu0
      %v3287 = vadd.f32 0.0, %v3286
      %v3288 = vpop.f32.mrf.mxu0
      %3289 = vmatprep.mubr.bf16.mxu0 %v1805
      %3290 = vmatmul.mubr.bf16.gmra.mxu0 %v1804
      %v3291 = vpop.f32.mrf.mxu0
      %v3292 = vadd.f32 0.0, %v3291
      %v3293 = vpop.f32.mrf.mxu0
      %v3294 = vpop.f32.mrf.mxu0
      %v3295 = vadd.f32 0.0, %v3294
      %v3296 = vpop.f32.mrf.mxu0
      %3297 = vmatprep.mubr.bf16.mxu0 %v1809
      %3298 = vmatmul.mubr.bf16.gmra.mxu0 %v1808
      %v3299 = vpop.f32.mrf.mxu0
      %v3300 = vadd.f32 0.0, %v3299
      %v3301 = vpop.f32.mrf.mxu0
      %v3302 = vpop.f32.mrf.mxu0
      %v3303 = vadd.f32 0.0, %v3302
      %v3304 = vpop.f32.mrf.mxu0
      %3305 = vmatprep.mubr.bf16.mxu0 %v1813
      %3306 = vmatmul.mubr.bf16.gmra.mxu0 %v1812
      %v3307 = vpop.f32.mrf.mxu0
      %v3308 = vadd.f32 0.0, %v3307
      %v3309 = vpop.f32.mrf.mxu0
      %v3310 = vpop.f32.mrf.mxu0
      %v3311 = vadd.f32 0.0, %v3310
      %v3312 = vpop.f32.mrf.mxu0
      %3313 = vmatprep.mubr.bf16.mxu0 %v1817
      %3314 = vmatmul.mubr.bf16.gmra.mxu0 %v1816
      %v3315 = vpop.f32.mrf.mxu0
      %v3316 = vadd.f32 0.0, %v3315
      %v3317 = vpop.f32.mrf.mxu0
      %v3318 = vpop.f32.mrf.mxu0
      %v3319 = vadd.f32 0.0, %v3318
      %v3320 = vpop.f32.mrf.mxu0
      %3321 = vmatprep.mubr.bf16.mxu0 %v1821
      %3322 = vmatmul.mubr.bf16.gmra.mxu0 %v1820
      %v3323 = vpop.f32.mrf.mxu0
      %v3324 = vadd.f32 0.0, %v3323
      %v3325 = vpop.f32.mrf.mxu0
      %v3326 = vpop.f32.mrf.mxu0
      %v3327 = vadd.f32 0.0, %v3326
      %v3328 = vpop.f32.mrf.mxu0
      %3329 = vmatprep.mubr.bf16.mxu0 %v1825
      %3330 = vmatmul.mubr.bf16.gmra.mxu0 %v1824
      %v3331 = vpop.f32.mrf.mxu0
      %v3332 = vadd.f32 0.0, %v3331
      %v3333 = vpop.f32.mrf.mxu0
      %v3334 = vpop.f32.mrf.mxu0
      %v3335 = vadd.f32 0.0, %v3334
      %v3336 = vpop.f32.mrf.mxu0
      %3337 = vmatprep.mubr.bf16.mxu0 %v3050
      %3338 = vmatmul.mubr.bf16.gmra.mxu0 %v3049
      %v3339 = vpop.f32.mrf.mxu0
      %v3340 = vadd.f32 0.0, %v3339
      %v3341 = vpop.f32.mrf.mxu0
      %v3342 = vpop.f32.mrf.mxu0
      %v3343 = vadd.f32 0.0, %v3342
      %v3344 = vpop.f32.mrf.mxu0
      %3345 = vdwg.mxu0
      %3346 = vmatprep.subr.bf16.mxu0 0
      %3347 = vmatpush1.bf16.msra.mxu0 %v3208
      %3348 = vmatprep.subr.bf16.mxu0 0
      %3349 = vmatpush1.bf16.msra.mxu0 %v3207
      %3350 = vmatprep.subr.bf16.mxu0 0
      %3351 = vmatpush1.bf16.msra.mxu0 %v3206
      %3352 = vmatprep.subr.bf16.mxu0 0
      %3353 = vmatpush1.bf16.msra.mxu0 %v3205
      %3354 = vmatprep.subr.bf16.mxu0 0
      %3355 = vmatpush1.bf16.msra.mxu0 %v3204
      %3356 = vmatprep.subr.bf16.mxu0 0
      %3357 = vmatpush1.bf16.msra.mxu0 %v3203
      %3358 = vmatprep.subr.bf16.mxu0 0
      %3359 = vmatpush1.bf16.msra.mxu0 %v3202
      %3360 = vmatprep.subr.bf16.mxu0 0
      %3361 = vmatpush1.bf16.msra.mxu0 %v3201
      %3362 = vmatprep.subr.bf16.mxu0 0
      %3363 = vmatpush2.bf16.msra.mxu0 %v3216
      %3364 = vmatprep.subr.bf16.mxu0 0
      %3365 = vmatpush2.bf16.msra.mxu0 %v3215
      %3366 = vmatprep.subr.bf16.mxu0 0
      %3367 = vmatpush2.bf16.msra.mxu0 %v3214
      %3368 = vmatprep.subr.bf16.mxu0 0
      %3369 = vmatpush2.bf16.msra.mxu0 %v3213
      %3370 = vmatprep.subr.bf16.mxu0 0
      %3371 = vmatpush2.bf16.msra.mxu0 %v3212
      %3372 = vmatprep.subr.bf16.mxu0 0
      %3373 = vmatpush2.bf16.msra.mxu0 %v3211
      %3374 = vmatprep.subr.bf16.mxu0 0
      %3375 = vmatpush2.bf16.msra.mxu0 %v3210
      %3376 = vmatprep.subr.bf16.mxu0 0
      %3377 = vmatpush2.bf16.msra.mxu0 %v3209
      %3378 = vmatprep.mubr.bf16.mxu0 %v1803
      %3379 = vmatmul.mubr.bf16.gmra.mxu0 %v1802
      %v3380 = vpop.f32.mrf.mxu0
      %v3381 = vadd.f32 %v3284, %v3380
      %v3382 = vpop.f32.mrf.mxu0
      %v3383 = vpop.f32.mrf.mxu0
      %v3384 = vadd.f32 %v3287, %v3383
      %v3385 = vpop.f32.mrf.mxu0
      %3386 = vmatprep.mubr.bf16.mxu0 %v1807
      %3387 = vmatmul.mubr.bf16.gmra.mxu0 %v1806
      %v3388 = vpop.f32.mrf.mxu0
      %v3389 = vadd.f32 %v3292, %v3388
      %v3390 = vpop.f32.mrf.mxu0
      %v3391 = vpop.f32.mrf.mxu0
      %v3392 = vadd.f32 %v3295, %v3391
      %v3393 = vpop.f32.mrf.mxu0
      %3394 = vmatprep.mubr.bf16.mxu0 %v1811
      %3395 = vmatmul.mubr.bf16.gmra.mxu0 %v1810
      %v3396 = vpop.f32.mrf.mxu0
      %v3397 = vadd.f32 %v3300, %v3396
      %v3398 = vpop.f32.mrf.mxu0
      %v3399 = vpop.f32.mrf.mxu0
      %v3400 = vadd.f32 %v3303, %v3399
      %v3401 = vpop.f32.mrf.mxu0
      %3402 = vmatprep.mubr.bf16.mxu0 %v1815
      %3403 = vmatmul.mubr.bf16.gmra.mxu0 %v1814
      %v3404 = vpop.f32.mrf.mxu0
      %v3405 = vadd.f32 %v3308, %v3404
      %v3406 = vpop.f32.mrf.mxu0
      %v3407 = vpop.f32.mrf.mxu0
      %v3408 = vadd.f32 %v3311, %v3407
      %v3409 = vpop.f32.mrf.mxu0
      %3410 = vmatprep.mubr.bf16.mxu0 %v1819
      %3411 = vmatmul.mubr.bf16.gmra.mxu0 %v1818
      %v3412 = vpop.f32.mrf.mxu0
      %v3413 = vadd.f32 %v3316, %v3412
      %v3414 = vpop.f32.mrf.mxu0
      %v3415 = vpop.f32.mrf.mxu0
      %v3416 = vadd.f32 %v3319, %v3415
      %v3417 = vpop.f32.mrf.mxu0
      %3418 = vmatprep.mubr.bf16.mxu0 %v1823
      %3419 = vmatmul.mubr.bf16.gmra.mxu0 %v1822
      %v3420 = vpop.f32.mrf.mxu0
      %v3421 = vadd.f32 %v3324, %v3420
      %v3422 = vpop.f32.mrf.mxu0
      %v3423 = vpop.f32.mrf.mxu0
      %v3424 = vadd.f32 %v3327, %v3423
      %v3425 = vpop.f32.mrf.mxu0
      %3426 = vmatprep.mubr.bf16.mxu0 %v1827
      %3427 = vmatmul.mubr.bf16.gmra.mxu0 %v1826
      %v3428 = vpop.f32.mrf.mxu0
      %v3429 = vadd.f32 %v3332, %v3428
      %v3430 = vpop.f32.mrf.mxu0
      %v3431 = vpop.f32.mrf.mxu0
      %v3432 = vadd.f32 %v3335, %v3431
      %v3433 = vpop.f32.mrf.mxu0
      %3434 = vmatprep.mubr.bf16.mxu0 %v3052
      %3435 = vmatmul.mubr.bf16.gmra.mxu0 %v3051
      %v3436 = vpop.f32.mrf.mxu0
      %v3437 = vadd.f32 %v3340, %v3436
      %v3438 = vpop.f32.mrf.mxu0
      %v3439 = vpop.f32.mrf.mxu0
      %v3440 = vadd.f32 %v3343, %v3439
      %v3441 = vpop.f32.mrf.mxu0
      %3442 = vdwg.mxu0
      %v3443 = vadd.f32 %v2956, %v3381
      %v3444 = vadd.f32 %v2957, %v3384
      %v3445 = vadd.f32 %v2958, %v3389
      %v3446 = vadd.f32 %v2959, %v3392
      %v3447 = vadd.f32 %v2960, %v3397
      %v3448 = vadd.f32 %v2961, %v3400
      %v3449 = vadd.f32 %v2962, %v3405
      %v3450 = vadd.f32 %v2963, %v3408
      %v3451 = vadd.f32 %v2964, %v3413
      %v3452 = vadd.f32 %v2965, %v3416
      %v3453 = vadd.f32 %v2966, %v3421
      %v3454 = vadd.f32 %v2967, %v3424
      %v3455 = vadd.f32 %v2968, %v3429
      %v3456 = vadd.f32 %v2969, %v3432
      %v3457 = vadd.f32 %v2970, %v3437
      %v3458 = vadd.f32 %v2971, %v3440
      %v3460 = vshrl.u32 %v658, 16
      %v3462 = vrot.slane %v3460, 4
      %v3463 = vshll.u32 %v658, 16
      %v3465 = vrot.slane %v3463, 5
      %v3466 = vor.u32 %v3462, %v3465
      %v3467 = vrot.slane %v3466, 4
      %v3469 = vshll.u32 %v660, 16
      %v3471 = vrot.slane %v3469, 5
      %v3472 = vsel %vm736, %v3467, %v3471
      %v3474 = vshrl.u32 %v659, 16
      %v3476 = vrot.slane %v3474, 4
      %v3477 = vshll.u32 %v659, 16
      %v3479 = vrot.slane %v3477, 5
      %v3480 = vor.u32 %v3476, %v3479
      %v3481 = vrot.slane %v3480, 4
      %v3483 = vshll.u32 %v661, 16
      %v3485 = vrot.slane %v3483, 5
      %v3486 = vsel %vm736, %v3481, %v3485
      %v3487 = vshrl.u32 %v660, 16
      %v3489 = vrot.slane %v3487, 4
      %v3490 = vor.u32 %v3489, %v3471
      %v3491 = vrot.slane %v3490, 4
      %v3493 = vshll.u32 %v662, 16
      %v3495 = vrot.slane %v3493, 5
      %v3496 = vsel %vm736, %v3491, %v3495
      %v3497 = vshrl.u32 %v661, 16
      %v3499 = vrot.slane %v3497, 4
      %v3500 = vor.u32 %v3499, %v3485
      %v3501 = vrot.slane %v3500, 4
      %v3503 = vshll.u32 %v663, 16
      %v3505 = vrot.slane %v3503, 5
      %v3506 = vsel %vm736, %v3501, %v3505
      %s3507 = scalar_lea.vmem %s1, 1024
      %v3508 = vld [vmem:[%s3507] sm:$0xf]
      %v3509 = vld [vmem:[%s3507 + $0x4] sm:$0xf]
      %v3510 = vld [vmem:[%s3507 + $0x8] sm:$0xf]
      %v3511 = vld [vmem:[%s3507 + $0xc] sm:$0xf]
      %v3512 = vld [vmem:[%s3507 + $0x10] sm:$0xf]
      %v3513 = vld [vmem:[%s3507 + $0x14] sm:$0xf]
      %v3514 = vld [vmem:[%s3507 + $0x18] sm:$0xf]
      %v3515 = vld [vmem:[%s3507 + $0x1c] sm:$0xf]
      %v3516 = vld [vmem:[%s3507 + $0x20] sm:$0xf]
      %v3517 = vld [vmem:[%s3507 + $0x24] sm:$0xf]
      %v3518 = vld [vmem:[%s3507 + $0x28] sm:$0xf]
      %v3519 = vld [vmem:[%s3507 + $0x2c] sm:$0xf]
      %v3520 = vld [vmem:[%s3507 + $0x30] sm:$0xf]
      %v3521 = vld [vmem:[%s3507 + $0x34] sm:$0xf]
      %v3522 = vld [vmem:[%s3507 + $0x38] sm:$0xf]
      %v3523 = vld [vmem:[%s3507 + $0x3c] sm:$0xf]
      %v3524 = vld [vmem:[%s3507 + $0x40] sm:$0xf]
      %v3525 = vld [vmem:[%s3507 + $0x44] sm:$0xf]
      %v3526 = vld [vmem:[%s3507 + $0x48] sm:$0xf]
      %v3527 = vld [vmem:[%s3507 + $0x4c] sm:$0xf]
      %v3528 = vld [vmem:[%s3507 + $0x50] sm:$0xf]
      %v3529 = vld [vmem:[%s3507 + $0x54] sm:$0xf]
      %v3530 = vld [vmem:[%s3507 + $0x58] sm:$0xf]
      %v3531 = vld [vmem:[%s3507 + $0x5c] sm:$0xf]
      %v3532 = vld [vmem:[%s3507 + $0x60] sm:$0xf]
      %v3533 = vld [vmem:[%s3507 + $0x64] sm:$0xf]
      %v3534 = vld [vmem:[%s3507 + $0x68] sm:$0xf]
      %v3535 = vld [vmem:[%s3507 + $0x6c] sm:$0xf]
      %v3536 = vld [vmem:[%s3507 + $0x70] sm:$0xf]
      %v3537 = vld [vmem:[%s3507 + $0x74] sm:$0xf]
      %v3538 = vld [vmem:[%s3507 + $0x78] sm:$0xf]
      %v3539 = vld [vmem:[%s3507 + $0x7c] sm:$0xf]
      %v3540 = vld [vmem:[%s3507 + $0x80] sm:$0xf]
      %v3541 = vld [vmem:[%s3507 + $0x84] sm:$0xf]
      %v3542 = vld [vmem:[%s3507 + $0x88] sm:$0xf]
      %v3543 = vld [vmem:[%s3507 + $0x8c] sm:$0xf]
      %v3544 = vld [vmem:[%s3507 + $0x90] sm:$0xf]
      %v3545 = vld [vmem:[%s3507 + $0x94] sm:$0xf]
      %v3546 = vld [vmem:[%s3507 + $0x98] sm:$0xf]
      %v3547 = vld [vmem:[%s3507 + $0x9c] sm:$0xf]
      %v3548 = vld [vmem:[%s3507 + $0xa0] sm:$0xf]
      %v3549 = vld [vmem:[%s3507 + $0xa4] sm:$0xf]
      %v3550 = vld [vmem:[%s3507 + $0xa8] sm:$0xf]
      %v3551 = vld [vmem:[%s3507 + $0xac] sm:$0xf]
      %v3552 = vld [vmem:[%s3507 + $0xb0] sm:$0xf]
      %v3553 = vld [vmem:[%s3507 + $0xb4] sm:$0xf]
      %v3554 = vld [vmem:[%s3507 + $0xb8] sm:$0xf]
      %v3555 = vld [vmem:[%s3507 + $0xbc] sm:$0xf]
      %v3556 = vld [vmem:[%s3507 + $0xc0] sm:$0xf]
      %v3557 = vld [vmem:[%s3507 + $0xc4] sm:$0xf]
      %v3558 = vld [vmem:[%s3507 + $0xc8] sm:$0xf]
      %v3559 = vld [vmem:[%s3507 + $0xcc] sm:$0xf]
      %v3560 = vld [vmem:[%s3507 + $0xd0] sm:$0xf]
      %v3561 = vld [vmem:[%s3507 + $0xd4] sm:$0xf]
      %v3562 = vld [vmem:[%s3507 + $0xd8] sm:$0xf]
      %v3563 = vld [vmem:[%s3507 + $0xdc] sm:$0xf]
      %v3564 = vld [vmem:[%s3507 + $0xe0] sm:$0xf]
      %v3565 = vld [vmem:[%s3507 + $0xe4] sm:$0xf]
      %v3566 = vld [vmem:[%s3507 + $0xe8] sm:$0xf]
      %v3567 = vld [vmem:[%s3507 + $0xec] sm:$0xf]
      %v3568 = vld [vmem:[%s3507 + $0xf0] sm:$0xf]
      %v3569 = vld [vmem:[%s3507 + $0xf4] sm:$0xf]
      %v3570 = vld [vmem:[%s3507 + $0xf8] sm:$0xf]
      %v3571 = vld [vmem:[%s3507 + $0xfc] sm:$0xf]
      %v3572 = vunpack.c.l.b16 %v3472
      %v3573 = vunpack.c.h.b16 %v3472
      %v3574 = vunpack.c.l.b16 %v3486
      %v3575 = vunpack.c.h.b16 %v3486
      %v3576 = vunpack.c.l.b16 %v3496
      %v3577 = vunpack.c.h.b16 %v3496
      %v3578 = vunpack.c.l.b16 %v3506
      %v3579 = vunpack.c.h.b16 %v3506
      %v3580 = vpack.c.b16 %v3576, %v3572
      %v3581 = vpack.c.b16 %v3577, %v3573
      %v3582 = vpack.c.b16 %v3578, %v3574
      %v3583 = vpack.c.b16 %v3579, %v3575
      %v3652 = vunpack.c.l.b16 %v3508
      %v3653 = vunpack.c.l.b16 %v3509
      %v3654 = vunpack.c.l.b16 %v3510
      %v3655 = vunpack.c.l.b16 %v3511
      %v3656 = vunpack.c.l.b16 %v3512
      %v3657 = vunpack.c.l.b16 %v3513
      %v3658 = vunpack.c.l.b16 %v3514
      %v3659 = vunpack.c.l.b16 %v3515
      %v3660 = vunpack.c.l.b16 %v3516
      %v3661 = vunpack.c.l.b16 %v3517
      %v3662 = vunpack.c.l.b16 %v3518
      %v3663 = vunpack.c.l.b16 %v3519
      %v3664 = vunpack.c.l.b16 %v3520
      %v3665 = vunpack.c.l.b16 %v3521
      %v3666 = vunpack.c.l.b16 %v3522
      %v3667 = vunpack.c.l.b16 %v3523
      %v3668 = vunpack.c.l.b16 %v3524
      %v3669 = vunpack.c.l.b16 %v3525
      %v3670 = vunpack.c.l.b16 %v3526
      %v3671 = vunpack.c.l.b16 %v3527
      %v3672 = vunpack.c.l.b16 %v3528
      %v3673 = vunpack.c.l.b16 %v3529
      %v3674 = vunpack.c.l.b16 %v3530
      %v3675 = vunpack.c.l.b16 %v3531
      %v3676 = vunpack.c.l.b16 %v3532
      %v3677 = vunpack.c.l.b16 %v3533
      %v3678 = vunpack.c.l.b16 %v3534
      %v3679 = vunpack.c.l.b16 %v3535
      %v3680 = vunpack.c.l.b16 %v3536
      %v3681 = vunpack.c.l.b16 %v3537
      %v3682 = vunpack.c.l.b16 %v3538
      %v3683 = vunpack.c.l.b16 %v3539
      %v3684 = vunpack.c.l.b16 %v3540
      %v3685 = vunpack.c.l.b16 %v3541
      %v3686 = vunpack.c.l.b16 %v3542
      %v3687 = vunpack.c.l.b16 %v3543
      %v3688 = vunpack.c.l.b16 %v3544
      %v3689 = vunpack.c.l.b16 %v3545
      %v3690 = vunpack.c.l.b16 %v3546
      %v3691 = vunpack.c.l.b16 %v3547
      %v3692 = vunpack.c.l.b16 %v3548
      %v3693 = vunpack.c.l.b16 %v3549
      %v3694 = vunpack.c.l.b16 %v3550
      %v3695 = vunpack.c.l.b16 %v3551
      %v3696 = vunpack.c.l.b16 %v3552
      %v3697 = vunpack.c.l.b16 %v3553
      %v3698 = vunpack.c.l.b16 %v3554
      %v3699 = vunpack.c.l.b16 %v3555
      %v3700 = vunpack.c.l.b16 %v3556
      %v3701 = vunpack.c.l.b16 %v3557
      %v3702 = vunpack.c.l.b16 %v3558
      %v3703 = vunpack.c.l.b16 %v3559
      %v3704 = vunpack.c.l.b16 %v3560
      %v3705 = vunpack.c.l.b16 %v3561
      %v3706 = vunpack.c.l.b16 %v3562
      %v3707 = vunpack.c.l.b16 %v3563
      %v3708 = vunpack.c.l.b16 %v3564
      %v3709 = vunpack.c.l.b16 %v3565
      %v3710 = vunpack.c.l.b16 %v3566
      %v3711 = vunpack.c.l.b16 %v3567
      %v3712 = vunpack.c.l.b16 %v3568
      %v3713 = vunpack.c.l.b16 %v3569
      %v3714 = vunpack.c.l.b16 %v3570
      %v3715 = vunpack.c.l.b16 %v3571
      %v3716 = vpack.c.b16 %v3653, %v3652
      %v3717 = vpack.c.b16 %v3655, %v3654
      %v3718 = vpack.c.b16 %v3657, %v3656
      %v3719 = vpack.c.b16 %v3659, %v3658
      %v3720 = vpack.c.b16 %v3661, %v3660
      %v3721 = vpack.c.b16 %v3663, %v3662
      %v3722 = vpack.c.b16 %v3665, %v3664
      %v3723 = vpack.c.b16 %v3667, %v3666
      %v3724 = vpack.c.b16 %v3669, %v3668
      %v3725 = vpack.c.b16 %v3671, %v3670
      %v3726 = vpack.c.b16 %v3673, %v3672
      %v3727 = vpack.c.b16 %v3675, %v3674
      %v3728 = vpack.c.b16 %v3677, %v3676
      %v3729 = vpack.c.b16 %v3679, %v3678
      %v3730 = vpack.c.b16 %v3681, %v3680
      %v3731 = vpack.c.b16 %v3683, %v3682
      %v3732 = vpack.c.b16 %v3685, %v3684
      %v3733 = vpack.c.b16 %v3687, %v3686
      %v3734 = vpack.c.b16 %v3689, %v3688
      %v3735 = vpack.c.b16 %v3691, %v3690
      %v3736 = vpack.c.b16 %v3693, %v3692
      %v3737 = vpack.c.b16 %v3695, %v3694
      %v3738 = vpack.c.b16 %v3697, %v3696
      %v3739 = vpack.c.b16 %v3699, %v3698
      %v3740 = vpack.c.b16 %v3701, %v3700
      %v3741 = vpack.c.b16 %v3703, %v3702
      %v3742 = vpack.c.b16 %v3705, %v3704
      %v3743 = vpack.c.b16 %v3707, %v3706
      %v3744 = vpack.c.b16 %v3709, %v3708
      %v3745 = vpack.c.b16 %v3711, %v3710
      %v3746 = vpack.c.b16 %v3713, %v3712
      %v3747 = vpack.c.b16 %v3715, %v3714
      %3780 = vmatprep.subr.bf16.mxu0 0
      %3781 = vmatpush1.bf16.msra.mxu0 %v3723
      %3782 = vmatprep.subr.bf16.mxu0 0
      %3783 = vmatpush1.bf16.msra.mxu0 %v3722
      %3784 = vmatprep.subr.bf16.mxu0 0
      %3785 = vmatpush1.bf16.msra.mxu0 %v3721
      %3786 = vmatprep.subr.bf16.mxu0 0
      %3787 = vmatpush1.bf16.msra.mxu0 %v3720
      %3788 = vmatprep.subr.bf16.mxu0 0
      %3789 = vmatpush1.bf16.msra.mxu0 %v3719
      %3790 = vmatprep.subr.bf16.mxu0 0
      %3791 = vmatpush1.bf16.msra.mxu0 %v3718
      %3792 = vmatprep.subr.bf16.mxu0 0
      %3793 = vmatpush1.bf16.msra.mxu0 %v3717
      %3794 = vmatprep.subr.bf16.mxu0 0
      %3795 = vmatpush1.bf16.msra.mxu0 %v3716
      %3796 = vmatprep.subr.bf16.mxu0 0
      %3797 = vmatpush2.bf16.msra.mxu0 %v3731
      %3798 = vmatprep.subr.bf16.mxu0 0
      %3799 = vmatpush2.bf16.msra.mxu0 %v3730
      %3800 = vmatprep.subr.bf16.mxu0 0
      %3801 = vmatpush2.bf16.msra.mxu0 %v3729
      %3802 = vmatprep.subr.bf16.mxu0 0
      %3803 = vmatpush2.bf16.msra.mxu0 %v3728
      %3804 = vmatprep.subr.bf16.mxu0 0
      %3805 = vmatpush2.bf16.msra.mxu0 %v3727
      %3806 = vmatprep.subr.bf16.mxu0 0
      %3807 = vmatpush2.bf16.msra.mxu0 %v3726
      %3808 = vmatprep.subr.bf16.mxu0 0
      %3809 = vmatpush2.bf16.msra.mxu0 %v3725
      %3810 = vmatprep.subr.bf16.mxu0 0
      %3811 = vmatpush2.bf16.msra.mxu0 %v3724
      %3812 = vmatprep.mubr.bf16.mxu0 %v1255
      %3813 = vmatmul.mubr.bf16.gmra.mxu0 %v1254
      %v3814 = vpop.f32.mrf.mxu0
      %v3815 = vadd.f32 0.0, %v3814
      %v3816 = vpop.f32.mrf.mxu0
      %v3817 = vpop.f32.mrf.mxu0
      %v3818 = vadd.f32 0.0, %v3817
      %v3819 = vpop.f32.mrf.mxu0
      %3820 = vmatprep.mubr.bf16.mxu0 %v1259
      %3821 = vmatmul.mubr.bf16.gmra.mxu0 %v1258
      %v3822 = vpop.f32.mrf.mxu0
      %v3823 = vadd.f32 0.0, %v3822
      %v3824 = vpop.f32.mrf.mxu0
      %v3825 = vpop.f32.mrf.mxu0
      %v3826 = vadd.f32 0.0, %v3825
      %v3827 = vpop.f32.mrf.mxu0
      %3828 = vmatprep.mubr.bf16.mxu0 %v1263
      %3829 = vmatmul.mubr.bf16.gmra.mxu0 %v1262
      %v3830 = vpop.f32.mrf.mxu0
      %v3831 = vadd.f32 0.0, %v3830
      %v3832 = vpop.f32.mrf.mxu0
      %v3833 = vpop.f32.mrf.mxu0
      %v3834 = vadd.f32 0.0, %v3833
      %v3835 = vpop.f32.mrf.mxu0
      %3836 = vmatprep.mubr.bf16.mxu0 %v1267
      %3837 = vmatmul.mubr.bf16.gmra.mxu0 %v1266
      %v3838 = vpop.f32.mrf.mxu0
      %v3839 = vadd.f32 0.0, %v3838
      %v3840 = vpop.f32.mrf.mxu0
      %v3841 = vpop.f32.mrf.mxu0
      %v3842 = vadd.f32 0.0, %v3841
      %v3843 = vpop.f32.mrf.mxu0
      %3844 = vmatprep.mubr.bf16.mxu0 %v1271
      %3845 = vmatmul.mubr.bf16.gmra.mxu0 %v1270
      %v3846 = vpop.f32.mrf.mxu0
      %v3847 = vadd.f32 0.0, %v3846
      %v3848 = vpop.f32.mrf.mxu0
      %v3849 = vpop.f32.mrf.mxu0
      %v3850 = vadd.f32 0.0, %v3849
      %v3851 = vpop.f32.mrf.mxu0
      %3852 = vmatprep.mubr.bf16.mxu0 %v1275
      %3853 = vmatmul.mubr.bf16.gmra.mxu0 %v1274
      %v3854 = vpop.f32.mrf.mxu0
      %v3855 = vadd.f32 0.0, %v3854
      %v3856 = vpop.f32.mrf.mxu0
      %v3857 = vpop.f32.mrf.mxu0
      %v3858 = vadd.f32 0.0, %v3857
      %v3859 = vpop.f32.mrf.mxu0
      %3860 = vmatprep.mubr.bf16.mxu0 %v1279
      %3861 = vmatmul.mubr.bf16.gmra.mxu0 %v1278
      %v3862 = vpop.f32.mrf.mxu0
      %v3863 = vadd.f32 0.0, %v3862
      %v3864 = vpop.f32.mrf.mxu0
      %v3865 = vpop.f32.mrf.mxu0
      %v3866 = vadd.f32 0.0, %v3865
      %v3867 = vpop.f32.mrf.mxu0
      %3868 = vmatprep.mubr.bf16.mxu0 %v3581
      %3869 = vmatmul.mubr.bf16.gmra.mxu0 %v3580
      %v3870 = vpop.f32.mrf.mxu0
      %v3871 = vadd.f32 0.0, %v3870
      %v3872 = vpop.f32.mrf.mxu0
      %v3873 = vpop.f32.mrf.mxu0
      %v3874 = vadd.f32 0.0, %v3873
      %v3875 = vpop.f32.mrf.mxu0
      %3876 = vdwg.mxu0
      %3877 = vmatprep.subr.bf16.mxu0 0
      %3878 = vmatpush1.bf16.msra.mxu0 %v3739
      %3879 = vmatprep.subr.bf16.mxu0 0
      %3880 = vmatpush1.bf16.msra.mxu0 %v3738
      %3881 = vmatprep.subr.bf16.mxu0 0
      %3882 = vmatpush1.bf16.msra.mxu0 %v3737
      %3883 = vmatprep.subr.bf16.mxu0 0
      %3884 = vmatpush1.bf16.msra.mxu0 %v3736
      %3885 = vmatprep.subr.bf16.mxu0 0
      %3886 = vmatpush1.bf16.msra.mxu0 %v3735
      %3887 = vmatprep.subr.bf16.mxu0 0
      %3888 = vmatpush1.bf16.msra.mxu0 %v3734
      %3889 = vmatprep.subr.bf16.mxu0 0
      %3890 = vmatpush1.bf16.msra.mxu0 %v3733
      %3891 = vmatprep.subr.bf16.mxu0 0
      %3892 = vmatpush1.bf16.msra.mxu0 %v3732
      %3893 = vmatprep.subr.bf16.mxu0 0
      %3894 = vmatpush2.bf16.msra.mxu0 %v3747
      %3895 = vmatprep.subr.bf16.mxu0 0
      %3896 = vmatpush2.bf16.msra.mxu0 %v3746
      %3897 = vmatprep.subr.bf16.mxu0 0
      %3898 = vmatpush2.bf16.msra.mxu0 %v3745
      %3899 = vmatprep.subr.bf16.mxu0 0
      %3900 = vmatpush2.bf16.msra.mxu0 %v3744
      %3901 = vmatprep.subr.bf16.mxu0 0
      %3902 = vmatpush2.bf16.msra.mxu0 %v3743
      %3903 = vmatprep.subr.bf16.mxu0 0
      %3904 = vmatpush2.bf16.msra.mxu0 %v3742
      %3905 = vmatprep.subr.bf16.mxu0 0
      %3906 = vmatpush2.bf16.msra.mxu0 %v3741
      %3907 = vmatprep.subr.bf16.mxu0 0
      %3908 = vmatpush2.bf16.msra.mxu0 %v3740
      %3909 = vmatprep.mubr.bf16.mxu0 %v1257
      %3910 = vmatmul.mubr.bf16.gmra.mxu0 %v1256
      %v3911 = vpop.f32.mrf.mxu0
      %v3912 = vadd.f32 %v3815, %v3911
      %v3913 = vpop.f32.mrf.mxu0
      %v3914 = vpop.f32.mrf.mxu0
      %v3915 = vadd.f32 %v3818, %v3914
      %v3916 = vpop.f32.mrf.mxu0
      %3917 = vmatprep.mubr.bf16.mxu0 %v1261
      %3918 = vmatmul.mubr.bf16.gmra.mxu0 %v1260
      %v3919 = vpop.f32.mrf.mxu0
      %v3920 = vadd.f32 %v3823, %v3919
      %v3921 = vpop.f32.mrf.mxu0
      %v3922 = vpop.f32.mrf.mxu0
      %v3923 = vadd.f32 %v3826, %v3922
      %v3924 = vpop.f32.mrf.mxu0
      %3925 = vmatprep.mubr.bf16.mxu0 %v1265
      %3926 = vmatmul.mubr.bf16.gmra.mxu0 %v1264
      %v3927 = vpop.f32.mrf.mxu0
      %v3928 = vadd.f32 %v3831, %v3927
      %v3929 = vpop.f32.mrf.mxu0
      %v3930 = vpop.f32.mrf.mxu0
      %v3931 = vadd.f32 %v3834, %v3930
      %v3932 = vpop.f32.mrf.mxu0
      %3933 = vmatprep.mubr.bf16.mxu0 %v1269
      %3934 = vmatmul.mubr.bf16.gmra.mxu0 %v1268
      %v3935 = vpop.f32.mrf.mxu0
      %v3936 = vadd.f32 %v3839, %v3935
      %v3937 = vpop.f32.mrf.mxu0
      %v3938 = vpop.f32.mrf.mxu0
      %v3939 = vadd.f32 %v3842, %v3938
      %v3940 = vpop.f32.mrf.mxu0
      %3941 = vmatprep.mubr.bf16.mxu0 %v1273
      %3942 = vmatmul.mubr.bf16.gmra.mxu0 %v1272
      %v3943 = vpop.f32.mrf.mxu0
      %v3944 = vadd.f32 %v3847, %v3943
      %v3945 = vpop.f32.mrf.mxu0
      %v3946 = vpop.f32.mrf.mxu0
      %v3947 = vadd.f32 %v3850, %v3946
      %v3948 = vpop.f32.mrf.mxu0
      %3949 = vmatprep.mubr.bf16.mxu0 %v1277
      %3950 = vmatmul.mubr.bf16.gmra.mxu0 %v1276
      %v3951 = vpop.f32.mrf.mxu0
      %v3952 = vadd.f32 %v3855, %v3951
      %v3953 = vpop.f32.mrf.mxu0
      %v3954 = vpop.f32.mrf.mxu0
      %v3955 = vadd.f32 %v3858, %v3954
      %v3956 = vpop.f32.mrf.mxu0
      %3957 = vmatprep.mubr.bf16.mxu0 %v1281
      %3958 = vmatmul.mubr.bf16.gmra.mxu0 %v1280
      %v3959 = vpop.f32.mrf.mxu0
      %v3960 = vadd.f32 %v3863, %v3959
      %v3961 = vpop.f32.mrf.mxu0
      %v3962 = vpop.f32.mrf.mxu0
      %v3963 = vadd.f32 %v3866, %v3962
      %v3964 = vpop.f32.mrf.mxu0
      %3965 = vmatprep.mubr.bf16.mxu0 %v3583
      %3966 = vmatmul.mubr.bf16.gmra.mxu0 %v3582
      %v3967 = vpop.f32.mrf.mxu0
      %v3968 = vadd.f32 %v3871, %v3967
      %v3969 = vpop.f32.mrf.mxu0
      %v3970 = vpop.f32.mrf.mxu0
      %v3971 = vadd.f32 %v3874, %v3970
      %v3972 = vpop.f32.mrf.mxu0
      %3973 = vdwg.mxu0
      %v3974 = vadd.f32 %v3443, %v3912
      %v3975 = vadd.f32 %v3444, %v3915
      %v3976 = vadd.f32 %v3445, %v3920
      %v3977 = vadd.f32 %v3446, %v3923
      %v3978 = vadd.f32 %v3447, %v3928
      %v3979 = vadd.f32 %v3448, %v3931
      %v3980 = vadd.f32 %v3449, %v3936
      %v3981 = vadd.f32 %v3450, %v3939
      %v3982 = vadd.f32 %v3451, %v3944
      %v3983 = vadd.f32 %v3452, %v3947
      %v3984 = vadd.f32 %v3453, %v3952
      %v3985 = vadd.f32 %v3454, %v3955
      %v3986 = vadd.f32 %v3455, %v3960
      %v3987 = vadd.f32 %v3456, %v3963
      %v3988 = vadd.f32 %v3457, %v3968
      %v3989 = vadd.f32 %v3458, %v3971
      %v3992 = vrot.slane %v658, 5
      %v3993 = vrot.slane %v3992, 4
      %v3994 = vrot.slane %v660, 5
      %v3995 = vsel %vm2264, %v3993, %v3994
      %v3996 = vrot.slane %v659, 5
      %v3997 = vrot.slane %v3996, 4
      %v3998 = vrot.slane %v661, 5
      %v3999 = vsel %vm2264, %v3997, %v3998
      %v4000 = vrot.slane %v3994, 4
      %v4001 = vrot.slane %v662, 5
      %v4002 = vsel %vm2264, %v4000, %v4001
      %v4003 = vrot.slane %v3998, 4
      %v4004 = vrot.slane %v663, 5
      %v4005 = vsel %vm2264, %v4003, %v4004
      %s4006 = scalar_lea.vmem %s1, 1280
      %v4007 = vld [vmem:[%s4006] sm:$0xf]
      %v4008 = vld [vmem:[%s4006 + $0x4] sm:$0xf]
      %v4009 = vld [vmem:[%s4006 + $0x8] sm:$0xf]
      %v4010 = vld [vmem:[%s4006 + $0xc] sm:$0xf]
      %v4011 = vld [vmem:[%s4006 + $0x10] sm:$0xf]
      %v4012 = vld [vmem:[%s4006 + $0x14] sm:$0xf]
      %v4013 = vld [vmem:[%s4006 + $0x18] sm:$0xf]
      %v4014 = vld [vmem:[%s4006 + $0x1c] sm:$0xf]
      %v4015 = vld [vmem:[%s4006 + $0x20] sm:$0xf]
      %v4016 = vld [vmem:[%s4006 + $0x24] sm:$0xf]
      %v4017 = vld [vmem:[%s4006 + $0x28] sm:$0xf]
      %v4018 = vld [vmem:[%s4006 + $0x2c] sm:$0xf]
      %v4019 = vld [vmem:[%s4006 + $0x30] sm:$0xf]
      %v4020 = vld [vmem:[%s4006 + $0x34] sm:$0xf]
      %v4021 = vld [vmem:[%s4006 + $0x38] sm:$0xf]
      %v4022 = vld [vmem:[%s4006 + $0x3c] sm:$0xf]
      %v4023 = vld [vmem:[%s4006 + $0x40] sm:$0xf]
      %v4024 = vld [vmem:[%s4006 + $0x44] sm:$0xf]
      %v4025 = vld [vmem:[%s4006 + $0x48] sm:$0xf]
      %v4026 = vld [vmem:[%s4006 + $0x4c] sm:$0xf]
      %v4027 = vld [vmem:[%s4006 + $0x50] sm:$0xf]
      %v4028 = vld [vmem:[%s4006 + $0x54] sm:$0xf]
      %v4029 = vld [vmem:[%s4006 + $0x58] sm:$0xf]
      %v4030 = vld [vmem:[%s4006 + $0x5c] sm:$0xf]
      %v4031 = vld [vmem:[%s4006 + $0x60] sm:$0xf]
      %v4032 = vld [vmem:[%s4006 + $0x64] sm:$0xf]
      %v4033 = vld [vmem:[%s4006 + $0x68] sm:$0xf]
      %v4034 = vld [vmem:[%s4006 + $0x6c] sm:$0xf]
      %v4035 = vld [vmem:[%s4006 + $0x70] sm:$0xf]
      %v4036 = vld [vmem:[%s4006 + $0x74] sm:$0xf]
      %v4037 = vld [vmem:[%s4006 + $0x78] sm:$0xf]
      %v4038 = vld [vmem:[%s4006 + $0x7c] sm:$0xf]
      %v4039 = vld [vmem:[%s4006 + $0x80] sm:$0xf]
      %v4040 = vld [vmem:[%s4006 + $0x84] sm:$0xf]
      %v4041 = vld [vmem:[%s4006 + $0x88] sm:$0xf]
      %v4042 = vld [vmem:[%s4006 + $0x8c] sm:$0xf]
      %v4043 = vld [vmem:[%s4006 + $0x90] sm:$0xf]
      %v4044 = vld [vmem:[%s4006 + $0x94] sm:$0xf]
      %v4045 = vld [vmem:[%s4006 + $0x98] sm:$0xf]
      %v4046 = vld [vmem:[%s4006 + $0x9c] sm:$0xf]
      %v4047 = vld [vmem:[%s4006 + $0xa0] sm:$0xf]
      %v4048 = vld [vmem:[%s4006 + $0xa4] sm:$0xf]
      %v4049 = vld [vmem:[%s4006 + $0xa8] sm:$0xf]
      %v4050 = vld [vmem:[%s4006 + $0xac] sm:$0xf]
      %v4051 = vld [vmem:[%s4006 + $0xb0] sm:$0xf]
      %v4052 = vld [vmem:[%s4006 + $0xb4] sm:$0xf]
      %v4053 = vld [vmem:[%s4006 + $0xb8] sm:$0xf]
      %v4054 = vld [vmem:[%s4006 + $0xbc] sm:$0xf]
      %v4055 = vld [vmem:[%s4006 + $0xc0] sm:$0xf]
      %v4056 = vld [vmem:[%s4006 + $0xc4] sm:$0xf]
      %v4057 = vld [vmem:[%s4006 + $0xc8] sm:$0xf]
      %v4058 = vld [vmem:[%s4006 + $0xcc] sm:$0xf]
      %v4059 = vld [vmem:[%s4006 + $0xd0] sm:$0xf]
      %v4060 = vld [vmem:[%s4006 + $0xd4] sm:$0xf]
      %v4061 = vld [vmem:[%s4006 + $0xd8] sm:$0xf]
      %v4062 = vld [vmem:[%s4006 + $0xdc] sm:$0xf]
      %v4063 = vld [vmem:[%s4006 + $0xe0] sm:$0xf]
      %v4064 = vld [vmem:[%s4006 + $0xe4] sm:$0xf]
      %v4065 = vld [vmem:[%s4006 + $0xe8] sm:$0xf]
      %v4066 = vld [vmem:[%s4006 + $0xec] sm:$0xf]
      %v4067 = vld [vmem:[%s4006 + $0xf0] sm:$0xf]
      %v4068 = vld [vmem:[%s4006 + $0xf4] sm:$0xf]
      %v4069 = vld [vmem:[%s4006 + $0xf8] sm:$0xf]
      %v4070 = vld [vmem:[%s4006 + $0xfc] sm:$0xf]
      %v4071 = vunpack.c.l.b16 %v3995
      %v4072 = vunpack.c.h.b16 %v3995
      %v4073 = vunpack.c.l.b16 %v3999
      %v4074 = vunpack.c.h.b16 %v3999
      %v4075 = vunpack.c.l.b16 %v4002
      %v4076 = vunpack.c.h.b16 %v4002
      %v4077 = vunpack.c.l.b16 %v4005
      %v4078 = vunpack.c.h.b16 %v4005
      %v4079 = vpack.c.b16 %v4075, %v4071
      %v4080 = vpack.c.b16 %v4076, %v4072
      %v4081 = vpack.c.b16 %v4077, %v4073
      %v4082 = vpack.c.b16 %v4078, %v4074
      %v4151 = vunpack.c.l.b16 %v4007
      %v4152 = vunpack.c.l.b16 %v4008
      %v4153 = vunpack.c.l.b16 %v4009
      %v4154 = vunpack.c.l.b16 %v4010
      %v4155 = vunpack.c.l.b16 %v4011
      %v4156 = vunpack.c.l.b16 %v4012
      %v4157 = vunpack.c.l.b16 %v4013
      %v4158 = vunpack.c.l.b16 %v4014
      %v4159 = vunpack.c.l.b16 %v4015
      %v4160 = vunpack.c.l.b16 %v4016
      %v4161 = vunpack.c.l.b16 %v4017
      %v4162 = vunpack.c.l.b16 %v4018
      %v4163 = vunpack.c.l.b16 %v4019
      %v4164 = vunpack.c.l.b16 %v4020
      %v4165 = vunpack.c.l.b16 %v4021
      %v4166 = vunpack.c.l.b16 %v4022
      %v4167 = vunpack.c.l.b16 %v4023
      %v4168 = vunpack.c.l.b16 %v4024
      %v4169 = vunpack.c.l.b16 %v4025
      %v4170 = vunpack.c.l.b16 %v4026
      %v4171 = vunpack.c.l.b16 %v4027
      %v4172 = vunpack.c.l.b16 %v4028
      %v4173 = vunpack.c.l.b16 %v4029
      %v4174 = vunpack.c.l.b16 %v4030
      %v4175 = vunpack.c.l.b16 %v4031
      %v4176 = vunpack.c.l.b16 %v4032
      %v4177 = vunpack.c.l.b16 %v4033
      %v4178 = vunpack.c.l.b16 %v4034
      %v4179 = vunpack.c.l.b16 %v4035
      %v4180 = vunpack.c.l.b16 %v4036
      %v4181 = vunpack.c.l.b16 %v4037
      %v4182 = vunpack.c.l.b16 %v4038
      %v4183 = vunpack.c.l.b16 %v4039
      %v4184 = vunpack.c.l.b16 %v4040
      %v4185 = vunpack.c.l.b16 %v4041
      %v4186 = vunpack.c.l.b16 %v4042
      %v4187 = vunpack.c.l.b16 %v4043
      %v4188 = vunpack.c.l.b16 %v4044
      %v4189 = vunpack.c.l.b16 %v4045
      %v4190 = vunpack.c.l.b16 %v4046
      %v4191 = vunpack.c.l.b16 %v4047
      %v4192 = vunpack.c.l.b16 %v4048
      %v4193 = vunpack.c.l.b16 %v4049
      %v4194 = vunpack.c.l.b16 %v4050
      %v4195 = vunpack.c.l.b16 %v4051
      %v4196 = vunpack.c.l.b16 %v4052
      %v4197 = vunpack.c.l.b16 %v4053
      %v4198 = vunpack.c.l.b16 %v4054
      %v4199 = vunpack.c.l.b16 %v4055
      %v4200 = vunpack.c.l.b16 %v4056
      %v4201 = vunpack.c.l.b16 %v4057
      %v4202 = vunpack.c.l.b16 %v4058
      %v4203 = vunpack.c.l.b16 %v4059
      %v4204 = vunpack.c.l.b16 %v4060
      %v4205 = vunpack.c.l.b16 %v4061
      %v4206 = vunpack.c.l.b16 %v4062
      %v4207 = vunpack.c.l.b16 %v4063
      %v4208 = vunpack.c.l.b16 %v4064
      %v4209 = vunpack.c.l.b16 %v4065
      %v4210 = vunpack.c.l.b16 %v4066
      %v4211 = vunpack.c.l.b16 %v4067
      %v4212 = vunpack.c.l.b16 %v4068
      %v4213 = vunpack.c.l.b16 %v4069
      %v4214 = vunpack.c.l.b16 %v4070
      %v4215 = vpack.c.b16 %v4152, %v4151
      %v4216 = vpack.c.b16 %v4154, %v4153
      %v4217 = vpack.c.b16 %v4156, %v4155
      %v4218 = vpack.c.b16 %v4158, %v4157
      %v4219 = vpack.c.b16 %v4160, %v4159
      %v4220 = vpack.c.b16 %v4162, %v4161
      %v4221 = vpack.c.b16 %v4164, %v4163
      %v4222 = vpack.c.b16 %v4166, %v4165
      %v4223 = vpack.c.b16 %v4168, %v4167
      %v4224 = vpack.c.b16 %v4170, %v4169
      %v4225 = vpack.c.b16 %v4172, %v4171
      %v4226 = vpack.c.b16 %v4174, %v4173
      %v4227 = vpack.c.b16 %v4176, %v4175
      %v4228 = vpack.c.b16 %v4178, %v4177
      %v4229 = vpack.c.b16 %v4180, %v4179
      %v4230 = vpack.c.b16 %v4182, %v4181
      %v4231 = vpack.c.b16 %v4184, %v4183
      %v4232 = vpack.c.b16 %v4186, %v4185
      %v4233 = vpack.c.b16 %v4188, %v4187
      %v4234 = vpack.c.b16 %v4190, %v4189
      %v4235 = vpack.c.b16 %v4192, %v4191
      %v4236 = vpack.c.b16 %v4194, %v4193
      %v4237 = vpack.c.b16 %v4196, %v4195
      %v4238 = vpack.c.b16 %v4198, %v4197
      %v4239 = vpack.c.b16 %v4200, %v4199
      %v4240 = vpack.c.b16 %v4202, %v4201
      %v4241 = vpack.c.b16 %v4204, %v4203
      %v4242 = vpack.c.b16 %v4206, %v4205
      %v4243 = vpack.c.b16 %v4208, %v4207
      %v4244 = vpack.c.b16 %v4210, %v4209
      %v4245 = vpack.c.b16 %v4212, %v4211
      %v4246 = vpack.c.b16 %v4214, %v4213
      %4279 = vmatprep.subr.bf16.mxu0 0
      %4280 = vmatpush1.bf16.msra.mxu0 %v4222
      %4281 = vmatprep.subr.bf16.mxu0 0
      %4282 = vmatpush1.bf16.msra.mxu0 %v4221
      %4283 = vmatprep.subr.bf16.mxu0 0
      %4284 = vmatpush1.bf16.msra.mxu0 %v4220
      %4285 = vmatprep.subr.bf16.mxu0 0
      %4286 = vmatpush1.bf16.msra.mxu0 %v4219
      %4287 = vmatprep.subr.bf16.mxu0 0
      %4288 = vmatpush1.bf16.msra.mxu0 %v4218
      %4289 = vmatprep.subr.bf16.mxu0 0
      %4290 = vmatpush1.bf16.msra.mxu0 %v4217
      %4291 = vmatprep.subr.bf16.mxu0 0
      %4292 = vmatpush1.bf16.msra.mxu0 %v4216
      %4293 = vmatprep.subr.bf16.mxu0 0
      %4294 = vmatpush1.bf16.msra.mxu0 %v4215
      %4295 = vmatprep.subr.bf16.mxu0 0
      %4296 = vmatpush2.bf16.msra.mxu0 %v4230
      %4297 = vmatprep.subr.bf16.mxu0 0
      %4298 = vmatpush2.bf16.msra.mxu0 %v4229
      %4299 = vmatprep.subr.bf16.mxu0 0
      %4300 = vmatpush2.bf16.msra.mxu0 %v4228
      %4301 = vmatprep.subr.bf16.mxu0 0
      %4302 = vmatpush2.bf16.msra.mxu0 %v4227
      %4303 = vmatprep.subr.bf16.mxu0 0
      %4304 = vmatpush2.bf16.msra.mxu0 %v4226
      %4305 = vmatprep.subr.bf16.mxu0 0
      %4306 = vmatpush2.bf16.msra.mxu0 %v4225
      %4307 = vmatprep.subr.bf16.mxu0 0
      %4308 = vmatpush2.bf16.msra.mxu0 %v4224
      %4309 = vmatprep.subr.bf16.mxu0 0
      %4310 = vmatpush2.bf16.msra.mxu0 %v4223
      %4311 = vmatprep.mubr.bf16.mxu0 %v2511
      %4312 = vmatmul.mubr.bf16.gmra.mxu0 %v2510
      %v4313 = vpop.f32.mrf.mxu0
      %v4314 = vadd.f32 0.0, %v4313
      %v4315 = vpop.f32.mrf.mxu0
      %v4316 = vpop.f32.mrf.mxu0
      %v4317 = vadd.f32 0.0, %v4316
      %v4318 = vpop.f32.mrf.mxu0
      %4319 = vmatprep.mubr.bf16.mxu0 %v2515
      %4320 = vmatmul.mubr.bf16.gmra.mxu0 %v2514
      %v4321 = vpop.f32.mrf.mxu0
      %v4322 = vadd.f32 0.0, %v4321
      %v4323 = vpop.f32.mrf.mxu0
      %v4324 = vpop.f32.mrf.mxu0
      %v4325 = vadd.f32 0.0, %v4324
      %v4326 = vpop.f32.mrf.mxu0
      %4327 = vmatprep.mubr.bf16.mxu0 %v2519
      %4328 = vmatmul.mubr.bf16.gmra.mxu0 %v2518
      %v4329 = vpop.f32.mrf.mxu0
      %v4330 = vadd.f32 0.0, %v4329
      %v4331 = vpop.f32.mrf.mxu0
      %v4332 = vpop.f32.mrf.mxu0
      %v4333 = vadd.f32 0.0, %v4332
      %v4334 = vpop.f32.mrf.mxu0
      %4335 = vmatprep.mubr.bf16.mxu0 %v2523
      %4336 = vmatmul.mubr.bf16.gmra.mxu0 %v2522
      %v4337 = vpop.f32.mrf.mxu0
      %v4338 = vadd.f32 0.0, %v4337
      %v4339 = vpop.f32.mrf.mxu0
      %v4340 = vpop.f32.mrf.mxu0
      %v4341 = vadd.f32 0.0, %v4340
      %v4342 = vpop.f32.mrf.mxu0
      %4343 = vmatprep.mubr.bf16.mxu0 %v2527
      %4344 = vmatmul.mubr.bf16.gmra.mxu0 %v2526
      %v4345 = vpop.f32.mrf.mxu0
      %v4346 = vadd.f32 0.0, %v4345
      %v4347 = vpop.f32.mrf.mxu0
      %v4348 = vpop.f32.mrf.mxu0
      %v4349 = vadd.f32 0.0, %v4348
      %v4350 = vpop.f32.mrf.mxu0
      %4351 = vmatprep.mubr.bf16.mxu0 %v2531
      %4352 = vmatmul.mubr.bf16.gmra.mxu0 %v2530
      %v4353 = vpop.f32.mrf.mxu0
      %v4354 = vadd.f32 0.0, %v4353
      %v4355 = vpop.f32.mrf.mxu0
      %v4356 = vpop.f32.mrf.mxu0
      %v4357 = vadd.f32 0.0, %v4356
      %v4358 = vpop.f32.mrf.mxu0
      %4359 = vmatprep.mubr.bf16.mxu0 %v2535
      %4360 = vmatmul.mubr.bf16.gmra.mxu0 %v2534
      %v4361 = vpop.f32.mrf.mxu0
      %v4362 = vadd.f32 0.0, %v4361
      %v4363 = vpop.f32.mrf.mxu0
      %v4364 = vpop.f32.mrf.mxu0
      %v4365 = vadd.f32 0.0, %v4364
      %v4366 = vpop.f32.mrf.mxu0
      %4367 = vmatprep.mubr.bf16.mxu0 %v4080
      %4368 = vmatmul.mubr.bf16.gmra.mxu0 %v4079
      %v4369 = vpop.f32.mrf.mxu0
      %v4370 = vadd.f32 0.0, %v4369
      %v4371 = vpop.f32.mrf.mxu0
      %v4372 = vpop.f32.mrf.mxu0
      %v4373 = vadd.f32 0.0, %v4372
      %v4374 = vpop.f32.mrf.mxu0
      %4375 = vdwg.mxu0
      %4376 = vmatprep.subr.bf16.mxu0 0
      %4377 = vmatpush1.bf16.msra.mxu0 %v4238
      %4378 = vmatprep.subr.bf16.mxu0 0
      %4379 = vmatpush1.bf16.msra.mxu0 %v4237
      %4380 = vmatprep.subr.bf16.mxu0 0
      %4381 = vmatpush1.bf16.msra.mxu0 %v4236
      %4382 = vmatprep.subr.bf16.mxu0 0
      %4383 = vmatpush1.bf16.msra.mxu0 %v4235
      %4384 = vmatprep.subr.bf16.mxu0 0
      %4385 = vmatpush1.bf16.msra.mxu0 %v4234
      %4386 = vmatprep.subr.bf16.mxu0 0
      %4387 = vmatpush1.bf16.msra.mxu0 %v4233
      %4388 = vmatprep.subr.bf16.mxu0 0
      %4389 = vmatpush1.bf16.msra.mxu0 %v4232
      %4390 = vmatprep.subr.bf16.mxu0 0
      %4391 = vmatpush1.bf16.msra.mxu0 %v4231
      %4392 = vmatprep.subr.bf16.mxu0 0
      %4393 = vmatpush2.bf16.msra.mxu0 %v4246
      %4394 = vmatprep.subr.bf16.mxu0 0
      %4395 = vmatpush2.bf16.msra.mxu0 %v4245
      %4396 = vmatprep.subr.bf16.mxu0 0
      %4397 = vmatpush2.bf16.msra.mxu0 %v4244
      %4398 = vmatprep.subr.bf16.mxu0 0
      %4399 = vmatpush2.bf16.msra.mxu0 %v4243
      %4400 = vmatprep.subr.bf16.mxu0 0
      %4401 = vmatpush2.bf16.msra.mxu0 %v4242
      %4402 = vmatprep.subr.bf16.mxu0 0
      %4403 = vmatpush2.bf16.msra.mxu0 %v4241
      %4404 = vmatprep.subr.bf16.mxu0 0
      %4405 = vmatpush2.bf16.msra.mxu0 %v4240
      %4406 = vmatprep.subr.bf16.mxu0 0
      %4407 = vmatpush2.bf16.msra.mxu0 %v4239
      %4408 = vmatprep.mubr.bf16.mxu0 %v2513
      %4409 = vmatmul.mubr.bf16.gmra.mxu0 %v2512
      %v4410 = vpop.f32.mrf.mxu0
      %v4411 = vadd.f32 %v4314, %v4410
      %v4412 = vpop.f32.mrf.mxu0
      %v4413 = vpop.f32.mrf.mxu0
      %v4414 = vadd.f32 %v4317, %v4413
      %v4415 = vpop.f32.mrf.mxu0
      %4416 = vmatprep.mubr.bf16.mxu0 %v2517
      %4417 = vmatmul.mubr.bf16.gmra.mxu0 %v2516
      %v4418 = vpop.f32.mrf.mxu0
      %v4419 = vadd.f32 %v4322, %v4418
      %v4420 = vpop.f32.mrf.mxu0
      %v4421 = vpop.f32.mrf.mxu0
      %v4422 = vadd.f32 %v4325, %v4421
      %v4423 = vpop.f32.mrf.mxu0
      %4424 = vmatprep.mubr.bf16.mxu0 %v2521
      %4425 = vmatmul.mubr.bf16.gmra.mxu0 %v2520
      %v4426 = vpop.f32.mrf.mxu0
      %v4427 = vadd.f32 %v4330, %v4426
      %v4428 = vpop.f32.mrf.mxu0
      %v4429 = vpop.f32.mrf.mxu0
      %v4430 = vadd.f32 %v4333, %v4429
      %v4431 = vpop.f32.mrf.mxu0
      %4432 = vmatprep.mubr.bf16.mxu0 %v2525
      %4433 = vmatmul.mubr.bf16.gmra.mxu0 %v2524
      %v4434 = vpop.f32.mrf.mxu0
      %v4435 = vadd.f32 %v4338, %v4434
      %v4436 = vpop.f32.mrf.mxu0
      %v4437 = vpop.f32.mrf.mxu0
      %v4438 = vadd.f32 %v4341, %v4437
      %v4439 = vpop.f32.mrf.mxu0
      %4440 = vmatprep.mubr.bf16.mxu0 %v2529
      %4441 = vmatmul.mubr.bf16.gmra.mxu0 %v2528
      %v4442 = vpop.f32.mrf.mxu0
      %v4443 = vadd.f32 %v4346, %v4442
      %v4444 = vpop.f32.mrf.mxu0
      %v4445 = vpop.f32.mrf.mxu0
      %v4446 = vadd.f32 %v4349, %v4445
      %v4447 = vpop.f32.mrf.mxu0
      %4448 = vmatprep.mubr.bf16.mxu0 %v2533
      %4449 = vmatmul.mubr.bf16.gmra.mxu0 %v2532
      %v4450 = vpop.f32.mrf.mxu0
      %v4451 = vadd.f32 %v4354, %v4450
      %v4452 = vpop.f32.mrf.mxu0
      %v4453 = vpop.f32.mrf.mxu0
      %v4454 = vadd.f32 %v4357, %v4453
      %v4455 = vpop.f32.mrf.mxu0
      %4456 = vmatprep.mubr.bf16.mxu0 %v2537
      %4457 = vmatmul.mubr.bf16.gmra.mxu0 %v2536
      %v4458 = vpop.f32.mrf.mxu0
      %v4459 = vadd.f32 %v4362, %v4458
      %v4460 = vpop.f32.mrf.mxu0
      %v4461 = vpop.f32.mrf.mxu0
      %v4462 = vadd.f32 %v4365, %v4461
      %v4463 = vpop.f32.mrf.mxu0
      %4464 = vmatprep.mubr.bf16.mxu0 %v4082
      %4465 = vmatmul.mubr.bf16.gmra.mxu0 %v4081
      %v4466 = vpop.f32.mrf.mxu0
      %v4467 = vadd.f32 %v4370, %v4466
      %v4468 = vpop.f32.mrf.mxu0
      %v4469 = vpop.f32.mrf.mxu0
      %v4470 = vadd.f32 %v4373, %v4469
      %v4471 = vpop.f32.mrf.mxu0
      %4472 = vdwg.mxu0
      %v4473 = vadd.f32 %v3974, %v4411
      %v4474 = vadd.f32 %v3975, %v4414
      %v4475 = vadd.f32 %v3976, %v4419
      %v4476 = vadd.f32 %v3977, %v4422
      %v4477 = vadd.f32 %v3978, %v4427
      %v4478 = vadd.f32 %v3979, %v4430
      %v4479 = vadd.f32 %v3980, %v4435
      %v4480 = vadd.f32 %v3981, %v4438
      %v4481 = vadd.f32 %v3982, %v4443
      %v4482 = vadd.f32 %v3983, %v4446
      %v4483 = vadd.f32 %v3984, %v4451
      %v4484 = vadd.f32 %v3985, %v4454
      %v4485 = vadd.f32 %v3986, %v4459
      %v4486 = vadd.f32 %v3987, %v4462
      %v4487 = vadd.f32 %v3988, %v4467
      %v4488 = vadd.f32 %v3989, %v4470
      %s4489 = scalar_lea.vmem %s1, 1536
      %v4490 = vld [vmem:[%s4489] sm:$0xf]
      %v4491 = vld [vmem:[%s4489 + $0x4] sm:$0xf]
      %v4492 = vld [vmem:[%s4489 + $0x8] sm:$0xf]
      %v4493 = vld [vmem:[%s4489 + $0xc] sm:$0xf]
      %v4494 = vld [vmem:[%s4489 + $0x10] sm:$0xf]
      %v4495 = vld [vmem:[%s4489 + $0x14] sm:$0xf]
      %v4496 = vld [vmem:[%s4489 + $0x18] sm:$0xf]
      %v4497 = vld [vmem:[%s4489 + $0x1c] sm:$0xf]
      %v4498 = vld [vmem:[%s4489 + $0x20] sm:$0xf]
      %v4499 = vld [vmem:[%s4489 + $0x24] sm:$0xf]
      %v4500 = vld [vmem:[%s4489 + $0x28] sm:$0xf]
      %v4501 = vld [vmem:[%s4489 + $0x2c] sm:$0xf]
      %v4502 = vld [vmem:[%s4489 + $0x30] sm:$0xf]
      %v4503 = vld [vmem:[%s4489 + $0x34] sm:$0xf]
      %v4504 = vld [vmem:[%s4489 + $0x38] sm:$0xf]
      %v4505 = vld [vmem:[%s4489 + $0x3c] sm:$0xf]
      %v4506 = vld [vmem:[%s4489 + $0x40] sm:$0xf]
      %v4507 = vld [vmem:[%s4489 + $0x44] sm:$0xf]
      %v4508 = vld [vmem:[%s4489 + $0x48] sm:$0xf]
      %v4509 = vld [vmem:[%s4489 + $0x4c] sm:$0xf]
      %v4510 = vld [vmem:[%s4489 + $0x50] sm:$0xf]
      %v4511 = vld [vmem:[%s4489 + $0x54] sm:$0xf]
      %v4512 = vld [vmem:[%s4489 + $0x58] sm:$0xf]
      %v4513 = vld [vmem:[%s4489 + $0x5c] sm:$0xf]
      %v4514 = vld [vmem:[%s4489 + $0x60] sm:$0xf]
      %v4515 = vld [vmem:[%s4489 + $0x64] sm:$0xf]
      %v4516 = vld [vmem:[%s4489 + $0x68] sm:$0xf]
      %v4517 = vld [vmem:[%s4489 + $0x6c] sm:$0xf]
      %v4518 = vld [vmem:[%s4489 + $0x70] sm:$0xf]
      %v4519 = vld [vmem:[%s4489 + $0x74] sm:$0xf]
      %v4520 = vld [vmem:[%s4489 + $0x78] sm:$0xf]
      %v4521 = vld [vmem:[%s4489 + $0x7c] sm:$0xf]
      %v4522 = vld [vmem:[%s4489 + $0x80] sm:$0xf]
      %v4523 = vld [vmem:[%s4489 + $0x84] sm:$0xf]
      %v4524 = vld [vmem:[%s4489 + $0x88] sm:$0xf]
      %v4525 = vld [vmem:[%s4489 + $0x8c] sm:$0xf]
      %v4526 = vld [vmem:[%s4489 + $0x90] sm:$0xf]
      %v4527 = vld [vmem:[%s4489 + $0x94] sm:$0xf]
      %v4528 = vld [vmem:[%s4489 + $0x98] sm:$0xf]
      %v4529 = vld [vmem:[%s4489 + $0x9c] sm:$0xf]
      %v4530 = vld [vmem:[%s4489 + $0xa0] sm:$0xf]
      %v4531 = vld [vmem:[%s4489 + $0xa4] sm:$0xf]
      %v4532 = vld [vmem:[%s4489 + $0xa8] sm:$0xf]
      %v4533 = vld [vmem:[%s4489 + $0xac] sm:$0xf]
      %v4534 = vld [vmem:[%s4489 + $0xb0] sm:$0xf]
      %v4535 = vld [vmem:[%s4489 + $0xb4] sm:$0xf]
      %v4536 = vld [vmem:[%s4489 + $0xb8] sm:$0xf]
      %v4537 = vld [vmem:[%s4489 + $0xbc] sm:$0xf]
      %v4538 = vld [vmem:[%s4489 + $0xc0] sm:$0xf]
      %v4539 = vld [vmem:[%s4489 + $0xc4] sm:$0xf]
      %v4540 = vld [vmem:[%s4489 + $0xc8] sm:$0xf]
      %v4541 = vld [vmem:[%s4489 + $0xcc] sm:$0xf]
      %v4542 = vld [vmem:[%s4489 + $0xd0] sm:$0xf]
      %v4543 = vld [vmem:[%s4489 + $0xd4] sm:$0xf]
      %v4544 = vld [vmem:[%s4489 + $0xd8] sm:$0xf]
      %v4545 = vld [vmem:[%s4489 + $0xdc] sm:$0xf]
      %v4546 = vld [vmem:[%s4489 + $0xe0] sm:$0xf]
      %v4547 = vld [vmem:[%s4489 + $0xe4] sm:$0xf]
      %v4548 = vld [vmem:[%s4489 + $0xe8] sm:$0xf]
      %v4549 = vld [vmem:[%s4489 + $0xec] sm:$0xf]
      %v4550 = vld [vmem:[%s4489 + $0xf0] sm:$0xf]
      %v4551 = vld [vmem:[%s4489 + $0xf4] sm:$0xf]
      %v4552 = vld [vmem:[%s4489 + $0xf8] sm:$0xf]
      %v4553 = vld [vmem:[%s4489 + $0xfc] sm:$0xf]
      %v4558 = vunpack.c.l.b16 %v664
      %v4559 = vunpack.c.h.b16 %v664
      %v4560 = vunpack.c.l.b16 %v665
      %v4561 = vunpack.c.h.b16 %v665
      %v4562 = vunpack.c.l.b16 %v666
      %v4563 = vunpack.c.h.b16 %v666
      %v4564 = vunpack.c.l.b16 %v667
      %v4565 = vunpack.c.h.b16 %v667
      %v4566 = vpack.c.b16 %v4562, %v4558
      %v4567 = vpack.c.b16 %v4563, %v4559
      %v4568 = vpack.c.b16 %v4564, %v4560
      %v4569 = vpack.c.b16 %v4565, %v4561
      %v4638 = vunpack.c.l.b16 %v4490
      %v4639 = vunpack.c.l.b16 %v4491
      %v4640 = vunpack.c.l.b16 %v4492
      %v4641 = vunpack.c.l.b16 %v4493
      %v4642 = vunpack.c.l.b16 %v4494
      %v4643 = vunpack.c.l.b16 %v4495
      %v4644 = vunpack.c.l.b16 %v4496
      %v4645 = vunpack.c.l.b16 %v4497
      %v4646 = vunpack.c.l.b16 %v4498
      %v4647 = vunpack.c.l.b16 %v4499
      %v4648 = vunpack.c.l.b16 %v4500
      %v4649 = vunpack.c.l.b16 %v4501
      %v4650 = vunpack.c.l.b16 %v4502
      %v4651 = vunpack.c.l.b16 %v4503
      %v4652 = vunpack.c.l.b16 %v4504
      %v4653 = vunpack.c.l.b16 %v4505
      %v4654 = vunpack.c.l.b16 %v4506
      %v4655 = vunpack.c.l.b16 %v4507
      %v4656 = vunpack.c.l.b16 %v4508
      %v4657 = vunpack.c.l.b16 %v4509
      %v4658 = vunpack.c.l.b16 %v4510
      %v4659 = vunpack.c.l.b16 %v4511
      %v4660 = vunpack.c.l.b16 %v4512
      %v4661 = vunpack.c.l.b16 %v4513
      %v4662 = vunpack.c.l.b16 %v4514
      %v4663 = vunpack.c.l.b16 %v4515
      %v4664 = vunpack.c.l.b16 %v4516
      %v4665 = vunpack.c.l.b16 %v4517
      %v4666 = vunpack.c.l.b16 %v4518
      %v4667 = vunpack.c.l.b16 %v4519
      %v4668 = vunpack.c.l.b16 %v4520
      %v4669 = vunpack.c.l.b16 %v4521
      %v4670 = vunpack.c.l.b16 %v4522
      %v4671 = vunpack.c.l.b16 %v4523
      %v4672 = vunpack.c.l.b16 %v4524
      %v4673 = vunpack.c.l.b16 %v4525
      %v4674 = vunpack.c.l.b16 %v4526
      %v4675 = vunpack.c.l.b16 %v4527
      %v4676 = vunpack.c.l.b16 %v4528
      %v4677 = vunpack.c.l.b16 %v4529
      %v4678 = vunpack.c.l.b16 %v4530
      %v4679 = vunpack.c.l.b16 %v4531
      %v4680 = vunpack.c.l.b16 %v4532
      %v4681 = vunpack.c.l.b16 %v4533
      %v4682 = vunpack.c.l.b16 %v4534
      %v4683 = vunpack.c.l.b16 %v4535
      %v4684 = vunpack.c.l.b16 %v4536
      %v4685 = vunpack.c.l.b16 %v4537
      %v4686 = vunpack.c.l.b16 %v4538
      %v4687 = vunpack.c.l.b16 %v4539
      %v4688 = vunpack.c.l.b16 %v4540
      %v4689 = vunpack.c.l.b16 %v4541
      %v4690 = vunpack.c.l.b16 %v4542
      %v4691 = vunpack.c.l.b16 %v4543
      %v4692 = vunpack.c.l.b16 %v4544
      %v4693 = vunpack.c.l.b16 %v4545
      %v4694 = vunpack.c.l.b16 %v4546
      %v4695 = vunpack.c.l.b16 %v4547
      %v4696 = vunpack.c.l.b16 %v4548
      %v4697 = vunpack.c.l.b16 %v4549
      %v4698 = vunpack.c.l.b16 %v4550
      %v4699 = vunpack.c.l.b16 %v4551
      %v4700 = vunpack.c.l.b16 %v4552
      %v4701 = vunpack.c.l.b16 %v4553
      %v4702 = vpack.c.b16 %v4639, %v4638
      %v4703 = vpack.c.b16 %v4641, %v4640
      %v4704 = vpack.c.b16 %v4643, %v4642
      %v4705 = vpack.c.b16 %v4645, %v4644
      %v4706 = vpack.c.b16 %v4647, %v4646
      %v4707 = vpack.c.b16 %v4649, %v4648
      %v4708 = vpack.c.b16 %v4651, %v4650
      %v4709 = vpack.c.b16 %v4653, %v4652
      %v4710 = vpack.c.b16 %v4655, %v4654
      %v4711 = vpack.c.b16 %v4657, %v4656
      %v4712 = vpack.c.b16 %v4659, %v4658
      %v4713 = vpack.c.b16 %v4661, %v4660
      %v4714 = vpack.c.b16 %v4663, %v4662
      %v4715 = vpack.c.b16 %v4665, %v4664
      %v4716 = vpack.c.b16 %v4667, %v4666
      %v4717 = vpack.c.b16 %v4669, %v4668
      %v4718 = vpack.c.b16 %v4671, %v4670
      %v4719 = vpack.c.b16 %v4673, %v4672
      %v4720 = vpack.c.b16 %v4675, %v4674
      %v4721 = vpack.c.b16 %v4677, %v4676
      %v4722 = vpack.c.b16 %v4679, %v4678
      %v4723 = vpack.c.b16 %v4681, %v4680
      %v4724 = vpack.c.b16 %v4683, %v4682
      %v4725 = vpack.c.b16 %v4685, %v4684
      %v4726 = vpack.c.b16 %v4687, %v4686
      %v4727 = vpack.c.b16 %v4689, %v4688
      %v4728 = vpack.c.b16 %v4691, %v4690
      %v4729 = vpack.c.b16 %v4693, %v4692
      %v4730 = vpack.c.b16 %v4695, %v4694
      %v4731 = vpack.c.b16 %v4697, %v4696
      %v4732 = vpack.c.b16 %v4699, %v4698
      %v4733 = vpack.c.b16 %v4701, %v4700
      %4766 = vmatprep.subr.bf16.mxu0 0
      %4767 = vmatpush1.bf16.msra.mxu0 %v4709
      %4768 = vmatprep.subr.bf16.mxu0 0
      %4769 = vmatpush1.bf16.msra.mxu0 %v4708
      %4770 = vmatprep.subr.bf16.mxu0 0
      %4771 = vmatpush1.bf16.msra.mxu0 %v4707
      %4772 = vmatprep.subr.bf16.mxu0 0
      %4773 = vmatpush1.bf16.msra.mxu0 %v4706
      %4774 = vmatprep.subr.bf16.mxu0 0
      %4775 = vmatpush1.bf16.msra.mxu0 %v4705
      %4776 = vmatprep.subr.bf16.mxu0 0
      %4777 = vmatpush1.bf16.msra.mxu0 %v4704
      %4778 = vmatprep.subr.bf16.mxu0 0
      %4779 = vmatpush1.bf16.msra.mxu0 %v4703
      %4780 = vmatprep.subr.bf16.mxu0 0
      %4781 = vmatpush1.bf16.msra.mxu0 %v4702
      %4782 = vmatprep.subr.bf16.mxu0 0
      %4783 = vmatpush2.bf16.msra.mxu0 %v4717
      %4784 = vmatprep.subr.bf16.mxu0 0
      %4785 = vmatpush2.bf16.msra.mxu0 %v4716
      %4786 = vmatprep.subr.bf16.mxu0 0
      %4787 = vmatpush2.bf16.msra.mxu0 %v4715
      %4788 = vmatprep.subr.bf16.mxu0 0
      %4789 = vmatpush2.bf16.msra.mxu0 %v4714
      %4790 = vmatprep.subr.bf16.mxu0 0
      %4791 = vmatpush2.bf16.msra.mxu0 %v4713
      %4792 = vmatprep.subr.bf16.mxu0 0
      %4793 = vmatpush2.bf16.msra.mxu0 %v4712
      %4794 = vmatprep.subr.bf16.mxu0 0
      %4795 = vmatpush2.bf16.msra.mxu0 %v4711
      %4796 = vmatprep.subr.bf16.mxu0 0
      %4797 = vmatpush2.bf16.msra.mxu0 %v4710
      %4798 = vmatprep.mubr.bf16.mxu0 %v1805
      %4799 = vmatmul.mubr.bf16.gmra.mxu0 %v1804
      %v4800 = vpop.f32.mrf.mxu0
      %v4801 = vadd.f32 0.0, %v4800
      %v4802 = vpop.f32.mrf.mxu0
      %v4803 = vpop.f32.mrf.mxu0
      %v4804 = vadd.f32 0.0, %v4803
      %v4805 = vpop.f32.mrf.mxu0
      %4806 = vmatprep.mubr.bf16.mxu0 %v1809
      %4807 = vmatmul.mubr.bf16.gmra.mxu0 %v1808
      %v4808 = vpop.f32.mrf.mxu0
      %v4809 = vadd.f32 0.0, %v4808
      %v4810 = vpop.f32.mrf.mxu0
      %v4811 = vpop.f32.mrf.mxu0
      %v4812 = vadd.f32 0.0, %v4811
      %v4813 = vpop.f32.mrf.mxu0
      %4814 = vmatprep.mubr.bf16.mxu0 %v1813
      %4815 = vmatmul.mubr.bf16.gmra.mxu0 %v1812
      %v4816 = vpop.f32.mrf.mxu0
      %v4817 = vadd.f32 0.0, %v4816
      %v4818 = vpop.f32.mrf.mxu0
      %v4819 = vpop.f32.mrf.mxu0
      %v4820 = vadd.f32 0.0, %v4819
      %v4821 = vpop.f32.mrf.mxu0
      %4822 = vmatprep.mubr.bf16.mxu0 %v1817
      %4823 = vmatmul.mubr.bf16.gmra.mxu0 %v1816
      %v4824 = vpop.f32.mrf.mxu0
      %v4825 = vadd.f32 0.0, %v4824
      %v4826 = vpop.f32.mrf.mxu0
      %v4827 = vpop.f32.mrf.mxu0
      %v4828 = vadd.f32 0.0, %v4827
      %v4829 = vpop.f32.mrf.mxu0
      %4830 = vmatprep.mubr.bf16.mxu0 %v1821
      %4831 = vmatmul.mubr.bf16.gmra.mxu0 %v1820
      %v4832 = vpop.f32.mrf.mxu0
      %v4833 = vadd.f32 0.0, %v4832
      %v4834 = vpop.f32.mrf.mxu0
      %v4835 = vpop.f32.mrf.mxu0
      %v4836 = vadd.f32 0.0, %v4835
      %v4837 = vpop.f32.mrf.mxu0
      %4838 = vmatprep.mubr.bf16.mxu0 %v1825
      %4839 = vmatmul.mubr.bf16.gmra.mxu0 %v1824
      %v4840 = vpop.f32.mrf.mxu0
      %v4841 = vadd.f32 0.0, %v4840
      %v4842 = vpop.f32.mrf.mxu0
      %v4843 = vpop.f32.mrf.mxu0
      %v4844 = vadd.f32 0.0, %v4843
      %v4845 = vpop.f32.mrf.mxu0
      %4846 = vmatprep.mubr.bf16.mxu0 %v3050
      %4847 = vmatmul.mubr.bf16.gmra.mxu0 %v3049
      %v4848 = vpop.f32.mrf.mxu0
      %v4849 = vadd.f32 0.0, %v4848
      %v4850 = vpop.f32.mrf.mxu0
      %v4851 = vpop.f32.mrf.mxu0
      %v4852 = vadd.f32 0.0, %v4851
      %v4853 = vpop.f32.mrf.mxu0
      %4854 = vmatprep.mubr.bf16.mxu0 %v4567
      %4855 = vmatmul.mubr.bf16.gmra.mxu0 %v4566
      %v4856 = vpop.f32.mrf.mxu0
      %v4857 = vadd.f32 0.0, %v4856
      %v4858 = vpop.f32.mrf.mxu0
      %v4859 = vpop.f32.mrf.mxu0
      %v4860 = vadd.f32 0.0, %v4859
      %v4861 = vpop.f32.mrf.mxu0
      %4862 = vdwg.mxu0
      %4863 = vmatprep.subr.bf16.mxu0 0
      %4864 = vmatpush1.bf16.msra.mxu0 %v4725
      %4865 = vmatprep.subr.bf16.mxu0 0
      %4866 = vmatpush1.bf16.msra.mxu0 %v4724
      %4867 = vmatprep.subr.bf16.mxu0 0
      %4868 = vmatpush1.bf16.msra.mxu0 %v4723
      %4869 = vmatprep.subr.bf16.mxu0 0
      %4870 = vmatpush1.bf16.msra.mxu0 %v4722
      %4871 = vmatprep.subr.bf16.mxu0 0
      %4872 = vmatpush1.bf16.msra.mxu0 %v4721
      %4873 = vmatprep.subr.bf16.mxu0 0
      %4874 = vmatpush1.bf16.msra.mxu0 %v4720
      %4875 = vmatprep.subr.bf16.mxu0 0
      %4876 = vmatpush1.bf16.msra.mxu0 %v4719
      %4877 = vmatprep.subr.bf16.mxu0 0
      %4878 = vmatpush1.bf16.msra.mxu0 %v4718
      %4879 = vmatprep.subr.bf16.mxu0 0
      %4880 = vmatpush2.bf16.msra.mxu0 %v4733
      %4881 = vmatprep.subr.bf16.mxu0 0
      %4882 = vmatpush2.bf16.msra.mxu0 %v4732
      %4883 = vmatprep.subr.bf16.mxu0 0
      %4884 = vmatpush2.bf16.msra.mxu0 %v4731
      %4885 = vmatprep.subr.bf16.mxu0 0
      %4886 = vmatpush2.bf16.msra.mxu0 %v4730
      %4887 = vmatprep.subr.bf16.mxu0 0
      %4888 = vmatpush2.bf16.msra.mxu0 %v4729
      %4889 = vmatprep.subr.bf16.mxu0 0
      %4890 = vmatpush2.bf16.msra.mxu0 %v4728
      %4891 = vmatprep.subr.bf16.mxu0 0
      %4892 = vmatpush2.bf16.msra.mxu0 %v4727
      %4893 = vmatprep.subr.bf16.mxu0 0
      %4894 = vmatpush2.bf16.msra.mxu0 %v4726
      %4895 = vmatprep.mubr.bf16.mxu0 %v1807
      %4896 = vmatmul.mubr.bf16.gmra.mxu0 %v1806
      %v4897 = vpop.f32.mrf.mxu0
      %v4898 = vadd.f32 %v4801, %v4897
      %v4899 = vpop.f32.mrf.mxu0
      %v4900 = vpop.f32.mrf.mxu0
      %v4901 = vadd.f32 %v4804, %v4900
      %v4902 = vpop.f32.mrf.mxu0
      %4903 = vmatprep.mubr.bf16.mxu0 %v1811
      %4904 = vmatmul.mubr.bf16.gmra.mxu0 %v1810
      %v4905 = vpop.f32.mrf.mxu0
      %v4906 = vadd.f32 %v4809, %v4905
      %v4907 = vpop.f32.mrf.mxu0
      %v4908 = vpop.f32.mrf.mxu0
      %v4909 = vadd.f32 %v4812, %v4908
      %v4910 = vpop.f32.mrf.mxu0
      %4911 = vmatprep.mubr.bf16.mxu0 %v1815
      %4912 = vmatmul.mubr.bf16.gmra.mxu0 %v1814
      %v4913 = vpop.f32.mrf.mxu0
      %v4914 = vadd.f32 %v4817, %v4913
      %v4915 = vpop.f32.mrf.mxu0
      %v4916 = vpop.f32.mrf.mxu0
      %v4917 = vadd.f32 %v4820, %v4916
      %v4918 = vpop.f32.mrf.mxu0
      %4919 = vmatprep.mubr.bf16.mxu0 %v1819
      %4920 = vmatmul.mubr.bf16.gmra.mxu0 %v1818
      %v4921 = vpop.f32.mrf.mxu0
      %v4922 = vadd.f32 %v4825, %v4921
      %v4923 = vpop.f32.mrf.mxu0
      %v4924 = vpop.f32.mrf.mxu0
      %v4925 = vadd.f32 %v4828, %v4924
      %v4926 = vpop.f32.mrf.mxu0
      %4927 = vmatprep.mubr.bf16.mxu0 %v1823
      %4928 = vmatmul.mubr.bf16.gmra.mxu0 %v1822
      %v4929 = vpop.f32.mrf.mxu0
      %v4930 = vadd.f32 %v4833, %v4929
      %v4931 = vpop.f32.mrf.mxu0
      %v4932 = vpop.f32.mrf.mxu0
      %v4933 = vadd.f32 %v4836, %v4932
      %v4934 = vpop.f32.mrf.mxu0
      %4935 = vmatprep.mubr.bf16.mxu0 %v1827
      %4936 = vmatmul.mubr.bf16.gmra.mxu0 %v1826
      %v4937 = vpop.f32.mrf.mxu0
      %v4938 = vadd.f32 %v4841, %v4937
      %v4939 = vpop.f32.mrf.mxu0
      %v4940 = vpop.f32.mrf.mxu0
      %v4941 = vadd.f32 %v4844, %v4940
      %v4942 = vpop.f32.mrf.mxu0
      %4943 = vmatprep.mubr.bf16.mxu0 %v3052
      %4944 = vmatmul.mubr.bf16.gmra.mxu0 %v3051
      %v4945 = vpop.f32.mrf.mxu0
      %v4946 = vadd.f32 %v4849, %v4945
      %v4947 = vpop.f32.mrf.mxu0
      %v4948 = vpop.f32.mrf.mxu0
      %v4949 = vadd.f32 %v4852, %v4948
      %v4950 = vpop.f32.mrf.mxu0
      %4951 = vmatprep.mubr.bf16.mxu0 %v4569
      %4952 = vmatmul.mubr.bf16.gmra.mxu0 %v4568
      %v4953 = vpop.f32.mrf.mxu0
      %v4954 = vadd.f32 %v4857, %v4953
      %v4955 = vpop.f32.mrf.mxu0
      %v4956 = vpop.f32.mrf.mxu0
      %v4957 = vadd.f32 %v4860, %v4956
      %v4958 = vpop.f32.mrf.mxu0
      %4959 = vdwg.mxu0
      %v4960 = vadd.f32 %v4473, %v4898
      %v4961 = vadd.f32 %v4474, %v4901
      %v4962 = vadd.f32 %v4475, %v4906
      %v4963 = vadd.f32 %v4476, %v4909
      %v4964 = vadd.f32 %v4477, %v4914
      %v4965 = vadd.f32 %v4478, %v4917
      %v4966 = vadd.f32 %v4479, %v4922
      %v4967 = vadd.f32 %v4480, %v4925
      %v4968 = vadd.f32 %v4481, %v4930
      %v4969 = vadd.f32 %v4482, %v4933
      %v4970 = vadd.f32 %v4483, %v4938
      %v4971 = vadd.f32 %v4484, %v4941
      %v4972 = vadd.f32 %v4485, %v4946
      %v4973 = vadd.f32 %v4486, %v4949
      %v4974 = vadd.f32 %v4487, %v4954
      %v4975 = vadd.f32 %v4488, %v4957
      %v4977 = vshrl.u32 %v664, 16
      %v4979 = vrot.slane %v4977, 4
      %v4980 = vshll.u32 %v664, 16
      %v4982 = vrot.slane %v4980, 5
      %v4983 = vor.u32 %v4979, %v4982
      %v4984 = vrot.slane %v4983, 4
      %v4986 = vshll.u32 %v666, 16
      %v4988 = vrot.slane %v4986, 5
      %v4989 = vsel %vm736, %v4984, %v4988
      %v4991 = vshrl.u32 %v665, 16
      %v4993 = vrot.slane %v4991, 4
      %v4994 = vshll.u32 %v665, 16
      %v4996 = vrot.slane %v4994, 5
      %v4997 = vor.u32 %v4993, %v4996
      %v4998 = vrot.slane %v4997, 4
      %v5000 = vshll.u32 %v667, 16
      %v5002 = vrot.slane %v5000, 5
      %v5003 = vsel %vm736, %v4998, %v5002
      %v5004 = vshrl.u32 %v666, 16
      %v5006 = vrot.slane %v5004, 4
      %v5007 = vor.u32 %v5006, %v4988
      %v5008 = vrot.slane %v5007, 4
      %v5010 = vshll.u32 %v668, 16
      %v5012 = vrot.slane %v5010, 5
      %v5013 = vsel %vm736, %v5008, %v5012
      %v5014 = vshrl.u32 %v667, 16
      %v5016 = vrot.slane %v5014, 4
      %v5017 = vor.u32 %v5016, %v5002
      %v5018 = vrot.slane %v5017, 4
      %v5020 = vshll.u32 %v669, 16
      %v5022 = vrot.slane %v5020, 5
      %v5023 = vsel %vm736, %v5018, %v5022
      %s5024 = scalar_lea.vmem %s1, 1792
      %v5025 = vld [vmem:[%s5024] sm:$0xf]
      %v5026 = vld [vmem:[%s5024 + $0x4] sm:$0xf]
      %v5027 = vld [vmem:[%s5024 + $0x8] sm:$0xf]
      %v5028 = vld [vmem:[%s5024 + $0xc] sm:$0xf]
      %v5029 = vld [vmem:[%s5024 + $0x10] sm:$0xf]
      %v5030 = vld [vmem:[%s5024 + $0x14] sm:$0xf]
      %v5031 = vld [vmem:[%s5024 + $0x18] sm:$0xf]
      %v5032 = vld [vmem:[%s5024 + $0x1c] sm:$0xf]
      %v5033 = vld [vmem:[%s5024 + $0x20] sm:$0xf]
      %v5034 = vld [vmem:[%s5024 + $0x24] sm:$0xf]
      %v5035 = vld [vmem:[%s5024 + $0x28] sm:$0xf]
      %v5036 = vld [vmem:[%s5024 + $0x2c] sm:$0xf]
      %v5037 = vld [vmem:[%s5024 + $0x30] sm:$0xf]
      %v5038 = vld [vmem:[%s5024 + $0x34] sm:$0xf]
      %v5039 = vld [vmem:[%s5024 + $0x38] sm:$0xf]
      %v5040 = vld [vmem:[%s5024 + $0x3c] sm:$0xf]
      %v5041 = vld [vmem:[%s5024 + $0x40] sm:$0xf]
      %v5042 = vld [vmem:[%s5024 + $0x44] sm:$0xf]
      %v5043 = vld [vmem:[%s5024 + $0x48] sm:$0xf]
      %v5044 = vld [vmem:[%s5024 + $0x4c] sm:$0xf]
      %v5045 = vld [vmem:[%s5024 + $0x50] sm:$0xf]
      %v5046 = vld [vmem:[%s5024 + $0x54] sm:$0xf]
      %v5047 = vld [vmem:[%s5024 + $0x58] sm:$0xf]
      %v5048 = vld [vmem:[%s5024 + $0x5c] sm:$0xf]
      %v5049 = vld [vmem:[%s5024 + $0x60] sm:$0xf]
      %v5050 = vld [vmem:[%s5024 + $0x64] sm:$0xf]
      %v5051 = vld [vmem:[%s5024 + $0x68] sm:$0xf]
      %v5052 = vld [vmem:[%s5024 + $0x6c] sm:$0xf]
      %v5053 = vld [vmem:[%s5024 + $0x70] sm:$0xf]
      %v5054 = vld [vmem:[%s5024 + $0x74] sm:$0xf]
      %v5055 = vld [vmem:[%s5024 + $0x78] sm:$0xf]
      %v5056 = vld [vmem:[%s5024 + $0x7c] sm:$0xf]
      %v5057 = vld [vmem:[%s5024 + $0x80] sm:$0xf]
      %v5058 = vld [vmem:[%s5024 + $0x84] sm:$0xf]
      %v5059 = vld [vmem:[%s5024 + $0x88] sm:$0xf]
      %v5060 = vld [vmem:[%s5024 + $0x8c] sm:$0xf]
      %v5061 = vld [vmem:[%s5024 + $0x90] sm:$0xf]
      %v5062 = vld [vmem:[%s5024 + $0x94] sm:$0xf]
      %v5063 = vld [vmem:[%s5024 + $0x98] sm:$0xf]
      %v5064 = vld [vmem:[%s5024 + $0x9c] sm:$0xf]
      %v5065 = vld [vmem:[%s5024 + $0xa0] sm:$0xf]
      %v5066 = vld [vmem:[%s5024 + $0xa4] sm:$0xf]
      %v5067 = vld [vmem:[%s5024 + $0xa8] sm:$0xf]
      %v5068 = vld [vmem:[%s5024 + $0xac] sm:$0xf]
      %v5069 = vld [vmem:[%s5024 + $0xb0] sm:$0xf]
      %v5070 = vld [vmem:[%s5024 + $0xb4] sm:$0xf]
      %v5071 = vld [vmem:[%s5024 + $0xb8] sm:$0xf]
      %v5072 = vld [vmem:[%s5024 + $0xbc] sm:$0xf]
      %v5073 = vld [vmem:[%s5024 + $0xc0] sm:$0xf]
      %v5074 = vld [vmem:[%s5024 + $0xc4] sm:$0xf]
      %v5075 = vld [vmem:[%s5024 + $0xc8] sm:$0xf]
      %v5076 = vld [vmem:[%s5024 + $0xcc] sm:$0xf]
      %v5077 = vld [vmem:[%s5024 + $0xd0] sm:$0xf]
      %v5078 = vld [vmem:[%s5024 + $0xd4] sm:$0xf]
      %v5079 = vld [vmem:[%s5024 + $0xd8] sm:$0xf]
      %v5080 = vld [vmem:[%s5024 + $0xdc] sm:$0xf]
      %v5081 = vld [vmem:[%s5024 + $0xe0] sm:$0xf]
      %v5082 = vld [vmem:[%s5024 + $0xe4] sm:$0xf]
      %v5083 = vld [vmem:[%s5024 + $0xe8] sm:$0xf]
      %v5084 = vld [vmem:[%s5024 + $0xec] sm:$0xf]
      %v5085 = vld [vmem:[%s5024 + $0xf0] sm:$0xf]
      %v5086 = vld [vmem:[%s5024 + $0xf4] sm:$0xf]
      %v5087 = vld [vmem:[%s5024 + $0xf8] sm:$0xf]
      %v5088 = vld [vmem:[%s5024 + $0xfc] sm:$0xf]
      %v5089 = vunpack.c.l.b16 %v4989
      %v5090 = vunpack.c.h.b16 %v4989
      %v5091 = vunpack.c.l.b16 %v5003
      %v5092 = vunpack.c.h.b16 %v5003
      %v5093 = vunpack.c.l.b16 %v5013
      %v5094 = vunpack.c.h.b16 %v5013
      %v5095 = vunpack.c.l.b16 %v5023
      %v5096 = vunpack.c.h.b16 %v5023
      %v5097 = vpack.c.b16 %v5093, %v5089
      %v5098 = vpack.c.b16 %v5094, %v5090
      %v5099 = vpack.c.b16 %v5095, %v5091
      %v5100 = vpack.c.b16 %v5096, %v5092
      %v5169 = vunpack.c.l.b16 %v5025
      %v5170 = vunpack.c.l.b16 %v5026
      %v5171 = vunpack.c.l.b16 %v5027
      %v5172 = vunpack.c.l.b16 %v5028
      %v5173 = vunpack.c.l.b16 %v5029
      %v5174 = vunpack.c.l.b16 %v5030
      %v5175 = vunpack.c.l.b16 %v5031
      %v5176 = vunpack.c.l.b16 %v5032
      %v5177 = vunpack.c.l.b16 %v5033
      %v5178 = vunpack.c.l.b16 %v5034
      %v5179 = vunpack.c.l.b16 %v5035
      %v5180 = vunpack.c.l.b16 %v5036
      %v5181 = vunpack.c.l.b16 %v5037
      %v5182 = vunpack.c.l.b16 %v5038
      %v5183 = vunpack.c.l.b16 %v5039
      %v5184 = vunpack.c.l.b16 %v5040
      %v5185 = vunpack.c.l.b16 %v5041
      %v5186 = vunpack.c.l.b16 %v5042
      %v5187 = vunpack.c.l.b16 %v5043
      %v5188 = vunpack.c.l.b16 %v5044
      %v5189 = vunpack.c.l.b16 %v5045
      %v5190 = vunpack.c.l.b16 %v5046
      %v5191 = vunpack.c.l.b16 %v5047
      %v5192 = vunpack.c.l.b16 %v5048
      %v5193 = vunpack.c.l.b16 %v5049
      %v5194 = vunpack.c.l.b16 %v5050
      %v5195 = vunpack.c.l.b16 %v5051
      %v5196 = vunpack.c.l.b16 %v5052
      %v5197 = vunpack.c.l.b16 %v5053
      %v5198 = vunpack.c.l.b16 %v5054
      %v5199 = vunpack.c.l.b16 %v5055
      %v5200 = vunpack.c.l.b16 %v5056
      %v5201 = vunpack.c.l.b16 %v5057
      %v5202 = vunpack.c.l.b16 %v5058
      %v5203 = vunpack.c.l.b16 %v5059
      %v5204 = vunpack.c.l.b16 %v5060
      %v5205 = vunpack.c.l.b16 %v5061
      %v5206 = vunpack.c.l.b16 %v5062
      %v5207 = vunpack.c.l.b16 %v5063
      %v5208 = vunpack.c.l.b16 %v5064
      %v5209 = vunpack.c.l.b16 %v5065
      %v5210 = vunpack.c.l.b16 %v5066
      %v5211 = vunpack.c.l.b16 %v5067
      %v5212 = vunpack.c.l.b16 %v5068
      %v5213 = vunpack.c.l.b16 %v5069
      %v5214 = vunpack.c.l.b16 %v5070
      %v5215 = vunpack.c.l.b16 %v5071
      %v5216 = vunpack.c.l.b16 %v5072
      %v5217 = vunpack.c.l.b16 %v5073
      %v5218 = vunpack.c.l.b16 %v5074
      %v5219 = vunpack.c.l.b16 %v5075
      %v5220 = vunpack.c.l.b16 %v5076
      %v5221 = vunpack.c.l.b16 %v5077
      %v5222 = vunpack.c.l.b16 %v5078
      %v5223 = vunpack.c.l.b16 %v5079
      %v5224 = vunpack.c.l.b16 %v5080
      %v5225 = vunpack.c.l.b16 %v5081
      %v5226 = vunpack.c.l.b16 %v5082
      %v5227 = vunpack.c.l.b16 %v5083
      %v5228 = vunpack.c.l.b16 %v5084
      %v5229 = vunpack.c.l.b16 %v5085
      %v5230 = vunpack.c.l.b16 %v5086
      %v5231 = vunpack.c.l.b16 %v5087
      %v5232 = vunpack.c.l.b16 %v5088
      %v5233 = vpack.c.b16 %v5170, %v5169
      %v5234 = vpack.c.b16 %v5172, %v5171
      %v5235 = vpack.c.b16 %v5174, %v5173
      %v5236 = vpack.c.b16 %v5176, %v5175
      %v5237 = vpack.c.b16 %v5178, %v5177
      %v5238 = vpack.c.b16 %v5180, %v5179
      %v5239 = vpack.c.b16 %v5182, %v5181
      %v5240 = vpack.c.b16 %v5184, %v5183
      %v5241 = vpack.c.b16 %v5186, %v5185
      %v5242 = vpack.c.b16 %v5188, %v5187
      %v5243 = vpack.c.b16 %v5190, %v5189
      %v5244 = vpack.c.b16 %v5192, %v5191
      %v5245 = vpack.c.b16 %v5194, %v5193
      %v5246 = vpack.c.b16 %v5196, %v5195
      %v5247 = vpack.c.b16 %v5198, %v5197
      %v5248 = vpack.c.b16 %v5200, %v5199
      %v5249 = vpack.c.b16 %v5202, %v5201
      %v5250 = vpack.c.b16 %v5204, %v5203
      %v5251 = vpack.c.b16 %v5206, %v5205
      %v5252 = vpack.c.b16 %v5208, %v5207
      %v5253 = vpack.c.b16 %v5210, %v5209
      %v5254 = vpack.c.b16 %v5212, %v5211
      %v5255 = vpack.c.b16 %v5214, %v5213
      %v5256 = vpack.c.b16 %v5216, %v5215
      %v5257 = vpack.c.b16 %v5218, %v5217
      %v5258 = vpack.c.b16 %v5220, %v5219
      %v5259 = vpack.c.b16 %v5222, %v5221
      %v5260 = vpack.c.b16 %v5224, %v5223
      %v5261 = vpack.c.b16 %v5226, %v5225
      %v5262 = vpack.c.b16 %v5228, %v5227
      %v5263 = vpack.c.b16 %v5230, %v5229
      %v5264 = vpack.c.b16 %v5232, %v5231
      %5297 = vmatprep.subr.bf16.mxu0 0
      %5298 = vmatpush1.bf16.msra.mxu0 %v5240
      %5299 = vmatprep.subr.bf16.mxu0 0
      %5300 = vmatpush1.bf16.msra.mxu0 %v5239
      %5301 = vmatprep.subr.bf16.mxu0 0
      %5302 = vmatpush1.bf16.msra.mxu0 %v5238
      %5303 = vmatprep.subr.bf16.mxu0 0
      %5304 = vmatpush1.bf16.msra.mxu0 %v5237
      %5305 = vmatprep.subr.bf16.mxu0 0
      %5306 = vmatpush1.bf16.msra.mxu0 %v5236
      %5307 = vmatprep.subr.bf16.mxu0 0
      %5308 = vmatpush1.bf16.msra.mxu0 %v5235
      %5309 = vmatprep.subr.bf16.mxu0 0
      %5310 = vmatpush1.bf16.msra.mxu0 %v5234
      %5311 = vmatprep.subr.bf16.mxu0 0
      %5312 = vmatpush1.bf16.msra.mxu0 %v5233
      %5313 = vmatprep.subr.bf16.mxu0 0
      %5314 = vmatpush2.bf16.msra.mxu0 %v5248
      %5315 = vmatprep.subr.bf16.mxu0 0
      %5316 = vmatpush2.bf16.msra.mxu0 %v5247
      %5317 = vmatprep.subr.bf16.mxu0 0
      %5318 = vmatpush2.bf16.msra.mxu0 %v5246
      %5319 = vmatprep.subr.bf16.mxu0 0
      %5320 = vmatpush2.bf16.msra.mxu0 %v5245
      %5321 = vmatprep.subr.bf16.mxu0 0
      %5322 = vmatpush2.bf16.msra.mxu0 %v5244
      %5323 = vmatprep.subr.bf16.mxu0 0
      %5324 = vmatpush2.bf16.msra.mxu0 %v5243
      %5325 = vmatprep.subr.bf16.mxu0 0
      %5326 = vmatpush2.bf16.msra.mxu0 %v5242
      %5327 = vmatprep.subr.bf16.mxu0 0
      %5328 = vmatpush2.bf16.msra.mxu0 %v5241
      %5329 = vmatprep.mubr.bf16.mxu0 %v1259
      %5330 = vmatmul.mubr.bf16.gmra.mxu0 %v1258
      %v5331 = vpop.f32.mrf.mxu0
      %v5332 = vadd.f32 0.0, %v5331
      %v5333 = vpop.f32.mrf.mxu0
      %v5334 = vpop.f32.mrf.mxu0
      %v5335 = vadd.f32 0.0, %v5334
      %v5336 = vpop.f32.mrf.mxu0
      %5337 = vmatprep.mubr.bf16.mxu0 %v1263
      %5338 = vmatmul.mubr.bf16.gmra.mxu0 %v1262
      %v5339 = vpop.f32.mrf.mxu0
      %v5340 = vadd.f32 0.0, %v5339
      %v5341 = vpop.f32.mrf.mxu0
      %v5342 = vpop.f32.mrf.mxu0
      %v5343 = vadd.f32 0.0, %v5342
      %v5344 = vpop.f32.mrf.mxu0
      %5345 = vmatprep.mubr.bf16.mxu0 %v1267
      %5346 = vmatmul.mubr.bf16.gmra.mxu0 %v1266
      %v5347 = vpop.f32.mrf.mxu0
      %v5348 = vadd.f32 0.0, %v5347
      %v5349 = vpop.f32.mrf.mxu0
      %v5350 = vpop.f32.mrf.mxu0
      %v5351 = vadd.f32 0.0, %v5350
      %v5352 = vpop.f32.mrf.mxu0
      %5353 = vmatprep.mubr.bf16.mxu0 %v1271
      %5354 = vmatmul.mubr.bf16.gmra.mxu0 %v1270
      %v5355 = vpop.f32.mrf.mxu0
      %v5356 = vadd.f32 0.0, %v5355
      %v5357 = vpop.f32.mrf.mxu0
      %v5358 = vpop.f32.mrf.mxu0
      %v5359 = vadd.f32 0.0, %v5358
      %v5360 = vpop.f32.mrf.mxu0
      %5361 = vmatprep.mubr.bf16.mxu0 %v1275
      %5362 = vmatmul.mubr.bf16.gmra.mxu0 %v1274
      %v5363 = vpop.f32.mrf.mxu0
      %v5364 = vadd.f32 0.0, %v5363
      %v5365 = vpop.f32.mrf.mxu0
      %v5366 = vpop.f32.mrf.mxu0
      %v5367 = vadd.f32 0.0, %v5366
      %v5368 = vpop.f32.mrf.mxu0
      %5369 = vmatprep.mubr.bf16.mxu0 %v1279
      %5370 = vmatmul.mubr.bf16.gmra.mxu0 %v1278
      %v5371 = vpop.f32.mrf.mxu0
      %v5372 = vadd.f32 0.0, %v5371
      %v5373 = vpop.f32.mrf.mxu0
      %v5374 = vpop.f32.mrf.mxu0
      %v5375 = vadd.f32 0.0, %v5374
      %v5376 = vpop.f32.mrf.mxu0
      %5377 = vmatprep.mubr.bf16.mxu0 %v3581
      %5378 = vmatmul.mubr.bf16.gmra.mxu0 %v3580
      %v5379 = vpop.f32.mrf.mxu0
      %v5380 = vadd.f32 0.0, %v5379
      %v5381 = vpop.f32.mrf.mxu0
      %v5382 = vpop.f32.mrf.mxu0
      %v5383 = vadd.f32 0.0, %v5382
      %v5384 = vpop.f32.mrf.mxu0
      %5385 = vmatprep.mubr.bf16.mxu0 %v5098
      %5386 = vmatmul.mubr.bf16.gmra.mxu0 %v5097
      %v5387 = vpop.f32.mrf.mxu0
      %v5388 = vadd.f32 0.0, %v5387
      %v5389 = vpop.f32.mrf.mxu0
      %v5390 = vpop.f32.mrf.mxu0
      %v5391 = vadd.f32 0.0, %v5390
      %v5392 = vpop.f32.mrf.mxu0
      %5393 = vdwg.mxu0
      %5394 = vmatprep.subr.bf16.mxu0 0
      %5395 = vmatpush1.bf16.msra.mxu0 %v5256
      %5396 = vmatprep.subr.bf16.mxu0 0
      %5397 = vmatpush1.bf16.msra.mxu0 %v5255
      %5398 = vmatprep.subr.bf16.mxu0 0
      %5399 = vmatpush1.bf16.msra.mxu0 %v5254
      %5400 = vmatprep.subr.bf16.mxu0 0
      %5401 = vmatpush1.bf16.msra.mxu0 %v5253
      %5402 = vmatprep.subr.bf16.mxu0 0
      %5403 = vmatpush1.bf16.msra.mxu0 %v5252
      %5404 = vmatprep.subr.bf16.mxu0 0
      %5405 = vmatpush1.bf16.msra.mxu0 %v5251
      %5406 = vmatprep.subr.bf16.mxu0 0
      %5407 = vmatpush1.bf16.msra.mxu0 %v5250
      %5408 = vmatprep.subr.bf16.mxu0 0
      %5409 = vmatpush1.bf16.msra.mxu0 %v5249
      %5410 = vmatprep.subr.bf16.mxu0 0
      %5411 = vmatpush2.bf16.msra.mxu0 %v5264
      %5412 = vmatprep.subr.bf16.mxu0 0
      %5413 = vmatpush2.bf16.msra.mxu0 %v5263
      %5414 = vmatprep.subr.bf16.mxu0 0
      %5415 = vmatpush2.bf16.msra.mxu0 %v5262
      %5416 = vmatprep.subr.bf16.mxu0 0
      %5417 = vmatpush2.bf16.msra.mxu0 %v5261
      %5418 = vmatprep.subr.bf16.mxu0 0
      %5419 = vmatpush2.bf16.msra.mxu0 %v5260
      %5420 = vmatprep.subr.bf16.mxu0 0
      %5421 = vmatpush2.bf16.msra.mxu0 %v5259
      %5422 = vmatprep.subr.bf16.mxu0 0
      %5423 = vmatpush2.bf16.msra.mxu0 %v5258
      %5424 = vmatprep.subr.bf16.mxu0 0
      %5425 = vmatpush2.bf16.msra.mxu0 %v5257
      %5426 = vmatprep.mubr.bf16.mxu0 %v1261
      %5427 = vmatmul.mubr.bf16.gmra.mxu0 %v1260
      %v5428 = vpop.f32.mrf.mxu0
      %v5429 = vadd.f32 %v5332, %v5428
      %v5430 = vpop.f32.mrf.mxu0
      %v5431 = vpop.f32.mrf.mxu0
      %v5432 = vadd.f32 %v5335, %v5431
      %v5433 = vpop.f32.mrf.mxu0
      %5434 = vmatprep.mubr.bf16.mxu0 %v1265
      %5435 = vmatmul.mubr.bf16.gmra.mxu0 %v1264
      %v5436 = vpop.f32.mrf.mxu0
      %v5437 = vadd.f32 %v5340, %v5436
      %v5438 = vpop.f32.mrf.mxu0
      %v5439 = vpop.f32.mrf.mxu0
      %v5440 = vadd.f32 %v5343, %v5439
      %v5441 = vpop.f32.mrf.mxu0
      %5442 = vmatprep.mubr.bf16.mxu0 %v1269
      %5443 = vmatmul.mubr.bf16.gmra.mxu0 %v1268
      %v5444 = vpop.f32.mrf.mxu0
      %v5445 = vadd.f32 %v5348, %v5444
      %v5446 = vpop.f32.mrf.mxu0
      %v5447 = vpop.f32.mrf.mxu0
      %v5448 = vadd.f32 %v5351, %v5447
      %v5449 = vpop.f32.mrf.mxu0
      %5450 = vmatprep.mubr.bf16.mxu0 %v1273
      %5451 = vmatmul.mubr.bf16.gmra.mxu0 %v1272
      %v5452 = vpop.f32.mrf.mxu0
      %v5453 = vadd.f32 %v5356, %v5452
      %v5454 = vpop.f32.mrf.mxu0
      %v5455 = vpop.f32.mrf.mxu0
      %v5456 = vadd.f32 %v5359, %v5455
      %v5457 = vpop.f32.mrf.mxu0
      %5458 = vmatprep.mubr.bf16.mxu0 %v1277
      %5459 = vmatmul.mubr.bf16.gmra.mxu0 %v1276
      %v5460 = vpop.f32.mrf.mxu0
      %v5461 = vadd.f32 %v5364, %v5460
      %v5462 = vpop.f32.mrf.mxu0
      %v5463 = vpop.f32.mrf.mxu0
      %v5464 = vadd.f32 %v5367, %v5463
      %v5465 = vpop.f32.mrf.mxu0
      %5466 = vmatprep.mubr.bf16.mxu0 %v1281
      %5467 = vmatmul.mubr.bf16.gmra.mxu0 %v1280
      %v5468 = vpop.f32.mrf.mxu0
      %v5469 = vadd.f32 %v5372, %v5468
      %v5470 = vpop.f32.mrf.mxu0
      %v5471 = vpop.f32.mrf.mxu0
      %v5472 = vadd.f32 %v5375, %v5471
      %v5473 = vpop.f32.mrf.mxu0
      %5474 = vmatprep.mubr.bf16.mxu0 %v3583
      %5475 = vmatmul.mubr.bf16.gmra.mxu0 %v3582
      %v5476 = vpop.f32.mrf.mxu0
      %v5477 = vadd.f32 %v5380, %v5476
      %v5478 = vpop.f32.mrf.mxu0
      %v5479 = vpop.f32.mrf.mxu0
      %v5480 = vadd.f32 %v5383, %v5479
      %v5481 = vpop.f32.mrf.mxu0
      %5482 = vmatprep.mubr.bf16.mxu0 %v5100
      %5483 = vmatmul.mubr.bf16.gmra.mxu0 %v5099
      %v5484 = vpop.f32.mrf.mxu0
      %v5485 = vadd.f32 %v5388, %v5484
      %v5486 = vpop.f32.mrf.mxu0
      %v5487 = vpop.f32.mrf.mxu0
      %v5488 = vadd.f32 %v5391, %v5487
      %v5489 = vpop.f32.mrf.mxu0
      %5490 = vdwg.mxu0
      %v5491 = vadd.f32 %v4960, %v5429
      %v5492 = vadd.f32 %v4961, %v5432
      %v5493 = vadd.f32 %v4962, %v5437
      %v5494 = vadd.f32 %v4963, %v5440
      %v5495 = vadd.f32 %v4964, %v5445
      %v5496 = vadd.f32 %v4965, %v5448
      %v5497 = vadd.f32 %v4966, %v5453
      %v5498 = vadd.f32 %v4967, %v5456
      %v5499 = vadd.f32 %v4968, %v5461
      %v5500 = vadd.f32 %v4969, %v5464
      %v5501 = vadd.f32 %v4970, %v5469
      %v5502 = vadd.f32 %v4971, %v5472
      %v5503 = vadd.f32 %v4972, %v5477
      %v5504 = vadd.f32 %v4973, %v5480
      %v5505 = vadd.f32 %v4974, %v5485
      %v5506 = vadd.f32 %v4975, %v5488
      %v5509 = vrot.slane %v664, 5
      %v5510 = vrot.slane %v5509, 4
      %v5511 = vrot.slane %v666, 5
      %v5512 = vsel %vm2264, %v5510, %v5511
      %v5513 = vrot.slane %v665, 5
      %v5514 = vrot.slane %v5513, 4
      %v5515 = vrot.slane %v667, 5
      %v5516 = vsel %vm2264, %v5514, %v5515
      %v5517 = vrot.slane %v5511, 4
      %v5518 = vrot.slane %v668, 5
      %v5519 = vsel %vm2264, %v5517, %v5518
      %v5520 = vrot.slane %v5515, 4
      %v5521 = vrot.slane %v669, 5
      %v5522 = vsel %vm2264, %v5520, %v5521
      %s5523 = scalar_lea.vmem %s1, 2048
      %v5524 = vld [vmem:[%s5523] sm:$0xf]
      %v5525 = vld [vmem:[%s5523 + $0x4] sm:$0xf]
      %v5526 = vld [vmem:[%s5523 + $0x8] sm:$0xf]
      %v5527 = vld [vmem:[%s5523 + $0xc] sm:$0xf]
      %v5528 = vld [vmem:[%s5523 + $0x10] sm:$0xf]
      %v5529 = vld [vmem:[%s5523 + $0x14] sm:$0xf]
      %v5530 = vld [vmem:[%s5523 + $0x18] sm:$0xf]
      %v5531 = vld [vmem:[%s5523 + $0x1c] sm:$0xf]
      %v5532 = vld [vmem:[%s5523 + $0x20] sm:$0xf]
      %v5533 = vld [vmem:[%s5523 + $0x24] sm:$0xf]
      %v5534 = vld [vmem:[%s5523 + $0x28] sm:$0xf]
      %v5535 = vld [vmem:[%s5523 + $0x2c] sm:$0xf]
      %v5536 = vld [vmem:[%s5523 + $0x30] sm:$0xf]
      %v5537 = vld [vmem:[%s5523 + $0x34] sm:$0xf]
      %v5538 = vld [vmem:[%s5523 + $0x38] sm:$0xf]
      %v5539 = vld [vmem:[%s5523 + $0x3c] sm:$0xf]
      %v5540 = vld [vmem:[%s5523 + $0x40] sm:$0xf]
      %v5541 = vld [vmem:[%s5523 + $0x44] sm:$0xf]
      %v5542 = vld [vmem:[%s5523 + $0x48] sm:$0xf]
      %v5543 = vld [vmem:[%s5523 + $0x4c] sm:$0xf]
      %v5544 = vld [vmem:[%s5523 + $0x50] sm:$0xf]
      %v5545 = vld [vmem:[%s5523 + $0x54] sm:$0xf]
      %v5546 = vld [vmem:[%s5523 + $0x58] sm:$0xf]
      %v5547 = vld [vmem:[%s5523 + $0x5c] sm:$0xf]
      %v5548 = vld [vmem:[%s5523 + $0x60] sm:$0xf]
      %v5549 = vld [vmem:[%s5523 + $0x64] sm:$0xf]
      %v5550 = vld [vmem:[%s5523 + $0x68] sm:$0xf]
      %v5551 = vld [vmem:[%s5523 + $0x6c] sm:$0xf]
      %v5552 = vld [vmem:[%s5523 + $0x70] sm:$0xf]
      %v5553 = vld [vmem:[%s5523 + $0x74] sm:$0xf]
      %v5554 = vld [vmem:[%s5523 + $0x78] sm:$0xf]
      %v5555 = vld [vmem:[%s5523 + $0x7c] sm:$0xf]
      %v5556 = vld [vmem:[%s5523 + $0x80] sm:$0xf]
      %v5557 = vld [vmem:[%s5523 + $0x84] sm:$0xf]
      %v5558 = vld [vmem:[%s5523 + $0x88] sm:$0xf]
      %v5559 = vld [vmem:[%s5523 + $0x8c] sm:$0xf]
      %v5560 = vld [vmem:[%s5523 + $0x90] sm:$0xf]
      %v5561 = vld [vmem:[%s5523 + $0x94] sm:$0xf]
      %v5562 = vld [vmem:[%s5523 + $0x98] sm:$0xf]
      %v5563 = vld [vmem:[%s5523 + $0x9c] sm:$0xf]
      %v5564 = vld [vmem:[%s5523 + $0xa0] sm:$0xf]
      %v5565 = vld [vmem:[%s5523 + $0xa4] sm:$0xf]
      %v5566 = vld [vmem:[%s5523 + $0xa8] sm:$0xf]
      %v5567 = vld [vmem:[%s5523 + $0xac] sm:$0xf]
      %v5568 = vld [vmem:[%s5523 + $0xb0] sm:$0xf]
      %v5569 = vld [vmem:[%s5523 + $0xb4] sm:$0xf]
      %v5570 = vld [vmem:[%s5523 + $0xb8] sm:$0xf]
      %v5571 = vld [vmem:[%s5523 + $0xbc] sm:$0xf]
      %v5572 = vld [vmem:[%s5523 + $0xc0] sm:$0xf]
      %v5573 = vld [vmem:[%s5523 + $0xc4] sm:$0xf]
      %v5574 = vld [vmem:[%s5523 + $0xc8] sm:$0xf]
      %v5575 = vld [vmem:[%s5523 + $0xcc] sm:$0xf]
      %v5576 = vld [vmem:[%s5523 + $0xd0] sm:$0xf]
      %v5577 = vld [vmem:[%s5523 + $0xd4] sm:$0xf]
      %v5578 = vld [vmem:[%s5523 + $0xd8] sm:$0xf]
      %v5579 = vld [vmem:[%s5523 + $0xdc] sm:$0xf]
      %v5580 = vld [vmem:[%s5523 + $0xe0] sm:$0xf]
      %v5581 = vld [vmem:[%s5523 + $0xe4] sm:$0xf]
      %v5582 = vld [vmem:[%s5523 + $0xe8] sm:$0xf]
      %v5583 = vld [vmem:[%s5523 + $0xec] sm:$0xf]
      %v5584 = vld [vmem:[%s5523 + $0xf0] sm:$0xf]
      %v5585 = vld [vmem:[%s5523 + $0xf4] sm:$0xf]
      %v5586 = vld [vmem:[%s5523 + $0xf8] sm:$0xf]
      %v5587 = vld [vmem:[%s5523 + $0xfc] sm:$0xf]
      %v5588 = vunpack.c.l.b16 %v5512
      %v5589 = vunpack.c.h.b16 %v5512
      %v5590 = vunpack.c.l.b16 %v5516
      %v5591 = vunpack.c.h.b16 %v5516
      %v5592 = vunpack.c.l.b16 %v5519
      %v5593 = vunpack.c.h.b16 %v5519
      %v5594 = vunpack.c.l.b16 %v5522
      %v5595 = vunpack.c.h.b16 %v5522
      %v5596 = vpack.c.b16 %v5592, %v5588
      %v5597 = vpack.c.b16 %v5593, %v5589
      %v5598 = vpack.c.b16 %v5594, %v5590
      %v5599 = vpack.c.b16 %v5595, %v5591
      %v5668 = vunpack.c.l.b16 %v5524
      %v5669 = vunpack.c.l.b16 %v5525
      %v5670 = vunpack.c.l.b16 %v5526
      %v5671 = vunpack.c.l.b16 %v5527
      %v5672 = vunpack.c.l.b16 %v5528
      %v5673 = vunpack.c.l.b16 %v5529
      %v5674 = vunpack.c.l.b16 %v5530
      %v5675 = vunpack.c.l.b16 %v5531
      %v5676 = vunpack.c.l.b16 %v5532
      %v5677 = vunpack.c.l.b16 %v5533
      %v5678 = vunpack.c.l.b16 %v5534
      %v5679 = vunpack.c.l.b16 %v5535
      %v5680 = vunpack.c.l.b16 %v5536
      %v5681 = vunpack.c.l.b16 %v5537
      %v5682 = vunpack.c.l.b16 %v5538
      %v5683 = vunpack.c.l.b16 %v5539
      %v5684 = vunpack.c.l.b16 %v5540
      %v5685 = vunpack.c.l.b16 %v5541
      %v5686 = vunpack.c.l.b16 %v5542
      %v5687 = vunpack.c.l.b16 %v5543
      %v5688 = vunpack.c.l.b16 %v5544
      %v5689 = vunpack.c.l.b16 %v5545
      %v5690 = vunpack.c.l.b16 %v5546
      %v5691 = vunpack.c.l.b16 %v5547
      %v5692 = vunpack.c.l.b16 %v5548
      %v5693 = vunpack.c.l.b16 %v5549
      %v5694 = vunpack.c.l.b16 %v5550
      %v5695 = vunpack.c.l.b16 %v5551
      %v5696 = vunpack.c.l.b16 %v5552
      %v5697 = vunpack.c.l.b16 %v5553
      %v5698 = vunpack.c.l.b16 %v5554
      %v5699 = vunpack.c.l.b16 %v5555
      %v5700 = vunpack.c.l.b16 %v5556
      %v5701 = vunpack.c.l.b16 %v5557
      %v5702 = vunpack.c.l.b16 %v5558
      %v5703 = vunpack.c.l.b16 %v5559
      %v5704 = vunpack.c.l.b16 %v5560
      %v5705 = vunpack.c.l.b16 %v5561
      %v5706 = vunpack.c.l.b16 %v5562
      %v5707 = vunpack.c.l.b16 %v5563
      %v5708 = vunpack.c.l.b16 %v5564
      %v5709 = vunpack.c.l.b16 %v5565
      %v5710 = vunpack.c.l.b16 %v5566
      %v5711 = vunpack.c.l.b16 %v5567
      %v5712 = vunpack.c.l.b16 %v5568
      %v5713 = vunpack.c.l.b16 %v5569
      %v5714 = vunpack.c.l.b16 %v5570
      %v5715 = vunpack.c.l.b16 %v5571
      %v5716 = vunpack.c.l.b16 %v5572
      %v5717 = vunpack.c.l.b16 %v5573
      %v5718 = vunpack.c.l.b16 %v5574
      %v5719 = vunpack.c.l.b16 %v5575
      %v5720 = vunpack.c.l.b16 %v5576
      %v5721 = vunpack.c.l.b16 %v5577
      %v5722 = vunpack.c.l.b16 %v5578
      %v5723 = vunpack.c.l.b16 %v5579
      %v5724 = vunpack.c.l.b16 %v5580
      %v5725 = vunpack.c.l.b16 %v5581
      %v5726 = vunpack.c.l.b16 %v5582
      %v5727 = vunpack.c.l.b16 %v5583
      %v5728 = vunpack.c.l.b16 %v5584
      %v5729 = vunpack.c.l.b16 %v5585
      %v5730 = vunpack.c.l.b16 %v5586
      %v5731 = vunpack.c.l.b16 %v5587
      %v5732 = vpack.c.b16 %v5669, %v5668
      %v5733 = vpack.c.b16 %v5671, %v5670
      %v5734 = vpack.c.b16 %v5673, %v5672
      %v5735 = vpack.c.b16 %v5675, %v5674
      %v5736 = vpack.c.b16 %v5677, %v5676
      %v5737 = vpack.c.b16 %v5679, %v5678
      %v5738 = vpack.c.b16 %v5681, %v5680
      %v5739 = vpack.c.b16 %v5683, %v5682
      %v5740 = vpack.c.b16 %v5685, %v5684
      %v5741 = vpack.c.b16 %v5687, %v5686
      %v5742 = vpack.c.b16 %v5689, %v5688
      %v5743 = vpack.c.b16 %v5691, %v5690
      %v5744 = vpack.c.b16 %v5693, %v5692
      %v5745 = vpack.c.b16 %v5695, %v5694
      %v5746 = vpack.c.b16 %v5697, %v5696
      %v5747 = vpack.c.b16 %v5699, %v5698
      %v5748 = vpack.c.b16 %v5701, %v5700
      %v5749 = vpack.c.b16 %v5703, %v5702
      %v5750 = vpack.c.b16 %v5705, %v5704
      %v5751 = vpack.c.b16 %v5707, %v5706
      %v5752 = vpack.c.b16 %v5709, %v5708
      %v5753 = vpack.c.b16 %v5711, %v5710
      %v5754 = vpack.c.b16 %v5713, %v5712
      %v5755 = vpack.c.b16 %v5715, %v5714
      %v5756 = vpack.c.b16 %v5717, %v5716
      %v5757 = vpack.c.b16 %v5719, %v5718
      %v5758 = vpack.c.b16 %v5721, %v5720
      %v5759 = vpack.c.b16 %v5723, %v5722
      %v5760 = vpack.c.b16 %v5725, %v5724
      %v5761 = vpack.c.b16 %v5727, %v5726
      %v5762 = vpack.c.b16 %v5729, %v5728
      %v5763 = vpack.c.b16 %v5731, %v5730
      %5796 = vmatprep.subr.bf16.mxu0 0
      %5797 = vmatpush1.bf16.msra.mxu0 %v5739
      %5798 = vmatprep.subr.bf16.mxu0 0
      %5799 = vmatpush1.bf16.msra.mxu0 %v5738
      %5800 = vmatprep.subr.bf16.mxu0 0
      %5801 = vmatpush1.bf16.msra.mxu0 %v5737
      %5802 = vmatprep.subr.bf16.mxu0 0
      %5803 = vmatpush1.bf16.msra.mxu0 %v5736
      %5804 = vmatprep.subr.bf16.mxu0 0
      %5805 = vmatpush1.bf16.msra.mxu0 %v5735
      %5806 = vmatprep.subr.bf16.mxu0 0
      %5807 = vmatpush1.bf16.msra.mxu0 %v5734
      %5808 = vmatprep.subr.bf16.mxu0 0
      %5809 = vmatpush1.bf16.msra.mxu0 %v5733
      %5810 = vmatprep.subr.bf16.mxu0 0
      %5811 = vmatpush1.bf16.msra.mxu0 %v5732
      %5812 = vmatprep.subr.bf16.mxu0 0
      %5813 = vmatpush2.bf16.msra.mxu0 %v5747
      %5814 = vmatprep.subr.bf16.mxu0 0
      %5815 = vmatpush2.bf16.msra.mxu0 %v5746
      %5816 = vmatprep.subr.bf16.mxu0 0
      %5817 = vmatpush2.bf16.msra.mxu0 %v5745
      %5818 = vmatprep.subr.bf16.mxu0 0
      %5819 = vmatpush2.bf16.msra.mxu0 %v5744
      %5820 = vmatprep.subr.bf16.mxu0 0
      %5821 = vmatpush2.bf16.msra.mxu0 %v5743
      %5822 = vmatprep.subr.bf16.mxu0 0
      %5823 = vmatpush2.bf16.msra.mxu0 %v5742
      %5824 = vmatprep.subr.bf16.mxu0 0
      %5825 = vmatpush2.bf16.msra.mxu0 %v5741
      %5826 = vmatprep.subr.bf16.mxu0 0
      %5827 = vmatpush2.bf16.msra.mxu0 %v5740
      %5828 = vmatprep.mubr.bf16.mxu0 %v2515
      %5829 = vmatmul.mubr.bf16.gmra.mxu0 %v2514
      %v5830 = vpop.f32.mrf.mxu0
      %v5831 = vadd.f32 0.0, %v5830
      %v5832 = vpop.f32.mrf.mxu0
      %v5833 = vpop.f32.mrf.mxu0
      %v5834 = vadd.f32 0.0, %v5833
      %v5835 = vpop.f32.mrf.mxu0
      %5836 = vmatprep.mubr.bf16.mxu0 %v2519
      %5837 = vmatmul.mubr.bf16.gmra.mxu0 %v2518
      %v5838 = vpop.f32.mrf.mxu0
      %v5839 = vadd.f32 0.0, %v5838
      %v5840 = vpop.f32.mrf.mxu0
      %v5841 = vpop.f32.mrf.mxu0
      %v5842 = vadd.f32 0.0, %v5841
      %v5843 = vpop.f32.mrf.mxu0
      %5844 = vmatprep.mubr.bf16.mxu0 %v2523
      %5845 = vmatmul.mubr.bf16.gmra.mxu0 %v2522
      %v5846 = vpop.f32.mrf.mxu0
      %v5847 = vadd.f32 0.0, %v5846
      %v5848 = vpop.f32.mrf.mxu0
      %v5849 = vpop.f32.mrf.mxu0
      %v5850 = vadd.f32 0.0, %v5849
      %v5851 = vpop.f32.mrf.mxu0
      %5852 = vmatprep.mubr.bf16.mxu0 %v2527
      %5853 = vmatmul.mubr.bf16.gmra.mxu0 %v2526
      %v5854 = vpop.f32.mrf.mxu0
      %v5855 = vadd.f32 0.0, %v5854
      %v5856 = vpop.f32.mrf.mxu0
      %v5857 = vpop.f32.mrf.mxu0
      %v5858 = vadd.f32 0.0, %v5857
      %v5859 = vpop.f32.mrf.mxu0
      %5860 = vmatprep.mubr.bf16.mxu0 %v2531
      %5861 = vmatmul.mubr.bf16.gmra.mxu0 %v2530
      %v5862 = vpop.f32.mrf.mxu0
      %v5863 = vadd.f32 0.0, %v5862
      %v5864 = vpop.f32.mrf.mxu0
      %v5865 = vpop.f32.mrf.mxu0
      %v5866 = vadd.f32 0.0, %v5865
      %v5867 = vpop.f32.mrf.mxu0
      %5868 = vmatprep.mubr.bf16.mxu0 %v2535
      %5869 = vmatmul.mubr.bf16.gmra.mxu0 %v2534
      %v5870 = vpop.f32.mrf.mxu0
      %v5871 = vadd.f32 0.0, %v5870
      %v5872 = vpop.f32.mrf.mxu0
      %v5873 = vpop.f32.mrf.mxu0
      %v5874 = vadd.f32 0.0, %v5873
      %v5875 = vpop.f32.mrf.mxu0
      %5876 = vmatprep.mubr.bf16.mxu0 %v4080
      %5877 = vmatmul.mubr.bf16.gmra.mxu0 %v4079
      %v5878 = vpop.f32.mrf.mxu0
      %v5879 = vadd.f32 0.0, %v5878
      %v5880 = vpop.f32.mrf.mxu0
      %v5881 = vpop.f32.mrf.mxu0
      %v5882 = vadd.f32 0.0, %v5881
      %v5883 = vpop.f32.mrf.mxu0
      %5884 = vmatprep.mubr.bf16.mxu0 %v5597
      %5885 = vmatmul.mubr.bf16.gmra.mxu0 %v5596
      %v5886 = vpop.f32.mrf.mxu0
      %v5887 = vadd.f32 0.0, %v5886
      %v5888 = vpop.f32.mrf.mxu0
      %v5889 = vpop.f32.mrf.mxu0
      %v5890 = vadd.f32 0.0, %v5889
      %v5891 = vpop.f32.mrf.mxu0
      %5892 = vdwg.mxu0
      %5893 = vmatprep.subr.bf16.mxu0 0
      %5894 = vmatpush1.bf16.msra.mxu0 %v5755
      %5895 = vmatprep.subr.bf16.mxu0 0
      %5896 = vmatpush1.bf16.msra.mxu0 %v5754
      %5897 = vmatprep.subr.bf16.mxu0 0
      %5898 = vmatpush1.bf16.msra.mxu0 %v5753
      %5899 = vmatprep.subr.bf16.mxu0 0
      %5900 = vmatpush1.bf16.msra.mxu0 %v5752
      %5901 = vmatprep.subr.bf16.mxu0 0
      %5902 = vmatpush1.bf16.msra.mxu0 %v5751
      %5903 = vmatprep.subr.bf16.mxu0 0
      %5904 = vmatpush1.bf16.msra.mxu0 %v5750
      %5905 = vmatprep.subr.bf16.mxu0 0
      %5906 = vmatpush1.bf16.msra.mxu0 %v5749
      %5907 = vmatprep.subr.bf16.mxu0 0
      %5908 = vmatpush1.bf16.msra.mxu0 %v5748
      %5909 = vmatprep.subr.bf16.mxu0 0
      %5910 = vmatpush2.bf16.msra.mxu0 %v5763
      %5911 = vmatprep.subr.bf16.mxu0 0
      %5912 = vmatpush2.bf16.msra.mxu0 %v5762
      %5913 = vmatprep.subr.bf16.mxu0 0
      %5914 = vmatpush2.bf16.msra.mxu0 %v5761
      %5915 = vmatprep.subr.bf16.mxu0 0
      %5916 = vmatpush2.bf16.msra.mxu0 %v5760
      %5917 = vmatprep.subr.bf16.mxu0 0
      %5918 = vmatpush2.bf16.msra.mxu0 %v5759
      %5919 = vmatprep.subr.bf16.mxu0 0
      %5920 = vmatpush2.bf16.msra.mxu0 %v5758
      %5921 = vmatprep.subr.bf16.mxu0 0
      %5922 = vmatpush2.bf16.msra.mxu0 %v5757
      %5923 = vmatprep.subr.bf16.mxu0 0
      %5924 = vmatpush2.bf16.msra.mxu0 %v5756
      %5925 = vmatprep.mubr.bf16.mxu0 %v2517
      %5926 = vmatmul.mubr.bf16.gmra.mxu0 %v2516
      %v5927 = vpop.f32.mrf.mxu0
      %v5928 = vadd.f32 %v5831, %v5927
      %v5929 = vpop.f32.mrf.mxu0
      %v5930 = vpop.f32.mrf.mxu0
      %v5931 = vadd.f32 %v5834, %v5930
      %v5932 = vpop.f32.mrf.mxu0
      %5933 = vmatprep.mubr.bf16.mxu0 %v2521
      %5934 = vmatmul.mubr.bf16.gmra.mxu0 %v2520
      %v5935 = vpop.f32.mrf.mxu0
      %v5936 = vadd.f32 %v5839, %v5935
      %v5937 = vpop.f32.mrf.mxu0
      %v5938 = vpop.f32.mrf.mxu0
      %v5939 = vadd.f32 %v5842, %v5938
      %v5940 = vpop.f32.mrf.mxu0
      %5941 = vmatprep.mubr.bf16.mxu0 %v2525
      %5942 = vmatmul.mubr.bf16.gmra.mxu0 %v2524
      %v5943 = vpop.f32.mrf.mxu0
      %v5944 = vadd.f32 %v5847, %v5943
      %v5945 = vpop.f32.mrf.mxu0
      %v5946 = vpop.f32.mrf.mxu0
      %v5947 = vadd.f32 %v5850, %v5946
      %v5948 = vpop.f32.mrf.mxu0
      %5949 = vmatprep.mubr.bf16.mxu0 %v2529
      %5950 = vmatmul.mubr.bf16.gmra.mxu0 %v2528
      %v5951 = vpop.f32.mrf.mxu0
      %v5952 = vadd.f32 %v5855, %v5951
      %v5953 = vpop.f32.mrf.mxu0
      %v5954 = vpop.f32.mrf.mxu0
      %v5955 = vadd.f32 %v5858, %v5954
      %v5956 = vpop.f32.mrf.mxu0
      %5957 = vmatprep.mubr.bf16.mxu0 %v2533
      %5958 = vmatmul.mubr.bf16.gmra.mxu0 %v2532
      %v5959 = vpop.f32.mrf.mxu0
      %v5960 = vadd.f32 %v5863, %v5959
      %v5961 = vpop.f32.mrf.mxu0
      %v5962 = vpop.f32.mrf.mxu0
      %v5963 = vadd.f32 %v5866, %v5962
      %v5964 = vpop.f32.mrf.mxu0
      %5965 = vmatprep.mubr.bf16.mxu0 %v2537
      %5966 = vmatmul.mubr.bf16.gmra.mxu0 %v2536
      %v5967 = vpop.f32.mrf.mxu0
      %v5968 = vadd.f32 %v5871, %v5967
      %v5969 = vpop.f32.mrf.mxu0
      %v5970 = vpop.f32.mrf.mxu0
      %v5971 = vadd.f32 %v5874, %v5970
      %v5972 = vpop.f32.mrf.mxu0
      %5973 = vmatprep.mubr.bf16.mxu0 %v4082
      %5974 = vmatmul.mubr.bf16.gmra.mxu0 %v4081
      %v5975 = vpop.f32.mrf.mxu0
      %v5976 = vadd.f32 %v5879, %v5975
      %v5977 = vpop.f32.mrf.mxu0
      %v5978 = vpop.f32.mrf.mxu0
      %v5979 = vadd.f32 %v5882, %v5978
      %v5980 = vpop.f32.mrf.mxu0
      %5981 = vmatprep.mubr.bf16.mxu0 %v5599
      %5982 = vmatmul.mubr.bf16.gmra.mxu0 %v5598
      %v5983 = vpop.f32.mrf.mxu0
      %v5984 = vadd.f32 %v5887, %v5983
      %v5985 = vpop.f32.mrf.mxu0
      %v5986 = vpop.f32.mrf.mxu0
      %v5987 = vadd.f32 %v5890, %v5986
      %v5988 = vpop.f32.mrf.mxu0
      %5989 = vdwg.mxu0
      %v5990 = vadd.f32 %v5491, %v5928
      %v5991 = vadd.f32 %v5492, %v5931
      %v5992 = vadd.f32 %v5493, %v5936
      %v5993 = vadd.f32 %v5494, %v5939
      %v5994 = vadd.f32 %v5495, %v5944
      %v5995 = vadd.f32 %v5496, %v5947
      %v5996 = vadd.f32 %v5497, %v5952
      %v5997 = vadd.f32 %v5498, %v5955
      %v5998 = vadd.f32 %v5499, %v5960
      %v5999 = vadd.f32 %v5500, %v5963
      %v6000 = vadd.f32 %v5501, %v5968
      %v6001 = vadd.f32 %v5502, %v5971
      %v6002 = vadd.f32 %v5503, %v5976
      %v6003 = vadd.f32 %v5504, %v5979
      %v6004 = vadd.f32 %v5505, %v5984
      %v6005 = vadd.f32 %v5506, %v5987
      %v6006 = vld [vmem:[%s2] sm:$0x1]
      %v6008 = vlaneseq
      %v6009 = vshrl.u32 %v6008, 7
      %v6010 = vsub.s32 0, %v6009
      %v6011 = vrot.slane %v6006, %v6010
      %v6013 = vadd.f32 %v5990, %v6011
      %v6014 = vadd.f32 %v5991, %v6011
      %v6015 = vadd.f32 %v5992, %v6011
      %v6016 = vadd.f32 %v5993, %v6011
      %v6017 = vadd.f32 %v5994, %v6011
      %v6018 = vadd.f32 %v5995, %v6011
      %v6019 = vadd.f32 %v5996, %v6011
      %v6020 = vadd.f32 %v5997, %v6011
      %v6021 = vadd.f32 %v5998, %v6011
      %v6022 = vadd.f32 %v5999, %v6011
      %v6023 = vadd.f32 %v6000, %v6011
      %v6024 = vadd.f32 %v6001, %v6011
      %v6025 = vadd.f32 %v6002, %v6011
      %v6026 = vadd.f32 %v6003, %v6011
      %v6027 = vadd.f32 %v6004, %v6011
      %v6028 = vadd.f32 %v6005, %v6011
      %v6029 = vld [vmem:[%s3] sm:$0x1]
      %v6031 = vlaneseq
      %v6032 = vshrl.u32 %v6031, 7
      %v6033 = vsub.s32 0, %v6032
      %v6034 = vrot.slane %v6029, %v6033
      %v6036 = vmul.f32 %v6013, %v6034
      %v6037 = vmul.f32 %v6014, %v6034
      %v6038 = vmul.f32 %v6015, %v6034
      %v6039 = vmul.f32 %v6016, %v6034
      %v6040 = vmul.f32 %v6017, %v6034
      %v6041 = vmul.f32 %v6018, %v6034
      %v6042 = vmul.f32 %v6019, %v6034
      %v6043 = vmul.f32 %v6020, %v6034
      %v6044 = vmul.f32 %v6021, %v6034
      %v6045 = vmul.f32 %v6022, %v6034
      %v6046 = vmul.f32 %v6023, %v6034
      %v6047 = vmul.f32 %v6024, %v6034
      %v6048 = vmul.f32 %v6025, %v6034
      %v6049 = vmul.f32 %v6026, %v6034
      %v6050 = vmul.f32 %v6027, %v6034
      %v6051 = vmul.f32 %v6028, %v6034
      %v6052 = vadd.f32 %v6036, 2.0
      %v6053 = vadd.f32 %v6037, 2.0
      %v6054 = vadd.f32 %v6038, 2.0
      %v6055 = vadd.f32 %v6039, 2.0
      %v6056 = vadd.f32 %v6040, 2.0
      %v6057 = vadd.f32 %v6041, 2.0
      %v6058 = vadd.f32 %v6042, 2.0
      %v6059 = vadd.f32 %v6043, 2.0
      %v6060 = vadd.f32 %v6044, 2.0
      %v6061 = vadd.f32 %v6045, 2.0
      %v6062 = vadd.f32 %v6046, 2.0
      %v6063 = vadd.f32 %v6047, 2.0
      %v6064 = vadd.f32 %v6048, 2.0
      %v6065 = vadd.f32 %v6049, 2.0
      %v6066 = vadd.f32 %v6050, 2.0
      %v6067 = vadd.f32 %v6051, 2.0
      %v6068 = vsub.f32 0.0, %v6052
      %v6069 = vsub.f32 0.0, %v6053
      %v6070 = vsub.f32 0.0, %v6054
      %v6071 = vsub.f32 0.0, %v6055
      %v6072 = vsub.f32 0.0, %v6056
      %v6073 = vsub.f32 0.0, %v6057
      %v6074 = vsub.f32 0.0, %v6058
      %v6075 = vsub.f32 0.0, %v6059
      %v6076 = vsub.f32 0.0, %v6060
      %v6077 = vsub.f32 0.0, %v6061
      %v6078 = vsub.f32 0.0, %v6062
      %v6079 = vsub.f32 0.0, %v6063
      %v6080 = vsub.f32 0.0, %v6064
      %v6081 = vsub.f32 0.0, %v6065
      %v6082 = vsub.f32 0.0, %v6066
      %v6083 = vsub.f32 0.0, %v6067
      %v6084 = vmul.f32 %v6068, 1.442695
      %v6085 = vpow.pop %v6084
      %v6086 = vmul.f32 %v6069, 1.442695
      %v6087 = vpow.pop %v6086
      %v6088 = vmul.f32 %v6070, 1.442695
      %v6089 = vpow.pop %v6088
      %v6090 = vmul.f32 %v6071, 1.442695
      %v6091 = vpow.pop %v6090
      %v6092 = vmul.f32 %v6072, 1.442695
      %v6093 = vpow.pop %v6092
      %v6094 = vmul.f32 %v6073, 1.442695
      %v6095 = vpow.pop %v6094
      %v6096 = vmul.f32 %v6074, 1.442695
      %v6097 = vpow.pop %v6096
      %v6098 = vmul.f32 %v6075, 1.442695
      %v6099 = vpow.pop %v6098
      %v6100 = vmul.f32 %v6076, 1.442695
      %v6101 = vpow.pop %v6100
      %v6102 = vmul.f32 %v6077, 1.442695
      %v6103 = vpow.pop %v6102
      %v6104 = vmul.f32 %v6078, 1.442695
      %v6105 = vpow.pop %v6104
      %v6106 = vmul.f32 %v6079, 1.442695
      %v6107 = vpow.pop %v6106
      %v6108 = vmul.f32 %v6080, 1.442695
      %v6109 = vpow.pop %v6108
      %v6110 = vmul.f32 %v6081, 1.442695
      %v6111 = vpow.pop %v6110
      %v6112 = vmul.f32 %v6082, 1.442695
      %v6113 = vpow.pop %v6112
      %v6114 = vmul.f32 %v6083, 1.442695
      %v6115 = vpow.pop %v6114
      %v6116 = vadd.f32 %v6085, 1.0
      %v6117 = vadd.f32 %v6087, 1.0
      %v6118 = vadd.f32 %v6089, 1.0
      %v6119 = vadd.f32 %v6091, 1.0
      %v6120 = vadd.f32 %v6093, 1.0
      %v6121 = vadd.f32 %v6095, 1.0
      %v6122 = vadd.f32 %v6097, 1.0
      %v6123 = vadd.f32 %v6099, 1.0
      %v6124 = vadd.f32 %v6101, 1.0
      %v6125 = vadd.f32 %v6103, 1.0
      %v6126 = vadd.f32 %v6105, 1.0
      %v6127 = vadd.f32 %v6107, 1.0
      %v6128 = vadd.f32 %v6109, 1.0
      %v6129 = vadd.f32 %v6111, 1.0
      %v6130 = vadd.f32 %v6113, 1.0
      %v6131 = vadd.f32 %v6115, 1.0
      %v6132 = vrcp.pop %v6116
      %v6133 = vmul.f32 1.0, %v6132
      %v6134 = vrcp.pop %v6117
      %v6135 = vmul.f32 1.0, %v6134
      %v6136 = vrcp.pop %v6118
      %v6137 = vmul.f32 1.0, %v6136
      %v6138 = vrcp.pop %v6119
      %v6139 = vmul.f32 1.0, %v6138
      %v6140 = vrcp.pop %v6120
      %v6141 = vmul.f32 1.0, %v6140
      %v6142 = vrcp.pop %v6121
      %v6143 = vmul.f32 1.0, %v6142
      %v6144 = vrcp.pop %v6122
      %v6145 = vmul.f32 1.0, %v6144
      %v6146 = vrcp.pop %v6123
      %v6147 = vmul.f32 1.0, %v6146
      %v6148 = vrcp.pop %v6124
      %v6149 = vmul.f32 1.0, %v6148
      %v6150 = vrcp.pop %v6125
      %v6151 = vmul.f32 1.0, %v6150
      %v6152 = vrcp.pop %v6126
      %v6153 = vmul.f32 1.0, %v6152
      %v6154 = vrcp.pop %v6127
      %v6155 = vmul.f32 1.0, %v6154
      %v6156 = vrcp.pop %v6128
      %v6157 = vmul.f32 1.0, %v6156
      %v6158 = vrcp.pop %v6129
      %v6159 = vmul.f32 1.0, %v6158
      %v6160 = vrcp.pop %v6130
      %v6161 = vmul.f32 1.0, %v6160
      %v6162 = vrcp.pop %v6131
      %v6163 = vmul.f32 1.0, %v6162
      %v6164 = vld [vmem:[%s230] sm:$0xff]
      %v6165 = vld [vmem:[%s230 + $0x8] sm:$0xff]
      %v6166 = vld [vmem:[%s230 + $0x10] sm:$0xff]
      %v6167 = vld [vmem:[%s230 + $0x18] sm:$0xff]
      %v6168 = vld [vmem:[%s230 + $0x20] sm:$0xff]
      %v6169 = vld [vmem:[%s230 + $0x28] sm:$0xff]
      %v6170 = vld [vmem:[%s230 + $0x30] sm:$0xff]
      %v6171 = vld [vmem:[%s230 + $0x38] sm:$0xff]
      %v6172 = vld [vmem:[%s230 + $0x40] sm:$0xff]
      %v6173 = vld [vmem:[%s230 + $0x48] sm:$0xff]
      %v6174 = vld [vmem:[%s230 + $0x50] sm:$0xff]
      %v6175 = vld [vmem:[%s230 + $0x58] sm:$0xff]
      %v6176 = vld [vmem:[%s230 + $0x60] sm:$0xff]
      %v6177 = vld [vmem:[%s230 + $0x68] sm:$0xff]
      %v6178 = vld [vmem:[%s230 + $0x70] sm:$0xff]
      %v6179 = vld [vmem:[%s230 + $0x78] sm:$0xff]
      %v6180 = vadd.f32 %v6164, %v6036
      %v6181 = vadd.f32 %v6165, %v6037
      %v6182 = vadd.f32 %v6166, %v6038
      %v6183 = vadd.f32 %v6167, %v6039
      %v6184 = vadd.f32 %v6168, %v6040
      %v6185 = vadd.f32 %v6169, %v6041
      %v6186 = vadd.f32 %v6170, %v6042
      %v6187 = vadd.f32 %v6171, %v6043
      %v6188 = vadd.f32 %v6172, %v6044
      %v6189 = vadd.f32 %v6173, %v6045
      %v6190 = vadd.f32 %v6174, %v6046
      %v6191 = vadd.f32 %v6175, %v6047
      %v6192 = vadd.f32 %v6176, %v6048
      %v6193 = vadd.f32 %v6177, %v6049
      %v6194 = vadd.f32 %v6178, %v6050
      %v6195 = vadd.f32 %v6179, %v6051
      %6212 = vrot.lane.b32.xlu0 %v6133, 2
      %v6213 = vpop.permute.xlu0 %6212
      %6214 = vrot.lane.b32.xlu0 %v6135, 2
      %v6215 = vpop.permute.xlu0 %6214
      %6216 = vrot.lane.b32.xlu0 %v6137, 2
      %v6217 = vpop.permute.xlu0 %6216
      %6218 = vrot.lane.b32.xlu0 %v6139, 2
      %v6219 = vpop.permute.xlu0 %6218
      %6220 = vrot.lane.b32.xlu0 %v6141, 2
      %v6221 = vpop.permute.xlu0 %6220
      %6222 = vrot.lane.b32.xlu0 %v6143, 2
      %v6223 = vpop.permute.xlu0 %6222
      %6224 = vrot.lane.b32.xlu0 %v6145, 2
      %v6225 = vpop.permute.xlu0 %6224
      %6226 = vrot.lane.b32.xlu0 %v6147, 2
      %v6227 = vpop.permute.xlu0 %6226
      %6228 = vrot.lane.b32.xlu0 %v6149, 2
      %v6229 = vpop.permute.xlu0 %6228
      %6230 = vrot.lane.b32.xlu0 %v6151, 2
      %v6231 = vpop.permute.xlu0 %6230
      %6232 = vrot.lane.b32.xlu0 %v6153, 2
      %v6233 = vpop.permute.xlu0 %6232
      %6234 = vrot.lane.b32.xlu0 %v6155, 2
      %v6235 = vpop.permute.xlu0 %6234
      %6236 = vrot.lane.b32.xlu0 %v6157, 2
      %v6237 = vpop.permute.xlu0 %6236
      %6238 = vrot.lane.b32.xlu0 %v6159, 2
      %v6239 = vpop.permute.xlu0 %6238
      %6240 = vrot.lane.b32.xlu0 %v6161, 2
      %v6241 = vpop.permute.xlu0 %6240
      %6242 = vrot.lane.b32.xlu0 %v6163, 2
      %v6243 = vpop.permute.xlu0 %6242
      %v6260 = vmul.f32 %v6180, %v6213
      %v6261 = vmul.f32 %v6181, %v6215
      %v6262 = vmul.f32 %v6182, %v6217
      %v6263 = vmul.f32 %v6183, %v6219
      %v6264 = vmul.f32 %v6184, %v6221
      %v6265 = vmul.f32 %v6185, %v6223
      %v6266 = vmul.f32 %v6186, %v6225
      %v6267 = vmul.f32 %v6187, %v6227
      %v6268 = vmul.f32 %v6188, %v6229
      %v6269 = vmul.f32 %v6189, %v6231
      %v6270 = vmul.f32 %v6190, %v6233
      %v6271 = vmul.f32 %v6191, %v6235
      %v6272 = vmul.f32 %v6192, %v6237
      %v6273 = vmul.f32 %v6193, %v6239
      %v6274 = vmul.f32 %v6194, %v6241
      %v6275 = vmul.f32 %v6195, %v6243
      %vm6276 = vcmask 15360
      %v6277 = vsel %vm6276, %v6164, %v6260
      %v6278 = vsel %vm6276, %v6165, %v6261
      %v6279 = vsel %vm6276, %v6166, %v6262
      %v6280 = vsel %vm6276, %v6167, %v6263
      %v6281 = vsel %vm6276, %v6168, %v6264
      %v6282 = vsel %vm6276, %v6169, %v6265
      %v6283 = vsel %vm6276, %v6170, %v6266
      %v6284 = vsel %vm6276, %v6171, %v6267
      %v6285 = vsel %vm6276, %v6172, %v6268
      %v6286 = vsel %vm6276, %v6173, %v6269
      %v6287 = vsel %vm6276, %v6174, %v6270
      %v6288 = vsel %vm6276, %v6175, %v6271
      %v6289 = vsel %vm6276, %v6176, %v6272
      %v6290 = vsel %vm6276, %v6177, %v6273
      %v6291 = vsel %vm6276, %v6178, %v6274
      %v6292 = vsel %vm6276, %v6179, %v6275
      %vm6293 = vcmask 31744
      %6294 = vst.msk [vmem:[%s241] sm:$0xff] %vm6293, %v6277
      %6295 = vst.msk [vmem:[%s241 + $0x8] sm:$0xff] %vm6293, %v6278
      %6296 = vst.msk [vmem:[%s241 + $0x10] sm:$0xff] %vm6293, %v6279
      %6297 = vst.msk [vmem:[%s241 + $0x18] sm:$0xff] %vm6293, %v6280
      %6298 = vst.msk [vmem:[%s241 + $0x20] sm:$0xff] %vm6293, %v6281
      %6299 = vst.msk [vmem:[%s241 + $0x28] sm:$0xff] %vm6293, %v6282
      %6300 = vst.msk [vmem:[%s241 + $0x30] sm:$0xff] %vm6293, %v6283
      %6301 = vst.msk [vmem:[%s241 + $0x38] sm:$0xff] %vm6293, %v6284
      %6302 = vst.msk [vmem:[%s241 + $0x40] sm:$0xff] %vm6293, %v6285
      %6303 = vst.msk [vmem:[%s241 + $0x48] sm:$0xff] %vm6293, %v6286
      %6304 = vst.msk [vmem:[%s241 + $0x50] sm:$0xff] %vm6293, %v6287
      %6305 = vst.msk [vmem:[%s241 + $0x58] sm:$0xff] %vm6293, %v6288
      %6306 = vst.msk [vmem:[%s241 + $0x60] sm:$0xff] %vm6293, %v6289
      %6307 = vst.msk [vmem:[%s241 + $0x68] sm:$0xff] %vm6293, %v6290
      %6308 = vst.msk [vmem:[%s241 + $0x70] sm:$0xff] %vm6293, %v6291
      %6309 = vst.msk [vmem:[%s241 + $0x78] sm:$0xff] %vm6293, %v6292
      %s6310 = smul.u32 8, %s21
      %p6311 = scmp.lt.s32.totalorder %s20, 1
      %s6312 = scalar_select %p6311, %s20, 1
      %p6313 = scmp.lt.s32.totalorder %s6310, 15
      %s6314 = scalar_select %p6313, %s6310, 15
      %s6315 = smul.addr %s6314, 2
      %s6316 = smul.addr %s6312, 32
      %s6317 = sadd.s32 %s6315, %s6316
      %s6318 = smul.addr %s6317, 8
      %s6319 = scalar_lea.vmem %s5, %s6318
      // Predicated region
      $region113: #{flow_forward.7} parent=35 // pred_check
        %p6320 = pneg %p139
      $region114: #{flow_forward.7} parent=35 // pred_check_branch
        %6322 = sbr.rel (%p6320) target = $region116
      $region115: #{flow_forward.7} parent=35 // pred_region
        %s6323 = smul.u32 8, %s21
      $region116: #{flow_forward.7} parent=35 // pred_fallthru
        _
    $region36: #{flow_forward.7} parent=5 // pred_fallthru
      _
    %p6324 = scmp.le.s32.totalorder 2, %s11
    // Predicated region
    $region117: #{flow_forward.7} parent=5 // pred_check
      %p6325 = pneg %p6324
    $region118: #{flow_forward.7} parent=5 // pred_check_branch
      %6327 = sbr.rel (%p6325) target = $region120
    $region119: #{flow_forward.7} parent=5 // pred_region
      %s6328 = ssub.s32 %s11, 2
      // Predicated region
      $region121: #{flow_forward.7} parent=119 // pred_check
        %p6329 = pneg %p145
      $region122: #{flow_forward.7} parent=119 // pred_check_branch
        %6331 = sbr.rel (%p6329) target = $region124
      $region123: #{flow_forward.7} parent=119 // pred_region
        %s6332 = smul.u32 8, %s23
        %p6333 = scmp.lt.s32.totalorder %s22, 1
        %s6334 = scalar_select %p6333, %s22, 1
        %p6335 = scmp.lt.s32.totalorder %s6332, 15
        %s6336 = scalar_select %p6335, %s6332, 15
        %s6337 = smul.addr %s6336, 2
        %s6338 = smul.addr %s6334, 32
        %s6339 = sadd.s32 %s6337, %s6338
        %s6340 = smul.addr %s6339, 8
        %s6341 = scalar_lea.vmem %s5, %s6340
      $region124: #{flow_forward.7} parent=119 // pred_fallthru
        _
    $region120: #{flow_forward.7} parent=5 // pred_fallthru
      _
  $region6: #{flow_forward.7} parent=0 // loop_footer
    %s15 = sadd.s32 1, %s11
  $region7: #{flow_forward.7} parent=0 // loop_footer_branch
    %10 = sbr.rel target = $region3
  $region8: #{flow_forward.7} parent=0 // loop_exit
    _
  %6342 = vsyncmov [#allocation3]
  %s6343 = vpop.sfrf %6342
  %p6344 = scmp.eq.s32.totalorder %s6343, 0
  %p6345 = pneg %p6344
  %6347 = shalt.err (%p6345)
  %s6348 = scalar_lea.sflag [#allocation3], 1
  %6349 = vsyncmov %s6348
  %s6350 = vpop.sfrf %6349
  %p6351 = scmp.eq.s32.totalorder %s6350, 0
  %p6352 = pneg %p6351
  %6354 = shalt.err (%p6352)

</llo_original>
